<compile_context>
chip_gen: v7x
topology: tpu7x:2x2x1
jax: 0.10.0
libtpu: 0.0.40
codegen_flags: <defaults>
</compile_context>

<pallas_src>
import functools

import jax
import jax.numpy as jnp
from jax import lax
from jax.experimental import pallas as pl
from jax.experimental.pallas import tpu as pltpu


# ----------------------------------------------------------------------------
# Fused kernel: pad -> 81-tap im2col -> one matmul (all 4 branches) -> SE
# heads -> branch softmax -> reweight -> single store.
# ----------------------------------------------------------------------------
def _psa_fused_kernel(x_ref, w_ref, fc1w_ref, fc1b_ref, fc2w_ref, fc2b_ref,
                      out_ref, xpad_sc, *, k_max):
    """One grid step == one batch element.

    x_ref   : (H, W, Cin)            unpadded input tile (compute dtype)
    w_ref   : (k_max^2*Cin, 4C)      fused im2col weight, columns ordered
                                     branch4..branch1 (compute dtype)
    fc1w_ref: (C, Cr)   fc1b_ref: (1, Cr)     (f32)
    fc2w_ref: (Cr, C)   fc2b_ref: (1, C)      (f32)
    out_ref : (H, W, 4C)             output tile (f32)
    xpad_sc : (H+2P, W+2P, Cin)      padded-input scratch (compute dtype)
    """
    H, W, Cin = x_ref.shape
    C4 = out_ref.shape[-1]
    C = C4 // 4
    P = k_max // 2
    HW = H * W

    # Padding folded into the kernel: zero the (small) padded scratch, then
    # drop the unpadded block into its interior.  Zeroing every grid step
    # keeps this correct under megacore grid sharding and costs only ~KBs.
    xpad_sc[...] = jnp.zeros_like(xpad_sc)
    xpad_sc[P:P + H, P:P + W, :] = x_ref[...]

    # Load the padded tile ONCE (stays in the compute dtype - no f32 round
    # trip) and build the 81-tap im2col patch matrix ONCE for all 4 branches.
    xp = xpad_sc[...]
    taps = []
    for kh in range(k_max):
        for kw in range(k_max):
            taps.append(xp[kh:kh + H, kw:kw + W, :])
    # TODO(synk): for Cin >= 128 drop im2col and accumulate per-tap dots
    # (contraction=Cin) into an f32 accumulator instead; the Cin-offset lane
    # concat below only pays off at small Cin where the deep fused contraction
    # keeps the MXU busy.
    patches = jnp.concatenate(taps, axis=-1).reshape(HW, k_max * k_max * Cin)

    # One wide MXU matmul for all 4 branches (columns already in the final
    # branch4..branch1 concat order; zero-padded tap rows of smaller kernels
    # contribute exact zeros).
    y = jnp.dot(patches, w_ref[...], preferred_element_type=jnp.float32)

    # SE heads, all f32 on VPU/EUP: per-branch global avg pool -> fc1 -> ReLU
    # -> fc2 -> sigmoid.  The fc hidden dim is tiny, so broadcast+reduce
    # instead of degenerate MXU matmuls.
    fc1w = fc1w_ref[...]
    fc1b = fc1b_ref[...]
    fc2w = fc2w_ref[...]
    fc2b = fc2b_ref[...]
    pooled_all = jnp.mean(y, axis=0, keepdims=True)                 # (1, 4C)
    logits = []
    for s in range(4):
        pooled = pooled_all[:, s * C:(s + 1) * C]                   # (1, C)
        h = jnp.sum(pooled[:, :, None] * fc1w[None, :, :], axis=1) + fc1b
        h = jnp.maximum(h, 0.0)                                     # (1, Cr)
        t = jnp.sum(h[:, :, None] * fc2w[None, :, :], axis=1) + fc2b
        logits.append(jax.nn.sigmoid(t))                            # (1, C)

    # Softmax over the 4 branches (per channel), f32, attention laid out in
    # the same slot order as y's columns.
    m = jnp.maximum(jnp.maximum(logits[0], logits[1]),
                    jnp.maximum(logits[2], logits[3]))
    e = [jnp.exp(t - m) for t in logits]
    denom = e[0] + e[1] + e[2] + e[3]
    att_full = jnp.concatenate([ei / denom for ei in e], axis=-1)   # (1, 4C)

    # Reweight and store the whole tile in one go (no y_sc round trip).
    # TODO(synk): 4C < 128 at these shapes so this store is lane-masked; for
    # production sizes present the output lane-dense (e.g. transpose to
    # (4C, H*W) in-kernel, which also yields NCHW output directly).
    out_ref[...] = (y * att_full).reshape(H, W, C4).astype(out_ref.dtype)


# ----------------------------------------------------------------------------
# One-time parameter preparation (hoisted out of the forward path)
# ----------------------------------------------------------------------------
def _branch_weight_im2col(w, groups, inplans, k_max):
    """(Cout, Cin//g, K, K) grouped weight -> (k_max^2*Cin, Cout) im2col weight
    spatially centered inside the k_max x k_max tap grid.

    Contraction index order is (kh, kw, cin), matching the in-kernel tap
    concatenation order.
    """
    Cout, in_pg, K, _ = w.shape
    out_pg = Cout // groups
    dense = jnp.zeros((Cout, inplans, K, K), w.dtype)
    for g in range(groups):
        dense = dense.at[g * out_pg:(g + 1) * out_pg,
                         g * in_pg:(g + 1) * in_pg].set(
                             w[g * out_pg:(g + 1) * out_pg])
    # TODO(synk): for large planes//4 and high group counts, replace the
    # block-diagonal zero-fill with per-group contractions in-kernel to avoid
    # groups x wasted MXU MACs / weight bytes.
    off = (k_max - K) // 2
    dense = jnp.pad(dense, ((0, 0), (0, 0),
                            (off, k_max - K - off), (off, k_max - K - off)))
    return jnp.transpose(dense, (2, 3, 1, 0)).reshape(k_max * k_max * inplans,
                                                      Cout)


def prepare_psa_params(branch_ws, se_params, conv_kernels, conv_groups,
                       inplans, compute_dtype=jnp.bfloat16):
    """Precompute kernel-ready weights (run once, not per forward call).

    bf16 MXU operands are the recommended setting on v5e, v6e and v7x alike;
    all SE / softmax / reweight elementwise math stays f32 in the kernel.
    """
    fc1_w, fc1_b, fc2_w, fc2_b = se_params
    k_max = max(int(k) for k in conv_kernels)
    # Final PyTorch concat order is branch4..branch1 -> reverse the branches
    # when concatenating output columns.
    cols = [_branch_weight_im2col(w, g, inplans, k_max)
            for w, _, g in reversed(list(zip(branch_ws, conv_kernels,
                                             conv_groups)))]
    w_fused = jnp.concatenate(cols, axis=1).astype(compute_dtype)
    return dict(
        w_fused=w_fused,                                   # (k_max^2*Cin, 4C)
        fc1w=jnp.transpose(fc1_w).astype(jnp.float32),     # (C, Cr)
        fc1b=fc1_b[None, :].astype(jnp.float32),           # (1, Cr)
        fc2w=jnp.transpose(fc2_w).astype(jnp.float32),     # (Cr, C)
        fc2b=fc2_b[None, :].astype(jnp.float32),           # (1, C)
    )


# ----------------------------------------------------------------------------
# Forward wrappers
# ----------------------------------------------------------------------------
def psa_forward_pallas_nhwc(x_nhwc, params):
    """PSAModule.forward, NHWC in / NHWC out (recommended deployment path:
    no layout transposes anywhere)."""
    w_fused = params["w_fused"]
    fc1w, fc1b = params["fc1w"], params["fc1b"]
    fc2w, fc2b = params["fc2w"], params["fc2b"]

    B, H, W, Cin = x_nhwc.shape
    KKCin, C4 = w_fused.shape
    k_max = int(round((KKCin // Cin) ** 0.5))
    P = k_max // 2
    compute_dtype = w_fused.dtype
    x = x_nhwc.astype(compute_dtype)

    def full_spec(a):
        return pl.BlockSpec(a.shape, lambda b: (0,) * a.ndim)

    itemsize = jnp.dtype(compute_dtype).itemsize
    vmem_est = (2 * H * W * Cin * itemsize            # input block (dbl buf)
                + 2 * H * W * C4 * 4                  # output block (dbl buf)
                + 2 * KKCin * C4 * itemsize           # fused weight
                + (H + 2 * P) * (W + 2 * P) * Cin * itemsize   # pad scratch
                + 3 * H * W * KKCin * itemsize)       # patches + temporaries
    vmem_limit = int(min(max(2 * vmem_est, 32 * 1024 * 1024),
                         64 * 1024 * 1024))           # <= v7x physical VMEM

    # TODO(synk): for large H*W add a row-block grid axis (halo via manual
    # DMA) so the 81-tap patch buffer fits v7x's 64 MiB VMEM and its 2
    # TensorCores get work even at B=1.
    # TODO(synk): on VMEM-tight targets mark the constant-index weight specs
    # pipeline_mode=pl.Buffered(1) to drop their second buffer.
    return pl.pallas_call(
        functools.partial(_psa_fused_kernel, k_max=k_max),
        out_shape=jax.ShapeDtypeStruct((B, H, W, C4), jnp.float32),
        grid=(B,),
        in_specs=[pl.BlockSpec((None, H, W, Cin), lambda b: (b, 0, 0, 0)),
                  full_spec(w_fused), full_spec(fc1w), full_spec(fc1b),
                  full_spec(fc2w), full_spec(fc2b)],
        out_specs=pl.BlockSpec((None, H, W, C4), lambda b: (b, 0, 0, 0)),
        scratch_shapes=[pltpu.VMEM((H + 2 * P, W + 2 * P, Cin),
                                   compute_dtype)],
        compiler_params=pltpu.CompilerParams(
            dimension_semantics=("parallel",),
            vmem_limit_bytes=vmem_limit),
    )(x, w_fused, fc1w, fc1b, fc2w, fc2b)


def psa_forward_pallas(x_nchw, params):
    """NCHW in / NCHW out wrapper for exact PyTorch parity.  The input
    transpose is fused with the bf16 cast into one XLA pass; keep NHWC
    end-to-end (psa_forward_pallas_nhwc) to avoid the output transpose."""
    compute_dtype = params["w_fused"].dtype
    x_nhwc = jnp.transpose(x_nchw, (0, 2, 3, 1)).astype(compute_dtype)
    out_nhwc = psa_forward_pallas_nhwc(x_nhwc, params)
    return jnp.transpose(out_nhwc, (0, 3, 1, 2))


# ----------------------------------------------------------------------------
# Pure-JAX reference (correctness check only)
# ----------------------------------------------------------------------------
def psa_forward_ref(x_nchw, branch_ws, se_params, conv_kernels, conv_groups):
    fc1_w, fc1_b, fc2_w, fc2_b = se_params
    outs, ses = [], []
    for w, k, g in zip(branch_ws, conv_kernels, conv_groups):
        y = lax.conv_general_dilated(
            x_nchw, w, window_strides=(1, 1),
            padding=[(k // 2, k // 2)] * 2,
            dimension_numbers=('NCHW', 'OIHW', 'NCHW'),
            feature_group_count=g)
        outs.append(y)
        pooled = jnp.mean(y, axis=(2, 3))                       # (B, C)
        h = jnp.maximum(pooled @ fc1_w.T + fc1_b, 0.0)
        ses.append(jax.nn.sigmoid(h @ fc2_w.T + fc2_b))
    feats = jnp.stack(outs, axis=1)                             # (B,4,C,H,W)
    att = jax.nn.softmax(jnp.stack(ses, axis=1), axis=1)        # (B,4,C)
    fw = feats * att[..., None, None]
    return jnp.concatenate([fw[:, 3], fw[:, 2], fw[:, 1], fw[:, 0]], axis=1)


# ----------------------------------------------------------------------------
# Deterministic parameter init (matches PyTorch __init__ shapes)
# ----------------------------------------------------------------------------
def make_params(key, inplans, planes, conv_kernels, conv_groups, reduction=16):
    C4 = planes // 4
    Cr = max(C4 // reduction, 1)
    keys = jax.random.split(key, 8)
    branch_ws = []
    for i, (k, g) in enumerate(zip(conv_kernels, conv_groups)):
        in_pg = inplans // g
        fan_in = in_pg * k * k
        w = jax.random.normal(keys[i], (C4, in_pg, k, k), jnp.float32)
        branch_ws.append(w * (1.0 / jnp.sqrt(fan_in)))
    fc1_w = jax.random.normal(keys[4], (Cr, C4), jnp.float32) / jnp.sqrt(C4)
    fc1_b = 0.1 * jax.random.normal(keys[5], (Cr,), jnp.float32)
    fc2_w = jax.random.normal(keys[6], (C4, Cr), jnp.float32) / jnp.sqrt(Cr)
    fc2_b = 0.1 * jax.random.normal(keys[7], (C4,), jnp.float32)
    return branch_ws, (fc1_w, fc1_b, fc2_w, fc2_b)


if __name__ == "__main__":
    # Small shapes consistent with the module's constraints:
    # inplans divisible by groups (1,4,8,16); planes//4 divisible by groups.
    B, inplans, H, W = 2, 16, 16, 16
    planes = 64
    conv_kernels = [3, 5, 7, 9]
    conv_groups = [1, 4, 8, 16]

    key = jax.random.PRNGKey(0)
    kx, kp = jax.random.split(key)
    x = jax.random.normal(kx, (B, inplans, H, W), jnp.float32)   # NCHW input
    branch_ws, se_params = make_params(kp, inplans, planes,
                                       conv_kernels, conv_groups)

    ref = jax.block_until_ready(
        psa_forward_ref(x, branch_ws, se_params, conv_kernels, conv_groups))

    fwd = jax.jit(psa_forward_pallas)

    # Exact path (f32 MXU operands): tight tolerance vs. the reference.
    params_f32 = prepare_psa_params(branch_ws, se_params, conv_kernels,
                                    conv_groups, inplans, jnp.float32)
    out_f32 = jax.block_until_ready(fwd(x, params_f32))
    assert out_f32.shape == (B, planes, H, W), out_f32.shape
    assert jnp.allclose(out_f32, ref, atol=1e-3, rtol=1e-3), (
        float(jnp.max(jnp.abs(out_f32 - ref))))

    # Recommended perf path (bf16 MXU operands on v5e/v6e/v7x; SE/softmax/
    # reweight stay f32): looser tolerance for bf16 rounding of conv operands.
    params_bf16 = prepare_psa_params(branch_ws, se_params, conv_kernels,
                                     conv_groups, inplans, jnp.bfloat16)
    out_bf16 = jax.block_until_ready(fwd(x, params_bf16))
    assert out_bf16.shape == (B, planes, H, W), out_bf16.shape
    assert jnp.allclose(out_bf16, ref, atol=5e-2, rtol=5e-2), (
        float(jnp.max(jnp.abs(out_bf16 - ref))))

    # NHWC end-to-end entry point (no layout transposes) also runs cleanly.
    out_nhwc = jax.block_until_ready(
        jax.jit(psa_forward_pallas_nhwc)(jnp.transpose(x, (0, 2, 3, 1)),
                                         params_bf16))
    assert out_nhwc.shape == (B, H, W, planes), out_nhwc.shape

    print("KERNEL_OK")
</pallas_src>

<mosaic_0001>
module attributes {stable_mosaic.version = 11 : i64} {
  func.func @_psa_fused_kernel(%arg0: i32, %arg1: memref<1x16x16x16xf32, #tpu.memory_space<vmem>>, %arg2: memref<1296x64xf32, #tpu.memory_space<vmem>>, %arg3: memref<16x1xf32, #tpu.memory_space<vmem>>, %arg4: memref<1x1xf32, #tpu.memory_space<vmem>>, %arg5: memref<1x16xf32, #tpu.memory_space<vmem>>, %arg6: memref<1x16xf32, #tpu.memory_space<vmem>>, %arg7: memref<1x16x16x64xf32, #tpu.memory_space<vmem>>, %arg8: memref<24x24x16xf32, #tpu.memory_space<vmem>>) attributes {dimension_semantics = [#tpu.dimension_semantics<parallel>], iteration_bounds = array<i64: 2>, scalar_prefetch = 0 : i64, scratch_operands = 1 : i64, tpu.core_type = #tpu.core_type<tc>, window_params = [{transform_indices = @transform_0, window_bounds = array<i64: 1, 16, 16, 16>}, {pipeline_mode = #tpu.pipeline_mode<synchronous>, transform_indices = @transform_1, window_bounds = array<i64: 1296, 64>}, {pipeline_mode = #tpu.pipeline_mode<synchronous>, transform_indices = @transform_2, window_bounds = array<i64: 16, 1>}, {pipeline_mode = #tpu.pipeline_mode<synchronous>, transform_indices = @transform_3, window_bounds = array<i64: 1, 1>}, {pipeline_mode = #tpu.pipeline_mode<synchronous>, transform_indices = @transform_4, window_bounds = array<i64: 1, 16>}, {pipeline_mode = #tpu.pipeline_mode<synchronous>, transform_indices = @transform_5, window_bounds = array<i64: 1, 16>}, {transform_indices = @transform_6, window_bounds = array<i64: 1, 16, 16, 64>}]} {
    %cst = arith.constant 0.000000e+00 : f32
    %0 = vector.broadcast %cst : f32 to vector<24x24x16xf32>
    %c0 = arith.constant 0 : index
    %c0_0 = arith.constant 0 : index
    %c0_1 = arith.constant 0 : index
    %1 = vector.load %arg8[%c0, %c0_0, %c0_1] : memref<24x24x16xf32, #tpu.memory_space<vmem>>, vector<24x24x16xf32>
    tpu.vector_store %arg8[%c0, %c0_0, %c0_1], %0 {strides = array<i32>} : memref<24x24x16xf32, #tpu.memory_space<vmem>>, vector<24x24x16xf32>,
    %c0_2 = arith.constant 0 : index
    %c0_3 = arith.constant 0 : index
    %c0_4 = arith.constant 0 : index
    %c0_5 = arith.constant 0 : index
    %2 = vector.load %arg1[%c0_2, %c0_3, %c0_4, %c0_5] : memref<1x16x16x16xf32, #tpu.memory_space<vmem>>, vector<1x16x16x16xf32>
    %3 = vector.shape_cast %2 : vector<1x16x16x16xf32> to vector<16x16x16xf32>
    %c4 = arith.constant 4 : index
    %c4_6 = arith.constant 4 : index
    %c0_7 = arith.constant 0 : index
    %4 = vector.load %arg8[%c4, %c4_6, %c0_7] : memref<24x24x16xf32, #tpu.memory_space<vmem>>, vector<16x16x16xf32>
    tpu.vector_store %arg8[%c4, %c4_6, %c0_7], %3 {strides = array<i32>} : memref<24x24x16xf32, #tpu.memory_space<vmem>>, vector<16x16x16xf32>,
    %c0_8 = arith.constant 0 : index
    %c0_9 = arith.constant 0 : index
    %c0_10 = arith.constant 0 : index
    %5 = vector.load %arg8[%c0_8, %c0_9, %c0_10] : memref<24x24x16xf32, #tpu.memory_space<vmem>>, vector<24x24x16xf32>
    %6 = vector.extract_strided_slice %5 {offsets = [0, 0, 0], sizes = [16, 16, 16], strides = [1, 1, 1]} : vector<24x24x16xf32> to vector<16x16x16xf32>
    %7 = vector.extract_strided_slice %5 {offsets = [0, 1, 0], sizes = [16, 16, 16], strides = [1, 1, 1]} : vector<24x24x16xf32> to vector<16x16x16xf32>
    %8 = vector.extract_strided_slice %5 {offsets = [0, 2, 0], sizes = [16, 16, 16], strides = [1, 1, 1]} : vector<24x24x16xf32> to vector<16x16x16xf32>
    %9 = vector.extract_strided_slice %5 {offsets = [0, 3, 0], sizes = [16, 16, 16], strides = [1, 1, 1]} : vector<24x24x16xf32> to vector<16x16x16xf32>
    %10 = vector.extract_strided_slice %5 {offsets = [0, 4, 0], sizes = [16, 16, 16], strides = [1, 1, 1]} : vector<24x24x16xf32> to vector<16x16x16xf32>
    %11 = vector.extract_strided_slice %5 {offsets = [0, 5, 0], sizes = [16, 16, 16], strides = [1, 1, 1]} : vector<24x24x16xf32> to vector<16x16x16xf32>
    %12 = vector.extract_strided_slice %5 {offsets = [0, 6, 0], sizes = [16, 16, 16], strides = [1, 1, 1]} : vector<24x24x16xf32> to vector<16x16x16xf32>
    %13 = vector.extract_strided_slice %5 {offsets = [0, 7, 0], sizes = [16, 16, 16], strides = [1, 1, 1]} : vector<24x24x16xf32> to vector<16x16x16xf32>
    %14 = vector.extract_strided_slice %5 {offsets = [0, 8, 0], sizes = [16, 16, 16], strides = [1, 1, 1]} : vector<24x24x16xf32> to vector<16x16x16xf32>
    %15 = vector.extract_strided_slice %5 {offsets = [1, 0, 0], sizes = [16, 16, 16], strides = [1, 1, 1]} : vector<24x24x16xf32> to vector<16x16x16xf32>
    %16 = vector.extract_strided_slice %5 {offsets = [1, 1, 0], sizes = [16, 16, 16], strides = [1, 1, 1]} : vector<24x24x16xf32> to vector<16x16x16xf32>
    %17 = vector.extract_strided_slice %5 {offsets = [1, 2, 0], sizes = [16, 16, 16], strides = [1, 1, 1]} : vector<24x24x16xf32> to vector<16x16x16xf32>
    %18 = vector.extract_strided_slice %5 {offsets = [1, 3, 0], sizes = [16, 16, 16], strides = [1, 1, 1]} : vector<24x24x16xf32> to vector<16x16x16xf32>
    %19 = vector.extract_strided_slice %5 {offsets = [1, 4, 0], sizes = [16, 16, 16], strides = [1, 1, 1]} : vector<24x24x16xf32> to vector<16x16x16xf32>
    %20 = vector.extract_strided_slice %5 {offsets = [1, 5, 0], sizes = [16, 16, 16], strides = [1, 1, 1]} : vector<24x24x16xf32> to vector<16x16x16xf32>
    %21 = vector.extract_strided_slice %5 {offsets = [1, 6, 0], sizes = [16, 16, 16], strides = [1, 1, 1]} : vector<24x24x16xf32> to vector<16x16x16xf32>
    %22 = vector.extract_strided_slice %5 {offsets = [1, 7, 0], sizes = [16, 16, 16], strides = [1, 1, 1]} : vector<24x24x16xf32> to vector<16x16x16xf32>
    %23 = vector.extract_strided_slice %5 {offsets = [1, 8, 0], sizes = [16, 16, 16], strides = [1, 1, 1]} : vector<24x24x16xf32> to vector<16x16x16xf32>
    %24 = vector.extract_strided_slice %5 {offsets = [2, 0, 0], sizes = [16, 16, 16], strides = [1, 1, 1]} : vector<24x24x16xf32> to vector<16x16x16xf32>
    %25 = vector.extract_strided_slice %5 {offsets = [2, 1, 0], sizes = [16, 16, 16], strides = [1, 1, 1]} : vector<24x24x16xf32> to vector<16x16x16xf32>
    %26 = vector.extract_strided_slice %5 {offsets = [2, 2, 0], sizes = [16, 16, 16], strides = [1, 1, 1]} : vector<24x24x16xf32> to vector<16x16x16xf32>
    %27 = vector.extract_strided_slice %5 {offsets = [2, 3, 0], sizes = [16, 16, 16], strides = [1, 1, 1]} : vector<24x24x16xf32> to vector<16x16x16xf32>
    %28 = vector.extract_strided_slice %5 {offsets = [2, 4, 0], sizes = [16, 16, 16], strides = [1, 1, 1]} : vector<24x24x16xf32> to vector<16x16x16xf32>
    %29 = vector.extract_strided_slice %5 {offsets = [2, 5, 0], sizes = [16, 16, 16], strides = [1, 1, 1]} : vector<24x24x16xf32> to vector<16x16x16xf32>
    %30 = vector.extract_strided_slice %5 {offsets = [2, 6, 0], sizes = [16, 16, 16], strides = [1, 1, 1]} : vector<24x24x16xf32> to vector<16x16x16xf32>
    %31 = vector.extract_strided_slice %5 {offsets = [2, 7, 0], sizes = [16, 16, 16], strides = [1, 1, 1]} : vector<24x24x16xf32> to vector<16x16x16xf32>
    %32 = vector.extract_strided_slice %5 {offsets = [2, 8, 0], sizes = [16, 16, 16], strides = [1, 1, 1]} : vector<24x24x16xf32> to vector<16x16x16xf32>
    %33 = vector.extract_strided_slice %5 {offsets = [3, 0, 0], sizes = [16, 16, 16], strides = [1, 1, 1]} : vector<24x24x16xf32> to vector<16x16x16xf32>
    %34 = vector.extract_strided_slice %5 {offsets = [3, 1, 0], sizes = [16, 16, 16], strides = [1, 1, 1]} : vector<24x24x16xf32> to vector<16x16x16xf32>
    %35 = vector.extract_strided_slice %5 {offsets = [3, 2, 0], sizes = [16, 16, 16], strides = [1, 1, 1]} : vector<24x24x16xf32> to vector<16x16x16xf32>
    %36 = vector.extract_strided_slice %5 {offsets = [3, 3, 0], sizes = [16, 16, 16], strides = [1, 1, 1]} : vector<24x24x16xf32> to vector<16x16x16xf32>
    %37 = vector.extract_strided_slice %5 {offsets = [3, 4, 0], sizes = [16, 16, 16], strides = [1, 1, 1]} : vector<24x24x16xf32> to vector<16x16x16xf32>
    %38 = vector.extract_strided_slice %5 {offsets = [3, 5, 0], sizes = [16, 16, 16], strides = [1, 1, 1]} : vector<24x24x16xf32> to vector<16x16x16xf32>
    %39 = vector.extract_strided_slice %5 {offsets = [3, 6, 0], sizes = [16, 16, 16], strides = [1, 1, 1]} : vector<24x24x16xf32> to vector<16x16x16xf32>
    %40 = vector.extract_strided_slice %5 {offsets = [3, 7, 0], sizes = [16, 16, 16], strides = [1, 1, 1]} : vector<24x24x16xf32> to vector<16x16x16xf32>
    %41 = vector.extract_strided_slice %5 {offsets = [3, 8, 0], sizes = [16, 16, 16], strides = [1, 1, 1]} : vector<24x24x16xf32> to vector<16x16x16xf32>
    %42 = vector.extract_strided_slice %5 {offsets = [4, 0, 0], sizes = [16, 16, 16], strides = [1, 1, 1]} : vector<24x24x16xf32> to vector<16x16x16xf32>
    %43 = vector.extract_strided_slice %5 {offsets = [4, 1, 0], sizes = [16, 16, 16], strides = [1, 1, 1]} : vector<24x24x16xf32> to vector<16x16x16xf32>
    %44 = vector.extract_strided_slice %5 {offsets = [4, 2, 0], sizes = [16, 16, 16], strides = [1, 1, 1]} : vector<24x24x16xf32> to vector<16x16x16xf32>
    %45 = vector.extract_strided_slice %5 {offsets = [4, 3, 0], sizes = [16, 16, 16], strides = [1, 1, 1]} : vector<24x24x16xf32> to vector<16x16x16xf32>
    %46 = vector.extract_strided_slice %5 {offsets = [4, 4, 0], sizes = [16, 16, 16], strides = [1, 1, 1]} : vector<24x24x16xf32> to vector<16x16x16xf32>
    %47 = vector.extract_strided_slice %5 {offsets = [4, 5, 0], sizes = [16, 16, 16], strides = [1, 1, 1]} : vector<24x24x16xf32> to vector<16x16x16xf32>
    %48 = vector.extract_strided_slice %5 {offsets = [4, 6, 0], sizes = [16, 16, 16], strides = [1, 1, 1]} : vector<24x24x16xf32> to vector<16x16x16xf32>
    %49 = vector.extract_strided_slice %5 {offsets = [4, 7, 0], sizes = [16, 16, 16], strides = [1, 1, 1]} : vector<24x24x16xf32> to vector<16x16x16xf32>
    %50 = vector.extract_strided_slice %5 {offsets = [4, 8, 0], sizes = [16, 16, 16], strides = [1, 1, 1]} : vector<24x24x16xf32> to vector<16x16x16xf32>
    %51 = vector.extract_strided_slice %5 {offsets = [5, 0, 0], sizes = [16, 16, 16], strides = [1, 1, 1]} : vector<24x24x16xf32> to vector<16x16x16xf32>
    %52 = vector.extract_strided_slice %5 {offsets = [5, 1, 0], sizes = [16, 16, 16], strides = [1, 1, 1]} : vector<24x24x16xf32> to vector<16x16x16xf32>
    %53 = vector.extract_strided_slice %5 {offsets = [5, 2, 0], sizes = [16, 16, 16], strides = [1, 1, 1]} : vector<24x24x16xf32> to vector<16x16x16xf32>
    %54 = vector.extract_strided_slice %5 {offsets = [5, 3, 0], sizes = [16, 16, 16], strides = [1, 1, 1]} : vector<24x24x16xf32> to vector<16x16x16xf32>
    %55 = vector.extract_strided_slice %5 {offsets = [5, 4, 0], sizes = [16, 16, 16], strides = [1, 1, 1]} : vector<24x24x16xf32> to vector<16x16x16xf32>
    %56 = vector.extract_strided_slice %5 {offsets = [5, 5, 0], sizes = [16, 16, 16], strides = [1, 1, 1]} : vector<24x24x16xf32> to vector<16x16x16xf32>
    %57 = vector.extract_strided_slice %5 {offsets = [5, 6, 0], sizes = [16, 16, 16], strides = [1, 1, 1]} : vector<24x24x16xf32> to vector<16x16x16xf32>
    %58 = vector.extract_strided_slice %5 {offsets = [5, 7, 0], sizes = [16, 16, 16], strides = [1, 1, 1]} : vector<24x24x16xf32> to vector<16x16x16xf32>
    %59 = vector.extract_strided_slice %5 {offsets = [5, 8, 0], sizes = [16, 16, 16], strides = [1, 1, 1]} : vector<24x24x16xf32> to vector<16x16x16xf32>
    %60 = vector.extract_strided_slice %5 {offsets = [6, 0, 0], sizes = [16, 16, 16], strides = [1, 1, 1]} : vector<24x24x16xf32> to vector<16x16x16xf32>
    %61 = vector.extract_strided_slice %5 {offsets = [6, 1, 0], sizes = [16, 16, 16], strides = [1, 1, 1]} : vector<24x24x16xf32> to vector<16x16x16xf32>
    %62 = vector.extract_strided_slice %5 {offsets = [6, 2, 0], sizes = [16, 16, 16], strides = [1, 1, 1]} : vector<24x24x16xf32> to vector<16x16x16xf32>
    %63 = vector.extract_strided_slice %5 {offsets = [6, 3, 0], sizes = [16, 16, 16], strides = [1, 1, 1]} : vector<24x24x16xf32> to vector<16x16x16xf32>
    %64 = vector.extract_strided_slice %5 {offsets = [6, 4, 0], sizes = [16, 16, 16], strides = [1, 1, 1]} : vector<24x24x16xf32> to vector<16x16x16xf32>
    %65 = vector.extract_strided_slice %5 {offsets = [6, 5, 0], sizes = [16, 16, 16], strides = [1, 1, 1]} : vector<24x24x16xf32> to vector<16x16x16xf32>
    %66 = vector.extract_strided_slice %5 {offsets = [6, 6, 0], sizes = [16, 16, 16], strides = [1, 1, 1]} : vector<24x24x16xf32> to vector<16x16x16xf32>
    %67 = vector.extract_strided_slice %5 {offsets = [6, 7, 0], sizes = [16, 16, 16], strides = [1, 1, 1]} : vector<24x24x16xf32> to vector<16x16x16xf32>
    %68 = vector.extract_strided_slice %5 {offsets = [6, 8, 0], sizes = [16, 16, 16], strides = [1, 1, 1]} : vector<24x24x16xf32> to vector<16x16x16xf32>
    %69 = vector.extract_strided_slice %5 {offsets = [7, 0, 0], sizes = [16, 16, 16], strides = [1, 1, 1]} : vector<24x24x16xf32> to vector<16x16x16xf32>
    %70 = vector.extract_strided_slice %5 {offsets = [7, 1, 0], sizes = [16, 16, 16], strides = [1, 1, 1]} : vector<24x24x16xf32> to vector<16x16x16xf32>
    %71 = vector.extract_strided_slice %5 {offsets = [7, 2, 0], sizes = [16, 16, 16], strides = [1, 1, 1]} : vector<24x24x16xf32> to vector<16x16x16xf32>
    %72 = vector.extract_strided_slice %5 {offsets = [7, 3, 0], sizes = [16, 16, 16], strides = [1, 1, 1]} : vector<24x24x16xf32> to vector<16x16x16xf32>
    %73 = vector.extract_strided_slice %5 {offsets = [7, 4, 0], sizes = [16, 16, 16], strides = [1, 1, 1]} : vector<24x24x16xf32> to vector<16x16x16xf32>
    %74 = vector.extract_strided_slice %5 {offsets = [7, 5, 0], sizes = [16, 16, 16], strides = [1, 1, 1]} : vector<24x24x16xf32> to vector<16x16x16xf32>
    %75 = vector.extract_strided_slice %5 {offsets = [7, 6, 0], sizes = [16, 16, 16], strides = [1, 1, 1]} : vector<24x24x16xf32> to vector<16x16x16xf32>
    %76 = vector.extract_strided_slice %5 {offsets = [7, 7, 0], sizes = [16, 16, 16], strides = [1, 1, 1]} : vector<24x24x16xf32> to vector<16x16x16xf32>
    %77 = vector.extract_strided_slice %5 {offsets = [7, 8, 0], sizes = [16, 16, 16], strides = [1, 1, 1]} : vector<24x24x16xf32> to vector<16x16x16xf32>
    %78 = vector.extract_strided_slice %5 {offsets = [8, 0, 0], sizes = [16, 16, 16], strides = [1, 1, 1]} : vector<24x24x16xf32> to vector<16x16x16xf32>
    %79 = vector.extract_strided_slice %5 {offsets = [8, 1, 0], sizes = [16, 16, 16], strides = [1, 1, 1]} : vector<24x24x16xf32> to vector<16x16x16xf32>
    %80 = vector.extract_strided_slice %5 {offsets = [8, 2, 0], sizes = [16, 16, 16], strides = [1, 1, 1]} : vector<24x24x16xf32> to vector<16x16x16xf32>
    %81 = vector.extract_strided_slice %5 {offsets = [8, 3, 0], sizes = [16, 16, 16], strides = [1, 1, 1]} : vector<24x24x16xf32> to vector<16x16x16xf32>
    %82 = vector.extract_strided_slice %5 {offsets = [8, 4, 0], sizes = [16, 16, 16], strides = [1, 1, 1]} : vector<24x24x16xf32> to vector<16x16x16xf32>
    %83 = vector.extract_strided_slice %5 {offsets = [8, 5, 0], sizes = [16, 16, 16], strides = [1, 1, 1]} : vector<24x24x16xf32> to vector<16x16x16xf32>
    %84 = vector.extract_strided_slice %5 {offsets = [8, 6, 0], sizes = [16, 16, 16], strides = [1, 1, 1]} : vector<24x24x16xf32> to vector<16x16x16xf32>
    %85 = vector.extract_strided_slice %5 {offsets = [8, 7, 0], sizes = [16, 16, 16], strides = [1, 1, 1]} : vector<24x24x16xf32> to vector<16x16x16xf32>
    %86 = vector.extract_strided_slice %5 {offsets = [8, 8, 0], sizes = [16, 16, 16], strides = [1, 1, 1]} : vector<24x24x16xf32> to vector<16x16x16xf32>
    %87 = tpu.concatenate %6, %7, %8, %9, %10, %11, %12, %13, %14, %15, %16, %17, %18, %19, %20, %21 in 2 : vector<16x16x16xf32>, vector<16x16x16xf32>, vector<16x16x16xf32>, vector<16x16x16xf32>, vector<16x16x16xf32>, vector<16x16x16xf32>, vector<16x16x16xf32>, vector<16x16x16xf32>, vector<16x16x16xf32>, vector<16x16x16xf32>, vector<16x16x16xf32>, vector<16x16x16xf32>, vector<16x16x16xf32>, vector<16x16x16xf32>, vector<16x16x16xf32>, vector<16x16x16xf32> -> vector<16x16x256xf32>
    %88 = tpu.concatenate %22, %23, %24, %25, %26, %27, %28, %29, %30, %31, %32, %33, %34, %35, %36, %37 in 2 : vector<16x16x16xf32>, vector<16x16x16xf32>, vector<16x16x16xf32>, vector<16x16x16xf32>, vector<16x16x16xf32>, vector<16x16x16xf32>, vector<16x16x16xf32>, vector<16x16x16xf32>, vector<16x16x16xf32>, vector<16x16x16xf32>, vector<16x16x16xf32>, vector<16x16x16xf32>, vector<16x16x16xf32>, vector<16x16x16xf32>, vector<16x16x16xf32>, vector<16x16x16xf32> -> vector<16x16x256xf32>
    %89 = tpu.concatenate %38, %39, %40, %41, %42, %43, %44, %45, %46, %47, %48, %49, %50, %51, %52, %53 in 2 : vector<16x16x16xf32>, vector<16x16x16xf32>, vector<16x16x16xf32>, vector<16x16x16xf32>, vector<16x16x16xf32>, vector<16x16x16xf32>, vector<16x16x16xf32>, vector<16x16x16xf32>, vector<16x16x16xf32>, vector<16x16x16xf32>, vector<16x16x16xf32>, vector<16x16x16xf32>, vector<16x16x16xf32>, vector<16x16x16xf32>, vector<16x16x16xf32>, vector<16x16x16xf32> -> vector<16x16x256xf32>
    %90 = tpu.concatenate %54, %55, %56, %57, %58, %59, %60, %61, %62, %63, %64, %65, %66, %67, %68, %69 in 2 : vector<16x16x16xf32>, vector<16x16x16xf32>, vector<16x16x16xf32>, vector<16x16x16xf32>, vector<16x16x16xf32>, vector<16x16x16xf32>, vector<16x16x16xf32>, vector<16x16x16xf32>, vector<16x16x16xf32>, vector<16x16x16xf32>, vector<16x16x16xf32>, vector<16x16x16xf32>, vector<16x16x16xf32>, vector<16x16x16xf32>, vector<16x16x16xf32>, vector<16x16x16xf32> -> vector<16x16x256xf32>
    %91 = tpu.concatenate %70, %71, %72, %73, %74, %75, %76, %77, %78, %79, %80, %81, %82, %83, %84, %85 in 2 : vector<16x16x16xf32>, vector<16x16x16xf32>, vector<16x16x16xf32>, vector<16x16x16xf32>, vector<16x16x16xf32>, vector<16x16x16xf32>, vector<16x16x16xf32>, vector<16x16x16xf32>, vector<16x16x16xf32>, vector<16x16x16xf32>, vector<16x16x16xf32>, vector<16x16x16xf32>, vector<16x16x16xf32>, vector<16x16x16xf32>, vector<16x16x16xf32>, vector<16x16x16xf32> -> vector<16x16x256xf32>
    %92 = tpu.concatenate %87, %88, %89, %90, %91, %86 in 2 : vector<16x16x256xf32>, vector<16x16x256xf32>, vector<16x16x256xf32>, vector<16x16x256xf32>, vector<16x16x256xf32>, vector<16x16x16xf32> -> vector<16x16x1296xf32>
    %93 = vector.shape_cast %92 : vector<16x16x1296xf32> to vector<256x1296xf32>
    %c0_11 = arith.constant 0 : index
    %c0_12 = arith.constant 0 : index
    %94 = vector.load %arg2[%c0_11, %c0_12] : memref<1296x64xf32, #tpu.memory_space<vmem>>, vector<1296x64xf32>
    %cst_13 = arith.constant dense<0.000000e+00> : vector<256x64xf32>
    %95 = tpu.matmul %93, %94, %cst_13 {dimension_numbers = #tpu.dot_dimension_numbers<[1], [0], [0], [1], [0, 0, 1, 1], [], []>} : vector<256x1296xf32>, vector<1296x64xf32>, vector<256x64xf32> -> vector<256x64xf32>
    %c0_14 = arith.constant 0 : index
    %c0_15 = arith.constant 0 : index
    %96 = vector.load %arg3[%c0_14, %c0_15] : memref<16x1xf32, #tpu.memory_space<vmem>>, vector<16x1xf32>
    %c0_16 = arith.constant 0 : index
    %c0_17 = arith.constant 0 : index
    %97 = vector.load %arg4[%c0_16, %c0_17] : memref<1x1xf32, #tpu.memory_space<vmem>>, vector<1x1xf32>
    %c0_18 = arith.constant 0 : index
    %c0_19 = arith.constant 0 : index
    %98 = vector.load %arg5[%c0_18, %c0_19] : memref<1x16xf32, #tpu.memory_space<vmem>>, vector<1x16xf32>
    %c0_20 = arith.constant 0 : index
    %c0_21 = arith.constant 0 : index
    %99 = vector.load %arg6[%c0_20, %c0_21] : memref<1x16xf32, #tpu.memory_space<vmem>>, vector<1x16xf32>
    %cst_22 = arith.constant dense<0.000000e+00> : vector<64xf32>
    %100 = vector.multi_reduction <add>, %95, %cst_22 [0] : vector<256x64xf32> to vector<64xf32>
    %101 = vector.shape_cast %100 : vector<64xf32> to vector<1x64xf32>
    %cst_23 = arith.constant 2.560000e+02 : f32
    %102 = vector.broadcast %cst_23 : f32 to vector<1x64xf32>
    %103 = arith.divf %101, %102 : vector<1x64xf32>
    %104 = vector.extract_strided_slice %103 {offsets = [0, 0], sizes = [1, 16], strides = [1, 1]} : vector<1x64xf32> to vector<1x16xf32>
    %105 = vector.shape_cast %104 : vector<1x16xf32> to vector<1x16x1xf32>
    %106 = vector.shape_cast %96 : vector<16x1xf32> to vector<1x16x1xf32>
    %107 = arith.mulf %105, %106 : vector<1x16x1xf32>
    %cst_24 = arith.constant dense<0.000000e+00> : vector<1x1xf32>
    %108 = vector.multi_reduction <add>, %107, %cst_24 [1] : vector<1x16x1xf32> to vector<1x1xf32>
    %109 = arith.addf %108, %97 : vector<1x1xf32>
    %cst_25 = arith.constant 0.000000e+00 : f32
    %110 = vector.broadcast %cst_25 : f32 to vector<1x1xf32>
    %111 = arith.maximumf %109, %110 : vector<1x1xf32>
    %112 = vector.shape_cast %111 : vector<1x1xf32> to vector<1x1x1xf32>
    %113 = vector.shape_cast %98 : vector<1x16xf32> to vector<1x1x16xf32>
    %114 = vector.broadcast %112 : vector<1x1x1xf32> to vector<1x1x16xf32>
    %115 = arith.mulf %114, %113 : vector<1x1x16xf32>
    %cst_26 = arith.constant dense<0.000000e+00> : vector<1x16xf32>
    %116 = vector.multi_reduction <add>, %115, %cst_26 [1] : vector<1x1x16xf32> to vector<1x16xf32>
    %117 = arith.addf %116, %99 : vector<1x16xf32>
    %118 = arith.negf %117 : vector<1x16xf32>
    %119 = math.exp %118 : vector<1x16xf32>
    %cst_27 = arith.constant 1.000000e+00 : f32
    %120 = vector.broadcast %cst_27 : f32 to vector<1x16xf32>
    %121 = arith.addf %120, %119 : vector<1x16xf32>
    %122 = arith.divf %120, %121 : vector<1x16xf32>
    %123 = vector.extract_strided_slice %103 {offsets = [0, 16], sizes = [1, 16], strides = [1, 1]} : vector<1x64xf32> to vector<1x16xf32>
    %124 = vector.shape_cast %123 : vector<1x16xf32> to vector<1x16x1xf32>
    %125 = vector.shape_cast %96 : vector<16x1xf32> to vector<1x16x1xf32>
    %126 = arith.mulf %124, %125 : vector<1x16x1xf32>
    %cst_28 = arith.constant dense<0.000000e+00> : vector<1x1xf32>
    %127 = vector.multi_reduction <add>, %126, %cst_28 [1] : vector<1x16x1xf32> to vector<1x1xf32>
    %128 = arith.addf %127, %97 : vector<1x1xf32>
    %cst_29 = arith.constant 0.000000e+00 : f32
    %129 = vector.broadcast %cst_29 : f32 to vector<1x1xf32>
    %130 = arith.maximumf %128, %129 : vector<1x1xf32>
    %131 = vector.shape_cast %130 : vector<1x1xf32> to vector<1x1x1xf32>
    %132 = vector.shape_cast %98 : vector<1x16xf32> to vector<1x1x16xf32>
    %133 = vector.broadcast %131 : vector<1x1x1xf32> to vector<1x1x16xf32>
    %134 = arith.mulf %133, %132 : vector<1x1x16xf32>
    %cst_30 = arith.constant dense<0.000000e+00> : vector<1x16xf32>
    %135 = vector.multi_reduction <add>, %134, %cst_30 [1] : vector<1x1x16xf32> to vector<1x16xf32>
    %136 = arith.addf %135, %99 : vector<1x16xf32>
    %137 = arith.negf %136 : vector<1x16xf32>
    %138 = math.exp %137 : vector<1x16xf32>
    %cst_31 = arith.constant 1.000000e+00 : f32
    %139 = vector.broadcast %cst_31 : f32 to vector<1x16xf32>
    %140 = arith.addf %139, %138 : vector<1x16xf32>
    %141 = arith.divf %139, %140 : vector<1x16xf32>
    %142 = vector.extract_strided_slice %103 {offsets = [0, 32], sizes = [1, 16], strides = [1, 1]} : vector<1x64xf32> to vector<1x16xf32>
    %143 = vector.shape_cast %142 : vector<1x16xf32> to vector<1x16x1xf32>
    %144 = vector.shape_cast %96 : vector<16x1xf32> to vector<1x16x1xf32>
    %145 = arith.mulf %143, %144 : vector<1x16x1xf32>
    %cst_32 = arith.constant dense<0.000000e+00> : vector<1x1xf32>
    %146 = vector.multi_reduction <add>, %145, %cst_32 [1] : vector<1x16x1xf32> to vector<1x1xf32>
    %147 = arith.addf %146, %97 : vector<1x1xf32>
    %cst_33 = arith.constant 0.000000e+00 : f32
    %148 = vector.broadcast %cst_33 : f32 to vector<1x1xf32>
    %149 = arith.maximumf %147, %148 : vector<1x1xf32>
    %150 = vector.shape_cast %149 : vector<1x1xf32> to vector<1x1x1xf32>
    %151 = vector.shape_cast %98 : vector<1x16xf32> to vector<1x1x16xf32>
    %152 = vector.broadcast %150 : vector<1x1x1xf32> to vector<1x1x16xf32>
    %153 = arith.mulf %152, %151 : vector<1x1x16xf32>
    %cst_34 = arith.constant dense<0.000000e+00> : vector<1x16xf32>
    %154 = vector.multi_reduction <add>, %153, %cst_34 [1] : vector<1x1x16xf32> to vector<1x16xf32>
    %155 = arith.addf %154, %99 : vector<1x16xf32>
    %156 = arith.negf %155 : vector<1x16xf32>
    %157 = math.exp %156 : vector<1x16xf32>
    %cst_35 = arith.constant 1.000000e+00 : f32
    %158 = vector.broadcast %cst_35 : f32 to vector<1x16xf32>
    %159 = arith.addf %158, %157 : vector<1x16xf32>
    %160 = arith.divf %158, %159 : vector<1x16xf32>
    %161 = vector.extract_strided_slice %103 {offsets = [0, 48], sizes = [1, 16], strides = [1, 1]} : vector<1x64xf32> to vector<1x16xf32>
    %162 = vector.shape_cast %161 : vector<1x16xf32> to vector<1x16x1xf32>
    %163 = vector.shape_cast %96 : vector<16x1xf32> to vector<1x16x1xf32>
    %164 = arith.mulf %162, %163 : vector<1x16x1xf32>
    %cst_36 = arith.constant dense<0.000000e+00> : vector<1x1xf32>
    %165 = vector.multi_reduction <add>, %164, %cst_36 [1] : vector<1x16x1xf32> to vector<1x1xf32>
    %166 = arith.addf %165, %97 : vector<1x1xf32>
    %cst_37 = arith.constant 0.000000e+00 : f32
    %167 = vector.broadcast %cst_37 : f32 to vector<1x1xf32>
    %168 = arith.maximumf %166, %167 : vector<1x1xf32>
    %169 = vector.shape_cast %168 : vector<1x1xf32> to vector<1x1x1xf32>
    %170 = vector.shape_cast %98 : vector<1x16xf32> to vector<1x1x16xf32>
    %171 = vector.broadcast %169 : vector<1x1x1xf32> to vector<1x1x16xf32>
    %172 = arith.mulf %171, %170 : vector<1x1x16xf32>
    %cst_38 = arith.constant dense<0.000000e+00> : vector<1x16xf32>
    %173 = vector.multi_reduction <add>, %172, %cst_38 [1] : vector<1x1x16xf32> to vector<1x16xf32>
    %174 = arith.addf %173, %99 : vector<1x16xf32>
    %175 = arith.negf %174 : vector<1x16xf32>
    %176 = math.exp %175 : vector<1x16xf32>
    %cst_39 = arith.constant 1.000000e+00 : f32
    %177 = vector.broadcast %cst_39 : f32 to vector<1x16xf32>
    %178 = arith.addf %177, %176 : vector<1x16xf32>
    %179 = arith.divf %177, %178 : vector<1x16xf32>
    %180 = arith.maximumf %122, %141 : vector<1x16xf32>
    %181 = arith.maximumf %160, %179 : vector<1x16xf32>
    %182 = arith.maximumf %180, %181 : vector<1x16xf32>
    %183 = arith.subf %122, %182 : vector<1x16xf32>
    %184 = math.exp %183 : vector<1x16xf32>
    %185 = arith.subf %141, %182 : vector<1x16xf32>
    %186 = math.exp %185 : vector<1x16xf32>
    %187 = arith.subf %160, %182 : vector<1x16xf32>
    %188 = math.exp %187 : vector<1x16xf32>
    %189 = arith.subf %179, %182 : vector<1x16xf32>
    %190 = math.exp %189 : vector<1x16xf32>
    %191 = arith.addf %184, %186 : vector<1x16xf32>
    %192 = arith.addf %191, %188 : vector<1x16xf32>
    %193 = arith.addf %192, %190 : vector<1x16xf32>
    %194 = arith.divf %184, %193 : vector<1x16xf32>
    %195 = arith.divf %186, %193 : vector<1x16xf32>
    %196 = arith.divf %188, %193 : vector<1x16xf32>
    %197 = arith.divf %190, %193 : vector<1x16xf32>
    %198 = tpu.concatenate %194, %195, %196, %197 in 1 : vector<1x16xf32>, vector<1x16xf32>, vector<1x16xf32>, vector<1x16xf32> -> vector<1x64xf32>
    %199 = vector.broadcast %198 : vector<1x64xf32> to vector<256x64xf32>
    %200 = arith.mulf %95, %199 : vector<256x64xf32>
    %201 = vector.shape_cast %200 : vector<256x64xf32> to vector<16x16x64xf32>
    %c0_40 = arith.constant 0 : index
    %c0_41 = arith.constant 0 : index
    %c0_42 = arith.constant 0 : index
    %c0_43 = arith.constant 0 : index
    %202 = vector.load %arg7[%c0_40, %c0_41, %c0_42, %c0_43] : memref<1x16x16x64xf32, #tpu.memory_space<vmem>>, vector<1x16x16x64xf32>
    %203 = vector.shape_cast %202 : vector<1x16x16x64xf32> to vector<16x16x64xf32>
    %204 = vector.shape_cast %201 : vector<16x16x64xf32> to vector<1x16x16x64xf32>
    tpu.vector_store %arg7[%c0_40, %c0_41, %c0_42, %c0_43], %204 {strides = array<i32>} : memref<1x16x16x64xf32, #tpu.memory_space<vmem>>, vector<1x16x16x64xf32>,
    return
  }
  func.func @transform_0(%arg0: i32) -> (i32, i32, i32, i32) {
    %c0_i32 = arith.constant 0 : i32
    %c0_i32_0 = arith.constant 0 : i32
    %c0_i32_1 = arith.constant 0 : i32
    %c0_i32_2 = arith.constant 0 : i32
    return %arg0, %c0_i32, %c0_i32_0, %c0_i32_1 : i32, i32, i32, i32
  }
  func.func @transform_1(%arg0: i32) -> (i32, i32) {
    %c0_i32 = arith.constant 0 : i32
    %c0_i32_0 = arith.constant 0 : i32
    %c0_i32_1 = arith.constant 0 : i32
    return %c0_i32, %c0_i32_0 : i32, i32
  }
  func.func @transform_2(%arg0: i32) -> (i32, i32) {
    %c0_i32 = arith.constant 0 : i32
    %c0_i32_0 = arith.constant 0 : i32
    %c0_i32_1 = arith.constant 0 : i32
    return %c0_i32, %c0_i32_0 : i32, i32
  }
  func.func @transform_3(%arg0: i32) -> (i32, i32) {
    %c0_i32 = arith.constant 0 : i32
    %c0_i32_0 = arith.constant 0 : i32
    %c0_i32_1 = arith.constant 0 : i32
    return %c0_i32, %c0_i32_0 : i32, i32
  }
  func.func @transform_4(%arg0: i32) -> (i32, i32) {
    %c0_i32 = arith.constant 0 : i32
    %c0_i32_0 = arith.constant 0 : i32
    %c0_i32_1 = arith.constant 0 : i32
    return %c0_i32, %c0_i32_0 : i32, i32
  }
  func.func @transform_5(%arg0: i32) -> (i32, i32) {
    %c0_i32 = arith.constant 0 : i32
    %c0_i32_0 = arith.constant 0 : i32
    %c0_i32_1 = arith.constant 0 : i32
    return %c0_i32, %c0_i32_0 : i32, i32
  }
  func.func @transform_6(%arg0: i32) -> (i32, i32, i32, i32) {
    %c0_i32 = arith.constant 0 : i32
    %c0_i32_0 = arith.constant 0 : i32
    %c0_i32_1 = arith.constant 0 : i32
    %c0_i32_2 = arith.constant 0 : i32
    return %arg0, %c0_i32, %c0_i32_0, %c0_i32_1 : i32, i32, i32, i32
  }
}

</mosaic_0001>

<llo_original>
// kernel: psa_forward_pallas.1
$region0: #{psa_forward_pallas.1}
  #allocation0 [shape = 'u32[]', space=smem, size = 0x4, offset = 0x4, fixed_abs, tag = 'smem constant byte address 0x4 - core index']
  #allocation1 [shape = 'u32[144,128]{1,0:T(1,128)}', space=vmem, size = 0x12000, scoped, tag = 'internal scratch']
  #allocation2 [shape = 'f32[24,24,16]{2,1,0:T(8,128)}', space=vmem, size = 0x48000, scoped, tag = 'scratch operand']
  #allocation3 [shape = 'f32[1,1]{1,0:T(1,128)S(1)}', space=vmem, size = 0x200, scoped, tag = 'scoped memory for psa_forward_pallas.1']
  %s0 = inlined_call_operand.vmem [shape: f32[2,16,16,16], index: 0, kind: input, shape index: {}]
  %s1 = inlined_call_operand.vmem [shape: f32[1296,64], index: 1, kind: input, shape index: {}]
  %s2 = inlined_call_operand.vmem [shape: f32[16,1], index: 2, kind: input, shape index: {}]
  %s3 = inlined_call_operand.<no memory space> [shape: f32[1,1], index: 3, kind: input, shape index: {}]
  %s4 = inlined_call_operand.vmem [shape: f32[1,16], index: 4, kind: input, shape index: {}]
  %s5 = inlined_call_operand.vmem [shape: f32[1,16], index: 5, kind: input, shape index: {}]
  %s6 = inlined_call_operand.hbm [shape: f32[2,16,16,64], index: 6, kind: output, shape index: {}]
  %s7 = sld [smem:[#allocation0]]
  $region57: #{psa_forward_pallas.1} parent=0
    _
  %s9 = ssub.s32 1, %s7
  %s10 = scalar_select 0, %s9, %s7
  %v11 = vstv %s3
  %12 = vst [vmem:[#allocation3] sm:$0x1] %v11
  $region1: #{psa_forward_pallas.1} parent=0
    #allocation4 [shape = 'u8[262144]{0}', space=vmem, size = 0x40000, scoped, tag = 'output window, operand 0']
    #allocation5 [shape = 's32[2]{0}', space=sflag, size = 0x8, scoped, tag = 'scoped memory for psa_forward_pallas.1']
    %13 = vsyncpa [#allocation5], 0
    %s14 = scalar_lea.sflag [#allocation5], 1
    %15 = vsyncpa %s14, 0
    loop: start=0, step=1, limit=4
    $region2: #{psa_forward_pallas.1} parent=1 // loop_pre_header
      _
    $region3: #{psa_forward_pallas.1} parent=1 // loop_header
      %s17 = sphi 0, %s21
      %p18 = scmp.ge.s32.totalorder %s17, 4
      %s27 = sphi 0, %s29
      %s30 = sphi 0, %s27
      %s31 = sphi 0, %s30
      %s47 = sphi 0, %s31
      %s51 = sphi 0, %s51
      %s53 = sphi 0, %s51
      %s54 = sphi 0, %s53
      %s68 = sphi 0, %s54
      %s72 = sphi 0, %s72
      %s74 = sphi 0, %s72
      %s75 = sphi 0, %s74
      %s89 = sphi 0, %s75
      %s93 = sphi 0, %s93
      %s95 = sphi 0, %s93
      %s96 = sphi 0, %s95
      %s110 = sphi 0, %s96
      %s114 = sphi 0, %s114
      %s116 = sphi 0, %s114
      %s117 = sphi 0, %s116
      %s131 = sphi 0, %s117
      %s135 = sphi 0, %s135
      %s137 = sphi 0, %s135
      %s138 = sphi 0, %s137
      %s152 = sphi 0, %s138
      %s158 = sphi 0, %s160
      %s161 = sphi 0, %s158
      %s162 = sphi 0, %s161
      %s178 = sphi 0, %s162
    $region4: #{psa_forward_pallas.1} parent=1 // loop_header_branch
      %20 = sbr.rel (%p18) target = $region8
    $region5: #{psa_forward_pallas.1} parent=1 // loop_body
      %s22 = ssub.s32 %s17, 1
      %s23 = ssub.s32 %s17, 2
      %s24 = sadd.s32 %s17, 1
      %s25 = ssub.s32 %s17, %s24
      %p26 = scmp.eq.s32.totalorder %s25, 0
      %s28 = sadd.s32 %s27, 1
      %s29 = scalar_select %p26, %s27, %s28
      %p32 = pneg %p26
      %p33 = scmp.eq.s32.totalorder %s17, 1
      %p34 = por %p32, %p33
      %p35 = scmp.ne.s32.totalorder %s27, %s30
      %p36 = scmp.eq.s32.totalorder %s17, 0
      %p37 = por %p35, %p36
      %p38 = scmp.ne.s32.totalorder %s27, %s30
      %p39 = scmp.eq.s32.totalorder %s22, 1
      %p40 = por %p38, %p39
      %p41 = scmp.ne.s32.totalorder %s30, %s31
      %p42 = scmp.eq.s32.totalorder %s22, 0
      %p43 = por %p41, %p42
      %p44 = scmp.ne.s32.totalorder %s30, %s31
      %p45 = scmp.eq.s32.totalorder %s23, 1
      %p46 = por %p44, %p45
      %p48 = scmp.ne.s32.totalorder %s31, %s47
      %p49 = scmp.eq.s32.totalorder %s23, 0
      %p50 = por %p48, %p49
      %s52 = sadd.s32 %s51, 1
      %p55 = scmp.eq.s32.totalorder %s17, 1
      %p56 = scmp.ne.s32.totalorder %s51, %s53
      %p57 = scmp.eq.s32.totalorder %s17, 0
      %p58 = por %p56, %p57
      %p59 = scmp.ne.s32.totalorder %s51, %s53
      %p60 = scmp.eq.s32.totalorder %s22, 1
      %p61 = por %p59, %p60
      %p62 = scmp.ne.s32.totalorder %s53, %s54
      %p63 = scmp.eq.s32.totalorder %s22, 0
      %p64 = por %p62, %p63
      %p65 = scmp.ne.s32.totalorder %s53, %s54
      %p66 = scmp.eq.s32.totalorder %s23, 1
      %p67 = por %p65, %p66
      %p69 = scmp.ne.s32.totalorder %s54, %s68
      %p70 = scmp.eq.s32.totalorder %s23, 0
      %p71 = por %p69, %p70
      %s73 = sadd.s32 %s72, 1
      %p76 = scmp.eq.s32.totalorder %s17, 1
      %p77 = scmp.ne.s32.totalorder %s72, %s74
      %p78 = scmp.eq.s32.totalorder %s17, 0
      %p79 = por %p77, %p78
      %p80 = scmp.ne.s32.totalorder %s72, %s74
      %p81 = scmp.eq.s32.totalorder %s22, 1
      %p82 = por %p80, %p81
      %p83 = scmp.ne.s32.totalorder %s74, %s75
      %p84 = scmp.eq.s32.totalorder %s22, 0
      %p85 = por %p83, %p84
      %p86 = scmp.ne.s32.totalorder %s74, %s75
      %p87 = scmp.eq.s32.totalorder %s23, 1
      %p88 = por %p86, %p87
      %p90 = scmp.ne.s32.totalorder %s75, %s89
      %p91 = scmp.eq.s32.totalorder %s23, 0
      %p92 = por %p90, %p91
      %s94 = sadd.s32 %s93, 1
      %p97 = scmp.eq.s32.totalorder %s17, 1
      %p98 = scmp.ne.s32.totalorder %s93, %s95
      %p99 = scmp.eq.s32.totalorder %s17, 0
      %p100 = por %p98, %p99
      %p101 = scmp.ne.s32.totalorder %s93, %s95
      %p102 = scmp.eq.s32.totalorder %s22, 1
      %p103 = por %p101, %p102
      %p104 = scmp.ne.s32.totalorder %s95, %s96
      %p105 = scmp.eq.s32.totalorder %s22, 0
      %p106 = por %p104, %p105
      %p107 = scmp.ne.s32.totalorder %s95, %s96
      %p108 = scmp.eq.s32.totalorder %s23, 1
      %p109 = por %p107, %p108
      %p111 = scmp.ne.s32.totalorder %s96, %s110
      %p112 = scmp.eq.s32.totalorder %s23, 0
      %p113 = por %p111, %p112
      %s115 = sadd.s32 %s114, 1
      %p118 = scmp.eq.s32.totalorder %s17, 1
      %p119 = scmp.ne.s32.totalorder %s114, %s116
      %p120 = scmp.eq.s32.totalorder %s17, 0
      %p121 = por %p119, %p120
      %p122 = scmp.ne.s32.totalorder %s114, %s116
      %p123 = scmp.eq.s32.totalorder %s22, 1
      %p124 = por %p122, %p123
      %p125 = scmp.ne.s32.totalorder %s116, %s117
      %p126 = scmp.eq.s32.totalorder %s22, 0
      %p127 = por %p125, %p126
      %p128 = scmp.ne.s32.totalorder %s116, %s117
      %p129 = scmp.eq.s32.totalorder %s23, 1
      %p130 = por %p128, %p129
      %p132 = scmp.ne.s32.totalorder %s117, %s131
      %p133 = scmp.eq.s32.totalorder %s23, 0
      %p134 = por %p132, %p133
      %s136 = sadd.s32 %s135, 1
      %p139 = scmp.eq.s32.totalorder %s17, 1
      %p140 = scmp.ne.s32.totalorder %s135, %s137
      %p141 = scmp.eq.s32.totalorder %s17, 0
      %p142 = por %p140, %p141
      %p143 = scmp.ne.s32.totalorder %s135, %s137
      %p144 = scmp.eq.s32.totalorder %s22, 1
      %p145 = por %p143, %p144
      %p146 = scmp.ne.s32.totalorder %s137, %s138
      %p147 = scmp.eq.s32.totalorder %s22, 0
      %p148 = por %p146, %p147
      %p149 = scmp.ne.s32.totalorder %s137, %s138
      %p150 = scmp.eq.s32.totalorder %s23, 1
      %p151 = por %p149, %p150
      %p153 = scmp.ne.s32.totalorder %s138, %s152
      %p154 = scmp.eq.s32.totalorder %s23, 0
      %p155 = por %p153, %p154
      %s156 = ssub.s32 %s17, %s24
      %p157 = scmp.eq.s32.totalorder %s156, 0
      %s159 = sadd.s32 %s158, 1
      %s160 = scalar_select %p157, %s158, %s159
      %p163 = pneg %p157
      %p164 = scmp.eq.s32.totalorder %s17, 1
      %p165 = por %p163, %p164
      %p166 = scmp.ne.s32.totalorder %s158, %s161
      %p167 = scmp.eq.s32.totalorder %s17, 0
      %p168 = por %p166, %p167
      %p169 = scmp.ne.s32.totalorder %s158, %s161
      %p170 = scmp.eq.s32.totalorder %s22, 1
      %p171 = por %p169, %p170
      %p172 = scmp.ne.s32.totalorder %s161, %s162
      %p173 = scmp.eq.s32.totalorder %s22, 0
      %p174 = por %p172, %p173
      %p175 = scmp.ne.s32.totalorder %s161, %s162
      %p176 = scmp.eq.s32.totalorder %s23, 1
      %p177 = por %p175, %p176
      %p179 = scmp.ne.s32.totalorder %s162, %s178
      %p180 = scmp.eq.s32.totalorder %s23, 0
      %p181 = por %p179, %p180
      %p182 = scmp.le.s32.totalorder 1, %s17
      %p183 = scmp.lt.s32.totalorder %s17, 3
      %p184 = pnand %p182, %p183
      %p185 = pneg %p184
      // Predicated region
      $region9: #{psa_forward_pallas.1} parent=5 // pred_check
        _
      $region10: #{psa_forward_pallas.1} parent=5 // pred_check_branch
        %187 = sbr.rel (%p184) target = $region12
      $region11: #{psa_forward_pallas.1} parent=5 // pred_region
        %s188 = ssub.s32 %s17, 1
        // Predicated region
        $region13: #{psa_forward_pallas.1} parent=11 // pred_check
          %p189 = pneg %p64
        $region14: #{psa_forward_pallas.1} parent=11 // pred_check_branch
          %191 = sbr.rel (%p189) target = $region16
        $region15: #{psa_forward_pallas.1} parent=11 // pred_region
          _
        $region16: #{psa_forward_pallas.1} parent=11 // pred_fallthru
          _
        // Predicated region
        $region17: #{psa_forward_pallas.1} parent=11 // pred_check
          %p192 = pneg %p85
        $region18: #{psa_forward_pallas.1} parent=11 // pred_check_branch
          %194 = sbr.rel (%p192) target = $region20
        $region19: #{psa_forward_pallas.1} parent=11 // pred_region
          _
        $region20: #{psa_forward_pallas.1} parent=11 // pred_fallthru
          _
        // Predicated region
        $region21: #{psa_forward_pallas.1} parent=11 // pred_check
          %p195 = pneg %p106
        $region22: #{psa_forward_pallas.1} parent=11 // pred_check_branch
          %197 = sbr.rel (%p195) target = $region24
        $region23: #{psa_forward_pallas.1} parent=11 // pred_region
          _
        $region24: #{psa_forward_pallas.1} parent=11 // pred_fallthru
          _
        // Predicated region
        $region25: #{psa_forward_pallas.1} parent=11 // pred_check
          %p198 = pneg %p127
        $region26: #{psa_forward_pallas.1} parent=11 // pred_check_branch
          %200 = sbr.rel (%p198) target = $region28
        $region27: #{psa_forward_pallas.1} parent=11 // pred_region
          _
        $region28: #{psa_forward_pallas.1} parent=11 // pred_fallthru
          _
        // Predicated region
        $region29: #{psa_forward_pallas.1} parent=11 // pred_check
          %p201 = pneg %p148
        $region30: #{psa_forward_pallas.1} parent=11 // pred_check_branch
          %203 = sbr.rel (%p201) target = $region32
        $region31: #{psa_forward_pallas.1} parent=11 // pred_region
          _
        $region32: #{psa_forward_pallas.1} parent=11 // pred_fallthru
          _
      $region12: #{psa_forward_pallas.1} parent=5 // pred_fallthru
        _
      %p204 = scmp.lt.s32.totalorder %s17, 2
      // Predicated region
      $region33: #{psa_forward_pallas.1} parent=5 // pred_check
        %p205 = pneg %p204
      $region34: #{psa_forward_pallas.1} parent=5 // pred_check_branch
        %207 = sbr.rel (%p205) target = $region36
      $region35: #{psa_forward_pallas.1} parent=5 // pred_region
        // Predicated region
        $region37: #{psa_forward_pallas.1} parent=35 // pred_check
          %p208 = pneg %p37
        $region38: #{psa_forward_pallas.1} parent=35 // pred_check_branch
          %210 = sbr.rel (%p208) target = $region40
        $region39: #{psa_forward_pallas.1} parent=35 // pred_region
          %p211 = scmp.lt.s32.totalorder %s17, 1
          %s212 = scalar_select %p211, %s17, 1
          %s213 = smul.addr %s212, 32
          %s214 = smul.addr %s213, 8
          %s215 = scalar_lea.vmem %s0, %s214
        $region40: #{psa_forward_pallas.1} parent=35 // pred_fallthru
          _
      $region36: #{psa_forward_pallas.1} parent=5 // pred_fallthru
        _
      %p216 = scmp.le.s32.totalorder 1, %s17
      %p217 = scmp.lt.s32.totalorder %s17, 3
      %p218 = pnand %p216, %p217
      %p219 = pneg %p218
      // Predicated region
      $region41: #{psa_forward_pallas.1} parent=5 // pred_check
        _
      $region42: #{psa_forward_pallas.1} parent=5 // pred_check_branch
        %221 = sbr.rel (%p218) target = $region44
      $region43: #{psa_forward_pallas.1} parent=5 // pred_region
        %s222 = ssub.s32 %s17, 1
        %p223 = scmp.lt.s32.totalorder %s22, 1
        %s224 = scalar_select %p223, %s22, 1
        %s225 = smul.addr %s224, 32
        %s226 = smul.addr %s225, 8
        %s227 = scalar_lea.vmem %s0, %s226
        %p228 = pneg %p43
        %p229 = pneg %p40
        %p230 = pneg %p64
        %p231 = pneg %p61
        %p232 = pneg %p85
        %p233 = pneg %p82
        %p234 = pneg %p106
        %p235 = pneg %p103
        %p236 = pneg %p127
        %p237 = pneg %p124
        %p238 = pneg %p148
        %p239 = pneg %p145
        %p240 = pneg %p174
        %p241 = pneg %p171
        %s242 = sand.u32 %s161, 1
        %s243 = scalar_lea.sflag [#allocation5], %s242
        %s244 = sand.u32 %s161, 1
        %s245 = smul.addr %s244, 256
        %s246 = scalar_lea.vmem [#allocation4], %s245
        %p247 = scmp.lt.s32.totalorder %s22, 1
        %s248 = scalar_select %p247, %s22, 1
        %s249 = smul.addr %s248, 32
        %s250 = smul.addr %s249, 8
        %s251 = scalar_lea.vmem %s0, %s250
        %vm252 = vcmask 130048
        %253 = vst.msk [vmem:[#allocation2] sm:$0xff] %vm252, 0.0
        %254 = vst.msk [vmem:[#allocation2 + $0x8] sm:$0xff] %vm252, 0.0
        %255 = vst.msk [vmem:[#allocation2 + $0x10] sm:$0xff] %vm252, 0.0
        %256 = vst.msk [vmem:[#allocation2 + $0x18] sm:$0xff] %vm252, 0.0
        %257 = vst.msk [vmem:[#allocation2 + $0x20] sm:$0xff] %vm252, 0.0
        %258 = vst.msk [vmem:[#allocation2 + $0x28] sm:$0xff] %vm252, 0.0
        %259 = vst.msk [vmem:[#allocation2 + $0x30] sm:$0xff] %vm252, 0.0
        %260 = vst.msk [vmem:[#allocation2 + $0x38] sm:$0xff] %vm252, 0.0
        %261 = vst.msk [vmem:[#allocation2 + $0x40] sm:$0xff] %vm252, 0.0
        %262 = vst.msk [vmem:[#allocation2 + $0x48] sm:$0xff] %vm252, 0.0
        %263 = vst.msk [vmem:[#allocation2 + $0x50] sm:$0xff] %vm252, 0.0
        %264 = vst.msk [vmem:[#allocation2 + $0x58] sm:$0xff] %vm252, 0.0
        %265 = vst.msk [vmem:[#allocation2 + $0x60] sm:$0xff] %vm252, 0.0
        %266 = vst.msk [vmem:[#allocation2 + $0x68] sm:$0xff] %vm252, 0.0
        %267 = vst.msk [vmem:[#allocation2 + $0x70] sm:$0xff] %vm252, 0.0
        %268 = vst.msk [vmem:[#allocation2 + $0x78] sm:$0xff] %vm252, 0.0
        %269 = vst.msk [vmem:[#allocation2 + $0x80] sm:$0xff] %vm252, 0.0
        %270 = vst.msk [vmem:[#allocation2 + $0x88] sm:$0xff] %vm252, 0.0
        %271 = vst.msk [vmem:[#allocation2 + $0x90] sm:$0xff] %vm252, 0.0
        %272 = vst.msk [vmem:[#allocation2 + $0x98] sm:$0xff] %vm252, 0.0
        %273 = vst.msk [vmem:[#allocation2 + $0xa0] sm:$0xff] %vm252, 0.0
        %274 = vst.msk [vmem:[#allocation2 + $0xa8] sm:$0xff] %vm252, 0.0
        %275 = vst.msk [vmem:[#allocation2 + $0xb0] sm:$0xff] %vm252, 0.0
        %276 = vst.msk [vmem:[#allocation2 + $0xb8] sm:$0xff] %vm252, 0.0
        %277 = vst.msk [vmem:[#allocation2 + $0xc0] sm:$0xff] %vm252, 0.0
        %278 = vst.msk [vmem:[#allocation2 + $0xc8] sm:$0xff] %vm252, 0.0
        %279 = vst.msk [vmem:[#allocation2 + $0xd0] sm:$0xff] %vm252, 0.0
        %280 = vst.msk [vmem:[#allocation2 + $0xd8] sm:$0xff] %vm252, 0.0
        %281 = vst.msk [vmem:[#allocation2 + $0xe0] sm:$0xff] %vm252, 0.0
        %282 = vst.msk [vmem:[#allocation2 + $0xe8] sm:$0xff] %vm252, 0.0
        %283 = vst.msk [vmem:[#allocation2 + $0xf0] sm:$0xff] %vm252, 0.0
        %284 = vst.msk [vmem:[#allocation2 + $0xf8] sm:$0xff] %vm252, 0.0
        %285 = vst.msk [vmem:[#allocation2 + $0x100] sm:$0xff] %vm252, 0.0
        %286 = vst.msk [vmem:[#allocation2 + $0x108] sm:$0xff] %vm252, 0.0
        %287 = vst.msk [vmem:[#allocation2 + $0x110] sm:$0xff] %vm252, 0.0
        %288 = vst.msk [vmem:[#allocation2 + $0x118] sm:$0xff] %vm252, 0.0
        %289 = vst.msk [vmem:[#allocation2 + $0x120] sm:$0xff] %vm252, 0.0
        %290 = vst.msk [vmem:[#allocation2 + $0x128] sm:$0xff] %vm252, 0.0
        %291 = vst.msk [vmem:[#allocation2 + $0x130] sm:$0xff] %vm252, 0.0
        %292 = vst.msk [vmem:[#allocation2 + $0x138] sm:$0xff] %vm252, 0.0
        %293 = vst.msk [vmem:[#allocation2 + $0x140] sm:$0xff] %vm252, 0.0
        %294 = vst.msk [vmem:[#allocation2 + $0x148] sm:$0xff] %vm252, 0.0
        %295 = vst.msk [vmem:[#allocation2 + $0x150] sm:$0xff] %vm252, 0.0
        %296 = vst.msk [vmem:[#allocation2 + $0x158] sm:$0xff] %vm252, 0.0
        %297 = vst.msk [vmem:[#allocation2 + $0x160] sm:$0xff] %vm252, 0.0
        %298 = vst.msk [vmem:[#allocation2 + $0x168] sm:$0xff] %vm252, 0.0
        %299 = vst.msk [vmem:[#allocation2 + $0x170] sm:$0xff] %vm252, 0.0
        %300 = vst.msk [vmem:[#allocation2 + $0x178] sm:$0xff] %vm252, 0.0
        %301 = vst.msk [vmem:[#allocation2 + $0x180] sm:$0xff] %vm252, 0.0
        %302 = vst.msk [vmem:[#allocation2 + $0x188] sm:$0xff] %vm252, 0.0
        %303 = vst.msk [vmem:[#allocation2 + $0x190] sm:$0xff] %vm252, 0.0
        %304 = vst.msk [vmem:[#allocation2 + $0x198] sm:$0xff] %vm252, 0.0
        %305 = vst.msk [vmem:[#allocation2 + $0x1a0] sm:$0xff] %vm252, 0.0
        %306 = vst.msk [vmem:[#allocation2 + $0x1a8] sm:$0xff] %vm252, 0.0
        %307 = vst.msk [vmem:[#allocation2 + $0x1b0] sm:$0xff] %vm252, 0.0
        %308 = vst.msk [vmem:[#allocation2 + $0x1b8] sm:$0xff] %vm252, 0.0
        %309 = vst.msk [vmem:[#allocation2 + $0x1c0] sm:$0xff] %vm252, 0.0
        %310 = vst.msk [vmem:[#allocation2 + $0x1c8] sm:$0xff] %vm252, 0.0
        %311 = vst.msk [vmem:[#allocation2 + $0x1d0] sm:$0xff] %vm252, 0.0
        %312 = vst.msk [vmem:[#allocation2 + $0x1d8] sm:$0xff] %vm252, 0.0
        %313 = vst.msk [vmem:[#allocation2 + $0x1e0] sm:$0xff] %vm252, 0.0
        %314 = vst.msk [vmem:[#allocation2 + $0x1e8] sm:$0xff] %vm252, 0.0
        %315 = vst.msk [vmem:[#allocation2 + $0x1f0] sm:$0xff] %vm252, 0.0
        %316 = vst.msk [vmem:[#allocation2 + $0x1f8] sm:$0xff] %vm252, 0.0
        %317 = vst.msk [vmem:[#allocation2 + $0x200] sm:$0xff] %vm252, 0.0
        %318 = vst.msk [vmem:[#allocation2 + $0x208] sm:$0xff] %vm252, 0.0
        %319 = vst.msk [vmem:[#allocation2 + $0x210] sm:$0xff] %vm252, 0.0
        %320 = vst.msk [vmem:[#allocation2 + $0x218] sm:$0xff] %vm252, 0.0
        %321 = vst.msk [vmem:[#allocation2 + $0x220] sm:$0xff] %vm252, 0.0
        %322 = vst.msk [vmem:[#allocation2 + $0x228] sm:$0xff] %vm252, 0.0
        %323 = vst.msk [vmem:[#allocation2 + $0x230] sm:$0xff] %vm252, 0.0
        %324 = vst.msk [vmem:[#allocation2 + $0x238] sm:$0xff] %vm252, 0.0
        %v325 = vld [vmem:[%s251] sm:$0xff]
        %v326 = vld [vmem:[%s251 + $0x8] sm:$0xff]
        %v327 = vld [vmem:[%s251 + $0x10] sm:$0xff]
        %v328 = vld [vmem:[%s251 + $0x18] sm:$0xff]
        %v329 = vld [vmem:[%s251 + $0x20] sm:$0xff]
        %v330 = vld [vmem:[%s251 + $0x28] sm:$0xff]
        %v331 = vld [vmem:[%s251 + $0x30] sm:$0xff]
        %v332 = vld [vmem:[%s251 + $0x38] sm:$0xff]
        %v333 = vld [vmem:[%s251 + $0x40] sm:$0xff]
        %v334 = vld [vmem:[%s251 + $0x48] sm:$0xff]
        %v335 = vld [vmem:[%s251 + $0x50] sm:$0xff]
        %v336 = vld [vmem:[%s251 + $0x58] sm:$0xff]
        %v337 = vld [vmem:[%s251 + $0x60] sm:$0xff]
        %v338 = vld [vmem:[%s251 + $0x68] sm:$0xff]
        %v339 = vld [vmem:[%s251 + $0x70] sm:$0xff]
        %v340 = vld [vmem:[%s251 + $0x78] sm:$0xff]
        %v341 = vld [vmem:[%s251 + $0x80] sm:$0xff]
        %v342 = vld [vmem:[%s251 + $0x88] sm:$0xff]
        %v343 = vld [vmem:[%s251 + $0x90] sm:$0xff]
        %v344 = vld [vmem:[%s251 + $0x98] sm:$0xff]
        %v345 = vld [vmem:[%s251 + $0xa0] sm:$0xff]
        %v346 = vld [vmem:[%s251 + $0xa8] sm:$0xff]
        %v347 = vld [vmem:[%s251 + $0xb0] sm:$0xff]
        %v348 = vld [vmem:[%s251 + $0xb8] sm:$0xff]
        %v349 = vld [vmem:[%s251 + $0xc0] sm:$0xff]
        %v350 = vld [vmem:[%s251 + $0xc8] sm:$0xff]
        %v351 = vld [vmem:[%s251 + $0xd0] sm:$0xff]
        %v352 = vld [vmem:[%s251 + $0xd8] sm:$0xff]
        %v353 = vld [vmem:[%s251 + $0xe0] sm:$0xff]
        %v354 = vld [vmem:[%s251 + $0xe8] sm:$0xff]
        %v355 = vld [vmem:[%s251 + $0xf0] sm:$0xff]
        %v356 = vld [vmem:[%s251 + $0xf8] sm:$0xff]
        %s357 = scalar_lea.vmem [#allocation2], 96
        %358 = vst.msk [vmem:[%s357 + $0x4] sm:$0xff] %vm252, %v325
        %359 = vst.msk [vmem:[%s357 + $0xc] sm:$0xff] %vm252, %v326
        %360 = vst.msk [vmem:[%s357 + $0x1c] sm:$0xff] %vm252, %v327
        %361 = vst.msk [vmem:[%s357 + $0x24] sm:$0xff] %vm252, %v328
        %362 = vst.msk [vmem:[%s357 + $0x34] sm:$0xff] %vm252, %v329
        %363 = vst.msk [vmem:[%s357 + $0x3c] sm:$0xff] %vm252, %v330
        %364 = vst.msk [vmem:[%s357 + $0x4c] sm:$0xff] %vm252, %v331
        %365 = vst.msk [vmem:[%s357 + $0x54] sm:$0xff] %vm252, %v332
        %366 = vst.msk [vmem:[%s357 + $0x64] sm:$0xff] %vm252, %v333
        %367 = vst.msk [vmem:[%s357 + $0x6c] sm:$0xff] %vm252, %v334
        %368 = vst.msk [vmem:[%s357 + $0x7c] sm:$0xff] %vm252, %v335
        %369 = vst.msk [vmem:[%s357 + $0x84] sm:$0xff] %vm252, %v336
        %370 = vst.msk [vmem:[%s357 + $0x94] sm:$0xff] %vm252, %v337
        %371 = vst.msk [vmem:[%s357 + $0x9c] sm:$0xff] %vm252, %v338
        %372 = vst.msk [vmem:[%s357 + $0xac] sm:$0xff] %vm252, %v339
        %373 = vst.msk [vmem:[%s357 + $0xb4] sm:$0xff] %vm252, %v340
        %374 = vst.msk [vmem:[%s357 + $0xc4] sm:$0xff] %vm252, %v341
        %375 = vst.msk [vmem:[%s357 + $0xcc] sm:$0xff] %vm252, %v342
        %376 = vst.msk [vmem:[%s357 + $0xdc] sm:$0xff] %vm252, %v343
        %377 = vst.msk [vmem:[%s357 + $0xe4] sm:$0xff] %vm252, %v344
        %378 = vst.msk [vmem:[%s357 + $0xf4] sm:$0xff] %vm252, %v345
        %379 = vst.msk [vmem:[%s357 + $0xfc] sm:$0xff] %vm252, %v346
        %380 = vst.msk [vmem:[%s357 + $0x10c] sm:$0xff] %vm252, %v347
        %381 = vst.msk [vmem:[%s357 + $0x114] sm:$0xff] %vm252, %v348
        %382 = vst.msk [vmem:[%s357 + $0x124] sm:$0xff] %vm252, %v349
        %383 = vst.msk [vmem:[%s357 + $0x12c] sm:$0xff] %vm252, %v350
        %384 = vst.msk [vmem:[%s357 + $0x13c] sm:$0xff] %vm252, %v351
        %385 = vst.msk [vmem:[%s357 + $0x144] sm:$0xff] %vm252, %v352
        %386 = vst.msk [vmem:[%s357 + $0x154] sm:$0xff] %vm252, %v353
        %387 = vst.msk [vmem:[%s357 + $0x15c] sm:$0xff] %vm252, %v354
        %388 = vst.msk [vmem:[%s357 + $0x16c] sm:$0xff] %vm252, %v355
        %389 = vst.msk [vmem:[%s357 + $0x174] sm:$0xff] %vm252, %v356
        %v390 = vld [vmem:[#allocation2] sm:$0xff]
        %v391 = vld [vmem:[#allocation2 + $0x8] sm:$0xff]
        %v392 = vld [vmem:[#allocation2 + $0x10] sm:$0xff]
        %v393 = vld [vmem:[#allocation2 + $0x18] sm:$0xff]
        %v394 = vld [vmem:[#allocation2 + $0x20] sm:$0xff]
        %v395 = vld [vmem:[#allocation2 + $0x28] sm:$0xff]
        %v396 = vld [vmem:[#allocation2 + $0x30] sm:$0xff]
        %v397 = vld [vmem:[#allocation2 + $0x38] sm:$0xff]
        %v398 = vld [vmem:[#allocation2 + $0x40] sm:$0xff]
        %v399 = vld [vmem:[#allocation2 + $0x48] sm:$0xff]
        %v400 = vld [vmem:[#allocation2 + $0x50] sm:$0xff]
        %v401 = vld [vmem:[#allocation2 + $0x58] sm:$0xff]
        %v402 = vld [vmem:[#allocation2 + $0x60] sm:$0xff]
        %v403 = vld [vmem:[#allocation2 + $0x68] sm:$0xff]
        %v404 = vld [vmem:[#allocation2 + $0x70] sm:$0xff]
        %v405 = vld [vmem:[#allocation2 + $0x78] sm:$0xff]
        %v406 = vld [vmem:[#allocation2 + $0x80] sm:$0xff]
        %v407 = vld [vmem:[#allocation2 + $0x88] sm:$0xff]
        %v408 = vld [vmem:[#allocation2 + $0x90] sm:$0xff]
        %v409 = vld [vmem:[#allocation2 + $0x98] sm:$0xff]
        %v410 = vld [vmem:[#allocation2 + $0xa0] sm:$0xff]
        %v411 = vld [vmem:[#allocation2 + $0xa8] sm:$0xff]
        %v412 = vld [vmem:[#allocation2 + $0xb0] sm:$0xff]
        %v413 = vld [vmem:[#allocation2 + $0xb8] sm:$0xff]
        %v414 = vld [vmem:[#allocation2 + $0xc0] sm:$0xff]
        %v415 = vld [vmem:[#allocation2 + $0xc8] sm:$0xff]
        %v416 = vld [vmem:[#allocation2 + $0xd0] sm:$0xff]
        %v417 = vld [vmem:[#allocation2 + $0xd8] sm:$0xff]
        %v418 = vld [vmem:[#allocation2 + $0xe0] sm:$0xff]
        %v419 = vld [vmem:[#allocation2 + $0xe8] sm:$0xff]
        %v420 = vld [vmem:[#allocation2 + $0xf0] sm:$0xff]
        %v421 = vld [vmem:[#allocation2 + $0xf8] sm:$0xff]
        %v422 = vld [vmem:[#allocation2 + $0x100] sm:$0xff]
        %v423 = vld [vmem:[#allocation2 + $0x108] sm:$0xff]
        %v424 = vld [vmem:[#allocation2 + $0x110] sm:$0xff]
        %v425 = vld [vmem:[#allocation2 + $0x118] sm:$0xff]
        %v426 = vld [vmem:[#allocation2 + $0x120] sm:$0xff]
        %v427 = vld [vmem:[#allocation2 + $0x128] sm:$0xff]
        %v428 = vld [vmem:[#allocation2 + $0x130] sm:$0xff]
        %v429 = vld [vmem:[#allocation2 + $0x138] sm:$0xff]
        %v430 = vld [vmem:[#allocation2 + $0x140] sm:$0xff]
        %v431 = vld [vmem:[#allocation2 + $0x148] sm:$0xff]
        %v432 = vld [vmem:[#allocation2 + $0x150] sm:$0xff]
        %v433 = vld [vmem:[#allocation2 + $0x158] sm:$0xff]
        %v434 = vld [vmem:[#allocation2 + $0x160] sm:$0xff]
        %v435 = vld [vmem:[#allocation2 + $0x168] sm:$0xff]
        %v436 = vld [vmem:[#allocation2 + $0x170] sm:$0xff]
        %v437 = vld [vmem:[#allocation2 + $0x178] sm:$0xff]
        %v438 = vld [vmem:[#allocation2 + $0x180] sm:$0xff]
        %v439 = vld [vmem:[#allocation2 + $0x188] sm:$0xff]
        %v440 = vld [vmem:[#allocation2 + $0x190] sm:$0xff]
        %v441 = vld [vmem:[#allocation2 + $0x198] sm:$0xff]
        %v442 = vld [vmem:[#allocation2 + $0x1a0] sm:$0xff]
        %v443 = vld [vmem:[#allocation2 + $0x1a8] sm:$0xff]
        %v444 = vld [vmem:[#allocation2 + $0x1b0] sm:$0xff]
        %v445 = vld [vmem:[#allocation2 + $0x1b8] sm:$0xff]
        %v446 = vld [vmem:[#allocation2 + $0x1c0] sm:$0xff]
        %v447 = vld [vmem:[#allocation2 + $0x1c8] sm:$0xff]
        %v448 = vld [vmem:[#allocation2 + $0x1d0] sm:$0xff]
        %v449 = vld [vmem:[#allocation2 + $0x1d8] sm:$0xff]
        %v450 = vld [vmem:[#allocation2 + $0x1e0] sm:$0xff]
        %v451 = vld [vmem:[#allocation2 + $0x1e8] sm:$0xff]
        %v452 = vld [vmem:[#allocation2 + $0x1f0] sm:$0xff]
        %v453 = vld [vmem:[#allocation2 + $0x1f8] sm:$0xff]
        %v454 = vld [vmem:[#allocation2 + $0x200] sm:$0xff]
        %v455 = vld [vmem:[#allocation2 + $0x208] sm:$0xff]
        %v456 = vld [vmem:[#allocation2 + $0x210] sm:$0xff]
        %v457 = vld [vmem:[#allocation2 + $0x218] sm:$0xff]
        %v458 = vld [vmem:[#allocation2 + $0x220] sm:$0xff]
        %v459 = vld [vmem:[#allocation2 + $0x228] sm:$0xff]
        %v460 = vld [vmem:[#allocation2 + $0x230] sm:$0xff]
        %v461 = vld [vmem:[#allocation2 + $0x238] sm:$0xff]
        %vm510 = vcmask 1046528
        %v511 = vrot.slane %v390, 1
        %v512 = vrot.slane %v391, 1
        %v513 = vsel %vm510, %v511, %v512
        %v514 = vrot.slane %v392, 1
        %v515 = vsel %vm510, %v512, %v514
        %v516 = vrot.slane %v393, 1
        %v517 = vrot.slane %v394, 1
        %v518 = vsel %vm510, %v516, %v517
        %v519 = vrot.slane %v395, 1
        %v520 = vsel %vm510, %v517, %v519
        %v521 = vrot.slane %v396, 1
        %v522 = vrot.slane %v397, 1
        %v523 = vsel %vm510, %v521, %v522
        %v524 = vrot.slane %v398, 1
        %v525 = vsel %vm510, %v522, %v524
        %v526 = vrot.slane %v399, 1
        %v527 = vrot.slane %v400, 1
        %v528 = vsel %vm510, %v526, %v527
        %v529 = vrot.slane %v401, 1
        %v530 = vsel %vm510, %v527, %v529
        %v531 = vrot.slane %v402, 1
        %v532 = vrot.slane %v403, 1
        %v533 = vsel %vm510, %v531, %v532
        %v534 = vrot.slane %v404, 1
        %v535 = vsel %vm510, %v532, %v534
        %v536 = vrot.slane %v405, 1
        %v537 = vrot.slane %v406, 1
        %v538 = vsel %vm510, %v536, %v537
        %v539 = vrot.slane %v407, 1
        %v540 = vsel %vm510, %v537, %v539
        %v541 = vrot.slane %v408, 1
        %v542 = vrot.slane %v409, 1
        %v543 = vsel %vm510, %v541, %v542
        %v544 = vrot.slane %v410, 1
        %v545 = vsel %vm510, %v542, %v544
        %v546 = vrot.slane %v411, 1
        %v547 = vrot.slane %v412, 1
        %v548 = vsel %vm510, %v546, %v547
        %v549 = vrot.slane %v413, 1
        %v550 = vsel %vm510, %v547, %v549
        %v551 = vrot.slane %v414, 1
        %v552 = vrot.slane %v415, 1
        %v553 = vsel %vm510, %v551, %v552
        %v554 = vrot.slane %v416, 1
        %v555 = vsel %vm510, %v552, %v554
        %v556 = vrot.slane %v417, 1
        %v557 = vrot.slane %v418, 1
        %v558 = vsel %vm510, %v556, %v557
        %v559 = vrot.slane %v419, 1
        %v560 = vsel %vm510, %v557, %v559
        %v561 = vrot.slane %v420, 1
        %v562 = vrot.slane %v421, 1
        %v563 = vsel %vm510, %v561, %v562
        %v564 = vrot.slane %v422, 1
        %v565 = vsel %vm510, %v562, %v564
        %v566 = vrot.slane %v423, 1
        %v567 = vrot.slane %v424, 1
        %v568 = vsel %vm510, %v566, %v567
        %v569 = vrot.slane %v425, 1
        %v570 = vsel %vm510, %v567, %v569
        %v571 = vrot.slane %v426, 1
        %v572 = vrot.slane %v427, 1
        %v573 = vsel %vm510, %v571, %v572
        %v574 = vrot.slane %v428, 1
        %v575 = vsel %vm510, %v572, %v574
        %v576 = vrot.slane %v429, 1
        %v577 = vrot.slane %v430, 1
        %v578 = vsel %vm510, %v576, %v577
        %v579 = vrot.slane %v431, 1
        %v580 = vsel %vm510, %v577, %v579
        %v581 = vrot.slane %v432, 1
        %v582 = vrot.slane %v433, 1
        %v583 = vsel %vm510, %v581, %v582
        %v584 = vrot.slane %v434, 1
        %v585 = vsel %vm510, %v582, %v584
        %v586 = vrot.slane %v435, 1
        %v587 = vrot.slane %v436, 1
        %v588 = vsel %vm510, %v586, %v587
        %v589 = vrot.slane %v437, 1
        %v590 = vsel %vm510, %v587, %v589
        %591 = vrot.lane.b32.xlu0 %v513, 16
        %v592 = vpop.permute.xlu0 %591
        %593 = vrot.lane.b32.xlu0 %v515, 16
        %v594 = vpop.permute.xlu0 %593
        %595 = vrot.lane.b32.xlu0 %v518, 16
        %v596 = vpop.permute.xlu0 %595
        %597 = vrot.lane.b32.xlu0 %v520, 16
        %v598 = vpop.permute.xlu0 %597
        %599 = vrot.lane.b32.xlu0 %v523, 16
        %v600 = vpop.permute.xlu0 %599
        %601 = vrot.lane.b32.xlu0 %v525, 16
        %v602 = vpop.permute.xlu0 %601
        %603 = vrot.lane.b32.xlu0 %v528, 16
        %v604 = vpop.permute.xlu0 %603
        %605 = vrot.lane.b32.xlu0 %v530, 16
        %v606 = vpop.permute.xlu0 %605
        %607 = vrot.lane.b32.xlu0 %v533, 16
        %v608 = vpop.permute.xlu0 %607
        %609 = vrot.lane.b32.xlu0 %v535, 16
        %v610 = vpop.permute.xlu0 %609
        %611 = vrot.lane.b32.xlu0 %v538, 16
        %v612 = vpop.permute.xlu0 %611
        %613 = vrot.lane.b32.xlu0 %v540, 16
        %v614 = vpop.permute.xlu0 %613
        %615 = vrot.lane.b32.xlu0 %v543, 16
        %v616 = vpop.permute.xlu0 %615
        %617 = vrot.lane.b32.xlu0 %v545, 16
        %v618 = vpop.permute.xlu0 %617
        %619 = vrot.lane.b32.xlu0 %v548, 16
        %v620 = vpop.permute.xlu0 %619
        %621 = vrot.lane.b32.xlu0 %v550, 16
        %v622 = vpop.permute.xlu0 %621
        %623 = vrot.lane.b32.xlu0 %v553, 16
        %v624 = vpop.permute.xlu0 %623
        %625 = vrot.lane.b32.xlu0 %v555, 16
        %v626 = vpop.permute.xlu0 %625
        %627 = vrot.lane.b32.xlu0 %v558, 16
        %v628 = vpop.permute.xlu0 %627
        %629 = vrot.lane.b32.xlu0 %v560, 16
        %v630 = vpop.permute.xlu0 %629
        %631 = vrot.lane.b32.xlu0 %v563, 16
        %v632 = vpop.permute.xlu0 %631
        %633 = vrot.lane.b32.xlu0 %v565, 16
        %v634 = vpop.permute.xlu0 %633
        %635 = vrot.lane.b32.xlu0 %v568, 16
        %v636 = vpop.permute.xlu0 %635
        %637 = vrot.lane.b32.xlu0 %v570, 16
        %v638 = vpop.permute.xlu0 %637
        %639 = vrot.lane.b32.xlu0 %v573, 16
        %v640 = vpop.permute.xlu0 %639
        %641 = vrot.lane.b32.xlu0 %v575, 16
        %v642 = vpop.permute.xlu0 %641
        %643 = vrot.lane.b32.xlu0 %v578, 16
        %v644 = vpop.permute.xlu0 %643
        %645 = vrot.lane.b32.xlu0 %v580, 16
        %v646 = vpop.permute.xlu0 %645
        %647 = vrot.lane.b32.xlu0 %v583, 16
        %v648 = vpop.permute.xlu0 %647
        %649 = vrot.lane.b32.xlu0 %v585, 16
        %v650 = vpop.permute.xlu0 %649
        %651 = vrot.lane.b32.xlu0 %v588, 16
        %v652 = vpop.permute.xlu0 %651
        %653 = vrot.lane.b32.xlu0 %v590, 16
        %v654 = vpop.permute.xlu0 %653
        %vm687 = vcmask 1045504
        %v688 = vrot.slane %v390, 2
        %v689 = vrot.slane %v391, 2
        %v690 = vsel %vm687, %v688, %v689
        %v691 = vrot.slane %v392, 2
        %v692 = vsel %vm687, %v689, %v691
        %v693 = vrot.slane %v393, 2
        %v694 = vrot.slane %v394, 2
        %v695 = vsel %vm687, %v693, %v694
        %v696 = vrot.slane %v395, 2
        %v697 = vsel %vm687, %v694, %v696
        %v698 = vrot.slane %v396, 2
        %v699 = vrot.slane %v397, 2
        %v700 = vsel %vm687, %v698, %v699
        %v701 = vrot.slane %v398, 2
        %v702 = vsel %vm687, %v699, %v701
        %v703 = vrot.slane %v399, 2
        %v704 = vrot.slane %v400, 2
        %v705 = vsel %vm687, %v703, %v704
        %v706 = vrot.slane %v401, 2
        %v707 = vsel %vm687, %v704, %v706
        %v708 = vrot.slane %v402, 2
        %v709 = vrot.slane %v403, 2
        %v710 = vsel %vm687, %v708, %v709
        %v711 = vrot.slane %v404, 2
        %v712 = vsel %vm687, %v709, %v711
        %v713 = vrot.slane %v405, 2
        %v714 = vrot.slane %v406, 2
        %v715 = vsel %vm687, %v713, %v714
        %v716 = vrot.slane %v407, 2
        %v717 = vsel %vm687, %v714, %v716
        %v718 = vrot.slane %v408, 2
        %v719 = vrot.slane %v409, 2
        %v720 = vsel %vm687, %v718, %v719
        %v721 = vrot.slane %v410, 2
        %v722 = vsel %vm687, %v719, %v721
        %v723 = vrot.slane %v411, 2
        %v724 = vrot.slane %v412, 2
        %v725 = vsel %vm687, %v723, %v724
        %v726 = vrot.slane %v413, 2
        %v727 = vsel %vm687, %v724, %v726
        %v728 = vrot.slane %v414, 2
        %v729 = vrot.slane %v415, 2
        %v730 = vsel %vm687, %v728, %v729
        %v731 = vrot.slane %v416, 2
        %v732 = vsel %vm687, %v729, %v731
        %v733 = vrot.slane %v417, 2
        %v734 = vrot.slane %v418, 2
        %v735 = vsel %vm687, %v733, %v734
        %v736 = vrot.slane %v419, 2
        %v737 = vsel %vm687, %v734, %v736
        %v738 = vrot.slane %v420, 2
        %v739 = vrot.slane %v421, 2
        %v740 = vsel %vm687, %v738, %v739
        %v741 = vrot.slane %v422, 2
        %v742 = vsel %vm687, %v739, %v741
        %v743 = vrot.slane %v423, 2
        %v744 = vrot.slane %v424, 2
        %v745 = vsel %vm687, %v743, %v744
        %v746 = vrot.slane %v425, 2
        %v747 = vsel %vm687, %v744, %v746
        %v748 = vrot.slane %v426, 2
        %v749 = vrot.slane %v427, 2
        %v750 = vsel %vm687, %v748, %v749
        %v751 = vrot.slane %v428, 2
        %v752 = vsel %vm687, %v749, %v751
        %v753 = vrot.slane %v429, 2
        %v754 = vrot.slane %v430, 2
        %v755 = vsel %vm687, %v753, %v754
        %v756 = vrot.slane %v431, 2
        %v757 = vsel %vm687, %v754, %v756
        %v758 = vrot.slane %v432, 2
        %v759 = vrot.slane %v433, 2
        %v760 = vsel %vm687, %v758, %v759
        %v761 = vrot.slane %v434, 2
        %v762 = vsel %vm687, %v759, %v761
        %v763 = vrot.slane %v435, 2
        %v764 = vrot.slane %v436, 2
        %v765 = vsel %vm687, %v763, %v764
        %v766 = vrot.slane %v437, 2
        %v767 = vsel %vm687, %v764, %v766
        %768 = vrot.lane.b32.xlu0 %v690, 32
        %v769 = vpop.permute.xlu0 %768
        %770 = vrot.lane.b32.xlu0 %v692, 32
        %v771 = vpop.permute.xlu0 %770
        %772 = vrot.lane.b32.xlu0 %v695, 32
        %v773 = vpop.permute.xlu0 %772
        %774 = vrot.lane.b32.xlu0 %v697, 32
        %v775 = vpop.permute.xlu0 %774
        %776 = vrot.lane.b32.xlu0 %v700, 32
        %v777 = vpop.permute.xlu0 %776
        %778 = vrot.lane.b32.xlu0 %v702, 32
        %v779 = vpop.permute.xlu0 %778
        %780 = vrot.lane.b32.xlu0 %v705, 32
        %v781 = vpop.permute.xlu0 %780
        %782 = vrot.lane.b32.xlu0 %v707, 32
        %v783 = vpop.permute.xlu0 %782
        %784 = vrot.lane.b32.xlu0 %v710, 32
        %v785 = vpop.permute.xlu0 %784
        %786 = vrot.lane.b32.xlu0 %v712, 32
        %v787 = vpop.permute.xlu0 %786
        %788 = vrot.lane.b32.xlu0 %v715, 32
        %v789 = vpop.permute.xlu0 %788
        %790 = vrot.lane.b32.xlu0 %v717, 32
        %v791 = vpop.permute.xlu0 %790
        %792 = vrot.lane.b32.xlu0 %v720, 32
        %v793 = vpop.permute.xlu0 %792
        %794 = vrot.lane.b32.xlu0 %v722, 32
        %v795 = vpop.permute.xlu0 %794
        %796 = vrot.lane.b32.xlu0 %v725, 32
        %v797 = vpop.permute.xlu0 %796
        %798 = vrot.lane.b32.xlu0 %v727, 32
        %v799 = vpop.permute.xlu0 %798
        %800 = vrot.lane.b32.xlu0 %v730, 32
        %v801 = vpop.permute.xlu0 %800
        %802 = vrot.lane.b32.xlu0 %v732, 32
        %v803 = vpop.permute.xlu0 %802
        %804 = vrot.lane.b32.xlu0 %v735, 32
        %v805 = vpop.permute.xlu0 %804
        %806 = vrot.lane.b32.xlu0 %v737, 32
        %v807 = vpop.permute.xlu0 %806
        %808 = vrot.lane.b32.xlu0 %v740, 32
        %v809 = vpop.permute.xlu0 %808
        %810 = vrot.lane.b32.xlu0 %v742, 32
        %v811 = vpop.permute.xlu0 %810
        %812 = vrot.lane.b32.xlu0 %v745, 32
        %v813 = vpop.permute.xlu0 %812
        %814 = vrot.lane.b32.xlu0 %v747, 32
        %v815 = vpop.permute.xlu0 %814
        %816 = vrot.lane.b32.xlu0 %v750, 32
        %v817 = vpop.permute.xlu0 %816
        %818 = vrot.lane.b32.xlu0 %v752, 32
        %v819 = vpop.permute.xlu0 %818
        %820 = vrot.lane.b32.xlu0 %v755, 32
        %v821 = vpop.permute.xlu0 %820
        %822 = vrot.lane.b32.xlu0 %v757, 32
        %v823 = vpop.permute.xlu0 %822
        %824 = vrot.lane.b32.xlu0 %v760, 32
        %v825 = vpop.permute.xlu0 %824
        %826 = vrot.lane.b32.xlu0 %v762, 32
        %v827 = vpop.permute.xlu0 %826
        %828 = vrot.lane.b32.xlu0 %v765, 32
        %v829 = vpop.permute.xlu0 %828
        %830 = vrot.lane.b32.xlu0 %v767, 32
        %v831 = vpop.permute.xlu0 %830
        %vm864 = vcmask 1044480
        %v865 = vrot.slane %v390, 3
        %v866 = vrot.slane %v391, 3
        %v867 = vsel %vm864, %v865, %v866
        %v868 = vrot.slane %v392, 3
        %v869 = vsel %vm864, %v866, %v868
        %v870 = vrot.slane %v393, 3
        %v871 = vrot.slane %v394, 3
        %v872 = vsel %vm864, %v870, %v871
        %v873 = vrot.slane %v395, 3
        %v874 = vsel %vm864, %v871, %v873
        %v875 = vrot.slane %v396, 3
        %v876 = vrot.slane %v397, 3
        %v877 = vsel %vm864, %v875, %v876
        %v878 = vrot.slane %v398, 3
        %v879 = vsel %vm864, %v876, %v878
        %v880 = vrot.slane %v399, 3
        %v881 = vrot.slane %v400, 3
        %v882 = vsel %vm864, %v880, %v881
        %v883 = vrot.slane %v401, 3
        %v884 = vsel %vm864, %v881, %v883
        %v885 = vrot.slane %v402, 3
        %v886 = vrot.slane %v403, 3
        %v887 = vsel %vm864, %v885, %v886
        %v888 = vrot.slane %v404, 3
        %v889 = vsel %vm864, %v886, %v888
        %v890 = vrot.slane %v405, 3
        %v891 = vrot.slane %v406, 3
        %v892 = vsel %vm864, %v890, %v891
        %v893 = vrot.slane %v407, 3
        %v894 = vsel %vm864, %v891, %v893
        %v895 = vrot.slane %v408, 3
        %v896 = vrot.slane %v409, 3
        %v897 = vsel %vm864, %v895, %v896
        %v898 = vrot.slane %v410, 3
        %v899 = vsel %vm864, %v896, %v898
        %v900 = vrot.slane %v411, 3
        %v901 = vrot.slane %v412, 3
        %v902 = vsel %vm864, %v900, %v901
        %v903 = vrot.slane %v413, 3
        %v904 = vsel %vm864, %v901, %v903
        %v905 = vrot.slane %v414, 3
        %v906 = vrot.slane %v415, 3
        %v907 = vsel %vm864, %v905, %v906
        %v908 = vrot.slane %v416, 3
        %v909 = vsel %vm864, %v906, %v908
        %v910 = vrot.slane %v417, 3
        %v911 = vrot.slane %v418, 3
        %v912 = vsel %vm864, %v910, %v911
        %v913 = vrot.slane %v419, 3
        %v914 = vsel %vm864, %v911, %v913
        %v915 = vrot.slane %v420, 3
        %v916 = vrot.slane %v421, 3
        %v917 = vsel %vm864, %v915, %v916
        %v918 = vrot.slane %v422, 3
        %v919 = vsel %vm864, %v916, %v918
        %v920 = vrot.slane %v423, 3
        %v921 = vrot.slane %v424, 3
        %v922 = vsel %vm864, %v920, %v921
        %v923 = vrot.slane %v425, 3
        %v924 = vsel %vm864, %v921, %v923
        %v925 = vrot.slane %v426, 3
        %v926 = vrot.slane %v427, 3
        %v927 = vsel %vm864, %v925, %v926
        %v928 = vrot.slane %v428, 3
        %v929 = vsel %vm864, %v926, %v928
        %v930 = vrot.slane %v429, 3
        %v931 = vrot.slane %v430, 3
        %v932 = vsel %vm864, %v930, %v931
        %v933 = vrot.slane %v431, 3
        %v934 = vsel %vm864, %v931, %v933
        %v935 = vrot.slane %v432, 3
        %v936 = vrot.slane %v433, 3
        %v937 = vsel %vm864, %v935, %v936
        %v938 = vrot.slane %v434, 3
        %v939 = vsel %vm864, %v936, %v938
        %v940 = vrot.slane %v435, 3
        %v941 = vrot.slane %v436, 3
        %v942 = vsel %vm864, %v940, %v941
        %v943 = vrot.slane %v437, 3
        %v944 = vsel %vm864, %v941, %v943
        %945 = vrot.lane.b32.xlu0 %v867, 48
        %v946 = vpop.permute.xlu0 %945
        %947 = vrot.lane.b32.xlu0 %v869, 48
        %v948 = vpop.permute.xlu0 %947
        %949 = vrot.lane.b32.xlu0 %v872, 48
        %v950 = vpop.permute.xlu0 %949
        %951 = vrot.lane.b32.xlu0 %v874, 48
        %v952 = vpop.permute.xlu0 %951
        %953 = vrot.lane.b32.xlu0 %v877, 48
        %v954 = vpop.permute.xlu0 %953
        %955 = vrot.lane.b32.xlu0 %v879, 48
        %v956 = vpop.permute.xlu0 %955
        %957 = vrot.lane.b32.xlu0 %v882, 48
        %v958 = vpop.permute.xlu0 %957
        %959 = vrot.lane.b32.xlu0 %v884, 48
        %v960 = vpop.permute.xlu0 %959
        %961 = vrot.lane.b32.xlu0 %v887, 48
        %v962 = vpop.permute.xlu0 %961
        %963 = vrot.lane.b32.xlu0 %v889, 48
        %v964 = vpop.permute.xlu0 %963
        %965 = vrot.lane.b32.xlu0 %v892, 48
        %v966 = vpop.permute.xlu0 %965
        %967 = vrot.lane.b32.xlu0 %v894, 48
        %v968 = vpop.permute.xlu0 %967
        %969 = vrot.lane.b32.xlu0 %v897, 48
        %v970 = vpop.permute.xlu0 %969
        %971 = vrot.lane.b32.xlu0 %v899, 48
        %v972 = vpop.permute.xlu0 %971
        %973 = vrot.lane.b32.xlu0 %v902, 48
        %v974 = vpop.permute.xlu0 %973
        %975 = vrot.lane.b32.xlu0 %v904, 48
        %v976 = vpop.permute.xlu0 %975
        %977 = vrot.lane.b32.xlu0 %v907, 48
        %v978 = vpop.permute.xlu0 %977
        %979 = vrot.lane.b32.xlu0 %v909, 48
        %v980 = vpop.permute.xlu0 %979
        %981 = vrot.lane.b32.xlu0 %v912, 48
        %v982 = vpop.permute.xlu0 %981
        %983 = vrot.lane.b32.xlu0 %v914, 48
        %v984 = vpop.permute.xlu0 %983
        %985 = vrot.lane.b32.xlu0 %v917, 48
        %v986 = vpop.permute.xlu0 %985
        %987 = vrot.lane.b32.xlu0 %v919, 48
        %v988 = vpop.permute.xlu0 %987
        %989 = vrot.lane.b32.xlu0 %v922, 48
        %v990 = vpop.permute.xlu0 %989
        %991 = vrot.lane.b32.xlu0 %v924, 48
        %v992 = vpop.permute.xlu0 %991
        %993 = vrot.lane.b32.xlu0 %v927, 48
        %v994 = vpop.permute.xlu0 %993
        %995 = vrot.lane.b32.xlu0 %v929, 48
        %v996 = vpop.permute.xlu0 %995
        %997 = vrot.lane.b32.xlu0 %v932, 48
        %v998 = vpop.permute.xlu0 %997
        %999 = vrot.lane.b32.xlu0 %v934, 48
        %v1000 = vpop.permute.xlu0 %999
        %1001 = vrot.lane.b32.xlu0 %v937, 48
        %v1002 = vpop.permute.xlu0 %1001
        %1003 = vrot.lane.b32.xlu0 %v939, 48
        %v1004 = vpop.permute.xlu0 %1003
        %1005 = vrot.lane.b32.xlu0 %v942, 48
        %v1006 = vpop.permute.xlu0 %1005
        %1007 = vrot.lane.b32.xlu0 %v944, 48
        %v1008 = vpop.permute.xlu0 %1007
        %vm1041 = vcmask 1043456
        %v1042 = vrot.slane %v390, 4
        %v1043 = vrot.slane %v391, 4
        %v1044 = vsel %vm1041, %v1042, %v1043
        %v1045 = vrot.slane %v392, 4
        %v1046 = vsel %vm1041, %v1043, %v1045
        %v1047 = vrot.slane %v393, 4
        %v1048 = vrot.slane %v394, 4
        %v1049 = vsel %vm1041, %v1047, %v1048
        %v1050 = vrot.slane %v395, 4
        %v1051 = vsel %vm1041, %v1048, %v1050
        %v1052 = vrot.slane %v396, 4
        %v1053 = vrot.slane %v397, 4
        %v1054 = vsel %vm1041, %v1052, %v1053
        %v1055 = vrot.slane %v398, 4
        %v1056 = vsel %vm1041, %v1053, %v1055
        %v1057 = vrot.slane %v399, 4
        %v1058 = vrot.slane %v400, 4
        %v1059 = vsel %vm1041, %v1057, %v1058
        %v1060 = vrot.slane %v401, 4
        %v1061 = vsel %vm1041, %v1058, %v1060
        %v1062 = vrot.slane %v402, 4
        %v1063 = vrot.slane %v403, 4
        %v1064 = vsel %vm1041, %v1062, %v1063
        %v1065 = vrot.slane %v404, 4
        %v1066 = vsel %vm1041, %v1063, %v1065
        %v1067 = vrot.slane %v405, 4
        %v1068 = vrot.slane %v406, 4
        %v1069 = vsel %vm1041, %v1067, %v1068
        %v1070 = vrot.slane %v407, 4
        %v1071 = vsel %vm1041, %v1068, %v1070
        %v1072 = vrot.slane %v408, 4
        %v1073 = vrot.slane %v409, 4
        %v1074 = vsel %vm1041, %v1072, %v1073
        %v1075 = vrot.slane %v410, 4
        %v1076 = vsel %vm1041, %v1073, %v1075
        %v1077 = vrot.slane %v411, 4
        %v1078 = vrot.slane %v412, 4
        %v1079 = vsel %vm1041, %v1077, %v1078
        %v1080 = vrot.slane %v413, 4
        %v1081 = vsel %vm1041, %v1078, %v1080
        %v1082 = vrot.slane %v414, 4
        %v1083 = vrot.slane %v415, 4
        %v1084 = vsel %vm1041, %v1082, %v1083
        %v1085 = vrot.slane %v416, 4
        %v1086 = vsel %vm1041, %v1083, %v1085
        %v1087 = vrot.slane %v417, 4
        %v1088 = vrot.slane %v418, 4
        %v1089 = vsel %vm1041, %v1087, %v1088
        %v1090 = vrot.slane %v419, 4
        %v1091 = vsel %vm1041, %v1088, %v1090
        %v1092 = vrot.slane %v420, 4
        %v1093 = vrot.slane %v421, 4
        %v1094 = vsel %vm1041, %v1092, %v1093
        %v1095 = vrot.slane %v422, 4
        %v1096 = vsel %vm1041, %v1093, %v1095
        %v1097 = vrot.slane %v423, 4
        %v1098 = vrot.slane %v424, 4
        %v1099 = vsel %vm1041, %v1097, %v1098
        %v1100 = vrot.slane %v425, 4
        %v1101 = vsel %vm1041, %v1098, %v1100
        %v1102 = vrot.slane %v426, 4
        %v1103 = vrot.slane %v427, 4
        %v1104 = vsel %vm1041, %v1102, %v1103
        %v1105 = vrot.slane %v428, 4
        %v1106 = vsel %vm1041, %v1103, %v1105
        %v1107 = vrot.slane %v429, 4
        %v1108 = vrot.slane %v430, 4
        %v1109 = vsel %vm1041, %v1107, %v1108
        %v1110 = vrot.slane %v431, 4
        %v1111 = vsel %vm1041, %v1108, %v1110
        %v1112 = vrot.slane %v432, 4
        %v1113 = vrot.slane %v433, 4
        %v1114 = vsel %vm1041, %v1112, %v1113
        %v1115 = vrot.slane %v434, 4
        %v1116 = vsel %vm1041, %v1113, %v1115
        %v1117 = vrot.slane %v435, 4
        %v1118 = vrot.slane %v436, 4
        %v1119 = vsel %vm1041, %v1117, %v1118
        %v1120 = vrot.slane %v437, 4
        %v1121 = vsel %vm1041, %v1118, %v1120
        %1122 = vrot.lane.b32.xlu0 %v1044, 64
        %v1123 = vpop.permute.xlu0 %1122
        %1124 = vrot.lane.b32.xlu0 %v1046, 64
        %v1125 = vpop.permute.xlu0 %1124
        %1126 = vrot.lane.b32.xlu0 %v1049, 64
        %v1127 = vpop.permute.xlu0 %1126
        %1128 = vrot.lane.b32.xlu0 %v1051, 64
        %v1129 = vpop.permute.xlu0 %1128
        %1130 = vrot.lane.b32.xlu0 %v1054, 64
        %v1131 = vpop.permute.xlu0 %1130
        %1132 = vrot.lane.b32.xlu0 %v1056, 64
        %v1133 = vpop.permute.xlu0 %1132
        %1134 = vrot.lane.b32.xlu0 %v1059, 64
        %v1135 = vpop.permute.xlu0 %1134
        %1136 = vrot.lane.b32.xlu0 %v1061, 64
        %v1137 = vpop.permute.xlu0 %1136
        %1138 = vrot.lane.b32.xlu0 %v1064, 64
        %v1139 = vpop.permute.xlu0 %1138
        %1140 = vrot.lane.b32.xlu0 %v1066, 64
        %v1141 = vpop.permute.xlu0 %1140
        %1142 = vrot.lane.b32.xlu0 %v1069, 64
        %v1143 = vpop.permute.xlu0 %1142
        %1144 = vrot.lane.b32.xlu0 %v1071, 64
        %v1145 = vpop.permute.xlu0 %1144
        %1146 = vrot.lane.b32.xlu0 %v1074, 64
        %v1147 = vpop.permute.xlu0 %1146
        %1148 = vrot.lane.b32.xlu0 %v1076, 64
        %v1149 = vpop.permute.xlu0 %1148
        %1150 = vrot.lane.b32.xlu0 %v1079, 64
        %v1151 = vpop.permute.xlu0 %1150
        %1152 = vrot.lane.b32.xlu0 %v1081, 64
        %v1153 = vpop.permute.xlu0 %1152
        %1154 = vrot.lane.b32.xlu0 %v1084, 64
        %v1155 = vpop.permute.xlu0 %1154
        %1156 = vrot.lane.b32.xlu0 %v1086, 64
        %v1157 = vpop.permute.xlu0 %1156
        %1158 = vrot.lane.b32.xlu0 %v1089, 64
        %v1159 = vpop.permute.xlu0 %1158
        %1160 = vrot.lane.b32.xlu0 %v1091, 64
        %v1161 = vpop.permute.xlu0 %1160
        %1162 = vrot.lane.b32.xlu0 %v1094, 64
        %v1163 = vpop.permute.xlu0 %1162
        %1164 = vrot.lane.b32.xlu0 %v1096, 64
        %v1165 = vpop.permute.xlu0 %1164
        %1166 = vrot.lane.b32.xlu0 %v1099, 64
        %v1167 = vpop.permute.xlu0 %1166
        %1168 = vrot.lane.b32.xlu0 %v1101, 64
        %v1169 = vpop.permute.xlu0 %1168
        %1170 = vrot.lane.b32.xlu0 %v1104, 64
        %v1171 = vpop.permute.xlu0 %1170
        %1172 = vrot.lane.b32.xlu0 %v1106, 64
        %v1173 = vpop.permute.xlu0 %1172
        %1174 = vrot.lane.b32.xlu0 %v1109, 64
        %v1175 = vpop.permute.xlu0 %1174
        %1176 = vrot.lane.b32.xlu0 %v1111, 64
        %v1177 = vpop.permute.xlu0 %1176
        %1178 = vrot.lane.b32.xlu0 %v1114, 64
        %v1179 = vpop.permute.xlu0 %1178
        %1180 = vrot.lane.b32.xlu0 %v1116, 64
        %v1181 = vpop.permute.xlu0 %1180
        %1182 = vrot.lane.b32.xlu0 %v1119, 64
        %v1183 = vpop.permute.xlu0 %1182
        %1184 = vrot.lane.b32.xlu0 %v1121, 64
        %v1185 = vpop.permute.xlu0 %1184
        %vm1218 = vcmask 1042432
        %v1219 = vrot.slane %v390, 5
        %v1220 = vrot.slane %v391, 5
        %v1221 = vsel %vm1218, %v1219, %v1220
        %v1222 = vrot.slane %v392, 5
        %v1223 = vsel %vm1218, %v1220, %v1222
        %v1224 = vrot.slane %v393, 5
        %v1225 = vrot.slane %v394, 5
        %v1226 = vsel %vm1218, %v1224, %v1225
        %v1227 = vrot.slane %v395, 5
        %v1228 = vsel %vm1218, %v1225, %v1227
        %v1229 = vrot.slane %v396, 5
        %v1230 = vrot.slane %v397, 5
        %v1231 = vsel %vm1218, %v1229, %v1230
        %v1232 = vrot.slane %v398, 5
        %v1233 = vsel %vm1218, %v1230, %v1232
        %v1234 = vrot.slane %v399, 5
        %v1235 = vrot.slane %v400, 5
        %v1236 = vsel %vm1218, %v1234, %v1235
        %v1237 = vrot.slane %v401, 5
        %v1238 = vsel %vm1218, %v1235, %v1237
        %v1239 = vrot.slane %v402, 5
        %v1240 = vrot.slane %v403, 5
        %v1241 = vsel %vm1218, %v1239, %v1240
        %v1242 = vrot.slane %v404, 5
        %v1243 = vsel %vm1218, %v1240, %v1242
        %v1244 = vrot.slane %v405, 5
        %v1245 = vrot.slane %v406, 5
        %v1246 = vsel %vm1218, %v1244, %v1245
        %v1247 = vrot.slane %v407, 5
        %v1248 = vsel %vm1218, %v1245, %v1247
        %v1249 = vrot.slane %v408, 5
        %v1250 = vrot.slane %v409, 5
        %v1251 = vsel %vm1218, %v1249, %v1250
        %v1252 = vrot.slane %v410, 5
        %v1253 = vsel %vm1218, %v1250, %v1252
        %v1254 = vrot.slane %v411, 5
        %v1255 = vrot.slane %v412, 5
        %v1256 = vsel %vm1218, %v1254, %v1255
        %v1257 = vrot.slane %v413, 5
        %v1258 = vsel %vm1218, %v1255, %v1257
        %v1259 = vrot.slane %v414, 5
        %v1260 = vrot.slane %v415, 5
        %v1261 = vsel %vm1218, %v1259, %v1260
        %v1262 = vrot.slane %v416, 5
        %v1263 = vsel %vm1218, %v1260, %v1262
        %v1264 = vrot.slane %v417, 5
        %v1265 = vrot.slane %v418, 5
        %v1266 = vsel %vm1218, %v1264, %v1265
        %v1267 = vrot.slane %v419, 5
        %v1268 = vsel %vm1218, %v1265, %v1267
        %v1269 = vrot.slane %v420, 5
        %v1270 = vrot.slane %v421, 5
        %v1271 = vsel %vm1218, %v1269, %v1270
        %v1272 = vrot.slane %v422, 5
        %v1273 = vsel %vm1218, %v1270, %v1272
        %v1274 = vrot.slane %v423, 5
        %v1275 = vrot.slane %v424, 5
        %v1276 = vsel %vm1218, %v1274, %v1275
        %v1277 = vrot.slane %v425, 5
        %v1278 = vsel %vm1218, %v1275, %v1277
        %v1279 = vrot.slane %v426, 5
        %v1280 = vrot.slane %v427, 5
        %v1281 = vsel %vm1218, %v1279, %v1280
        %v1282 = vrot.slane %v428, 5
        %v1283 = vsel %vm1218, %v1280, %v1282
        %v1284 = vrot.slane %v429, 5
        %v1285 = vrot.slane %v430, 5
        %v1286 = vsel %vm1218, %v1284, %v1285
        %v1287 = vrot.slane %v431, 5
        %v1288 = vsel %vm1218, %v1285, %v1287
        %v1289 = vrot.slane %v432, 5
        %v1290 = vrot.slane %v433, 5
        %v1291 = vsel %vm1218, %v1289, %v1290
        %v1292 = vrot.slane %v434, 5
        %v1293 = vsel %vm1218, %v1290, %v1292
        %v1294 = vrot.slane %v435, 5
        %v1295 = vrot.slane %v436, 5
        %v1296 = vsel %vm1218, %v1294, %v1295
        %v1297 = vrot.slane %v437, 5
        %v1298 = vsel %vm1218, %v1295, %v1297
        %1299 = vrot.lane.b32.xlu0 %v1221, 80
        %v1300 = vpop.permute.xlu0 %1299
        %1301 = vrot.lane.b32.xlu0 %v1223, 80
        %v1302 = vpop.permute.xlu0 %1301
        %1303 = vrot.lane.b32.xlu0 %v1226, 80
        %v1304 = vpop.permute.xlu0 %1303
        %1305 = vrot.lane.b32.xlu0 %v1228, 80
        %v1306 = vpop.permute.xlu0 %1305
        %1307 = vrot.lane.b32.xlu0 %v1231, 80
        %v1308 = vpop.permute.xlu0 %1307
        %1309 = vrot.lane.b32.xlu0 %v1233, 80
        %v1310 = vpop.permute.xlu0 %1309
        %1311 = vrot.lane.b32.xlu0 %v1236, 80
        %v1312 = vpop.permute.xlu0 %1311
        %1313 = vrot.lane.b32.xlu0 %v1238, 80
        %v1314 = vpop.permute.xlu0 %1313
        %1315 = vrot.lane.b32.xlu0 %v1241, 80
        %v1316 = vpop.permute.xlu0 %1315
        %1317 = vrot.lane.b32.xlu0 %v1243, 80
        %v1318 = vpop.permute.xlu0 %1317
        %1319 = vrot.lane.b32.xlu0 %v1246, 80
        %v1320 = vpop.permute.xlu0 %1319
        %1321 = vrot.lane.b32.xlu0 %v1248, 80
        %v1322 = vpop.permute.xlu0 %1321
        %1323 = vrot.lane.b32.xlu0 %v1251, 80
        %v1324 = vpop.permute.xlu0 %1323
        %1325 = vrot.lane.b32.xlu0 %v1253, 80
        %v1326 = vpop.permute.xlu0 %1325
        %1327 = vrot.lane.b32.xlu0 %v1256, 80
        %v1328 = vpop.permute.xlu0 %1327
        %1329 = vrot.lane.b32.xlu0 %v1258, 80
        %v1330 = vpop.permute.xlu0 %1329
        %1331 = vrot.lane.b32.xlu0 %v1261, 80
        %v1332 = vpop.permute.xlu0 %1331
        %1333 = vrot.lane.b32.xlu0 %v1263, 80
        %v1334 = vpop.permute.xlu0 %1333
        %1335 = vrot.lane.b32.xlu0 %v1266, 80
        %v1336 = vpop.permute.xlu0 %1335
        %1337 = vrot.lane.b32.xlu0 %v1268, 80
        %v1338 = vpop.permute.xlu0 %1337
        %1339 = vrot.lane.b32.xlu0 %v1271, 80
        %v1340 = vpop.permute.xlu0 %1339
        %1341 = vrot.lane.b32.xlu0 %v1273, 80
        %v1342 = vpop.permute.xlu0 %1341
        %1343 = vrot.lane.b32.xlu0 %v1276, 80
        %v1344 = vpop.permute.xlu0 %1343
        %1345 = vrot.lane.b32.xlu0 %v1278, 80
        %v1346 = vpop.permute.xlu0 %1345
        %1347 = vrot.lane.b32.xlu0 %v1281, 80
        %v1348 = vpop.permute.xlu0 %1347
        %1349 = vrot.lane.b32.xlu0 %v1283, 80
        %v1350 = vpop.permute.xlu0 %1349
        %1351 = vrot.lane.b32.xlu0 %v1286, 80
        %v1352 = vpop.permute.xlu0 %1351
        %1353 = vrot.lane.b32.xlu0 %v1288, 80
        %v1354 = vpop.permute.xlu0 %1353
        %1355 = vrot.lane.b32.xlu0 %v1291, 80
        %v1356 = vpop.permute.xlu0 %1355
        %1357 = vrot.lane.b32.xlu0 %v1293, 80
        %v1358 = vpop.permute.xlu0 %1357
        %1359 = vrot.lane.b32.xlu0 %v1296, 80
        %v1360 = vpop.permute.xlu0 %1359
        %1361 = vrot.lane.b32.xlu0 %v1298, 80
        %v1362 = vpop.permute.xlu0 %1361
        %vm1395 = vcmask 1041408
        %v1396 = vrot.slane %v390, 6
        %v1397 = vrot.slane %v391, 6
        %v1398 = vsel %vm1395, %v1396, %v1397
        %v1399 = vrot.slane %v392, 6
        %v1400 = vsel %vm1395, %v1397, %v1399
        %v1401 = vrot.slane %v393, 6
        %v1402 = vrot.slane %v394, 6
        %v1403 = vsel %vm1395, %v1401, %v1402
        %v1404 = vrot.slane %v395, 6
        %v1405 = vsel %vm1395, %v1402, %v1404
        %v1406 = vrot.slane %v396, 6
        %v1407 = vrot.slane %v397, 6
        %v1408 = vsel %vm1395, %v1406, %v1407
        %v1409 = vrot.slane %v398, 6
        %v1410 = vsel %vm1395, %v1407, %v1409
        %v1411 = vrot.slane %v399, 6
        %v1412 = vrot.slane %v400, 6
        %v1413 = vsel %vm1395, %v1411, %v1412
        %v1414 = vrot.slane %v401, 6
        %v1415 = vsel %vm1395, %v1412, %v1414
        %v1416 = vrot.slane %v402, 6
        %v1417 = vrot.slane %v403, 6
        %v1418 = vsel %vm1395, %v1416, %v1417
        %v1419 = vrot.slane %v404, 6
        %v1420 = vsel %vm1395, %v1417, %v1419
        %v1421 = vrot.slane %v405, 6
        %v1422 = vrot.slane %v406, 6
        %v1423 = vsel %vm1395, %v1421, %v1422
        %v1424 = vrot.slane %v407, 6
        %v1425 = vsel %vm1395, %v1422, %v1424
        %v1426 = vrot.slane %v408, 6
        %v1427 = vrot.slane %v409, 6
        %v1428 = vsel %vm1395, %v1426, %v1427
        %v1429 = vrot.slane %v410, 6
        %v1430 = vsel %vm1395, %v1427, %v1429
        %v1431 = vrot.slane %v411, 6
        %v1432 = vrot.slane %v412, 6
        %v1433 = vsel %vm1395, %v1431, %v1432
        %v1434 = vrot.slane %v413, 6
        %v1435 = vsel %vm1395, %v1432, %v1434
        %v1436 = vrot.slane %v414, 6
        %v1437 = vrot.slane %v415, 6
        %v1438 = vsel %vm1395, %v1436, %v1437
        %v1439 = vrot.slane %v416, 6
        %v1440 = vsel %vm1395, %v1437, %v1439
        %v1441 = vrot.slane %v417, 6
        %v1442 = vrot.slane %v418, 6
        %v1443 = vsel %vm1395, %v1441, %v1442
        %v1444 = vrot.slane %v419, 6
        %v1445 = vsel %vm1395, %v1442, %v1444
        %v1446 = vrot.slane %v420, 6
        %v1447 = vrot.slane %v421, 6
        %v1448 = vsel %vm1395, %v1446, %v1447
        %v1449 = vrot.slane %v422, 6
        %v1450 = vsel %vm1395, %v1447, %v1449
        %v1451 = vrot.slane %v423, 6
        %v1452 = vrot.slane %v424, 6
        %v1453 = vsel %vm1395, %v1451, %v1452
        %v1454 = vrot.slane %v425, 6
        %v1455 = vsel %vm1395, %v1452, %v1454
        %v1456 = vrot.slane %v426, 6
        %v1457 = vrot.slane %v427, 6
        %v1458 = vsel %vm1395, %v1456, %v1457
        %v1459 = vrot.slane %v428, 6
        %v1460 = vsel %vm1395, %v1457, %v1459
        %v1461 = vrot.slane %v429, 6
        %v1462 = vrot.slane %v430, 6
        %v1463 = vsel %vm1395, %v1461, %v1462
        %v1464 = vrot.slane %v431, 6
        %v1465 = vsel %vm1395, %v1462, %v1464
        %v1466 = vrot.slane %v432, 6
        %v1467 = vrot.slane %v433, 6
        %v1468 = vsel %vm1395, %v1466, %v1467
        %v1469 = vrot.slane %v434, 6
        %v1470 = vsel %vm1395, %v1467, %v1469
        %v1471 = vrot.slane %v435, 6
        %v1472 = vrot.slane %v436, 6
        %v1473 = vsel %vm1395, %v1471, %v1472
        %v1474 = vrot.slane %v437, 6
        %v1475 = vsel %vm1395, %v1472, %v1474
        %1476 = vrot.lane.b32.xlu0 %v1398, 96
        %v1477 = vpop.permute.xlu0 %1476
        %1478 = vrot.lane.b32.xlu0 %v1400, 96
        %v1479 = vpop.permute.xlu0 %1478
        %1480 = vrot.lane.b32.xlu0 %v1403, 96
        %v1481 = vpop.permute.xlu0 %1480
        %1482 = vrot.lane.b32.xlu0 %v1405, 96
        %v1483 = vpop.permute.xlu0 %1482
        %1484 = vrot.lane.b32.xlu0 %v1408, 96
        %v1485 = vpop.permute.xlu0 %1484
        %1486 = vrot.lane.b32.xlu0 %v1410, 96
        %v1487 = vpop.permute.xlu0 %1486
        %1488 = vrot.lane.b32.xlu0 %v1413, 96
        %v1489 = vpop.permute.xlu0 %1488
        %1490 = vrot.lane.b32.xlu0 %v1415, 96
        %v1491 = vpop.permute.xlu0 %1490
        %1492 = vrot.lane.b32.xlu0 %v1418, 96
        %v1493 = vpop.permute.xlu0 %1492
        %1494 = vrot.lane.b32.xlu0 %v1420, 96
        %v1495 = vpop.permute.xlu0 %1494
        %1496 = vrot.lane.b32.xlu0 %v1423, 96
        %v1497 = vpop.permute.xlu0 %1496
        %1498 = vrot.lane.b32.xlu0 %v1425, 96
        %v1499 = vpop.permute.xlu0 %1498
        %1500 = vrot.lane.b32.xlu0 %v1428, 96
        %v1501 = vpop.permute.xlu0 %1500
        %1502 = vrot.lane.b32.xlu0 %v1430, 96
        %v1503 = vpop.permute.xlu0 %1502
        %1504 = vrot.lane.b32.xlu0 %v1433, 96
        %v1505 = vpop.permute.xlu0 %1504
        %1506 = vrot.lane.b32.xlu0 %v1435, 96
        %v1507 = vpop.permute.xlu0 %1506
        %1508 = vrot.lane.b32.xlu0 %v1438, 96
        %v1509 = vpop.permute.xlu0 %1508
        %1510 = vrot.lane.b32.xlu0 %v1440, 96
        %v1511 = vpop.permute.xlu0 %1510
        %1512 = vrot.lane.b32.xlu0 %v1443, 96
        %v1513 = vpop.permute.xlu0 %1512
        %1514 = vrot.lane.b32.xlu0 %v1445, 96
        %v1515 = vpop.permute.xlu0 %1514
        %1516 = vrot.lane.b32.xlu0 %v1448, 96
        %v1517 = vpop.permute.xlu0 %1516
        %1518 = vrot.lane.b32.xlu0 %v1450, 96
        %v1519 = vpop.permute.xlu0 %1518
        %1520 = vrot.lane.b32.xlu0 %v1453, 96
        %v1521 = vpop.permute.xlu0 %1520
        %1522 = vrot.lane.b32.xlu0 %v1455, 96
        %v1523 = vpop.permute.xlu0 %1522
        %1524 = vrot.lane.b32.xlu0 %v1458, 96
        %v1525 = vpop.permute.xlu0 %1524
        %1526 = vrot.lane.b32.xlu0 %v1460, 96
        %v1527 = vpop.permute.xlu0 %1526
        %1528 = vrot.lane.b32.xlu0 %v1463, 96
        %v1529 = vpop.permute.xlu0 %1528
        %1530 = vrot.lane.b32.xlu0 %v1465, 96
        %v1531 = vpop.permute.xlu0 %1530
        %1532 = vrot.lane.b32.xlu0 %v1468, 96
        %v1533 = vpop.permute.xlu0 %1532
        %1534 = vrot.lane.b32.xlu0 %v1470, 96
        %v1535 = vpop.permute.xlu0 %1534
        %1536 = vrot.lane.b32.xlu0 %v1473, 96
        %v1537 = vpop.permute.xlu0 %1536
        %1538 = vrot.lane.b32.xlu0 %v1475, 96
        %v1539 = vpop.permute.xlu0 %1538
        %vm1572 = vcmask 1040384
        %v1573 = vrot.slane %v390, 7
        %v1574 = vrot.slane %v391, 7
        %v1575 = vsel %vm1572, %v1573, %v1574
        %v1576 = vrot.slane %v392, 7
        %v1577 = vsel %vm1572, %v1574, %v1576
        %v1578 = vrot.slane %v393, 7
        %v1579 = vrot.slane %v394, 7
        %v1580 = vsel %vm1572, %v1578, %v1579
        %v1581 = vrot.slane %v395, 7
        %v1582 = vsel %vm1572, %v1579, %v1581
        %v1583 = vrot.slane %v396, 7
        %v1584 = vrot.slane %v397, 7
        %v1585 = vsel %vm1572, %v1583, %v1584
        %v1586 = vrot.slane %v398, 7
        %v1587 = vsel %vm1572, %v1584, %v1586
        %v1588 = vrot.slane %v399, 7
        %v1589 = vrot.slane %v400, 7
        %v1590 = vsel %vm1572, %v1588, %v1589
        %v1591 = vrot.slane %v401, 7
        %v1592 = vsel %vm1572, %v1589, %v1591
        %v1593 = vrot.slane %v402, 7
        %v1594 = vrot.slane %v403, 7
        %v1595 = vsel %vm1572, %v1593, %v1594
        %v1596 = vrot.slane %v404, 7
        %v1597 = vsel %vm1572, %v1594, %v1596
        %v1598 = vrot.slane %v405, 7
        %v1599 = vrot.slane %v406, 7
        %v1600 = vsel %vm1572, %v1598, %v1599
        %v1601 = vrot.slane %v407, 7
        %v1602 = vsel %vm1572, %v1599, %v1601
        %v1603 = vrot.slane %v408, 7
        %v1604 = vrot.slane %v409, 7
        %v1605 = vsel %vm1572, %v1603, %v1604
        %v1606 = vrot.slane %v410, 7
        %v1607 = vsel %vm1572, %v1604, %v1606
        %v1608 = vrot.slane %v411, 7
        %v1609 = vrot.slane %v412, 7
        %v1610 = vsel %vm1572, %v1608, %v1609
        %v1611 = vrot.slane %v413, 7
        %v1612 = vsel %vm1572, %v1609, %v1611
        %v1613 = vrot.slane %v414, 7
        %v1614 = vrot.slane %v415, 7
        %v1615 = vsel %vm1572, %v1613, %v1614
        %v1616 = vrot.slane %v416, 7
        %v1617 = vsel %vm1572, %v1614, %v1616
        %v1618 = vrot.slane %v417, 7
        %v1619 = vrot.slane %v418, 7
        %v1620 = vsel %vm1572, %v1618, %v1619
        %v1621 = vrot.slane %v419, 7
        %v1622 = vsel %vm1572, %v1619, %v1621
        %v1623 = vrot.slane %v420, 7
        %v1624 = vrot.slane %v421, 7
        %v1625 = vsel %vm1572, %v1623, %v1624
        %v1626 = vrot.slane %v422, 7
        %v1627 = vsel %vm1572, %v1624, %v1626
        %v1628 = vrot.slane %v423, 7
        %v1629 = vrot.slane %v424, 7
        %v1630 = vsel %vm1572, %v1628, %v1629
        %v1631 = vrot.slane %v425, 7
        %v1632 = vsel %vm1572, %v1629, %v1631
        %v1633 = vrot.slane %v426, 7
        %v1634 = vrot.slane %v427, 7
        %v1635 = vsel %vm1572, %v1633, %v1634
        %v1636 = vrot.slane %v428, 7
        %v1637 = vsel %vm1572, %v1634, %v1636
        %v1638 = vrot.slane %v429, 7
        %v1639 = vrot.slane %v430, 7
        %v1640 = vsel %vm1572, %v1638, %v1639
        %v1641 = vrot.slane %v431, 7
        %v1642 = vsel %vm1572, %v1639, %v1641
        %v1643 = vrot.slane %v432, 7
        %v1644 = vrot.slane %v433, 7
        %v1645 = vsel %vm1572, %v1643, %v1644
        %v1646 = vrot.slane %v434, 7
        %v1647 = vsel %vm1572, %v1644, %v1646
        %v1648 = vrot.slane %v435, 7
        %v1649 = vrot.slane %v436, 7
        %v1650 = vsel %vm1572, %v1648, %v1649
        %v1651 = vrot.slane %v437, 7
        %v1652 = vsel %vm1572, %v1649, %v1651
        %1653 = vrot.lane.b32.xlu0 %v1575, 112
        %v1654 = vpop.permute.xlu0 %1653
        %1655 = vrot.lane.b32.xlu0 %v1577, 112
        %v1656 = vpop.permute.xlu0 %1655
        %1657 = vrot.lane.b32.xlu0 %v1580, 112
        %v1658 = vpop.permute.xlu0 %1657
        %1659 = vrot.lane.b32.xlu0 %v1582, 112
        %v1660 = vpop.permute.xlu0 %1659
        %1661 = vrot.lane.b32.xlu0 %v1585, 112
        %v1662 = vpop.permute.xlu0 %1661
        %1663 = vrot.lane.b32.xlu0 %v1587, 112
        %v1664 = vpop.permute.xlu0 %1663
        %1665 = vrot.lane.b32.xlu0 %v1590, 112
        %v1666 = vpop.permute.xlu0 %1665
        %1667 = vrot.lane.b32.xlu0 %v1592, 112
        %v1668 = vpop.permute.xlu0 %1667
        %1669 = vrot.lane.b32.xlu0 %v1595, 112
        %v1670 = vpop.permute.xlu0 %1669
        %1671 = vrot.lane.b32.xlu0 %v1597, 112
        %v1672 = vpop.permute.xlu0 %1671
        %1673 = vrot.lane.b32.xlu0 %v1600, 112
        %v1674 = vpop.permute.xlu0 %1673
        %1675 = vrot.lane.b32.xlu0 %v1602, 112
        %v1676 = vpop.permute.xlu0 %1675
        %1677 = vrot.lane.b32.xlu0 %v1605, 112
        %v1678 = vpop.permute.xlu0 %1677
        %1679 = vrot.lane.b32.xlu0 %v1607, 112
        %v1680 = vpop.permute.xlu0 %1679
        %1681 = vrot.lane.b32.xlu0 %v1610, 112
        %v1682 = vpop.permute.xlu0 %1681
        %1683 = vrot.lane.b32.xlu0 %v1612, 112
        %v1684 = vpop.permute.xlu0 %1683
        %1685 = vrot.lane.b32.xlu0 %v1615, 112
        %v1686 = vpop.permute.xlu0 %1685
        %1687 = vrot.lane.b32.xlu0 %v1617, 112
        %v1688 = vpop.permute.xlu0 %1687
        %1689 = vrot.lane.b32.xlu0 %v1620, 112
        %v1690 = vpop.permute.xlu0 %1689
        %1691 = vrot.lane.b32.xlu0 %v1622, 112
        %v1692 = vpop.permute.xlu0 %1691
        %1693 = vrot.lane.b32.xlu0 %v1625, 112
        %v1694 = vpop.permute.xlu0 %1693
        %1695 = vrot.lane.b32.xlu0 %v1627, 112
        %v1696 = vpop.permute.xlu0 %1695
        %1697 = vrot.lane.b32.xlu0 %v1630, 112
        %v1698 = vpop.permute.xlu0 %1697
        %1699 = vrot.lane.b32.xlu0 %v1632, 112
        %v1700 = vpop.permute.xlu0 %1699
        %1701 = vrot.lane.b32.xlu0 %v1635, 112
        %v1702 = vpop.permute.xlu0 %1701
        %1703 = vrot.lane.b32.xlu0 %v1637, 112
        %v1704 = vpop.permute.xlu0 %1703
        %1705 = vrot.lane.b32.xlu0 %v1640, 112
        %v1706 = vpop.permute.xlu0 %1705
        %1707 = vrot.lane.b32.xlu0 %v1642, 112
        %v1708 = vpop.permute.xlu0 %1707
        %1709 = vrot.lane.b32.xlu0 %v1645, 112
        %v1710 = vpop.permute.xlu0 %1709
        %1711 = vrot.lane.b32.xlu0 %v1647, 112
        %v1712 = vpop.permute.xlu0 %1711
        %1713 = vrot.lane.b32.xlu0 %v1650, 112
        %v1714 = vpop.permute.xlu0 %1713
        %1715 = vrot.lane.b32.xlu0 %v1652, 112
        %v1716 = vpop.permute.xlu0 %1715
        %1751 = vrot.lane.b32.xlu0 %v393, 16
        %v1752 = vpop.permute.xlu0 %1751
        %1753 = vrot.lane.b32.xlu0 %v394, 16
        %v1754 = vpop.permute.xlu0 %1753
        %1755 = vrot.lane.b32.xlu0 %v396, 16
        %v1756 = vpop.permute.xlu0 %1755
        %1757 = vrot.lane.b32.xlu0 %v397, 16
        %v1758 = vpop.permute.xlu0 %1757
        %1759 = vrot.lane.b32.xlu0 %v399, 16
        %v1760 = vpop.permute.xlu0 %1759
        %1761 = vrot.lane.b32.xlu0 %v400, 16
        %v1762 = vpop.permute.xlu0 %1761
        %1763 = vrot.lane.b32.xlu0 %v402, 16
        %v1764 = vpop.permute.xlu0 %1763
        %1765 = vrot.lane.b32.xlu0 %v403, 16
        %v1766 = vpop.permute.xlu0 %1765
        %1767 = vrot.lane.b32.xlu0 %v405, 16
        %v1768 = vpop.permute.xlu0 %1767
        %1769 = vrot.lane.b32.xlu0 %v406, 16
        %v1770 = vpop.permute.xlu0 %1769
        %1771 = vrot.lane.b32.xlu0 %v408, 16
        %v1772 = vpop.permute.xlu0 %1771
        %1773 = vrot.lane.b32.xlu0 %v409, 16
        %v1774 = vpop.permute.xlu0 %1773
        %1775 = vrot.lane.b32.xlu0 %v411, 16
        %v1776 = vpop.permute.xlu0 %1775
        %1777 = vrot.lane.b32.xlu0 %v412, 16
        %v1778 = vpop.permute.xlu0 %1777
        %1779 = vrot.lane.b32.xlu0 %v414, 16
        %v1780 = vpop.permute.xlu0 %1779
        %1781 = vrot.lane.b32.xlu0 %v415, 16
        %v1782 = vpop.permute.xlu0 %1781
        %1783 = vrot.lane.b32.xlu0 %v417, 16
        %v1784 = vpop.permute.xlu0 %1783
        %1785 = vrot.lane.b32.xlu0 %v418, 16
        %v1786 = vpop.permute.xlu0 %1785
        %1787 = vrot.lane.b32.xlu0 %v420, 16
        %v1788 = vpop.permute.xlu0 %1787
        %1789 = vrot.lane.b32.xlu0 %v421, 16
        %v1790 = vpop.permute.xlu0 %1789
        %1791 = vrot.lane.b32.xlu0 %v423, 16
        %v1792 = vpop.permute.xlu0 %1791
        %1793 = vrot.lane.b32.xlu0 %v424, 16
        %v1794 = vpop.permute.xlu0 %1793
        %1795 = vrot.lane.b32.xlu0 %v426, 16
        %v1796 = vpop.permute.xlu0 %1795
        %1797 = vrot.lane.b32.xlu0 %v427, 16
        %v1798 = vpop.permute.xlu0 %1797
        %1799 = vrot.lane.b32.xlu0 %v429, 16
        %v1800 = vpop.permute.xlu0 %1799
        %1801 = vrot.lane.b32.xlu0 %v430, 16
        %v1802 = vpop.permute.xlu0 %1801
        %1803 = vrot.lane.b32.xlu0 %v432, 16
        %v1804 = vpop.permute.xlu0 %1803
        %1805 = vrot.lane.b32.xlu0 %v433, 16
        %v1806 = vpop.permute.xlu0 %1805
        %1807 = vrot.lane.b32.xlu0 %v435, 16
        %v1808 = vpop.permute.xlu0 %1807
        %1809 = vrot.lane.b32.xlu0 %v436, 16
        %v1810 = vpop.permute.xlu0 %1809
        %1811 = vrot.lane.b32.xlu0 %v438, 16
        %v1812 = vpop.permute.xlu0 %1811
        %1813 = vrot.lane.b32.xlu0 %v439, 16
        %v1814 = vpop.permute.xlu0 %1813
        %v1848 = vrot.slane %v438, 1
        %v1849 = vrot.slane %v439, 1
        %v1850 = vsel %vm510, %v1848, %v1849
        %v1851 = vrot.slane %v440, 1
        %v1852 = vsel %vm510, %v1849, %v1851
        %1853 = vrot.lane.b32.xlu0 %v518, 32
        %v1854 = vpop.permute.xlu0 %1853
        %1855 = vrot.lane.b32.xlu0 %v520, 32
        %v1856 = vpop.permute.xlu0 %1855
        %1857 = vrot.lane.b32.xlu0 %v523, 32
        %v1858 = vpop.permute.xlu0 %1857
        %1859 = vrot.lane.b32.xlu0 %v525, 32
        %v1860 = vpop.permute.xlu0 %1859
        %1861 = vrot.lane.b32.xlu0 %v528, 32
        %v1862 = vpop.permute.xlu0 %1861
        %1863 = vrot.lane.b32.xlu0 %v530, 32
        %v1864 = vpop.permute.xlu0 %1863
        %1865 = vrot.lane.b32.xlu0 %v533, 32
        %v1866 = vpop.permute.xlu0 %1865
        %1867 = vrot.lane.b32.xlu0 %v535, 32
        %v1868 = vpop.permute.xlu0 %1867
        %1869 = vrot.lane.b32.xlu0 %v538, 32
        %v1870 = vpop.permute.xlu0 %1869
        %1871 = vrot.lane.b32.xlu0 %v540, 32
        %v1872 = vpop.permute.xlu0 %1871
        %1873 = vrot.lane.b32.xlu0 %v543, 32
        %v1874 = vpop.permute.xlu0 %1873
        %1875 = vrot.lane.b32.xlu0 %v545, 32
        %v1876 = vpop.permute.xlu0 %1875
        %1877 = vrot.lane.b32.xlu0 %v548, 32
        %v1878 = vpop.permute.xlu0 %1877
        %1879 = vrot.lane.b32.xlu0 %v550, 32
        %v1880 = vpop.permute.xlu0 %1879
        %1881 = vrot.lane.b32.xlu0 %v553, 32
        %v1882 = vpop.permute.xlu0 %1881
        %1883 = vrot.lane.b32.xlu0 %v555, 32
        %v1884 = vpop.permute.xlu0 %1883
        %1885 = vrot.lane.b32.xlu0 %v558, 32
        %v1886 = vpop.permute.xlu0 %1885
        %1887 = vrot.lane.b32.xlu0 %v560, 32
        %v1888 = vpop.permute.xlu0 %1887
        %1889 = vrot.lane.b32.xlu0 %v563, 32
        %v1890 = vpop.permute.xlu0 %1889
        %1891 = vrot.lane.b32.xlu0 %v565, 32
        %v1892 = vpop.permute.xlu0 %1891
        %1893 = vrot.lane.b32.xlu0 %v568, 32
        %v1894 = vpop.permute.xlu0 %1893
        %1895 = vrot.lane.b32.xlu0 %v570, 32
        %v1896 = vpop.permute.xlu0 %1895
        %1897 = vrot.lane.b32.xlu0 %v573, 32
        %v1898 = vpop.permute.xlu0 %1897
        %1899 = vrot.lane.b32.xlu0 %v575, 32
        %v1900 = vpop.permute.xlu0 %1899
        %1901 = vrot.lane.b32.xlu0 %v578, 32
        %v1902 = vpop.permute.xlu0 %1901
        %1903 = vrot.lane.b32.xlu0 %v580, 32
        %v1904 = vpop.permute.xlu0 %1903
        %1905 = vrot.lane.b32.xlu0 %v583, 32
        %v1906 = vpop.permute.xlu0 %1905
        %1907 = vrot.lane.b32.xlu0 %v585, 32
        %v1908 = vpop.permute.xlu0 %1907
        %1909 = vrot.lane.b32.xlu0 %v588, 32
        %v1910 = vpop.permute.xlu0 %1909
        %1911 = vrot.lane.b32.xlu0 %v590, 32
        %v1912 = vpop.permute.xlu0 %1911
        %1913 = vrot.lane.b32.xlu0 %v1850, 32
        %v1914 = vpop.permute.xlu0 %1913
        %1915 = vrot.lane.b32.xlu0 %v1852, 32
        %v1916 = vpop.permute.xlu0 %1915
        %v1949 = vrot.slane %v438, 2
        %v1950 = vrot.slane %v439, 2
        %v1951 = vsel %vm687, %v1949, %v1950
        %v1952 = vrot.slane %v440, 2
        %v1953 = vsel %vm687, %v1950, %v1952
        %1954 = vrot.lane.b32.xlu0 %v695, 48
        %v1955 = vpop.permute.xlu0 %1954
        %1956 = vrot.lane.b32.xlu0 %v697, 48
        %v1957 = vpop.permute.xlu0 %1956
        %1958 = vrot.lane.b32.xlu0 %v700, 48
        %v1959 = vpop.permute.xlu0 %1958
        %1960 = vrot.lane.b32.xlu0 %v702, 48
        %v1961 = vpop.permute.xlu0 %1960
        %1962 = vrot.lane.b32.xlu0 %v705, 48
        %v1963 = vpop.permute.xlu0 %1962
        %1964 = vrot.lane.b32.xlu0 %v707, 48
        %v1965 = vpop.permute.xlu0 %1964
        %1966 = vrot.lane.b32.xlu0 %v710, 48
        %v1967 = vpop.permute.xlu0 %1966
        %1968 = vrot.lane.b32.xlu0 %v712, 48
        %v1969 = vpop.permute.xlu0 %1968
        %1970 = vrot.lane.b32.xlu0 %v715, 48
        %v1971 = vpop.permute.xlu0 %1970
        %1972 = vrot.lane.b32.xlu0 %v717, 48
        %v1973 = vpop.permute.xlu0 %1972
        %1974 = vrot.lane.b32.xlu0 %v720, 48
        %v1975 = vpop.permute.xlu0 %1974
        %1976 = vrot.lane.b32.xlu0 %v722, 48
        %v1977 = vpop.permute.xlu0 %1976
        %1978 = vrot.lane.b32.xlu0 %v725, 48
        %v1979 = vpop.permute.xlu0 %1978
        %1980 = vrot.lane.b32.xlu0 %v727, 48
        %v1981 = vpop.permute.xlu0 %1980
        %1982 = vrot.lane.b32.xlu0 %v730, 48
        %v1983 = vpop.permute.xlu0 %1982
        %1984 = vrot.lane.b32.xlu0 %v732, 48
        %v1985 = vpop.permute.xlu0 %1984
        %1986 = vrot.lane.b32.xlu0 %v735, 48
        %v1987 = vpop.permute.xlu0 %1986
        %1988 = vrot.lane.b32.xlu0 %v737, 48
        %v1989 = vpop.permute.xlu0 %1988
        %1990 = vrot.lane.b32.xlu0 %v740, 48
        %v1991 = vpop.permute.xlu0 %1990
        %1992 = vrot.lane.b32.xlu0 %v742, 48
        %v1993 = vpop.permute.xlu0 %1992
        %1994 = vrot.lane.b32.xlu0 %v745, 48
        %v1995 = vpop.permute.xlu0 %1994
        %1996 = vrot.lane.b32.xlu0 %v747, 48
        %v1997 = vpop.permute.xlu0 %1996
        %1998 = vrot.lane.b32.xlu0 %v750, 48
        %v1999 = vpop.permute.xlu0 %1998
        %2000 = vrot.lane.b32.xlu0 %v752, 48
        %v2001 = vpop.permute.xlu0 %2000
        %2002 = vrot.lane.b32.xlu0 %v755, 48
        %v2003 = vpop.permute.xlu0 %2002
        %2004 = vrot.lane.b32.xlu0 %v757, 48
        %v2005 = vpop.permute.xlu0 %2004
        %2006 = vrot.lane.b32.xlu0 %v760, 48
        %v2007 = vpop.permute.xlu0 %2006
        %2008 = vrot.lane.b32.xlu0 %v762, 48
        %v2009 = vpop.permute.xlu0 %2008
        %2010 = vrot.lane.b32.xlu0 %v765, 48
        %v2011 = vpop.permute.xlu0 %2010
        %2012 = vrot.lane.b32.xlu0 %v767, 48
        %v2013 = vpop.permute.xlu0 %2012
        %2014 = vrot.lane.b32.xlu0 %v1951, 48
        %v2015 = vpop.permute.xlu0 %2014
        %2016 = vrot.lane.b32.xlu0 %v1953, 48
        %v2017 = vpop.permute.xlu0 %2016
        %v2050 = vrot.slane %v438, 3
        %v2051 = vrot.slane %v439, 3
        %v2052 = vsel %vm864, %v2050, %v2051
        %v2053 = vrot.slane %v440, 3
        %v2054 = vsel %vm864, %v2051, %v2053
        %2055 = vrot.lane.b32.xlu0 %v872, 64
        %v2056 = vpop.permute.xlu0 %2055
        %2057 = vrot.lane.b32.xlu0 %v874, 64
        %v2058 = vpop.permute.xlu0 %2057
        %2059 = vrot.lane.b32.xlu0 %v877, 64
        %v2060 = vpop.permute.xlu0 %2059
        %2061 = vrot.lane.b32.xlu0 %v879, 64
        %v2062 = vpop.permute.xlu0 %2061
        %2063 = vrot.lane.b32.xlu0 %v882, 64
        %v2064 = vpop.permute.xlu0 %2063
        %2065 = vrot.lane.b32.xlu0 %v884, 64
        %v2066 = vpop.permute.xlu0 %2065
        %2067 = vrot.lane.b32.xlu0 %v887, 64
        %v2068 = vpop.permute.xlu0 %2067
        %2069 = vrot.lane.b32.xlu0 %v889, 64
        %v2070 = vpop.permute.xlu0 %2069
        %2071 = vrot.lane.b32.xlu0 %v892, 64
        %v2072 = vpop.permute.xlu0 %2071
        %2073 = vrot.lane.b32.xlu0 %v894, 64
        %v2074 = vpop.permute.xlu0 %2073
        %2075 = vrot.lane.b32.xlu0 %v897, 64
        %v2076 = vpop.permute.xlu0 %2075
        %2077 = vrot.lane.b32.xlu0 %v899, 64
        %v2078 = vpop.permute.xlu0 %2077
        %2079 = vrot.lane.b32.xlu0 %v902, 64
        %v2080 = vpop.permute.xlu0 %2079
        %2081 = vrot.lane.b32.xlu0 %v904, 64
        %v2082 = vpop.permute.xlu0 %2081
        %2083 = vrot.lane.b32.xlu0 %v907, 64
        %v2084 = vpop.permute.xlu0 %2083
        %2085 = vrot.lane.b32.xlu0 %v909, 64
        %v2086 = vpop.permute.xlu0 %2085
        %2087 = vrot.lane.b32.xlu0 %v912, 64
        %v2088 = vpop.permute.xlu0 %2087
        %2089 = vrot.lane.b32.xlu0 %v914, 64
        %v2090 = vpop.permute.xlu0 %2089
        %2091 = vrot.lane.b32.xlu0 %v917, 64
        %v2092 = vpop.permute.xlu0 %2091
        %2093 = vrot.lane.b32.xlu0 %v919, 64
        %v2094 = vpop.permute.xlu0 %2093
        %2095 = vrot.lane.b32.xlu0 %v922, 64
        %v2096 = vpop.permute.xlu0 %2095
        %2097 = vrot.lane.b32.xlu0 %v924, 64
        %v2098 = vpop.permute.xlu0 %2097
        %2099 = vrot.lane.b32.xlu0 %v927, 64
        %v2100 = vpop.permute.xlu0 %2099
        %2101 = vrot.lane.b32.xlu0 %v929, 64
        %v2102 = vpop.permute.xlu0 %2101
        %2103 = vrot.lane.b32.xlu0 %v932, 64
        %v2104 = vpop.permute.xlu0 %2103
        %2105 = vrot.lane.b32.xlu0 %v934, 64
        %v2106 = vpop.permute.xlu0 %2105
        %2107 = vrot.lane.b32.xlu0 %v937, 64
        %v2108 = vpop.permute.xlu0 %2107
        %2109 = vrot.lane.b32.xlu0 %v939, 64
        %v2110 = vpop.permute.xlu0 %2109
        %2111 = vrot.lane.b32.xlu0 %v942, 64
        %v2112 = vpop.permute.xlu0 %2111
        %2113 = vrot.lane.b32.xlu0 %v944, 64
        %v2114 = vpop.permute.xlu0 %2113
        %2115 = vrot.lane.b32.xlu0 %v2052, 64
        %v2116 = vpop.permute.xlu0 %2115
        %2117 = vrot.lane.b32.xlu0 %v2054, 64
        %v2118 = vpop.permute.xlu0 %2117
        %v2151 = vrot.slane %v438, 4
        %v2152 = vrot.slane %v439, 4
        %v2153 = vsel %vm1041, %v2151, %v2152
        %v2154 = vrot.slane %v440, 4
        %v2155 = vsel %vm1041, %v2152, %v2154
        %2156 = vrot.lane.b32.xlu0 %v1049, 80
        %v2157 = vpop.permute.xlu0 %2156
        %2158 = vrot.lane.b32.xlu0 %v1051, 80
        %v2159 = vpop.permute.xlu0 %2158
        %2160 = vrot.lane.b32.xlu0 %v1054, 80
        %v2161 = vpop.permute.xlu0 %2160
        %2162 = vrot.lane.b32.xlu0 %v1056, 80
        %v2163 = vpop.permute.xlu0 %2162
        %2164 = vrot.lane.b32.xlu0 %v1059, 80
        %v2165 = vpop.permute.xlu0 %2164
        %2166 = vrot.lane.b32.xlu0 %v1061, 80
        %v2167 = vpop.permute.xlu0 %2166
        %2168 = vrot.lane.b32.xlu0 %v1064, 80
        %v2169 = vpop.permute.xlu0 %2168
        %2170 = vrot.lane.b32.xlu0 %v1066, 80
        %v2171 = vpop.permute.xlu0 %2170
        %2172 = vrot.lane.b32.xlu0 %v1069, 80
        %v2173 = vpop.permute.xlu0 %2172
        %2174 = vrot.lane.b32.xlu0 %v1071, 80
        %v2175 = vpop.permute.xlu0 %2174
        %2176 = vrot.lane.b32.xlu0 %v1074, 80
        %v2177 = vpop.permute.xlu0 %2176
        %2178 = vrot.lane.b32.xlu0 %v1076, 80
        %v2179 = vpop.permute.xlu0 %2178
        %2180 = vrot.lane.b32.xlu0 %v1079, 80
        %v2181 = vpop.permute.xlu0 %2180
        %2182 = vrot.lane.b32.xlu0 %v1081, 80
        %v2183 = vpop.permute.xlu0 %2182
        %2184 = vrot.lane.b32.xlu0 %v1084, 80
        %v2185 = vpop.permute.xlu0 %2184
        %2186 = vrot.lane.b32.xlu0 %v1086, 80
        %v2187 = vpop.permute.xlu0 %2186
        %2188 = vrot.lane.b32.xlu0 %v1089, 80
        %v2189 = vpop.permute.xlu0 %2188
        %2190 = vrot.lane.b32.xlu0 %v1091, 80
        %v2191 = vpop.permute.xlu0 %2190
        %2192 = vrot.lane.b32.xlu0 %v1094, 80
        %v2193 = vpop.permute.xlu0 %2192
        %2194 = vrot.lane.b32.xlu0 %v1096, 80
        %v2195 = vpop.permute.xlu0 %2194
        %2196 = vrot.lane.b32.xlu0 %v1099, 80
        %v2197 = vpop.permute.xlu0 %2196
        %2198 = vrot.lane.b32.xlu0 %v1101, 80
        %v2199 = vpop.permute.xlu0 %2198
        %2200 = vrot.lane.b32.xlu0 %v1104, 80
        %v2201 = vpop.permute.xlu0 %2200
        %2202 = vrot.lane.b32.xlu0 %v1106, 80
        %v2203 = vpop.permute.xlu0 %2202
        %2204 = vrot.lane.b32.xlu0 %v1109, 80
        %v2205 = vpop.permute.xlu0 %2204
        %2206 = vrot.lane.b32.xlu0 %v1111, 80
        %v2207 = vpop.permute.xlu0 %2206
        %2208 = vrot.lane.b32.xlu0 %v1114, 80
        %v2209 = vpop.permute.xlu0 %2208
        %2210 = vrot.lane.b32.xlu0 %v1116, 80
        %v2211 = vpop.permute.xlu0 %2210
        %2212 = vrot.lane.b32.xlu0 %v1119, 80
        %v2213 = vpop.permute.xlu0 %2212
        %2214 = vrot.lane.b32.xlu0 %v1121, 80
        %v2215 = vpop.permute.xlu0 %2214
        %2216 = vrot.lane.b32.xlu0 %v2153, 80
        %v2217 = vpop.permute.xlu0 %2216
        %2218 = vrot.lane.b32.xlu0 %v2155, 80
        %v2219 = vpop.permute.xlu0 %2218
        %v2252 = vrot.slane %v438, 5
        %v2253 = vrot.slane %v439, 5
        %v2254 = vsel %vm1218, %v2252, %v2253
        %v2255 = vrot.slane %v440, 5
        %v2256 = vsel %vm1218, %v2253, %v2255
        %2257 = vrot.lane.b32.xlu0 %v1226, 96
        %v2258 = vpop.permute.xlu0 %2257
        %2259 = vrot.lane.b32.xlu0 %v1228, 96
        %v2260 = vpop.permute.xlu0 %2259
        %2261 = vrot.lane.b32.xlu0 %v1231, 96
        %v2262 = vpop.permute.xlu0 %2261
        %2263 = vrot.lane.b32.xlu0 %v1233, 96
        %v2264 = vpop.permute.xlu0 %2263
        %2265 = vrot.lane.b32.xlu0 %v1236, 96
        %v2266 = vpop.permute.xlu0 %2265
        %2267 = vrot.lane.b32.xlu0 %v1238, 96
        %v2268 = vpop.permute.xlu0 %2267
        %2269 = vrot.lane.b32.xlu0 %v1241, 96
        %v2270 = vpop.permute.xlu0 %2269
        %2271 = vrot.lane.b32.xlu0 %v1243, 96
        %v2272 = vpop.permute.xlu0 %2271
        %2273 = vrot.lane.b32.xlu0 %v1246, 96
        %v2274 = vpop.permute.xlu0 %2273
        %2275 = vrot.lane.b32.xlu0 %v1248, 96
        %v2276 = vpop.permute.xlu0 %2275
        %2277 = vrot.lane.b32.xlu0 %v1251, 96
        %v2278 = vpop.permute.xlu0 %2277
        %2279 = vrot.lane.b32.xlu0 %v1253, 96
        %v2280 = vpop.permute.xlu0 %2279
        %2281 = vrot.lane.b32.xlu0 %v1256, 96
        %v2282 = vpop.permute.xlu0 %2281
        %2283 = vrot.lane.b32.xlu0 %v1258, 96
        %v2284 = vpop.permute.xlu0 %2283
        %2285 = vrot.lane.b32.xlu0 %v1261, 96
        %v2286 = vpop.permute.xlu0 %2285
        %2287 = vrot.lane.b32.xlu0 %v1263, 96
        %v2288 = vpop.permute.xlu0 %2287
        %2289 = vrot.lane.b32.xlu0 %v1266, 96
        %v2290 = vpop.permute.xlu0 %2289
        %2291 = vrot.lane.b32.xlu0 %v1268, 96
        %v2292 = vpop.permute.xlu0 %2291
        %2293 = vrot.lane.b32.xlu0 %v1271, 96
        %v2294 = vpop.permute.xlu0 %2293
        %2295 = vrot.lane.b32.xlu0 %v1273, 96
        %v2296 = vpop.permute.xlu0 %2295
        %2297 = vrot.lane.b32.xlu0 %v1276, 96
        %v2298 = vpop.permute.xlu0 %2297
        %2299 = vrot.lane.b32.xlu0 %v1278, 96
        %v2300 = vpop.permute.xlu0 %2299
        %2301 = vrot.lane.b32.xlu0 %v1281, 96
        %v2302 = vpop.permute.xlu0 %2301
        %2303 = vrot.lane.b32.xlu0 %v1283, 96
        %v2304 = vpop.permute.xlu0 %2303
        %2305 = vrot.lane.b32.xlu0 %v1286, 96
        %v2306 = vpop.permute.xlu0 %2305
        %2307 = vrot.lane.b32.xlu0 %v1288, 96
        %v2308 = vpop.permute.xlu0 %2307
        %2309 = vrot.lane.b32.xlu0 %v1291, 96
        %v2310 = vpop.permute.xlu0 %2309
        %2311 = vrot.lane.b32.xlu0 %v1293, 96
        %v2312 = vpop.permute.xlu0 %2311
        %2313 = vrot.lane.b32.xlu0 %v1296, 96
        %v2314 = vpop.permute.xlu0 %2313
        %2315 = vrot.lane.b32.xlu0 %v1298, 96
        %v2316 = vpop.permute.xlu0 %2315
        %2317 = vrot.lane.b32.xlu0 %v2254, 96
        %v2318 = vpop.permute.xlu0 %2317
        %2319 = vrot.lane.b32.xlu0 %v2256, 96
        %v2320 = vpop.permute.xlu0 %2319
        %v2353 = vrot.slane %v438, 6
        %v2354 = vrot.slane %v439, 6
        %v2355 = vsel %vm1395, %v2353, %v2354
        %v2356 = vrot.slane %v440, 6
        %v2357 = vsel %vm1395, %v2354, %v2356
        %2358 = vrot.lane.b32.xlu0 %v1403, 112
        %v2359 = vpop.permute.xlu0 %2358
        %2360 = vrot.lane.b32.xlu0 %v1405, 112
        %v2361 = vpop.permute.xlu0 %2360
        %2362 = vrot.lane.b32.xlu0 %v1408, 112
        %v2363 = vpop.permute.xlu0 %2362
        %2364 = vrot.lane.b32.xlu0 %v1410, 112
        %v2365 = vpop.permute.xlu0 %2364
        %2366 = vrot.lane.b32.xlu0 %v1413, 112
        %v2367 = vpop.permute.xlu0 %2366
        %2368 = vrot.lane.b32.xlu0 %v1415, 112
        %v2369 = vpop.permute.xlu0 %2368
        %2370 = vrot.lane.b32.xlu0 %v1418, 112
        %v2371 = vpop.permute.xlu0 %2370
        %2372 = vrot.lane.b32.xlu0 %v1420, 112
        %v2373 = vpop.permute.xlu0 %2372
        %2374 = vrot.lane.b32.xlu0 %v1423, 112
        %v2375 = vpop.permute.xlu0 %2374
        %2376 = vrot.lane.b32.xlu0 %v1425, 112
        %v2377 = vpop.permute.xlu0 %2376
        %2378 = vrot.lane.b32.xlu0 %v1428, 112
        %v2379 = vpop.permute.xlu0 %2378
        %2380 = vrot.lane.b32.xlu0 %v1430, 112
        %v2381 = vpop.permute.xlu0 %2380
        %2382 = vrot.lane.b32.xlu0 %v1433, 112
        %v2383 = vpop.permute.xlu0 %2382
        %2384 = vrot.lane.b32.xlu0 %v1435, 112
        %v2385 = vpop.permute.xlu0 %2384
        %2386 = vrot.lane.b32.xlu0 %v1438, 112
        %v2387 = vpop.permute.xlu0 %2386
        %2388 = vrot.lane.b32.xlu0 %v1440, 112
        %v2389 = vpop.permute.xlu0 %2388
        %2390 = vrot.lane.b32.xlu0 %v1443, 112
        %v2391 = vpop.permute.xlu0 %2390
        %2392 = vrot.lane.b32.xlu0 %v1445, 112
        %v2393 = vpop.permute.xlu0 %2392
        %2394 = vrot.lane.b32.xlu0 %v1448, 112
        %v2395 = vpop.permute.xlu0 %2394
        %2396 = vrot.lane.b32.xlu0 %v1450, 112
        %v2397 = vpop.permute.xlu0 %2396
        %2398 = vrot.lane.b32.xlu0 %v1453, 112
        %v2399 = vpop.permute.xlu0 %2398
        %2400 = vrot.lane.b32.xlu0 %v1455, 112
        %v2401 = vpop.permute.xlu0 %2400
        %2402 = vrot.lane.b32.xlu0 %v1458, 112
        %v2403 = vpop.permute.xlu0 %2402
        %2404 = vrot.lane.b32.xlu0 %v1460, 112
        %v2405 = vpop.permute.xlu0 %2404
        %2406 = vrot.lane.b32.xlu0 %v1463, 112
        %v2407 = vpop.permute.xlu0 %2406
        %2408 = vrot.lane.b32.xlu0 %v1465, 112
        %v2409 = vpop.permute.xlu0 %2408
        %2410 = vrot.lane.b32.xlu0 %v1468, 112
        %v2411 = vpop.permute.xlu0 %2410
        %2412 = vrot.lane.b32.xlu0 %v1470, 112
        %v2413 = vpop.permute.xlu0 %2412
        %2414 = vrot.lane.b32.xlu0 %v1473, 112
        %v2415 = vpop.permute.xlu0 %2414
        %2416 = vrot.lane.b32.xlu0 %v1475, 112
        %v2417 = vpop.permute.xlu0 %2416
        %2418 = vrot.lane.b32.xlu0 %v2355, 112
        %v2419 = vpop.permute.xlu0 %2418
        %2420 = vrot.lane.b32.xlu0 %v2357, 112
        %v2421 = vpop.permute.xlu0 %2420
        %v2454 = vsel %vm252, %v390, %v592
        %v2455 = vsel %vm252, %v391, %v594
        %v2456 = vsel %vm252, %v393, %v596
        %v2457 = vsel %vm252, %v394, %v598
        %v2458 = vsel %vm252, %v396, %v600
        %v2459 = vsel %vm252, %v397, %v602
        %v2460 = vsel %vm252, %v399, %v604
        %v2461 = vsel %vm252, %v400, %v606
        %v2462 = vsel %vm252, %v402, %v608
        %v2463 = vsel %vm252, %v403, %v610
        %v2464 = vsel %vm252, %v405, %v612
        %v2465 = vsel %vm252, %v406, %v614
        %v2466 = vsel %vm252, %v408, %v616
        %v2467 = vsel %vm252, %v409, %v618
        %v2468 = vsel %vm252, %v411, %v620
        %v2469 = vsel %vm252, %v412, %v622
        %v2470 = vsel %vm252, %v414, %v624
        %v2471 = vsel %vm252, %v415, %v626
        %v2472 = vsel %vm252, %v417, %v628
        %v2473 = vsel %vm252, %v418, %v630
        %v2474 = vsel %vm252, %v420, %v632
        %v2475 = vsel %vm252, %v421, %v634
        %v2476 = vsel %vm252, %v423, %v636
        %v2477 = vsel %vm252, %v424, %v638
        %v2478 = vsel %vm252, %v426, %v640
        %v2479 = vsel %vm252, %v427, %v642
        %v2480 = vsel %vm252, %v429, %v644
        %v2481 = vsel %vm252, %v430, %v646
        %v2482 = vsel %vm252, %v432, %v648
        %v2483 = vsel %vm252, %v433, %v650
        %v2484 = vsel %vm252, %v435, %v652
        %v2485 = vsel %vm252, %v436, %v654
        %vm2486 = vcmask 261120
        %v2487 = vsel %vm2486, %v2454, %v769
        %v2488 = vsel %vm2486, %v2455, %v771
        %v2489 = vsel %vm2486, %v2456, %v773
        %v2490 = vsel %vm2486, %v2457, %v775
        %v2491 = vsel %vm2486, %v2458, %v777
        %v2492 = vsel %vm2486, %v2459, %v779
        %v2493 = vsel %vm2486, %v2460, %v781
        %v2494 = vsel %vm2486, %v2461, %v783
        %v2495 = vsel %vm2486, %v2462, %v785
        %v2496 = vsel %vm2486, %v2463, %v787
        %v2497 = vsel %vm2486, %v2464, %v789
        %v2498 = vsel %vm2486, %v2465, %v791
        %v2499 = vsel %vm2486, %v2466, %v793
        %v2500 = vsel %vm2486, %v2467, %v795
        %v2501 = vsel %vm2486, %v2468, %v797
        %v2502 = vsel %vm2486, %v2469, %v799
        %v2503 = vsel %vm2486, %v2470, %v801
        %v2504 = vsel %vm2486, %v2471, %v803
        %v2505 = vsel %vm2486, %v2472, %v805
        %v2506 = vsel %vm2486, %v2473, %v807
        %v2507 = vsel %vm2486, %v2474, %v809
        %v2508 = vsel %vm2486, %v2475, %v811
        %v2509 = vsel %vm2486, %v2476, %v813
        %v2510 = vsel %vm2486, %v2477, %v815
        %v2511 = vsel %vm2486, %v2478, %v817
        %v2512 = vsel %vm2486, %v2479, %v819
        %v2513 = vsel %vm2486, %v2480, %v821
        %v2514 = vsel %vm2486, %v2481, %v823
        %v2515 = vsel %vm2486, %v2482, %v825
        %v2516 = vsel %vm2486, %v2483, %v827
        %v2517 = vsel %vm2486, %v2484, %v829
        %v2518 = vsel %vm2486, %v2485, %v831
        %vm2519 = vcmask 392192
        %v2520 = vsel %vm2519, %v2487, %v946
        %v2521 = vsel %vm2519, %v2488, %v948
        %v2522 = vsel %vm2519, %v2489, %v950
        %v2523 = vsel %vm2519, %v2490, %v952
        %v2524 = vsel %vm2519, %v2491, %v954
        %v2525 = vsel %vm2519, %v2492, %v956
        %v2526 = vsel %vm2519, %v2493, %v958
        %v2527 = vsel %vm2519, %v2494, %v960
        %v2528 = vsel %vm2519, %v2495, %v962
        %v2529 = vsel %vm2519, %v2496, %v964
        %v2530 = vsel %vm2519, %v2497, %v966
        %v2531 = vsel %vm2519, %v2498, %v968
        %v2532 = vsel %vm2519, %v2499, %v970
        %v2533 = vsel %vm2519, %v2500, %v972
        %v2534 = vsel %vm2519, %v2501, %v974
        %v2535 = vsel %vm2519, %v2502, %v976
        %v2536 = vsel %vm2519, %v2503, %v978
        %v2537 = vsel %vm2519, %v2504, %v980
        %v2538 = vsel %vm2519, %v2505, %v982
        %v2539 = vsel %vm2519, %v2506, %v984
        %v2540 = vsel %vm2519, %v2507, %v986
        %v2541 = vsel %vm2519, %v2508, %v988
        %v2542 = vsel %vm2519, %v2509, %v990
        %v2543 = vsel %vm2519, %v2510, %v992
        %v2544 = vsel %vm2519, %v2511, %v994
        %v2545 = vsel %vm2519, %v2512, %v996
        %v2546 = vsel %vm2519, %v2513, %v998
        %v2547 = vsel %vm2519, %v2514, %v1000
        %v2548 = vsel %vm2519, %v2515, %v1002
        %v2549 = vsel %vm2519, %v2516, %v1004
        %v2550 = vsel %vm2519, %v2517, %v1006
        %v2551 = vsel %vm2519, %v2518, %v1008
        %vm2552 = vcmask 523264
        %v2553 = vsel %vm2552, %v2520, %v1123
        %v2554 = vsel %vm2552, %v2521, %v1125
        %v2555 = vsel %vm2552, %v2522, %v1127
        %v2556 = vsel %vm2552, %v2523, %v1129
        %v2557 = vsel %vm2552, %v2524, %v1131
        %v2558 = vsel %vm2552, %v2525, %v1133
        %v2559 = vsel %vm2552, %v2526, %v1135
        %v2560 = vsel %vm2552, %v2527, %v1137
        %v2561 = vsel %vm2552, %v2528, %v1139
        %v2562 = vsel %vm2552, %v2529, %v1141
        %v2563 = vsel %vm2552, %v2530, %v1143
        %v2564 = vsel %vm2552, %v2531, %v1145
        %v2565 = vsel %vm2552, %v2532, %v1147
        %v2566 = vsel %vm2552, %v2533, %v1149
        %v2567 = vsel %vm2552, %v2534, %v1151
        %v2568 = vsel %vm2552, %v2535, %v1153
        %v2569 = vsel %vm2552, %v2536, %v1155
        %v2570 = vsel %vm2552, %v2537, %v1157
        %v2571 = vsel %vm2552, %v2538, %v1159
        %v2572 = vsel %vm2552, %v2539, %v1161
        %v2573 = vsel %vm2552, %v2540, %v1163
        %v2574 = vsel %vm2552, %v2541, %v1165
        %v2575 = vsel %vm2552, %v2542, %v1167
        %v2576 = vsel %vm2552, %v2543, %v1169
        %v2577 = vsel %vm2552, %v2544, %v1171
        %v2578 = vsel %vm2552, %v2545, %v1173
        %v2579 = vsel %vm2552, %v2546, %v1175
        %v2580 = vsel %vm2552, %v2547, %v1177
        %v2581 = vsel %vm2552, %v2548, %v1179
        %v2582 = vsel %vm2552, %v2549, %v1181
        %v2583 = vsel %vm2552, %v2550, %v1183
        %v2584 = vsel %vm2552, %v2551, %v1185
        %vm2585 = vcmask 654336
        %v2586 = vsel %vm2585, %v2553, %v1300
        %v2587 = vsel %vm2585, %v2554, %v1302
        %v2588 = vsel %vm2585, %v2555, %v1304
        %v2589 = vsel %vm2585, %v2556, %v1306
        %v2590 = vsel %vm2585, %v2557, %v1308
        %v2591 = vsel %vm2585, %v2558, %v1310
        %v2592 = vsel %vm2585, %v2559, %v1312
        %v2593 = vsel %vm2585, %v2560, %v1314
        %v2594 = vsel %vm2585, %v2561, %v1316
        %v2595 = vsel %vm2585, %v2562, %v1318
        %v2596 = vsel %vm2585, %v2563, %v1320
        %v2597 = vsel %vm2585, %v2564, %v1322
        %v2598 = vsel %vm2585, %v2565, %v1324
        %v2599 = vsel %vm2585, %v2566, %v1326
        %v2600 = vsel %vm2585, %v2567, %v1328
        %v2601 = vsel %vm2585, %v2568, %v1330
        %v2602 = vsel %vm2585, %v2569, %v1332
        %v2603 = vsel %vm2585, %v2570, %v1334
        %v2604 = vsel %vm2585, %v2571, %v1336
        %v2605 = vsel %vm2585, %v2572, %v1338
        %v2606 = vsel %vm2585, %v2573, %v1340
        %v2607 = vsel %vm2585, %v2574, %v1342
        %v2608 = vsel %vm2585, %v2575, %v1344
        %v2609 = vsel %vm2585, %v2576, %v1346
        %v2610 = vsel %vm2585, %v2577, %v1348
        %v2611 = vsel %vm2585, %v2578, %v1350
        %v2612 = vsel %vm2585, %v2579, %v1352
        %v2613 = vsel %vm2585, %v2580, %v1354
        %v2614 = vsel %vm2585, %v2581, %v1356
        %v2615 = vsel %vm2585, %v2582, %v1358
        %v2616 = vsel %vm2585, %v2583, %v1360
        %v2617 = vsel %vm2585, %v2584, %v1362
        %vm2618 = vcmask 785408
        %v2619 = vsel %vm2618, %v2586, %v1477
        %v2620 = vsel %vm2618, %v2587, %v1479
        %v2621 = vsel %vm2618, %v2588, %v1481
        %v2622 = vsel %vm2618, %v2589, %v1483
        %v2623 = vsel %vm2618, %v2590, %v1485
        %v2624 = vsel %vm2618, %v2591, %v1487
        %v2625 = vsel %vm2618, %v2592, %v1489
        %v2626 = vsel %vm2618, %v2593, %v1491
        %v2627 = vsel %vm2618, %v2594, %v1493
        %v2628 = vsel %vm2618, %v2595, %v1495
        %v2629 = vsel %vm2618, %v2596, %v1497
        %v2630 = vsel %vm2618, %v2597, %v1499
        %v2631 = vsel %vm2618, %v2598, %v1501
        %v2632 = vsel %vm2618, %v2599, %v1503
        %v2633 = vsel %vm2618, %v2600, %v1505
        %v2634 = vsel %vm2618, %v2601, %v1507
        %v2635 = vsel %vm2618, %v2602, %v1509
        %v2636 = vsel %vm2618, %v2603, %v1511
        %v2637 = vsel %vm2618, %v2604, %v1513
        %v2638 = vsel %vm2618, %v2605, %v1515
        %v2639 = vsel %vm2618, %v2606, %v1517
        %v2640 = vsel %vm2618, %v2607, %v1519
        %v2641 = vsel %vm2618, %v2608, %v1521
        %v2642 = vsel %vm2618, %v2609, %v1523
        %v2643 = vsel %vm2618, %v2610, %v1525
        %v2644 = vsel %vm2618, %v2611, %v1527
        %v2645 = vsel %vm2618, %v2612, %v1529
        %v2646 = vsel %vm2618, %v2613, %v1531
        %v2647 = vsel %vm2618, %v2614, %v1533
        %v2648 = vsel %vm2618, %v2615, %v1535
        %v2649 = vsel %vm2618, %v2616, %v1537
        %v2650 = vsel %vm2618, %v2617, %v1539
        %vm2651 = vcmask 916480
        %v2652 = vsel %vm2651, %v2619, %v1654
        %v2653 = vsel %vm2651, %v2620, %v1656
        %v2654 = vsel %vm2651, %v2621, %v1658
        %v2655 = vsel %vm2651, %v2622, %v1660
        %v2656 = vsel %vm2651, %v2623, %v1662
        %v2657 = vsel %vm2651, %v2624, %v1664
        %v2658 = vsel %vm2651, %v2625, %v1666
        %v2659 = vsel %vm2651, %v2626, %v1668
        %v2660 = vsel %vm2651, %v2627, %v1670
        %v2661 = vsel %vm2651, %v2628, %v1672
        %v2662 = vsel %vm2651, %v2629, %v1674
        %v2663 = vsel %vm2651, %v2630, %v1676
        %v2664 = vsel %vm2651, %v2631, %v1678
        %v2665 = vsel %vm2651, %v2632, %v1680
        %v2666 = vsel %vm2651, %v2633, %v1682
        %v2667 = vsel %vm2651, %v2634, %v1684
        %v2668 = vsel %vm2651, %v2635, %v1686
        %v2669 = vsel %vm2651, %v2636, %v1688
        %v2670 = vsel %vm2651, %v2637, %v1690
        %v2671 = vsel %vm2651, %v2638, %v1692
        %v2672 = vsel %vm2651, %v2639, %v1694
        %v2673 = vsel %vm2651, %v2640, %v1696
        %v2674 = vsel %vm2651, %v2641, %v1698
        %v2675 = vsel %vm2651, %v2642, %v1700
        %v2676 = vsel %vm2651, %v2643, %v1702
        %v2677 = vsel %vm2651, %v2644, %v1704
        %v2678 = vsel %vm2651, %v2645, %v1706
        %v2679 = vsel %vm2651, %v2646, %v1708
        %v2680 = vsel %vm2651, %v2647, %v1710
        %v2681 = vsel %vm2651, %v2648, %v1712
        %v2682 = vsel %vm2651, %v2649, %v1714
        %v2683 = vsel %vm2651, %v2650, %v1716
        %v2684 = vsel %vm252, %v391, %v1752
        %v2685 = vsel %vm252, %v392, %v1754
        %v2686 = vsel %vm252, %v394, %v1756
        %v2687 = vsel %vm252, %v395, %v1758
        %v2688 = vsel %vm252, %v397, %v1760
        %v2689 = vsel %vm252, %v398, %v1762
        %v2690 = vsel %vm252, %v400, %v1764
        %v2691 = vsel %vm252, %v401, %v1766
        %v2692 = vsel %vm252, %v403, %v1768
        %v2693 = vsel %vm252, %v404, %v1770
        %v2694 = vsel %vm252, %v406, %v1772
        %v2695 = vsel %vm252, %v407, %v1774
        %v2696 = vsel %vm252, %v409, %v1776
        %v2697 = vsel %vm252, %v410, %v1778
        %v2698 = vsel %vm252, %v412, %v1780
        %v2699 = vsel %vm252, %v413, %v1782
        %v2700 = vsel %vm252, %v415, %v1784
        %v2701 = vsel %vm252, %v416, %v1786
        %v2702 = vsel %vm252, %v418, %v1788
        %v2703 = vsel %vm252, %v419, %v1790
        %v2704 = vsel %vm252, %v421, %v1792
        %v2705 = vsel %vm252, %v422, %v1794
        %v2706 = vsel %vm252, %v424, %v1796
        %v2707 = vsel %vm252, %v425, %v1798
        %v2708 = vsel %vm252, %v427, %v1800
        %v2709 = vsel %vm252, %v428, %v1802
        %v2710 = vsel %vm252, %v430, %v1804
        %v2711 = vsel %vm252, %v431, %v1806
        %v2712 = vsel %vm252, %v433, %v1808
        %v2713 = vsel %vm252, %v434, %v1810
        %v2714 = vsel %vm252, %v436, %v1812
        %v2715 = vsel %vm252, %v437, %v1814
        %v2716 = vsel %vm2486, %v2684, %v1854
        %v2717 = vsel %vm2486, %v2685, %v1856
        %v2718 = vsel %vm2486, %v2686, %v1858
        %v2719 = vsel %vm2486, %v2687, %v1860
        %v2720 = vsel %vm2486, %v2688, %v1862
        %v2721 = vsel %vm2486, %v2689, %v1864
        %v2722 = vsel %vm2486, %v2690, %v1866
        %v2723 = vsel %vm2486, %v2691, %v1868
        %v2724 = vsel %vm2486, %v2692, %v1870
        %v2725 = vsel %vm2486, %v2693, %v1872
        %v2726 = vsel %vm2486, %v2694, %v1874
        %v2727 = vsel %vm2486, %v2695, %v1876
        %v2728 = vsel %vm2486, %v2696, %v1878
        %v2729 = vsel %vm2486, %v2697, %v1880
        %v2730 = vsel %vm2486, %v2698, %v1882
        %v2731 = vsel %vm2486, %v2699, %v1884
        %v2732 = vsel %vm2486, %v2700, %v1886
        %v2733 = vsel %vm2486, %v2701, %v1888
        %v2734 = vsel %vm2486, %v2702, %v1890
        %v2735 = vsel %vm2486, %v2703, %v1892
        %v2736 = vsel %vm2486, %v2704, %v1894
        %v2737 = vsel %vm2486, %v2705, %v1896
        %v2738 = vsel %vm2486, %v2706, %v1898
        %v2739 = vsel %vm2486, %v2707, %v1900
        %v2740 = vsel %vm2486, %v2708, %v1902
        %v2741 = vsel %vm2486, %v2709, %v1904
        %v2742 = vsel %vm2486, %v2710, %v1906
        %v2743 = vsel %vm2486, %v2711, %v1908
        %v2744 = vsel %vm2486, %v2712, %v1910
        %v2745 = vsel %vm2486, %v2713, %v1912
        %v2746 = vsel %vm2486, %v2714, %v1914
        %v2747 = vsel %vm2486, %v2715, %v1916
        %v2748 = vsel %vm2519, %v2716, %v1955
        %v2749 = vsel %vm2519, %v2717, %v1957
        %v2750 = vsel %vm2519, %v2718, %v1959
        %v2751 = vsel %vm2519, %v2719, %v1961
        %v2752 = vsel %vm2519, %v2720, %v1963
        %v2753 = vsel %vm2519, %v2721, %v1965
        %v2754 = vsel %vm2519, %v2722, %v1967
        %v2755 = vsel %vm2519, %v2723, %v1969
        %v2756 = vsel %vm2519, %v2724, %v1971
        %v2757 = vsel %vm2519, %v2725, %v1973
        %v2758 = vsel %vm2519, %v2726, %v1975
        %v2759 = vsel %vm2519, %v2727, %v1977
        %v2760 = vsel %vm2519, %v2728, %v1979
        %v2761 = vsel %vm2519, %v2729, %v1981
        %v2762 = vsel %vm2519, %v2730, %v1983
        %v2763 = vsel %vm2519, %v2731, %v1985
        %v2764 = vsel %vm2519, %v2732, %v1987
        %v2765 = vsel %vm2519, %v2733, %v1989
        %v2766 = vsel %vm2519, %v2734, %v1991
        %v2767 = vsel %vm2519, %v2735, %v1993
        %v2768 = vsel %vm2519, %v2736, %v1995
        %v2769 = vsel %vm2519, %v2737, %v1997
        %v2770 = vsel %vm2519, %v2738, %v1999
        %v2771 = vsel %vm2519, %v2739, %v2001
        %v2772 = vsel %vm2519, %v2740, %v2003
        %v2773 = vsel %vm2519, %v2741, %v2005
        %v2774 = vsel %vm2519, %v2742, %v2007
        %v2775 = vsel %vm2519, %v2743, %v2009
        %v2776 = vsel %vm2519, %v2744, %v2011
        %v2777 = vsel %vm2519, %v2745, %v2013
        %v2778 = vsel %vm2519, %v2746, %v2015
        %v2779 = vsel %vm2519, %v2747, %v2017
        %v2780 = vsel %vm2552, %v2748, %v2056
        %v2781 = vsel %vm2552, %v2749, %v2058
        %v2782 = vsel %vm2552, %v2750, %v2060
        %v2783 = vsel %vm2552, %v2751, %v2062
        %v2784 = vsel %vm2552, %v2752, %v2064
        %v2785 = vsel %vm2552, %v2753, %v2066
        %v2786 = vsel %vm2552, %v2754, %v2068
        %v2787 = vsel %vm2552, %v2755, %v2070
        %v2788 = vsel %vm2552, %v2756, %v2072
        %v2789 = vsel %vm2552, %v2757, %v2074
        %v2790 = vsel %vm2552, %v2758, %v2076
        %v2791 = vsel %vm2552, %v2759, %v2078
        %v2792 = vsel %vm2552, %v2760, %v2080
        %v2793 = vsel %vm2552, %v2761, %v2082
        %v2794 = vsel %vm2552, %v2762, %v2084
        %v2795 = vsel %vm2552, %v2763, %v2086
        %v2796 = vsel %vm2552, %v2764, %v2088
        %v2797 = vsel %vm2552, %v2765, %v2090
        %v2798 = vsel %vm2552, %v2766, %v2092
        %v2799 = vsel %vm2552, %v2767, %v2094
        %v2800 = vsel %vm2552, %v2768, %v2096
        %v2801 = vsel %vm2552, %v2769, %v2098
        %v2802 = vsel %vm2552, %v2770, %v2100
        %v2803 = vsel %vm2552, %v2771, %v2102
        %v2804 = vsel %vm2552, %v2772, %v2104
        %v2805 = vsel %vm2552, %v2773, %v2106
        %v2806 = vsel %vm2552, %v2774, %v2108
        %v2807 = vsel %vm2552, %v2775, %v2110
        %v2808 = vsel %vm2552, %v2776, %v2112
        %v2809 = vsel %vm2552, %v2777, %v2114
        %v2810 = vsel %vm2552, %v2778, %v2116
        %v2811 = vsel %vm2552, %v2779, %v2118
        %v2812 = vsel %vm2585, %v2780, %v2157
        %v2813 = vsel %vm2585, %v2781, %v2159
        %v2814 = vsel %vm2585, %v2782, %v2161
        %v2815 = vsel %vm2585, %v2783, %v2163
        %v2816 = vsel %vm2585, %v2784, %v2165
        %v2817 = vsel %vm2585, %v2785, %v2167
        %v2818 = vsel %vm2585, %v2786, %v2169
        %v2819 = vsel %vm2585, %v2787, %v2171
        %v2820 = vsel %vm2585, %v2788, %v2173
        %v2821 = vsel %vm2585, %v2789, %v2175
        %v2822 = vsel %vm2585, %v2790, %v2177
        %v2823 = vsel %vm2585, %v2791, %v2179
        %v2824 = vsel %vm2585, %v2792, %v2181
        %v2825 = vsel %vm2585, %v2793, %v2183
        %v2826 = vsel %vm2585, %v2794, %v2185
        %v2827 = vsel %vm2585, %v2795, %v2187
        %v2828 = vsel %vm2585, %v2796, %v2189
        %v2829 = vsel %vm2585, %v2797, %v2191
        %v2830 = vsel %vm2585, %v2798, %v2193
        %v2831 = vsel %vm2585, %v2799, %v2195
        %v2832 = vsel %vm2585, %v2800, %v2197
        %v2833 = vsel %vm2585, %v2801, %v2199
        %v2834 = vsel %vm2585, %v2802, %v2201
        %v2835 = vsel %vm2585, %v2803, %v2203
        %v2836 = vsel %vm2585, %v2804, %v2205
        %v2837 = vsel %vm2585, %v2805, %v2207
        %v2838 = vsel %vm2585, %v2806, %v2209
        %v2839 = vsel %vm2585, %v2807, %v2211
        %v2840 = vsel %vm2585, %v2808, %v2213
        %v2841 = vsel %vm2585, %v2809, %v2215
        %v2842 = vsel %vm2585, %v2810, %v2217
        %v2843 = vsel %vm2585, %v2811, %v2219
        %v2844 = vsel %vm2618, %v2812, %v2258
        %v2845 = vsel %vm2618, %v2813, %v2260
        %v2846 = vsel %vm2618, %v2814, %v2262
        %v2847 = vsel %vm2618, %v2815, %v2264
        %v2848 = vsel %vm2618, %v2816, %v2266
        %v2849 = vsel %vm2618, %v2817, %v2268
        %v2850 = vsel %vm2618, %v2818, %v2270
        %v2851 = vsel %vm2618, %v2819, %v2272
        %v2852 = vsel %vm2618, %v2820, %v2274
        %v2853 = vsel %vm2618, %v2821, %v2276
        %v2854 = vsel %vm2618, %v2822, %v2278
        %v2855 = vsel %vm2618, %v2823, %v2280
        %v2856 = vsel %vm2618, %v2824, %v2282
        %v2857 = vsel %vm2618, %v2825, %v2284
        %v2858 = vsel %vm2618, %v2826, %v2286
        %v2859 = vsel %vm2618, %v2827, %v2288
        %v2860 = vsel %vm2618, %v2828, %v2290
        %v2861 = vsel %vm2618, %v2829, %v2292
        %v2862 = vsel %vm2618, %v2830, %v2294
        %v2863 = vsel %vm2618, %v2831, %v2296
        %v2864 = vsel %vm2618, %v2832, %v2298
        %v2865 = vsel %vm2618, %v2833, %v2300
        %v2866 = vsel %vm2618, %v2834, %v2302
        %v2867 = vsel %vm2618, %v2835, %v2304
        %v2868 = vsel %vm2618, %v2836, %v2306
        %v2869 = vsel %vm2618, %v2837, %v2308
        %v2870 = vsel %vm2618, %v2838, %v2310
        %v2871 = vsel %vm2618, %v2839, %v2312
        %v2872 = vsel %vm2618, %v2840, %v2314
        %v2873 = vsel %vm2618, %v2841, %v2316
        %v2874 = vsel %vm2618, %v2842, %v2318
        %v2875 = vsel %vm2618, %v2843, %v2320
        %v2876 = vsel %vm2651, %v2844, %v2359
        %v2877 = vsel %vm2651, %v2845, %v2361
        %v2878 = vsel %vm2651, %v2846, %v2363
        %v2879 = vsel %vm2651, %v2847, %v2365
        %v2880 = vsel %vm2651, %v2848, %v2367
        %v2881 = vsel %vm2651, %v2849, %v2369
        %v2882 = vsel %vm2651, %v2850, %v2371
        %v2883 = vsel %vm2651, %v2851, %v2373
        %v2884 = vsel %vm2651, %v2852, %v2375
        %v2885 = vsel %vm2651, %v2853, %v2377
        %v2886 = vsel %vm2651, %v2854, %v2379
        %v2887 = vsel %vm2651, %v2855, %v2381
        %v2888 = vsel %vm2651, %v2856, %v2383
        %v2889 = vsel %vm2651, %v2857, %v2385
        %v2890 = vsel %vm2651, %v2858, %v2387
        %v2891 = vsel %vm2651, %v2859, %v2389
        %v2892 = vsel %vm2651, %v2860, %v2391
        %v2893 = vsel %vm2651, %v2861, %v2393
        %v2894 = vsel %vm2651, %v2862, %v2395
        %v2895 = vsel %vm2651, %v2863, %v2397
        %v2896 = vsel %vm2651, %v2864, %v2399
        %v2897 = vsel %vm2651, %v2865, %v2401
        %v2898 = vsel %vm2651, %v2866, %v2403
        %v2899 = vsel %vm2651, %v2867, %v2405
        %v2900 = vsel %vm2651, %v2868, %v2407
        %v2901 = vsel %vm2651, %v2869, %v2409
        %v2902 = vsel %vm2651, %v2870, %v2411
        %v2903 = vsel %vm2651, %v2871, %v2413
        %v2904 = vsel %vm2651, %v2872, %v2415
        %v2905 = vsel %vm2651, %v2873, %v2417
        %v2906 = vsel %vm2651, %v2874, %v2419
        %v2907 = vsel %vm2651, %v2875, %v2421
        %2908 = vrot.lane.b32.xlu0 %v517, 16
        %v2909 = vpop.permute.xlu0 %2908
        %2910 = vrot.lane.b32.xlu0 %v519, 16
        %v2911 = vpop.permute.xlu0 %2910
        %2912 = vrot.lane.b32.xlu0 %v522, 16
        %v2913 = vpop.permute.xlu0 %2912
        %2914 = vrot.lane.b32.xlu0 %v524, 16
        %v2915 = vpop.permute.xlu0 %2914
        %2916 = vrot.lane.b32.xlu0 %v527, 16
        %v2917 = vpop.permute.xlu0 %2916
        %2918 = vrot.lane.b32.xlu0 %v529, 16
        %v2919 = vpop.permute.xlu0 %2918
        %2920 = vrot.lane.b32.xlu0 %v532, 16
        %v2921 = vpop.permute.xlu0 %2920
        %2922 = vrot.lane.b32.xlu0 %v534, 16
        %v2923 = vpop.permute.xlu0 %2922
        %2924 = vrot.lane.b32.xlu0 %v537, 16
        %v2925 = vpop.permute.xlu0 %2924
        %2926 = vrot.lane.b32.xlu0 %v539, 16
        %v2927 = vpop.permute.xlu0 %2926
        %2928 = vrot.lane.b32.xlu0 %v542, 16
        %v2929 = vpop.permute.xlu0 %2928
        %2930 = vrot.lane.b32.xlu0 %v544, 16
        %v2931 = vpop.permute.xlu0 %2930
        %2932 = vrot.lane.b32.xlu0 %v547, 16
        %v2933 = vpop.permute.xlu0 %2932
        %2934 = vrot.lane.b32.xlu0 %v549, 16
        %v2935 = vpop.permute.xlu0 %2934
        %2936 = vrot.lane.b32.xlu0 %v552, 16
        %v2937 = vpop.permute.xlu0 %2936
        %2938 = vrot.lane.b32.xlu0 %v554, 16
        %v2939 = vpop.permute.xlu0 %2938
        %2940 = vrot.lane.b32.xlu0 %v557, 16
        %v2941 = vpop.permute.xlu0 %2940
        %2942 = vrot.lane.b32.xlu0 %v559, 16
        %v2943 = vpop.permute.xlu0 %2942
        %2944 = vrot.lane.b32.xlu0 %v562, 16
        %v2945 = vpop.permute.xlu0 %2944
        %2946 = vrot.lane.b32.xlu0 %v564, 16
        %v2947 = vpop.permute.xlu0 %2946
        %2948 = vrot.lane.b32.xlu0 %v567, 16
        %v2949 = vpop.permute.xlu0 %2948
        %2950 = vrot.lane.b32.xlu0 %v569, 16
        %v2951 = vpop.permute.xlu0 %2950
        %2952 = vrot.lane.b32.xlu0 %v572, 16
        %v2953 = vpop.permute.xlu0 %2952
        %2954 = vrot.lane.b32.xlu0 %v574, 16
        %v2955 = vpop.permute.xlu0 %2954
        %2956 = vrot.lane.b32.xlu0 %v577, 16
        %v2957 = vpop.permute.xlu0 %2956
        %2958 = vrot.lane.b32.xlu0 %v579, 16
        %v2959 = vpop.permute.xlu0 %2958
        %2960 = vrot.lane.b32.xlu0 %v582, 16
        %v2961 = vpop.permute.xlu0 %2960
        %2962 = vrot.lane.b32.xlu0 %v584, 16
        %v2963 = vpop.permute.xlu0 %2962
        %2964 = vrot.lane.b32.xlu0 %v587, 16
        %v2965 = vpop.permute.xlu0 %2964
        %2966 = vrot.lane.b32.xlu0 %v589, 16
        %v2967 = vpop.permute.xlu0 %2966
        %2968 = vrot.lane.b32.xlu0 %v1849, 16
        %v2969 = vpop.permute.xlu0 %2968
        %2970 = vrot.lane.b32.xlu0 %v1852, 16
        %v2971 = vpop.permute.xlu0 %2970
        %2972 = vrot.lane.b32.xlu0 %v1851, 16
        %v2973 = vpop.permute.xlu0 %2972
        %v3009 = vrot.slane %v441, 1
        %v3010 = vrot.slane %v442, 1
        %v3011 = vsel %vm510, %v3009, %v3010
        %3012 = vrot.lane.b32.xlu0 %v521, 32
        %v3013 = vpop.permute.xlu0 %3012
        %3014 = vrot.lane.b32.xlu0 %v522, 32
        %v3015 = vpop.permute.xlu0 %3014
        %3016 = vrot.lane.b32.xlu0 %v526, 32
        %v3017 = vpop.permute.xlu0 %3016
        %3018 = vrot.lane.b32.xlu0 %v527, 32
        %v3019 = vpop.permute.xlu0 %3018
        %3020 = vrot.lane.b32.xlu0 %v531, 32
        %v3021 = vpop.permute.xlu0 %3020
        %3022 = vrot.lane.b32.xlu0 %v532, 32
        %v3023 = vpop.permute.xlu0 %3022
        %3024 = vrot.lane.b32.xlu0 %v536, 32
        %v3025 = vpop.permute.xlu0 %3024
        %3026 = vrot.lane.b32.xlu0 %v537, 32
        %v3027 = vpop.permute.xlu0 %3026
        %3028 = vrot.lane.b32.xlu0 %v541, 32
        %v3029 = vpop.permute.xlu0 %3028
        %3030 = vrot.lane.b32.xlu0 %v542, 32
        %v3031 = vpop.permute.xlu0 %3030
        %3032 = vrot.lane.b32.xlu0 %v546, 32
        %v3033 = vpop.permute.xlu0 %3032
        %3034 = vrot.lane.b32.xlu0 %v547, 32
        %v3035 = vpop.permute.xlu0 %3034
        %3036 = vrot.lane.b32.xlu0 %v551, 32
        %v3037 = vpop.permute.xlu0 %3036
        %3038 = vrot.lane.b32.xlu0 %v552, 32
        %v3039 = vpop.permute.xlu0 %3038
        %3040 = vrot.lane.b32.xlu0 %v556, 32
        %v3041 = vpop.permute.xlu0 %3040
        %3042 = vrot.lane.b32.xlu0 %v557, 32
        %v3043 = vpop.permute.xlu0 %3042
        %3044 = vrot.lane.b32.xlu0 %v561, 32
        %v3045 = vpop.permute.xlu0 %3044
        %3046 = vrot.lane.b32.xlu0 %v562, 32
        %v3047 = vpop.permute.xlu0 %3046
        %3048 = vrot.lane.b32.xlu0 %v566, 32
        %v3049 = vpop.permute.xlu0 %3048
        %3050 = vrot.lane.b32.xlu0 %v567, 32
        %v3051 = vpop.permute.xlu0 %3050
        %3052 = vrot.lane.b32.xlu0 %v571, 32
        %v3053 = vpop.permute.xlu0 %3052
        %3054 = vrot.lane.b32.xlu0 %v572, 32
        %v3055 = vpop.permute.xlu0 %3054
        %3056 = vrot.lane.b32.xlu0 %v576, 32
        %v3057 = vpop.permute.xlu0 %3056
        %3058 = vrot.lane.b32.xlu0 %v577, 32
        %v3059 = vpop.permute.xlu0 %3058
        %3060 = vrot.lane.b32.xlu0 %v581, 32
        %v3061 = vpop.permute.xlu0 %3060
        %3062 = vrot.lane.b32.xlu0 %v582, 32
        %v3063 = vpop.permute.xlu0 %3062
        %3064 = vrot.lane.b32.xlu0 %v586, 32
        %v3065 = vpop.permute.xlu0 %3064
        %3066 = vrot.lane.b32.xlu0 %v587, 32
        %v3067 = vpop.permute.xlu0 %3066
        %3068 = vrot.lane.b32.xlu0 %v1848, 32
        %v3069 = vpop.permute.xlu0 %3068
        %3070 = vrot.lane.b32.xlu0 %v1849, 32
        %v3071 = vpop.permute.xlu0 %3070
        %3072 = vrot.lane.b32.xlu0 %v3009, 32
        %v3073 = vpop.permute.xlu0 %3072
        %3074 = vrot.lane.b32.xlu0 %v3011, 32
        %v3075 = vpop.permute.xlu0 %3074
        %3076 = vrot.lane.b32.xlu0 %v3010, 32
        %v3077 = vpop.permute.xlu0 %3076
        %v3112 = vrot.slane %v441, 2
        %v3113 = vrot.slane %v442, 2
        %v3114 = vsel %vm687, %v3112, %v3113
        %v3115 = vrot.slane %v443, 2
        %v3116 = vsel %vm687, %v3113, %v3115
        %3117 = vrot.lane.b32.xlu0 %v698, 48
        %v3118 = vpop.permute.xlu0 %3117
        %3119 = vrot.lane.b32.xlu0 %v703, 48
        %v3120 = vpop.permute.xlu0 %3119
        %3121 = vrot.lane.b32.xlu0 %v708, 48
        %v3122 = vpop.permute.xlu0 %3121
        %3123 = vrot.lane.b32.xlu0 %v713, 48
        %v3124 = vpop.permute.xlu0 %3123
        %3125 = vrot.lane.b32.xlu0 %v718, 48
        %v3126 = vpop.permute.xlu0 %3125
        %3127 = vrot.lane.b32.xlu0 %v723, 48
        %v3128 = vpop.permute.xlu0 %3127
        %3129 = vrot.lane.b32.xlu0 %v728, 48
        %v3130 = vpop.permute.xlu0 %3129
        %3131 = vrot.lane.b32.xlu0 %v733, 48
        %v3132 = vpop.permute.xlu0 %3131
        %3133 = vrot.lane.b32.xlu0 %v738, 48
        %v3134 = vpop.permute.xlu0 %3133
        %3135 = vrot.lane.b32.xlu0 %v743, 48
        %v3136 = vpop.permute.xlu0 %3135
        %3137 = vrot.lane.b32.xlu0 %v748, 48
        %v3138 = vpop.permute.xlu0 %3137
        %3139 = vrot.lane.b32.xlu0 %v753, 48
        %v3140 = vpop.permute.xlu0 %3139
        %3141 = vrot.lane.b32.xlu0 %v758, 48
        %v3142 = vpop.permute.xlu0 %3141
        %3143 = vrot.lane.b32.xlu0 %v763, 48
        %v3144 = vpop.permute.xlu0 %3143
        %3145 = vrot.lane.b32.xlu0 %v1949, 48
        %v3146 = vpop.permute.xlu0 %3145
        %3147 = vrot.lane.b32.xlu0 %v3112, 48
        %v3148 = vpop.permute.xlu0 %3147
        %3149 = vrot.lane.b32.xlu0 %v3114, 48
        %v3150 = vpop.permute.xlu0 %3149
        %3151 = vrot.lane.b32.xlu0 %v3116, 48
        %v3152 = vpop.permute.xlu0 %3151
        %v3171 = vrot.slane %v441, 3
        %v3172 = vrot.slane %v442, 3
        %v3173 = vsel %vm864, %v3171, %v3172
        %v3174 = vrot.slane %v443, 3
        %v3175 = vsel %vm864, %v3172, %v3174
        %3176 = vrot.lane.b32.xlu0 %v875, 64
        %v3177 = vpop.permute.xlu0 %3176
        %3178 = vrot.lane.b32.xlu0 %v880, 64
        %v3179 = vpop.permute.xlu0 %3178
        %3180 = vrot.lane.b32.xlu0 %v885, 64
        %v3181 = vpop.permute.xlu0 %3180
        %3182 = vrot.lane.b32.xlu0 %v890, 64
        %v3183 = vpop.permute.xlu0 %3182
        %3184 = vrot.lane.b32.xlu0 %v895, 64
        %v3185 = vpop.permute.xlu0 %3184
        %3186 = vrot.lane.b32.xlu0 %v900, 64
        %v3187 = vpop.permute.xlu0 %3186
        %3188 = vrot.lane.b32.xlu0 %v905, 64
        %v3189 = vpop.permute.xlu0 %3188
        %3190 = vrot.lane.b32.xlu0 %v910, 64
        %v3191 = vpop.permute.xlu0 %3190
        %3192 = vrot.lane.b32.xlu0 %v915, 64
        %v3193 = vpop.permute.xlu0 %3192
        %3194 = vrot.lane.b32.xlu0 %v920, 64
        %v3195 = vpop.permute.xlu0 %3194
        %3196 = vrot.lane.b32.xlu0 %v925, 64
        %v3197 = vpop.permute.xlu0 %3196
        %3198 = vrot.lane.b32.xlu0 %v930, 64
        %v3199 = vpop.permute.xlu0 %3198
        %3200 = vrot.lane.b32.xlu0 %v935, 64
        %v3201 = vpop.permute.xlu0 %3200
        %3202 = vrot.lane.b32.xlu0 %v940, 64
        %v3203 = vpop.permute.xlu0 %3202
        %3204 = vrot.lane.b32.xlu0 %v2050, 64
        %v3205 = vpop.permute.xlu0 %3204
        %3206 = vrot.lane.b32.xlu0 %v3171, 64
        %v3207 = vpop.permute.xlu0 %3206
        %3208 = vrot.lane.b32.xlu0 %v3173, 64
        %v3209 = vpop.permute.xlu0 %3208
        %3210 = vrot.lane.b32.xlu0 %v3175, 64
        %v3211 = vpop.permute.xlu0 %3210
        %v3230 = vrot.slane %v441, 4
        %v3231 = vrot.slane %v442, 4
        %v3232 = vsel %vm1041, %v3230, %v3231
        %v3233 = vrot.slane %v443, 4
        %v3234 = vsel %vm1041, %v3231, %v3233
        %3235 = vrot.lane.b32.xlu0 %v1052, 80
        %v3236 = vpop.permute.xlu0 %3235
        %3237 = vrot.lane.b32.xlu0 %v1057, 80
        %v3238 = vpop.permute.xlu0 %3237
        %3239 = vrot.lane.b32.xlu0 %v1062, 80
        %v3240 = vpop.permute.xlu0 %3239
        %3241 = vrot.lane.b32.xlu0 %v1067, 80
        %v3242 = vpop.permute.xlu0 %3241
        %3243 = vrot.lane.b32.xlu0 %v1072, 80
        %v3244 = vpop.permute.xlu0 %3243
        %3245 = vrot.lane.b32.xlu0 %v1077, 80
        %v3246 = vpop.permute.xlu0 %3245
        %3247 = vrot.lane.b32.xlu0 %v1082, 80
        %v3248 = vpop.permute.xlu0 %3247
        %3249 = vrot.lane.b32.xlu0 %v1087, 80
        %v3250 = vpop.permute.xlu0 %3249
        %3251 = vrot.lane.b32.xlu0 %v1092, 80
        %v3252 = vpop.permute.xlu0 %3251
        %3253 = vrot.lane.b32.xlu0 %v1097, 80
        %v3254 = vpop.permute.xlu0 %3253
        %3255 = vrot.lane.b32.xlu0 %v1102, 80
        %v3256 = vpop.permute.xlu0 %3255
        %3257 = vrot.lane.b32.xlu0 %v1107, 80
        %v3258 = vpop.permute.xlu0 %3257
        %3259 = vrot.lane.b32.xlu0 %v1112, 80
        %v3260 = vpop.permute.xlu0 %3259
        %3261 = vrot.lane.b32.xlu0 %v1117, 80
        %v3262 = vpop.permute.xlu0 %3261
        %3263 = vrot.lane.b32.xlu0 %v2151, 80
        %v3264 = vpop.permute.xlu0 %3263
        %3265 = vrot.lane.b32.xlu0 %v3230, 80
        %v3266 = vpop.permute.xlu0 %3265
        %3267 = vrot.lane.b32.xlu0 %v3232, 80
        %v3268 = vpop.permute.xlu0 %3267
        %3269 = vrot.lane.b32.xlu0 %v3234, 80
        %v3270 = vpop.permute.xlu0 %3269
        %v3289 = vrot.slane %v441, 5
        %v3290 = vrot.slane %v442, 5
        %v3291 = vsel %vm1218, %v3289, %v3290
        %v3292 = vrot.slane %v443, 5
        %v3293 = vsel %vm1218, %v3290, %v3292
        %3294 = vrot.lane.b32.xlu0 %v1229, 96
        %v3295 = vpop.permute.xlu0 %3294
        %3296 = vrot.lane.b32.xlu0 %v1234, 96
        %v3297 = vpop.permute.xlu0 %3296
        %3298 = vrot.lane.b32.xlu0 %v1239, 96
        %v3299 = vpop.permute.xlu0 %3298
        %3300 = vrot.lane.b32.xlu0 %v1244, 96
        %v3301 = vpop.permute.xlu0 %3300
        %3302 = vrot.lane.b32.xlu0 %v1249, 96
        %v3303 = vpop.permute.xlu0 %3302
        %3304 = vrot.lane.b32.xlu0 %v1254, 96
        %v3305 = vpop.permute.xlu0 %3304
        %3306 = vrot.lane.b32.xlu0 %v1259, 96
        %v3307 = vpop.permute.xlu0 %3306
        %3308 = vrot.lane.b32.xlu0 %v1264, 96
        %v3309 = vpop.permute.xlu0 %3308
        %3310 = vrot.lane.b32.xlu0 %v1269, 96
        %v3311 = vpop.permute.xlu0 %3310
        %3312 = vrot.lane.b32.xlu0 %v1274, 96
        %v3313 = vpop.permute.xlu0 %3312
        %3314 = vrot.lane.b32.xlu0 %v1279, 96
        %v3315 = vpop.permute.xlu0 %3314
        %3316 = vrot.lane.b32.xlu0 %v1284, 96
        %v3317 = vpop.permute.xlu0 %3316
        %3318 = vrot.lane.b32.xlu0 %v1289, 96
        %v3319 = vpop.permute.xlu0 %3318
        %3320 = vrot.lane.b32.xlu0 %v1294, 96
        %v3321 = vpop.permute.xlu0 %3320
        %3322 = vrot.lane.b32.xlu0 %v2252, 96
        %v3323 = vpop.permute.xlu0 %3322
        %3324 = vrot.lane.b32.xlu0 %v3289, 96
        %v3325 = vpop.permute.xlu0 %3324
        %3326 = vrot.lane.b32.xlu0 %v3291, 96
        %v3327 = vpop.permute.xlu0 %3326
        %3328 = vrot.lane.b32.xlu0 %v3293, 96
        %v3329 = vpop.permute.xlu0 %3328
        %v3348 = vrot.slane %v441, 6
        %v3349 = vrot.slane %v442, 6
        %v3350 = vsel %vm1395, %v3348, %v3349
        %v3351 = vrot.slane %v443, 6
        %v3352 = vsel %vm1395, %v3349, %v3351
        %3353 = vrot.lane.b32.xlu0 %v1406, 112
        %v3354 = vpop.permute.xlu0 %3353
        %3355 = vrot.lane.b32.xlu0 %v1411, 112
        %v3356 = vpop.permute.xlu0 %3355
        %3357 = vrot.lane.b32.xlu0 %v1416, 112
        %v3358 = vpop.permute.xlu0 %3357
        %3359 = vrot.lane.b32.xlu0 %v1421, 112
        %v3360 = vpop.permute.xlu0 %3359
        %3361 = vrot.lane.b32.xlu0 %v1426, 112
        %v3362 = vpop.permute.xlu0 %3361
        %3363 = vrot.lane.b32.xlu0 %v1431, 112
        %v3364 = vpop.permute.xlu0 %3363
        %3365 = vrot.lane.b32.xlu0 %v1436, 112
        %v3366 = vpop.permute.xlu0 %3365
        %3367 = vrot.lane.b32.xlu0 %v1441, 112
        %v3368 = vpop.permute.xlu0 %3367
        %3369 = vrot.lane.b32.xlu0 %v1446, 112
        %v3370 = vpop.permute.xlu0 %3369
        %3371 = vrot.lane.b32.xlu0 %v1451, 112
        %v3372 = vpop.permute.xlu0 %3371
        %3373 = vrot.lane.b32.xlu0 %v1456, 112
        %v3374 = vpop.permute.xlu0 %3373
        %3375 = vrot.lane.b32.xlu0 %v1461, 112
        %v3376 = vpop.permute.xlu0 %3375
        %3377 = vrot.lane.b32.xlu0 %v1466, 112
        %v3378 = vpop.permute.xlu0 %3377
        %3379 = vrot.lane.b32.xlu0 %v1471, 112
        %v3380 = vpop.permute.xlu0 %3379
        %3381 = vrot.lane.b32.xlu0 %v2353, 112
        %v3382 = vpop.permute.xlu0 %3381
        %3383 = vrot.lane.b32.xlu0 %v3348, 112
        %v3384 = vpop.permute.xlu0 %3383
        %3385 = vrot.lane.b32.xlu0 %v3350, 112
        %v3386 = vpop.permute.xlu0 %3385
        %3387 = vrot.lane.b32.xlu0 %v3352, 112
        %v3388 = vpop.permute.xlu0 %3387
        %v3407 = vrot.slane %v438, 7
        %v3408 = vrot.slane %v439, 7
        %v3409 = vsel %vm1572, %v3407, %v3408
        %v3410 = vrot.slane %v440, 7
        %v3411 = vsel %vm1572, %v3408, %v3410
        %v3412 = vrot.slane %v441, 7
        %v3413 = vrot.slane %v442, 7
        %v3414 = vsel %vm1572, %v3412, %v3413
        %v3415 = vrot.slane %v443, 7
        %v3416 = vsel %vm1572, %v3413, %v3415
        %3465 = vrot.lane.b32.xlu0 %v398, 16
        %v3466 = vpop.permute.xlu0 %3465
        %3467 = vrot.lane.b32.xlu0 %v401, 16
        %v3468 = vpop.permute.xlu0 %3467
        %3469 = vrot.lane.b32.xlu0 %v404, 16
        %v3470 = vpop.permute.xlu0 %3469
        %3471 = vrot.lane.b32.xlu0 %v407, 16
        %v3472 = vpop.permute.xlu0 %3471
        %3473 = vrot.lane.b32.xlu0 %v410, 16
        %v3474 = vpop.permute.xlu0 %3473
        %3475 = vrot.lane.b32.xlu0 %v413, 16
        %v3476 = vpop.permute.xlu0 %3475
        %3477 = vrot.lane.b32.xlu0 %v416, 16
        %v3478 = vpop.permute.xlu0 %3477
        %3479 = vrot.lane.b32.xlu0 %v419, 16
        %v3480 = vpop.permute.xlu0 %3479
        %3481 = vrot.lane.b32.xlu0 %v422, 16
        %v3482 = vpop.permute.xlu0 %3481
        %3483 = vrot.lane.b32.xlu0 %v425, 16
        %v3484 = vpop.permute.xlu0 %3483
        %3485 = vrot.lane.b32.xlu0 %v428, 16
        %v3486 = vpop.permute.xlu0 %3485
        %3487 = vrot.lane.b32.xlu0 %v431, 16
        %v3488 = vpop.permute.xlu0 %3487
        %3489 = vrot.lane.b32.xlu0 %v434, 16
        %v3490 = vpop.permute.xlu0 %3489
        %3491 = vrot.lane.b32.xlu0 %v437, 16
        %v3492 = vpop.permute.xlu0 %3491
        %3493 = vrot.lane.b32.xlu0 %v440, 16
        %v3494 = vpop.permute.xlu0 %3493
        %3495 = vrot.lane.b32.xlu0 %v441, 16
        %v3496 = vpop.permute.xlu0 %3495
        %3497 = vrot.lane.b32.xlu0 %v442, 16
        %v3498 = vpop.permute.xlu0 %3497
        %3499 = vrot.lane.b32.xlu0 %v443, 16
        %v3500 = vpop.permute.xlu0 %3499
        %v3519 = vrot.slane %v443, 1
        %v3520 = vsel %vm510, %v3010, %v3519
        %3521 = vrot.lane.b32.xlu0 %v524, 32
        %v3522 = vpop.permute.xlu0 %3521
        %3523 = vrot.lane.b32.xlu0 %v529, 32
        %v3524 = vpop.permute.xlu0 %3523
        %3525 = vrot.lane.b32.xlu0 %v534, 32
        %v3526 = vpop.permute.xlu0 %3525
        %3527 = vrot.lane.b32.xlu0 %v539, 32
        %v3528 = vpop.permute.xlu0 %3527
        %3529 = vrot.lane.b32.xlu0 %v544, 32
        %v3530 = vpop.permute.xlu0 %3529
        %3531 = vrot.lane.b32.xlu0 %v549, 32
        %v3532 = vpop.permute.xlu0 %3531
        %3533 = vrot.lane.b32.xlu0 %v554, 32
        %v3534 = vpop.permute.xlu0 %3533
        %3535 = vrot.lane.b32.xlu0 %v559, 32
        %v3536 = vpop.permute.xlu0 %3535
        %3537 = vrot.lane.b32.xlu0 %v564, 32
        %v3538 = vpop.permute.xlu0 %3537
        %3539 = vrot.lane.b32.xlu0 %v569, 32
        %v3540 = vpop.permute.xlu0 %3539
        %3541 = vrot.lane.b32.xlu0 %v574, 32
        %v3542 = vpop.permute.xlu0 %3541
        %3543 = vrot.lane.b32.xlu0 %v579, 32
        %v3544 = vpop.permute.xlu0 %3543
        %3545 = vrot.lane.b32.xlu0 %v584, 32
        %v3546 = vpop.permute.xlu0 %3545
        %3547 = vrot.lane.b32.xlu0 %v589, 32
        %v3548 = vpop.permute.xlu0 %3547
        %3549 = vrot.lane.b32.xlu0 %v1851, 32
        %v3550 = vpop.permute.xlu0 %3549
        %3551 = vrot.lane.b32.xlu0 %v3520, 32
        %v3552 = vpop.permute.xlu0 %3551
        %3553 = vrot.lane.b32.xlu0 %v3519, 32
        %v3554 = vpop.permute.xlu0 %3553
        %v3574 = vrot.slane %v444, 1
        %v3575 = vrot.slane %v445, 1
        %v3576 = vsel %vm510, %v3574, %v3575
        %3577 = vrot.lane.b32.xlu0 %v526, 48
        %v3578 = vpop.permute.xlu0 %3577
        %3579 = vrot.lane.b32.xlu0 %v528, 48
        %v3580 = vpop.permute.xlu0 %3579
        %3581 = vrot.lane.b32.xlu0 %v527, 48
        %v3582 = vpop.permute.xlu0 %3581
        %3583 = vrot.lane.b32.xlu0 %v531, 48
        %v3584 = vpop.permute.xlu0 %3583
        %3585 = vrot.lane.b32.xlu0 %v533, 48
        %v3586 = vpop.permute.xlu0 %3585
        %3587 = vrot.lane.b32.xlu0 %v532, 48
        %v3588 = vpop.permute.xlu0 %3587
        %3589 = vrot.lane.b32.xlu0 %v536, 48
        %v3590 = vpop.permute.xlu0 %3589
        %3591 = vrot.lane.b32.xlu0 %v538, 48
        %v3592 = vpop.permute.xlu0 %3591
        %3593 = vrot.lane.b32.xlu0 %v537, 48
        %v3594 = vpop.permute.xlu0 %3593
        %3595 = vrot.lane.b32.xlu0 %v541, 48
        %v3596 = vpop.permute.xlu0 %3595
        %3597 = vrot.lane.b32.xlu0 %v543, 48
        %v3598 = vpop.permute.xlu0 %3597
        %3599 = vrot.lane.b32.xlu0 %v542, 48
        %v3600 = vpop.permute.xlu0 %3599
        %3601 = vrot.lane.b32.xlu0 %v546, 48
        %v3602 = vpop.permute.xlu0 %3601
        %3603 = vrot.lane.b32.xlu0 %v548, 48
        %v3604 = vpop.permute.xlu0 %3603
        %3605 = vrot.lane.b32.xlu0 %v547, 48
        %v3606 = vpop.permute.xlu0 %3605
        %3607 = vrot.lane.b32.xlu0 %v551, 48
        %v3608 = vpop.permute.xlu0 %3607
        %3609 = vrot.lane.b32.xlu0 %v553, 48
        %v3610 = vpop.permute.xlu0 %3609
        %3611 = vrot.lane.b32.xlu0 %v552, 48
        %v3612 = vpop.permute.xlu0 %3611
        %3613 = vrot.lane.b32.xlu0 %v556, 48
        %v3614 = vpop.permute.xlu0 %3613
        %3615 = vrot.lane.b32.xlu0 %v558, 48
        %v3616 = vpop.permute.xlu0 %3615
        %3617 = vrot.lane.b32.xlu0 %v557, 48
        %v3618 = vpop.permute.xlu0 %3617
        %3619 = vrot.lane.b32.xlu0 %v561, 48
        %v3620 = vpop.permute.xlu0 %3619
        %3621 = vrot.lane.b32.xlu0 %v563, 48
        %v3622 = vpop.permute.xlu0 %3621
        %3623 = vrot.lane.b32.xlu0 %v562, 48
        %v3624 = vpop.permute.xlu0 %3623
        %3625 = vrot.lane.b32.xlu0 %v566, 48
        %v3626 = vpop.permute.xlu0 %3625
        %3627 = vrot.lane.b32.xlu0 %v568, 48
        %v3628 = vpop.permute.xlu0 %3627
        %3629 = vrot.lane.b32.xlu0 %v567, 48
        %v3630 = vpop.permute.xlu0 %3629
        %3631 = vrot.lane.b32.xlu0 %v571, 48
        %v3632 = vpop.permute.xlu0 %3631
        %3633 = vrot.lane.b32.xlu0 %v573, 48
        %v3634 = vpop.permute.xlu0 %3633
        %3635 = vrot.lane.b32.xlu0 %v572, 48
        %v3636 = vpop.permute.xlu0 %3635
        %3637 = vrot.lane.b32.xlu0 %v576, 48
        %v3638 = vpop.permute.xlu0 %3637
        %3639 = vrot.lane.b32.xlu0 %v578, 48
        %v3640 = vpop.permute.xlu0 %3639
        %3641 = vrot.lane.b32.xlu0 %v577, 48
        %v3642 = vpop.permute.xlu0 %3641
        %3643 = vrot.lane.b32.xlu0 %v581, 48
        %v3644 = vpop.permute.xlu0 %3643
        %3645 = vrot.lane.b32.xlu0 %v583, 48
        %v3646 = vpop.permute.xlu0 %3645
        %3647 = vrot.lane.b32.xlu0 %v582, 48
        %v3648 = vpop.permute.xlu0 %3647
        %3649 = vrot.lane.b32.xlu0 %v586, 48
        %v3650 = vpop.permute.xlu0 %3649
        %3651 = vrot.lane.b32.xlu0 %v588, 48
        %v3652 = vpop.permute.xlu0 %3651
        %3653 = vrot.lane.b32.xlu0 %v587, 48
        %v3654 = vpop.permute.xlu0 %3653
        %3655 = vrot.lane.b32.xlu0 %v1848, 48
        %v3656 = vpop.permute.xlu0 %3655
        %3657 = vrot.lane.b32.xlu0 %v1850, 48
        %v3658 = vpop.permute.xlu0 %3657
        %3659 = vrot.lane.b32.xlu0 %v1849, 48
        %v3660 = vpop.permute.xlu0 %3659
        %3661 = vrot.lane.b32.xlu0 %v3009, 48
        %v3662 = vpop.permute.xlu0 %3661
        %3663 = vrot.lane.b32.xlu0 %v3011, 48
        %v3664 = vpop.permute.xlu0 %3663
        %3665 = vrot.lane.b32.xlu0 %v3010, 48
        %v3666 = vpop.permute.xlu0 %3665
        %3667 = vrot.lane.b32.xlu0 %v3574, 48
        %v3668 = vpop.permute.xlu0 %3667
        %3669 = vrot.lane.b32.xlu0 %v3576, 48
        %v3670 = vpop.permute.xlu0 %3669
        %3671 = vrot.lane.b32.xlu0 %v3575, 48
        %v3672 = vpop.permute.xlu0 %3671
        %v3722 = vrot.slane %v444, 2
        %v3723 = vrot.slane %v445, 2
        %v3724 = vsel %vm687, %v3722, %v3723
        %v3725 = vrot.slane %v446, 2
        %v3726 = vsel %vm687, %v3723, %v3725
        %3727 = vrot.lane.b32.xlu0 %v703, 64
        %v3728 = vpop.permute.xlu0 %3727
        %3729 = vrot.lane.b32.xlu0 %v705, 64
        %v3730 = vpop.permute.xlu0 %3729
        %3731 = vrot.lane.b32.xlu0 %v707, 64
        %v3732 = vpop.permute.xlu0 %3731
        %3733 = vrot.lane.b32.xlu0 %v708, 64
        %v3734 = vpop.permute.xlu0 %3733
        %3735 = vrot.lane.b32.xlu0 %v710, 64
        %v3736 = vpop.permute.xlu0 %3735
        %3737 = vrot.lane.b32.xlu0 %v712, 64
        %v3738 = vpop.permute.xlu0 %3737
        %3739 = vrot.lane.b32.xlu0 %v713, 64
        %v3740 = vpop.permute.xlu0 %3739
        %3741 = vrot.lane.b32.xlu0 %v715, 64
        %v3742 = vpop.permute.xlu0 %3741
        %3743 = vrot.lane.b32.xlu0 %v717, 64
        %v3744 = vpop.permute.xlu0 %3743
        %3745 = vrot.lane.b32.xlu0 %v718, 64
        %v3746 = vpop.permute.xlu0 %3745
        %3747 = vrot.lane.b32.xlu0 %v720, 64
        %v3748 = vpop.permute.xlu0 %3747
        %3749 = vrot.lane.b32.xlu0 %v722, 64
        %v3750 = vpop.permute.xlu0 %3749
        %3751 = vrot.lane.b32.xlu0 %v723, 64
        %v3752 = vpop.permute.xlu0 %3751
        %3753 = vrot.lane.b32.xlu0 %v725, 64
        %v3754 = vpop.permute.xlu0 %3753
        %3755 = vrot.lane.b32.xlu0 %v727, 64
        %v3756 = vpop.permute.xlu0 %3755
        %3757 = vrot.lane.b32.xlu0 %v728, 64
        %v3758 = vpop.permute.xlu0 %3757
        %3759 = vrot.lane.b32.xlu0 %v730, 64
        %v3760 = vpop.permute.xlu0 %3759
        %3761 = vrot.lane.b32.xlu0 %v732, 64
        %v3762 = vpop.permute.xlu0 %3761
        %3763 = vrot.lane.b32.xlu0 %v733, 64
        %v3764 = vpop.permute.xlu0 %3763
        %3765 = vrot.lane.b32.xlu0 %v735, 64
        %v3766 = vpop.permute.xlu0 %3765
        %3767 = vrot.lane.b32.xlu0 %v737, 64
        %v3768 = vpop.permute.xlu0 %3767
        %3769 = vrot.lane.b32.xlu0 %v738, 64
        %v3770 = vpop.permute.xlu0 %3769
        %3771 = vrot.lane.b32.xlu0 %v740, 64
        %v3772 = vpop.permute.xlu0 %3771
        %3773 = vrot.lane.b32.xlu0 %v742, 64
        %v3774 = vpop.permute.xlu0 %3773
        %3775 = vrot.lane.b32.xlu0 %v743, 64
        %v3776 = vpop.permute.xlu0 %3775
        %3777 = vrot.lane.b32.xlu0 %v745, 64
        %v3778 = vpop.permute.xlu0 %3777
        %3779 = vrot.lane.b32.xlu0 %v747, 64
        %v3780 = vpop.permute.xlu0 %3779
        %3781 = vrot.lane.b32.xlu0 %v748, 64
        %v3782 = vpop.permute.xlu0 %3781
        %3783 = vrot.lane.b32.xlu0 %v750, 64
        %v3784 = vpop.permute.xlu0 %3783
        %3785 = vrot.lane.b32.xlu0 %v752, 64
        %v3786 = vpop.permute.xlu0 %3785
        %3787 = vrot.lane.b32.xlu0 %v753, 64
        %v3788 = vpop.permute.xlu0 %3787
        %3789 = vrot.lane.b32.xlu0 %v755, 64
        %v3790 = vpop.permute.xlu0 %3789
        %3791 = vrot.lane.b32.xlu0 %v757, 64
        %v3792 = vpop.permute.xlu0 %3791
        %3793 = vrot.lane.b32.xlu0 %v758, 64
        %v3794 = vpop.permute.xlu0 %3793
        %3795 = vrot.lane.b32.xlu0 %v760, 64
        %v3796 = vpop.permute.xlu0 %3795
        %3797 = vrot.lane.b32.xlu0 %v762, 64
        %v3798 = vpop.permute.xlu0 %3797
        %3799 = vrot.lane.b32.xlu0 %v763, 64
        %v3800 = vpop.permute.xlu0 %3799
        %3801 = vrot.lane.b32.xlu0 %v765, 64
        %v3802 = vpop.permute.xlu0 %3801
        %3803 = vrot.lane.b32.xlu0 %v767, 64
        %v3804 = vpop.permute.xlu0 %3803
        %3805 = vrot.lane.b32.xlu0 %v1949, 64
        %v3806 = vpop.permute.xlu0 %3805
        %3807 = vrot.lane.b32.xlu0 %v1951, 64
        %v3808 = vpop.permute.xlu0 %3807
        %3809 = vrot.lane.b32.xlu0 %v1953, 64
        %v3810 = vpop.permute.xlu0 %3809
        %3811 = vrot.lane.b32.xlu0 %v3112, 64
        %v3812 = vpop.permute.xlu0 %3811
        %3813 = vrot.lane.b32.xlu0 %v3114, 64
        %v3814 = vpop.permute.xlu0 %3813
        %3815 = vrot.lane.b32.xlu0 %v3116, 64
        %v3816 = vpop.permute.xlu0 %3815
        %3817 = vrot.lane.b32.xlu0 %v3722, 64
        %v3818 = vpop.permute.xlu0 %3817
        %3819 = vrot.lane.b32.xlu0 %v3724, 64
        %v3820 = vpop.permute.xlu0 %3819
        %3821 = vrot.lane.b32.xlu0 %v3726, 64
        %v3822 = vpop.permute.xlu0 %3821
        %v3871 = vrot.slane %v444, 3
        %v3872 = vrot.slane %v445, 3
        %v3873 = vsel %vm864, %v3871, %v3872
        %v3874 = vrot.slane %v446, 3
        %v3875 = vsel %vm864, %v3872, %v3874
        %3876 = vrot.lane.b32.xlu0 %v880, 80
        %v3877 = vpop.permute.xlu0 %3876
        %3878 = vrot.lane.b32.xlu0 %v882, 80
        %v3879 = vpop.permute.xlu0 %3878
        %3880 = vrot.lane.b32.xlu0 %v884, 80
        %v3881 = vpop.permute.xlu0 %3880
        %3882 = vrot.lane.b32.xlu0 %v885, 80
        %v3883 = vpop.permute.xlu0 %3882
        %3884 = vrot.lane.b32.xlu0 %v887, 80
        %v3885 = vpop.permute.xlu0 %3884
        %3886 = vrot.lane.b32.xlu0 %v889, 80
        %v3887 = vpop.permute.xlu0 %3886
        %3888 = vrot.lane.b32.xlu0 %v890, 80
        %v3889 = vpop.permute.xlu0 %3888
        %3890 = vrot.lane.b32.xlu0 %v892, 80
        %v3891 = vpop.permute.xlu0 %3890
        %3892 = vrot.lane.b32.xlu0 %v894, 80
        %v3893 = vpop.permute.xlu0 %3892
        %3894 = vrot.lane.b32.xlu0 %v895, 80
        %v3895 = vpop.permute.xlu0 %3894
        %3896 = vrot.lane.b32.xlu0 %v897, 80
        %v3897 = vpop.permute.xlu0 %3896
        %3898 = vrot.lane.b32.xlu0 %v899, 80
        %v3899 = vpop.permute.xlu0 %3898
        %3900 = vrot.lane.b32.xlu0 %v900, 80
        %v3901 = vpop.permute.xlu0 %3900
        %3902 = vrot.lane.b32.xlu0 %v902, 80
        %v3903 = vpop.permute.xlu0 %3902
        %3904 = vrot.lane.b32.xlu0 %v904, 80
        %v3905 = vpop.permute.xlu0 %3904
        %3906 = vrot.lane.b32.xlu0 %v905, 80
        %v3907 = vpop.permute.xlu0 %3906
        %3908 = vrot.lane.b32.xlu0 %v907, 80
        %v3909 = vpop.permute.xlu0 %3908
        %3910 = vrot.lane.b32.xlu0 %v909, 80
        %v3911 = vpop.permute.xlu0 %3910
        %3912 = vrot.lane.b32.xlu0 %v910, 80
        %v3913 = vpop.permute.xlu0 %3912
        %3914 = vrot.lane.b32.xlu0 %v912, 80
        %v3915 = vpop.permute.xlu0 %3914
        %3916 = vrot.lane.b32.xlu0 %v914, 80
        %v3917 = vpop.permute.xlu0 %3916
        %3918 = vrot.lane.b32.xlu0 %v915, 80
        %v3919 = vpop.permute.xlu0 %3918
        %3920 = vrot.lane.b32.xlu0 %v917, 80
        %v3921 = vpop.permute.xlu0 %3920
        %3922 = vrot.lane.b32.xlu0 %v919, 80
        %v3923 = vpop.permute.xlu0 %3922
        %3924 = vrot.lane.b32.xlu0 %v920, 80
        %v3925 = vpop.permute.xlu0 %3924
        %3926 = vrot.lane.b32.xlu0 %v922, 80
        %v3927 = vpop.permute.xlu0 %3926
        %3928 = vrot.lane.b32.xlu0 %v924, 80
        %v3929 = vpop.permute.xlu0 %3928
        %3930 = vrot.lane.b32.xlu0 %v925, 80
        %v3931 = vpop.permute.xlu0 %3930
        %3932 = vrot.lane.b32.xlu0 %v927, 80
        %v3933 = vpop.permute.xlu0 %3932
        %3934 = vrot.lane.b32.xlu0 %v929, 80
        %v3935 = vpop.permute.xlu0 %3934
        %3936 = vrot.lane.b32.xlu0 %v930, 80
        %v3937 = vpop.permute.xlu0 %3936
        %3938 = vrot.lane.b32.xlu0 %v932, 80
        %v3939 = vpop.permute.xlu0 %3938
        %3940 = vrot.lane.b32.xlu0 %v934, 80
        %v3941 = vpop.permute.xlu0 %3940
        %3942 = vrot.lane.b32.xlu0 %v935, 80
        %v3943 = vpop.permute.xlu0 %3942
        %3944 = vrot.lane.b32.xlu0 %v937, 80
        %v3945 = vpop.permute.xlu0 %3944
        %3946 = vrot.lane.b32.xlu0 %v939, 80
        %v3947 = vpop.permute.xlu0 %3946
        %3948 = vrot.lane.b32.xlu0 %v940, 80
        %v3949 = vpop.permute.xlu0 %3948
        %3950 = vrot.lane.b32.xlu0 %v942, 80
        %v3951 = vpop.permute.xlu0 %3950
        %3952 = vrot.lane.b32.xlu0 %v944, 80
        %v3953 = vpop.permute.xlu0 %3952
        %3954 = vrot.lane.b32.xlu0 %v2050, 80
        %v3955 = vpop.permute.xlu0 %3954
        %3956 = vrot.lane.b32.xlu0 %v2052, 80
        %v3957 = vpop.permute.xlu0 %3956
        %3958 = vrot.lane.b32.xlu0 %v2054, 80
        %v3959 = vpop.permute.xlu0 %3958
        %3960 = vrot.lane.b32.xlu0 %v3171, 80
        %v3961 = vpop.permute.xlu0 %3960
        %3962 = vrot.lane.b32.xlu0 %v3173, 80
        %v3963 = vpop.permute.xlu0 %3962
        %3964 = vrot.lane.b32.xlu0 %v3175, 80
        %v3965 = vpop.permute.xlu0 %3964
        %3966 = vrot.lane.b32.xlu0 %v3871, 80
        %v3967 = vpop.permute.xlu0 %3966
        %3968 = vrot.lane.b32.xlu0 %v3873, 80
        %v3969 = vpop.permute.xlu0 %3968
        %3970 = vrot.lane.b32.xlu0 %v3875, 80
        %v3971 = vpop.permute.xlu0 %3970
        %v4020 = vrot.slane %v444, 4
        %v4021 = vrot.slane %v445, 4
        %v4022 = vsel %vm1041, %v4020, %v4021
        %v4023 = vrot.slane %v446, 4
        %v4024 = vsel %vm1041, %v4021, %v4023
        %4025 = vrot.lane.b32.xlu0 %v1057, 96
        %v4026 = vpop.permute.xlu0 %4025
        %4027 = vrot.lane.b32.xlu0 %v1059, 96
        %v4028 = vpop.permute.xlu0 %4027
        %4029 = vrot.lane.b32.xlu0 %v1061, 96
        %v4030 = vpop.permute.xlu0 %4029
        %4031 = vrot.lane.b32.xlu0 %v1062, 96
        %v4032 = vpop.permute.xlu0 %4031
        %4033 = vrot.lane.b32.xlu0 %v1064, 96
        %v4034 = vpop.permute.xlu0 %4033
        %4035 = vrot.lane.b32.xlu0 %v1066, 96
        %v4036 = vpop.permute.xlu0 %4035
        %4037 = vrot.lane.b32.xlu0 %v1067, 96
        %v4038 = vpop.permute.xlu0 %4037
        %4039 = vrot.lane.b32.xlu0 %v1069, 96
        %v4040 = vpop.permute.xlu0 %4039
        %4041 = vrot.lane.b32.xlu0 %v1071, 96
        %v4042 = vpop.permute.xlu0 %4041
        %4043 = vrot.lane.b32.xlu0 %v1072, 96
        %v4044 = vpop.permute.xlu0 %4043
        %4045 = vrot.lane.b32.xlu0 %v1074, 96
        %v4046 = vpop.permute.xlu0 %4045
        %4047 = vrot.lane.b32.xlu0 %v1076, 96
        %v4048 = vpop.permute.xlu0 %4047
        %4049 = vrot.lane.b32.xlu0 %v1077, 96
        %v4050 = vpop.permute.xlu0 %4049
        %4051 = vrot.lane.b32.xlu0 %v1079, 96
        %v4052 = vpop.permute.xlu0 %4051
        %4053 = vrot.lane.b32.xlu0 %v1081, 96
        %v4054 = vpop.permute.xlu0 %4053
        %4055 = vrot.lane.b32.xlu0 %v1082, 96
        %v4056 = vpop.permute.xlu0 %4055
        %4057 = vrot.lane.b32.xlu0 %v1084, 96
        %v4058 = vpop.permute.xlu0 %4057
        %4059 = vrot.lane.b32.xlu0 %v1086, 96
        %v4060 = vpop.permute.xlu0 %4059
        %4061 = vrot.lane.b32.xlu0 %v1087, 96
        %v4062 = vpop.permute.xlu0 %4061
        %4063 = vrot.lane.b32.xlu0 %v1089, 96
        %v4064 = vpop.permute.xlu0 %4063
        %4065 = vrot.lane.b32.xlu0 %v1091, 96
        %v4066 = vpop.permute.xlu0 %4065
        %4067 = vrot.lane.b32.xlu0 %v1092, 96
        %v4068 = vpop.permute.xlu0 %4067
        %4069 = vrot.lane.b32.xlu0 %v1094, 96
        %v4070 = vpop.permute.xlu0 %4069
        %4071 = vrot.lane.b32.xlu0 %v1096, 96
        %v4072 = vpop.permute.xlu0 %4071
        %4073 = vrot.lane.b32.xlu0 %v1097, 96
        %v4074 = vpop.permute.xlu0 %4073
        %4075 = vrot.lane.b32.xlu0 %v1099, 96
        %v4076 = vpop.permute.xlu0 %4075
        %4077 = vrot.lane.b32.xlu0 %v1101, 96
        %v4078 = vpop.permute.xlu0 %4077
        %4079 = vrot.lane.b32.xlu0 %v1102, 96
        %v4080 = vpop.permute.xlu0 %4079
        %4081 = vrot.lane.b32.xlu0 %v1104, 96
        %v4082 = vpop.permute.xlu0 %4081
        %4083 = vrot.lane.b32.xlu0 %v1106, 96
        %v4084 = vpop.permute.xlu0 %4083
        %4085 = vrot.lane.b32.xlu0 %v1107, 96
        %v4086 = vpop.permute.xlu0 %4085
        %4087 = vrot.lane.b32.xlu0 %v1109, 96
        %v4088 = vpop.permute.xlu0 %4087
        %4089 = vrot.lane.b32.xlu0 %v1111, 96
        %v4090 = vpop.permute.xlu0 %4089
        %4091 = vrot.lane.b32.xlu0 %v1112, 96
        %v4092 = vpop.permute.xlu0 %4091
        %4093 = vrot.lane.b32.xlu0 %v1114, 96
        %v4094 = vpop.permute.xlu0 %4093
        %4095 = vrot.lane.b32.xlu0 %v1116, 96
        %v4096 = vpop.permute.xlu0 %4095
        %4097 = vrot.lane.b32.xlu0 %v1117, 96
        %v4098 = vpop.permute.xlu0 %4097
        %4099 = vrot.lane.b32.xlu0 %v1119, 96
        %v4100 = vpop.permute.xlu0 %4099
        %4101 = vrot.lane.b32.xlu0 %v1121, 96
        %v4102 = vpop.permute.xlu0 %4101
        %4103 = vrot.lane.b32.xlu0 %v2151, 96
        %v4104 = vpop.permute.xlu0 %4103
        %4105 = vrot.lane.b32.xlu0 %v2153, 96
        %v4106 = vpop.permute.xlu0 %4105
        %4107 = vrot.lane.b32.xlu0 %v2155, 96
        %v4108 = vpop.permute.xlu0 %4107
        %4109 = vrot.lane.b32.xlu0 %v3230, 96
        %v4110 = vpop.permute.xlu0 %4109
        %4111 = vrot.lane.b32.xlu0 %v3232, 96
        %v4112 = vpop.permute.xlu0 %4111
        %4113 = vrot.lane.b32.xlu0 %v3234, 96
        %v4114 = vpop.permute.xlu0 %4113
        %4115 = vrot.lane.b32.xlu0 %v4020, 96
        %v4116 = vpop.permute.xlu0 %4115
        %4117 = vrot.lane.b32.xlu0 %v4022, 96
        %v4118 = vpop.permute.xlu0 %4117
        %4119 = vrot.lane.b32.xlu0 %v4024, 96
        %v4120 = vpop.permute.xlu0 %4119
        %v4169 = vrot.slane %v444, 5
        %v4170 = vrot.slane %v445, 5
        %v4171 = vsel %vm1218, %v4169, %v4170
        %v4172 = vrot.slane %v446, 5
        %v4173 = vsel %vm1218, %v4170, %v4172
        %4174 = vrot.lane.b32.xlu0 %v1234, 112
        %v4175 = vpop.permute.xlu0 %4174
        %4176 = vrot.lane.b32.xlu0 %v1236, 112
        %v4177 = vpop.permute.xlu0 %4176
        %4178 = vrot.lane.b32.xlu0 %v1238, 112
        %v4179 = vpop.permute.xlu0 %4178
        %4180 = vrot.lane.b32.xlu0 %v1239, 112
        %v4181 = vpop.permute.xlu0 %4180
        %4182 = vrot.lane.b32.xlu0 %v1241, 112
        %v4183 = vpop.permute.xlu0 %4182
        %4184 = vrot.lane.b32.xlu0 %v1243, 112
        %v4185 = vpop.permute.xlu0 %4184
        %4186 = vrot.lane.b32.xlu0 %v1244, 112
        %v4187 = vpop.permute.xlu0 %4186
        %4188 = vrot.lane.b32.xlu0 %v1246, 112
        %v4189 = vpop.permute.xlu0 %4188
        %4190 = vrot.lane.b32.xlu0 %v1248, 112
        %v4191 = vpop.permute.xlu0 %4190
        %4192 = vrot.lane.b32.xlu0 %v1249, 112
        %v4193 = vpop.permute.xlu0 %4192
        %4194 = vrot.lane.b32.xlu0 %v1251, 112
        %v4195 = vpop.permute.xlu0 %4194
        %4196 = vrot.lane.b32.xlu0 %v1253, 112
        %v4197 = vpop.permute.xlu0 %4196
        %4198 = vrot.lane.b32.xlu0 %v1254, 112
        %v4199 = vpop.permute.xlu0 %4198
        %4200 = vrot.lane.b32.xlu0 %v1256, 112
        %v4201 = vpop.permute.xlu0 %4200
        %4202 = vrot.lane.b32.xlu0 %v1258, 112
        %v4203 = vpop.permute.xlu0 %4202
        %4204 = vrot.lane.b32.xlu0 %v1259, 112
        %v4205 = vpop.permute.xlu0 %4204
        %4206 = vrot.lane.b32.xlu0 %v1261, 112
        %v4207 = vpop.permute.xlu0 %4206
        %4208 = vrot.lane.b32.xlu0 %v1263, 112
        %v4209 = vpop.permute.xlu0 %4208
        %4210 = vrot.lane.b32.xlu0 %v1264, 112
        %v4211 = vpop.permute.xlu0 %4210
        %4212 = vrot.lane.b32.xlu0 %v1266, 112
        %v4213 = vpop.permute.xlu0 %4212
        %4214 = vrot.lane.b32.xlu0 %v1268, 112
        %v4215 = vpop.permute.xlu0 %4214
        %4216 = vrot.lane.b32.xlu0 %v1269, 112
        %v4217 = vpop.permute.xlu0 %4216
        %4218 = vrot.lane.b32.xlu0 %v1271, 112
        %v4219 = vpop.permute.xlu0 %4218
        %4220 = vrot.lane.b32.xlu0 %v1273, 112
        %v4221 = vpop.permute.xlu0 %4220
        %4222 = vrot.lane.b32.xlu0 %v1274, 112
        %v4223 = vpop.permute.xlu0 %4222
        %4224 = vrot.lane.b32.xlu0 %v1276, 112
        %v4225 = vpop.permute.xlu0 %4224
        %4226 = vrot.lane.b32.xlu0 %v1278, 112
        %v4227 = vpop.permute.xlu0 %4226
        %4228 = vrot.lane.b32.xlu0 %v1279, 112
        %v4229 = vpop.permute.xlu0 %4228
        %4230 = vrot.lane.b32.xlu0 %v1281, 112
        %v4231 = vpop.permute.xlu0 %4230
        %4232 = vrot.lane.b32.xlu0 %v1283, 112
        %v4233 = vpop.permute.xlu0 %4232
        %4234 = vrot.lane.b32.xlu0 %v1284, 112
        %v4235 = vpop.permute.xlu0 %4234
        %4236 = vrot.lane.b32.xlu0 %v1286, 112
        %v4237 = vpop.permute.xlu0 %4236
        %4238 = vrot.lane.b32.xlu0 %v1288, 112
        %v4239 = vpop.permute.xlu0 %4238
        %4240 = vrot.lane.b32.xlu0 %v1289, 112
        %v4241 = vpop.permute.xlu0 %4240
        %4242 = vrot.lane.b32.xlu0 %v1291, 112
        %v4243 = vpop.permute.xlu0 %4242
        %4244 = vrot.lane.b32.xlu0 %v1293, 112
        %v4245 = vpop.permute.xlu0 %4244
        %4246 = vrot.lane.b32.xlu0 %v1294, 112
        %v4247 = vpop.permute.xlu0 %4246
        %4248 = vrot.lane.b32.xlu0 %v1296, 112
        %v4249 = vpop.permute.xlu0 %4248
        %4250 = vrot.lane.b32.xlu0 %v1298, 112
        %v4251 = vpop.permute.xlu0 %4250
        %4252 = vrot.lane.b32.xlu0 %v2252, 112
        %v4253 = vpop.permute.xlu0 %4252
        %4254 = vrot.lane.b32.xlu0 %v2254, 112
        %v4255 = vpop.permute.xlu0 %4254
        %4256 = vrot.lane.b32.xlu0 %v2256, 112
        %v4257 = vpop.permute.xlu0 %4256
        %4258 = vrot.lane.b32.xlu0 %v3289, 112
        %v4259 = vpop.permute.xlu0 %4258
        %4260 = vrot.lane.b32.xlu0 %v3291, 112
        %v4261 = vpop.permute.xlu0 %4260
        %4262 = vrot.lane.b32.xlu0 %v3293, 112
        %v4263 = vpop.permute.xlu0 %4262
        %4264 = vrot.lane.b32.xlu0 %v4169, 112
        %v4265 = vpop.permute.xlu0 %4264
        %4266 = vrot.lane.b32.xlu0 %v4171, 112
        %v4267 = vpop.permute.xlu0 %4266
        %4268 = vrot.lane.b32.xlu0 %v4173, 112
        %v4269 = vpop.permute.xlu0 %4268
        %v4318 = vsel %vm252, %v393, %v2909
        %v4319 = vsel %vm252, %v395, %v2911
        %v4320 = vsel %vm252, %v396, %v2913
        %v4321 = vsel %vm252, %v398, %v2915
        %v4322 = vsel %vm252, %v399, %v2917
        %v4323 = vsel %vm252, %v401, %v2919
        %v4324 = vsel %vm252, %v402, %v2921
        %v4325 = vsel %vm252, %v404, %v2923
        %v4326 = vsel %vm252, %v405, %v2925
        %v4327 = vsel %vm252, %v407, %v2927
        %v4328 = vsel %vm252, %v408, %v2929
        %v4329 = vsel %vm252, %v410, %v2931
        %v4330 = vsel %vm252, %v411, %v2933
        %v4331 = vsel %vm252, %v413, %v2935
        %v4332 = vsel %vm252, %v414, %v2937
        %v4333 = vsel %vm252, %v416, %v2939
        %v4334 = vsel %vm252, %v417, %v2941
        %v4335 = vsel %vm252, %v419, %v2943
        %v4336 = vsel %vm252, %v420, %v2945
        %v4337 = vsel %vm252, %v422, %v2947
        %v4338 = vsel %vm252, %v423, %v2949
        %v4339 = vsel %vm252, %v425, %v2951
        %v4340 = vsel %vm252, %v426, %v2953
        %v4341 = vsel %vm252, %v428, %v2955
        %v4342 = vsel %vm252, %v429, %v2957
        %v4343 = vsel %vm252, %v431, %v2959
        %v4344 = vsel %vm252, %v432, %v2961
        %v4345 = vsel %vm252, %v434, %v2963
        %v4346 = vsel %vm252, %v435, %v2965
        %v4347 = vsel %vm252, %v437, %v2967
        %v4348 = vsel %vm252, %v438, %v2969
        %v4349 = vsel %vm252, %v439, %v2971
        %v4350 = vsel %vm252, %v440, %v2973
        %v4351 = vsel %vm2486, %v4318, %v3013
        %v4352 = vsel %vm2486, %v2457, %v1858
        %v4353 = vsel %vm2486, %v4319, %v3015
        %v4354 = vsel %vm2486, %v4320, %v3017
        %v4355 = vsel %vm2486, %v2459, %v1862
        %v4356 = vsel %vm2486, %v4321, %v3019
        %v4357 = vsel %vm2486, %v4322, %v3021
        %v4358 = vsel %vm2486, %v2461, %v1866
        %v4359 = vsel %vm2486, %v4323, %v3023
        %v4360 = vsel %vm2486, %v4324, %v3025
        %v4361 = vsel %vm2486, %v2463, %v1870
        %v4362 = vsel %vm2486, %v4325, %v3027
        %v4363 = vsel %vm2486, %v4326, %v3029
        %v4364 = vsel %vm2486, %v2465, %v1874
        %v4365 = vsel %vm2486, %v4327, %v3031
        %v4366 = vsel %vm2486, %v4328, %v3033
        %v4367 = vsel %vm2486, %v2467, %v1878
        %v4368 = vsel %vm2486, %v4329, %v3035
        %v4369 = vsel %vm2486, %v4330, %v3037
        %v4370 = vsel %vm2486, %v2469, %v1882
        %v4371 = vsel %vm2486, %v4331, %v3039
        %v4372 = vsel %vm2486, %v4332, %v3041
        %v4373 = vsel %vm2486, %v2471, %v1886
        %v4374 = vsel %vm2486, %v4333, %v3043
        %v4375 = vsel %vm2486, %v4334, %v3045
        %v4376 = vsel %vm2486, %v2473, %v1890
        %v4377 = vsel %vm2486, %v4335, %v3047
        %v4378 = vsel %vm2486, %v4336, %v3049
        %v4379 = vsel %vm2486, %v2475, %v1894
        %v4380 = vsel %vm2486, %v4337, %v3051
        %v4381 = vsel %vm2486, %v4338, %v3053
        %v4382 = vsel %vm2486, %v2477, %v1898
        %v4383 = vsel %vm2486, %v4339, %v3055
        %v4384 = vsel %vm2486, %v4340, %v3057
        %v4385 = vsel %vm2486, %v2479, %v1902
        %v4386 = vsel %vm2486, %v4341, %v3059
        %v4387 = vsel %vm2486, %v4342, %v3061
        %v4388 = vsel %vm2486, %v2481, %v1906
        %v4389 = vsel %vm2486, %v4343, %v3063
        %v4390 = vsel %vm2486, %v4344, %v3065
        %v4391 = vsel %vm2486, %v2483, %v1910
        %v4392 = vsel %vm2486, %v4345, %v3067
        %v4393 = vsel %vm2486, %v4346, %v3069
        %v4394 = vsel %vm2486, %v2485, %v1914
        %v4395 = vsel %vm2486, %v4347, %v3071
        %v4396 = vsel %vm2486, %v4348, %v3073
        %v4397 = vsel %vm2486, %v4349, %v3075
        %v4398 = vsel %vm2486, %v4350, %v3077
        %v4399 = vsel %vm2519, %v4351, %v3118
        %v4400 = vsel %vm2519, %v4352, %v1959
        %v4401 = vsel %vm2519, %v4353, %v1961
        %v4402 = vsel %vm2519, %v4354, %v3120
        %v4403 = vsel %vm2519, %v4355, %v1963
        %v4404 = vsel %vm2519, %v4356, %v1965
        %v4405 = vsel %vm2519, %v4357, %v3122
        %v4406 = vsel %vm2519, %v4358, %v1967
        %v4407 = vsel %vm2519, %v4359, %v1969
        %v4408 = vsel %vm2519, %v4360, %v3124
        %v4409 = vsel %vm2519, %v4361, %v1971
        %v4410 = vsel %vm2519, %v4362, %v1973
        %v4411 = vsel %vm2519, %v4363, %v3126
        %v4412 = vsel %vm2519, %v4364, %v1975
        %v4413 = vsel %vm2519, %v4365, %v1977
        %v4414 = vsel %vm2519, %v4366, %v3128
        %v4415 = vsel %vm2519, %v4367, %v1979
        %v4416 = vsel %vm2519, %v4368, %v1981
        %v4417 = vsel %vm2519, %v4369, %v3130
        %v4418 = vsel %vm2519, %v4370, %v1983
        %v4419 = vsel %vm2519, %v4371, %v1985
        %v4420 = vsel %vm2519, %v4372, %v3132
        %v4421 = vsel %vm2519, %v4373, %v1987
        %v4422 = vsel %vm2519, %v4374, %v1989
        %v4423 = vsel %vm2519, %v4375, %v3134
        %v4424 = vsel %vm2519, %v4376, %v1991
        %v4425 = vsel %vm2519, %v4377, %v1993
        %v4426 = vsel %vm2519, %v4378, %v3136
        %v4427 = vsel %vm2519, %v4379, %v1995
        %v4428 = vsel %vm2519, %v4380, %v1997
        %v4429 = vsel %vm2519, %v4381, %v3138
        %v4430 = vsel %vm2519, %v4382, %v1999
        %v4431 = vsel %vm2519, %v4383, %v2001
        %v4432 = vsel %vm2519, %v4384, %v3140
        %v4433 = vsel %vm2519, %v4385, %v2003
        %v4434 = vsel %vm2519, %v4386, %v2005
        %v4435 = vsel %vm2519, %v4387, %v3142
        %v4436 = vsel %vm2519, %v4388, %v2007
        %v4437 = vsel %vm2519, %v4389, %v2009
        %v4438 = vsel %vm2519, %v4390, %v3144
        %v4439 = vsel %vm2519, %v4391, %v2011
        %v4440 = vsel %vm2519, %v4392, %v2013
        %v4441 = vsel %vm2519, %v4393, %v3146
        %v4442 = vsel %vm2519, %v4394, %v2015
        %v4443 = vsel %vm2519, %v4395, %v2017
        %v4444 = vsel %vm2519, %v4396, %v3148
        %v4445 = vsel %vm2519, %v4397, %v3150
        %v4446 = vsel %vm2519, %v4398, %v3152
        %v4447 = vsel %vm2552, %v4399, %v3177
        %v4448 = vsel %vm2552, %v4400, %v2060
        %v4449 = vsel %vm2552, %v4401, %v2062
        %v4450 = vsel %vm2552, %v4402, %v3179
        %v4451 = vsel %vm2552, %v4403, %v2064
        %v4452 = vsel %vm2552, %v4404, %v2066
        %v4453 = vsel %vm2552, %v4405, %v3181
        %v4454 = vsel %vm2552, %v4406, %v2068
        %v4455 = vsel %vm2552, %v4407, %v2070
        %v4456 = vsel %vm2552, %v4408, %v3183
        %v4457 = vsel %vm2552, %v4409, %v2072
        %v4458 = vsel %vm2552, %v4410, %v2074
        %v4459 = vsel %vm2552, %v4411, %v3185
        %v4460 = vsel %vm2552, %v4412, %v2076
        %v4461 = vsel %vm2552, %v4413, %v2078
        %v4462 = vsel %vm2552, %v4414, %v3187
        %v4463 = vsel %vm2552, %v4415, %v2080
        %v4464 = vsel %vm2552, %v4416, %v2082
        %v4465 = vsel %vm2552, %v4417, %v3189
        %v4466 = vsel %vm2552, %v4418, %v2084
        %v4467 = vsel %vm2552, %v4419, %v2086
        %v4468 = vsel %vm2552, %v4420, %v3191
        %v4469 = vsel %vm2552, %v4421, %v2088
        %v4470 = vsel %vm2552, %v4422, %v2090
        %v4471 = vsel %vm2552, %v4423, %v3193
        %v4472 = vsel %vm2552, %v4424, %v2092
        %v4473 = vsel %vm2552, %v4425, %v2094
        %v4474 = vsel %vm2552, %v4426, %v3195
        %v4475 = vsel %vm2552, %v4427, %v2096
        %v4476 = vsel %vm2552, %v4428, %v2098
        %v4477 = vsel %vm2552, %v4429, %v3197
        %v4478 = vsel %vm2552, %v4430, %v2100
        %v4479 = vsel %vm2552, %v4431, %v2102
        %v4480 = vsel %vm2552, %v4432, %v3199
        %v4481 = vsel %vm2552, %v4433, %v2104
        %v4482 = vsel %vm2552, %v4434, %v2106
        %v4483 = vsel %vm2552, %v4435, %v3201
        %v4484 = vsel %vm2552, %v4436, %v2108
        %v4485 = vsel %vm2552, %v4437, %v2110
        %v4486 = vsel %vm2552, %v4438, %v3203
        %v4487 = vsel %vm2552, %v4439, %v2112
        %v4488 = vsel %vm2552, %v4440, %v2114
        %v4489 = vsel %vm2552, %v4441, %v3205
        %v4490 = vsel %vm2552, %v4442, %v2116
        %v4491 = vsel %vm2552, %v4443, %v2118
        %v4492 = vsel %vm2552, %v4444, %v3207
        %v4493 = vsel %vm2552, %v4445, %v3209
        %v4494 = vsel %vm2552, %v4446, %v3211
        %v4495 = vsel %vm2585, %v4447, %v3236
        %v4496 = vsel %vm2585, %v4448, %v2161
        %v4497 = vsel %vm2585, %v4449, %v2163
        %v4498 = vsel %vm2585, %v4450, %v3238
        %v4499 = vsel %vm2585, %v4451, %v2165
        %v4500 = vsel %vm2585, %v4452, %v2167
        %v4501 = vsel %vm2585, %v4453, %v3240
        %v4502 = vsel %vm2585, %v4454, %v2169
        %v4503 = vsel %vm2585, %v4455, %v2171
        %v4504 = vsel %vm2585, %v4456, %v3242
        %v4505 = vsel %vm2585, %v4457, %v2173
        %v4506 = vsel %vm2585, %v4458, %v2175
        %v4507 = vsel %vm2585, %v4459, %v3244
        %v4508 = vsel %vm2585, %v4460, %v2177
        %v4509 = vsel %vm2585, %v4461, %v2179
        %v4510 = vsel %vm2585, %v4462, %v3246
        %v4511 = vsel %vm2585, %v4463, %v2181
        %v4512 = vsel %vm2585, %v4464, %v2183
        %v4513 = vsel %vm2585, %v4465, %v3248
        %v4514 = vsel %vm2585, %v4466, %v2185
        %v4515 = vsel %vm2585, %v4467, %v2187
        %v4516 = vsel %vm2585, %v4468, %v3250
        %v4517 = vsel %vm2585, %v4469, %v2189
        %v4518 = vsel %vm2585, %v4470, %v2191
        %v4519 = vsel %vm2585, %v4471, %v3252
        %v4520 = vsel %vm2585, %v4472, %v2193
        %v4521 = vsel %vm2585, %v4473, %v2195
        %v4522 = vsel %vm2585, %v4474, %v3254
        %v4523 = vsel %vm2585, %v4475, %v2197
        %v4524 = vsel %vm2585, %v4476, %v2199
        %v4525 = vsel %vm2585, %v4477, %v3256
        %v4526 = vsel %vm2585, %v4478, %v2201
        %v4527 = vsel %vm2585, %v4479, %v2203
        %v4528 = vsel %vm2585, %v4480, %v3258
        %v4529 = vsel %vm2585, %v4481, %v2205
        %v4530 = vsel %vm2585, %v4482, %v2207
        %v4531 = vsel %vm2585, %v4483, %v3260
        %v4532 = vsel %vm2585, %v4484, %v2209
        %v4533 = vsel %vm2585, %v4485, %v2211
        %v4534 = vsel %vm2585, %v4486, %v3262
        %v4535 = vsel %vm2585, %v4487, %v2213
        %v4536 = vsel %vm2585, %v4488, %v2215
        %v4537 = vsel %vm2585, %v4489, %v3264
        %v4538 = vsel %vm2585, %v4490, %v2217
        %v4539 = vsel %vm2585, %v4491, %v2219
        %v4540 = vsel %vm2585, %v4492, %v3266
        %v4541 = vsel %vm2585, %v4493, %v3268
        %v4542 = vsel %vm2585, %v4494, %v3270
        %v4543 = vsel %vm2618, %v4495, %v3295
        %v4544 = vsel %vm2618, %v4496, %v2262
        %v4545 = vsel %vm2618, %v4497, %v2264
        %v4546 = vsel %vm2618, %v4498, %v3297
        %v4547 = vsel %vm2618, %v4499, %v2266
        %v4548 = vsel %vm2618, %v4500, %v2268
        %v4549 = vsel %vm2618, %v4501, %v3299
        %v4550 = vsel %vm2618, %v4502, %v2270
        %v4551 = vsel %vm2618, %v4503, %v2272
        %v4552 = vsel %vm2618, %v4504, %v3301
        %v4553 = vsel %vm2618, %v4505, %v2274
        %v4554 = vsel %vm2618, %v4506, %v2276
        %v4555 = vsel %vm2618, %v4507, %v3303
        %v4556 = vsel %vm2618, %v4508, %v2278
        %v4557 = vsel %vm2618, %v4509, %v2280
        %v4558 = vsel %vm2618, %v4510, %v3305
        %v4559 = vsel %vm2618, %v4511, %v2282
        %v4560 = vsel %vm2618, %v4512, %v2284
        %v4561 = vsel %vm2618, %v4513, %v3307
        %v4562 = vsel %vm2618, %v4514, %v2286
        %v4563 = vsel %vm2618, %v4515, %v2288
        %v4564 = vsel %vm2618, %v4516, %v3309
        %v4565 = vsel %vm2618, %v4517, %v2290
        %v4566 = vsel %vm2618, %v4518, %v2292
        %v4567 = vsel %vm2618, %v4519, %v3311
        %v4568 = vsel %vm2618, %v4520, %v2294
        %v4569 = vsel %vm2618, %v4521, %v2296
        %v4570 = vsel %vm2618, %v4522, %v3313
        %v4571 = vsel %vm2618, %v4523, %v2298
        %v4572 = vsel %vm2618, %v4524, %v2300
        %v4573 = vsel %vm2618, %v4525, %v3315
        %v4574 = vsel %vm2618, %v4526, %v2302
        %v4575 = vsel %vm2618, %v4527, %v2304
        %v4576 = vsel %vm2618, %v4528, %v3317
        %v4577 = vsel %vm2618, %v4529, %v2306
        %v4578 = vsel %vm2618, %v4530, %v2308
        %v4579 = vsel %vm2618, %v4531, %v3319
        %v4580 = vsel %vm2618, %v4532, %v2310
        %v4581 = vsel %vm2618, %v4533, %v2312
        %v4582 = vsel %vm2618, %v4534, %v3321
        %v4583 = vsel %vm2618, %v4535, %v2314
        %v4584 = vsel %vm2618, %v4536, %v2316
        %v4585 = vsel %vm2618, %v4537, %v3323
        %v4586 = vsel %vm2618, %v4538, %v2318
        %v4587 = vsel %vm2618, %v4539, %v2320
        %v4588 = vsel %vm2618, %v4540, %v3325
        %v4589 = vsel %vm2618, %v4541, %v3327
        %v4590 = vsel %vm2618, %v4542, %v3329
        %v4591 = vsel %vm2651, %v4543, %v3354
        %v4592 = vsel %vm2651, %v4544, %v2363
        %v4593 = vsel %vm2651, %v4545, %v2365
        %v4594 = vsel %vm2651, %v4546, %v3356
        %v4595 = vsel %vm2651, %v4547, %v2367
        %v4596 = vsel %vm2651, %v4548, %v2369
        %v4597 = vsel %vm2651, %v4549, %v3358
        %v4598 = vsel %vm2651, %v4550, %v2371
        %v4599 = vsel %vm2651, %v4551, %v2373
        %v4600 = vsel %vm2651, %v4552, %v3360
        %v4601 = vsel %vm2651, %v4553, %v2375
        %v4602 = vsel %vm2651, %v4554, %v2377
        %v4603 = vsel %vm2651, %v4555, %v3362
        %v4604 = vsel %vm2651, %v4556, %v2379
        %v4605 = vsel %vm2651, %v4557, %v2381
        %v4606 = vsel %vm2651, %v4558, %v3364
        %v4607 = vsel %vm2651, %v4559, %v2383
        %v4608 = vsel %vm2651, %v4560, %v2385
        %v4609 = vsel %vm2651, %v4561, %v3366
        %v4610 = vsel %vm2651, %v4562, %v2387
        %v4611 = vsel %vm2651, %v4563, %v2389
        %v4612 = vsel %vm2651, %v4564, %v3368
        %v4613 = vsel %vm2651, %v4565, %v2391
        %v4614 = vsel %vm2651, %v4566, %v2393
        %v4615 = vsel %vm2651, %v4567, %v3370
        %v4616 = vsel %vm2651, %v4568, %v2395
        %v4617 = vsel %vm2651, %v4569, %v2397
        %v4618 = vsel %vm2651, %v4570, %v3372
        %v4619 = vsel %vm2651, %v4571, %v2399
        %v4620 = vsel %vm2651, %v4572, %v2401
        %v4621 = vsel %vm2651, %v4573, %v3374
        %v4622 = vsel %vm2651, %v4574, %v2403
        %v4623 = vsel %vm2651, %v4575, %v2405
        %v4624 = vsel %vm2651, %v4576, %v3376
        %v4625 = vsel %vm2651, %v4577, %v2407
        %v4626 = vsel %vm2651, %v4578, %v2409
        %v4627 = vsel %vm2651, %v4579, %v3378
        %v4628 = vsel %vm2651, %v4580, %v2411
        %v4629 = vsel %vm2651, %v4581, %v2413
        %v4630 = vsel %vm2651, %v4582, %v3380
        %v4631 = vsel %vm2651, %v4583, %v2415
        %v4632 = vsel %vm2651, %v4584, %v2417
        %v4633 = vsel %vm2651, %v4585, %v3382
        %v4634 = vsel %vm2651, %v4586, %v2419
        %v4635 = vsel %vm2651, %v4587, %v2421
        %v4636 = vsel %vm2651, %v4588, %v3384
        %v4637 = vsel %vm2651, %v4589, %v3386
        %v4638 = vsel %vm2651, %v4590, %v3388
        %v4639 = vsel %vm252, %v1583, %v1756
        %v4640 = vsel %vm252, %v1585, %v1758
        %v4641 = vsel %vm252, %v1587, %v3466
        %v4642 = vsel %vm252, %v1588, %v1760
        %v4643 = vsel %vm252, %v1590, %v1762
        %v4644 = vsel %vm252, %v1592, %v3468
        %v4645 = vsel %vm252, %v1593, %v1764
        %v4646 = vsel %vm252, %v1595, %v1766
        %v4647 = vsel %vm252, %v1597, %v3470
        %v4648 = vsel %vm252, %v1598, %v1768
        %v4649 = vsel %vm252, %v1600, %v1770
        %v4650 = vsel %vm252, %v1602, %v3472
        %v4651 = vsel %vm252, %v1603, %v1772
        %v4652 = vsel %vm252, %v1605, %v1774
        %v4653 = vsel %vm252, %v1607, %v3474
        %v4654 = vsel %vm252, %v1608, %v1776
        %v4655 = vsel %vm252, %v1610, %v1778
        %v4656 = vsel %vm252, %v1612, %v3476
        %v4657 = vsel %vm252, %v1613, %v1780
        %v4658 = vsel %vm252, %v1615, %v1782
        %v4659 = vsel %vm252, %v1617, %v3478
        %v4660 = vsel %vm252, %v1618, %v1784
        %v4661 = vsel %vm252, %v1620, %v1786
        %v4662 = vsel %vm252, %v1622, %v3480
        %v4663 = vsel %vm252, %v1623, %v1788
        %v4664 = vsel %vm252, %v1625, %v1790
        %v4665 = vsel %vm252, %v1627, %v3482
        %v4666 = vsel %vm252, %v1628, %v1792
        %v4667 = vsel %vm252, %v1630, %v1794
        %v4668 = vsel %vm252, %v1632, %v3484
        %v4669 = vsel %vm252, %v1633, %v1796
        %v4670 = vsel %vm252, %v1635, %v1798
        %v4671 = vsel %vm252, %v1637, %v3486
        %v4672 = vsel %vm252, %v1638, %v1800
        %v4673 = vsel %vm252, %v1640, %v1802
        %v4674 = vsel %vm252, %v1642, %v3488
        %v4675 = vsel %vm252, %v1643, %v1804
        %v4676 = vsel %vm252, %v1645, %v1806
        %v4677 = vsel %vm252, %v1647, %v3490
        %v4678 = vsel %vm252, %v1648, %v1808
        %v4679 = vsel %vm252, %v1650, %v1810
        %v4680 = vsel %vm252, %v1652, %v3492
        %v4681 = vsel %vm252, %v3407, %v1812
        %v4682 = vsel %vm252, %v3409, %v1814
        %v4683 = vsel %vm252, %v3411, %v3494
        %v4684 = vsel %vm252, %v3412, %v3496
        %v4685 = vsel %vm252, %v3414, %v3498
        %v4686 = vsel %vm252, %v3416, %v3500
        %v4687 = vsel %vm2486, %v4639, %v3015
        %v4688 = vsel %vm2486, %v4640, %v1860
        %v4689 = vsel %vm2486, %v4641, %v3522
        %v4690 = vsel %vm2486, %v4642, %v3019
        %v4691 = vsel %vm2486, %v4643, %v1864
        %v4692 = vsel %vm2486, %v4644, %v3524
        %v4693 = vsel %vm2486, %v4645, %v3023
        %v4694 = vsel %vm2486, %v4646, %v1868
        %v4695 = vsel %vm2486, %v4647, %v3526
        %v4696 = vsel %vm2486, %v4648, %v3027
        %v4697 = vsel %vm2486, %v4649, %v1872
        %v4698 = vsel %vm2486, %v4650, %v3528
        %v4699 = vsel %vm2486, %v4651, %v3031
        %v4700 = vsel %vm2486, %v4652, %v1876
        %v4701 = vsel %vm2486, %v4653, %v3530
        %v4702 = vsel %vm2486, %v4654, %v3035
        %v4703 = vsel %vm2486, %v4655, %v1880
        %v4704 = vsel %vm2486, %v4656, %v3532
        %v4705 = vsel %vm2486, %v4657, %v3039
        %v4706 = vsel %vm2486, %v4658, %v1884
        %v4707 = vsel %vm2486, %v4659, %v3534
        %v4708 = vsel %vm2486, %v4660, %v3043
        %v4709 = vsel %vm2486, %v4661, %v1888
        %v4710 = vsel %vm2486, %v4662, %v3536
        %v4711 = vsel %vm2486, %v4663, %v3047
        %v4712 = vsel %vm2486, %v4664, %v1892
        %v4713 = vsel %vm2486, %v4665, %v3538
        %v4714 = vsel %vm2486, %v4666, %v3051
        %v4715 = vsel %vm2486, %v4667, %v1896
        %v4716 = vsel %vm2486, %v4668, %v3540
        %v4717 = vsel %vm2486, %v4669, %v3055
        %v4718 = vsel %vm2486, %v4670, %v1900
        %v4719 = vsel %vm2486, %v4671, %v3542
        %v4720 = vsel %vm2486, %v4672, %v3059
        %v4721 = vsel %vm2486, %v4673, %v1904
        %v4722 = vsel %vm2486, %v4674, %v3544
        %v4723 = vsel %vm2486, %v4675, %v3063
        %v4724 = vsel %vm2486, %v4676, %v1908
        %v4725 = vsel %vm2486, %v4677, %v3546
        %v4726 = vsel %vm2486, %v4678, %v3067
        %v4727 = vsel %vm2486, %v4679, %v1912
        %v4728 = vsel %vm2486, %v4680, %v3548
        %v4729 = vsel %vm2486, %v4681, %v3071
        %v4730 = vsel %vm2486, %v4682, %v1916
        %v4731 = vsel %vm2486, %v4683, %v3550
        %v4732 = vsel %vm2486, %v4684, %v3077
        %v4733 = vsel %vm2486, %v4685, %v3552
        %v4734 = vsel %vm2486, %v4686, %v3554
        %v4735 = vsel %vm2519, %v4687, %v3578
        %v4736 = vsel %vm2519, %v4688, %v3580
        %v4737 = vsel %vm2519, %v4689, %v3582
        %v4738 = vsel %vm2519, %v4690, %v3584
        %v4739 = vsel %vm2519, %v4691, %v3586
        %v4740 = vsel %vm2519, %v4692, %v3588
        %v4741 = vsel %vm2519, %v4693, %v3590
        %v4742 = vsel %vm2519, %v4694, %v3592
        %v4743 = vsel %vm2519, %v4695, %v3594
        %v4744 = vsel %vm2519, %v4696, %v3596
        %v4745 = vsel %vm2519, %v4697, %v3598
        %v4746 = vsel %vm2519, %v4698, %v3600
        %v4747 = vsel %vm2519, %v4699, %v3602
        %v4748 = vsel %vm2519, %v4700, %v3604
        %v4749 = vsel %vm2519, %v4701, %v3606
        %v4750 = vsel %vm2519, %v4702, %v3608
        %v4751 = vsel %vm2519, %v4703, %v3610
        %v4752 = vsel %vm2519, %v4704, %v3612
        %v4753 = vsel %vm2519, %v4705, %v3614
        %v4754 = vsel %vm2519, %v4706, %v3616
        %v4755 = vsel %vm2519, %v4707, %v3618
        %v4756 = vsel %vm2519, %v4708, %v3620
        %v4757 = vsel %vm2519, %v4709, %v3622
        %v4758 = vsel %vm2519, %v4710, %v3624
        %v4759 = vsel %vm2519, %v4711, %v3626
        %v4760 = vsel %vm2519, %v4712, %v3628
        %v4761 = vsel %vm2519, %v4713, %v3630
        %v4762 = vsel %vm2519, %v4714, %v3632
        %v4763 = vsel %vm2519, %v4715, %v3634
        %v4764 = vsel %vm2519, %v4716, %v3636
        %v4765 = vsel %vm2519, %v4717, %v3638
        %v4766 = vsel %vm2519, %v4718, %v3640
        %v4767 = vsel %vm2519, %v4719, %v3642
        %v4768 = vsel %vm2519, %v4720, %v3644
        %v4769 = vsel %vm2519, %v4721, %v3646
        %v4770 = vsel %vm2519, %v4722, %v3648
        %v4771 = vsel %vm2519, %v4723, %v3650
        %v4772 = vsel %vm2519, %v4724, %v3652
        %v4773 = vsel %vm2519, %v4725, %v3654
        %v4774 = vsel %vm2519, %v4726, %v3656
        %v4775 = vsel %vm2519, %v4727, %v3658
        %v4776 = vsel %vm2519, %v4728, %v3660
        %v4777 = vsel %vm2519, %v4729, %v3662
        %v4778 = vsel %vm2519, %v4730, %v3664
        %v4779 = vsel %vm2519, %v4731, %v3666
        %v4780 = vsel %vm2519, %v4732, %v3668
        %v4781 = vsel %vm2519, %v4733, %v3670
        %v4782 = vsel %vm2519, %v4734, %v3672
        %v4783 = vsel %vm2552, %v4735, %v3728
        %v4784 = vsel %vm2552, %v4736, %v3730
        %v4785 = vsel %vm2552, %v4737, %v3732
        %v4786 = vsel %vm2552, %v4738, %v3734
        %v4787 = vsel %vm2552, %v4739, %v3736
        %v4788 = vsel %vm2552, %v4740, %v3738
        %v4789 = vsel %vm2552, %v4741, %v3740
        %v4790 = vsel %vm2552, %v4742, %v3742
        %v4791 = vsel %vm2552, %v4743, %v3744
        %v4792 = vsel %vm2552, %v4744, %v3746
        %v4793 = vsel %vm2552, %v4745, %v3748
        %v4794 = vsel %vm2552, %v4746, %v3750
        %v4795 = vsel %vm2552, %v4747, %v3752
        %v4796 = vsel %vm2552, %v4748, %v3754
        %v4797 = vsel %vm2552, %v4749, %v3756
        %v4798 = vsel %vm2552, %v4750, %v3758
        %v4799 = vsel %vm2552, %v4751, %v3760
        %v4800 = vsel %vm2552, %v4752, %v3762
        %v4801 = vsel %vm2552, %v4753, %v3764
        %v4802 = vsel %vm2552, %v4754, %v3766
        %v4803 = vsel %vm2552, %v4755, %v3768
        %v4804 = vsel %vm2552, %v4756, %v3770
        %v4805 = vsel %vm2552, %v4757, %v3772
        %v4806 = vsel %vm2552, %v4758, %v3774
        %v4807 = vsel %vm2552, %v4759, %v3776
        %v4808 = vsel %vm2552, %v4760, %v3778
        %v4809 = vsel %vm2552, %v4761, %v3780
        %v4810 = vsel %vm2552, %v4762, %v3782
        %v4811 = vsel %vm2552, %v4763, %v3784
        %v4812 = vsel %vm2552, %v4764, %v3786
        %v4813 = vsel %vm2552, %v4765, %v3788
        %v4814 = vsel %vm2552, %v4766, %v3790
        %v4815 = vsel %vm2552, %v4767, %v3792
        %v4816 = vsel %vm2552, %v4768, %v3794
        %v4817 = vsel %vm2552, %v4769, %v3796
        %v4818 = vsel %vm2552, %v4770, %v3798
        %v4819 = vsel %vm2552, %v4771, %v3800
        %v4820 = vsel %vm2552, %v4772, %v3802
        %v4821 = vsel %vm2552, %v4773, %v3804
        %v4822 = vsel %vm2552, %v4774, %v3806
        %v4823 = vsel %vm2552, %v4775, %v3808
        %v4824 = vsel %vm2552, %v4776, %v3810
        %v4825 = vsel %vm2552, %v4777, %v3812
        %v4826 = vsel %vm2552, %v4778, %v3814
        %v4827 = vsel %vm2552, %v4779, %v3816
        %v4828 = vsel %vm2552, %v4780, %v3818
        %v4829 = vsel %vm2552, %v4781, %v3820
        %v4830 = vsel %vm2552, %v4782, %v3822
        %v4831 = vsel %vm2585, %v4783, %v3877
        %v4832 = vsel %vm2585, %v4784, %v3879
        %v4833 = vsel %vm2585, %v4785, %v3881
        %v4834 = vsel %vm2585, %v4786, %v3883
        %v4835 = vsel %vm2585, %v4787, %v3885
        %v4836 = vsel %vm2585, %v4788, %v3887
        %v4837 = vsel %vm2585, %v4789, %v3889
        %v4838 = vsel %vm2585, %v4790, %v3891
        %v4839 = vsel %vm2585, %v4791, %v3893
        %v4840 = vsel %vm2585, %v4792, %v3895
        %v4841 = vsel %vm2585, %v4793, %v3897
        %v4842 = vsel %vm2585, %v4794, %v3899
        %v4843 = vsel %vm2585, %v4795, %v3901
        %v4844 = vsel %vm2585, %v4796, %v3903
        %v4845 = vsel %vm2585, %v4797, %v3905
        %v4846 = vsel %vm2585, %v4798, %v3907
        %v4847 = vsel %vm2585, %v4799, %v3909
        %v4848 = vsel %vm2585, %v4800, %v3911
        %v4849 = vsel %vm2585, %v4801, %v3913
        %v4850 = vsel %vm2585, %v4802, %v3915
        %v4851 = vsel %vm2585, %v4803, %v3917
        %v4852 = vsel %vm2585, %v4804, %v3919
        %v4853 = vsel %vm2585, %v4805, %v3921
        %v4854 = vsel %vm2585, %v4806, %v3923
        %v4855 = vsel %vm2585, %v4807, %v3925
        %v4856 = vsel %vm2585, %v4808, %v3927
        %v4857 = vsel %vm2585, %v4809, %v3929
        %v4858 = vsel %vm2585, %v4810, %v3931
        %v4859 = vsel %vm2585, %v4811, %v3933
        %v4860 = vsel %vm2585, %v4812, %v3935
        %v4861 = vsel %vm2585, %v4813, %v3937
        %v4862 = vsel %vm2585, %v4814, %v3939
        %v4863 = vsel %vm2585, %v4815, %v3941
        %v4864 = vsel %vm2585, %v4816, %v3943
        %v4865 = vsel %vm2585, %v4817, %v3945
        %v4866 = vsel %vm2585, %v4818, %v3947
        %v4867 = vsel %vm2585, %v4819, %v3949
        %v4868 = vsel %vm2585, %v4820, %v3951
        %v4869 = vsel %vm2585, %v4821, %v3953
        %v4870 = vsel %vm2585, %v4822, %v3955
        %v4871 = vsel %vm2585, %v4823, %v3957
        %v4872 = vsel %vm2585, %v4824, %v3959
        %v4873 = vsel %vm2585, %v4825, %v3961
        %v4874 = vsel %vm2585, %v4826, %v3963
        %v4875 = vsel %vm2585, %v4827, %v3965
        %v4876 = vsel %vm2585, %v4828, %v3967
        %v4877 = vsel %vm2585, %v4829, %v3969
        %v4878 = vsel %vm2585, %v4830, %v3971
        %v4879 = vsel %vm2618, %v4831, %v4026
        %v4880 = vsel %vm2618, %v4832, %v4028
        %v4881 = vsel %vm2618, %v4833, %v4030
        %v4882 = vsel %vm2618, %v4834, %v4032
        %v4883 = vsel %vm2618, %v4835, %v4034
        %v4884 = vsel %vm2618, %v4836, %v4036
        %v4885 = vsel %vm2618, %v4837, %v4038
        %v4886 = vsel %vm2618, %v4838, %v4040
        %v4887 = vsel %vm2618, %v4839, %v4042
        %v4888 = vsel %vm2618, %v4840, %v4044
        %v4889 = vsel %vm2618, %v4841, %v4046
        %v4890 = vsel %vm2618, %v4842, %v4048
        %v4891 = vsel %vm2618, %v4843, %v4050
        %v4892 = vsel %vm2618, %v4844, %v4052
        %v4893 = vsel %vm2618, %v4845, %v4054
        %v4894 = vsel %vm2618, %v4846, %v4056
        %v4895 = vsel %vm2618, %v4847, %v4058
        %v4896 = vsel %vm2618, %v4848, %v4060
        %v4897 = vsel %vm2618, %v4849, %v4062
        %v4898 = vsel %vm2618, %v4850, %v4064
        %v4899 = vsel %vm2618, %v4851, %v4066
        %v4900 = vsel %vm2618, %v4852, %v4068
        %v4901 = vsel %vm2618, %v4853, %v4070
        %v4902 = vsel %vm2618, %v4854, %v4072
        %v4903 = vsel %vm2618, %v4855, %v4074
        %v4904 = vsel %vm2618, %v4856, %v4076
        %v4905 = vsel %vm2618, %v4857, %v4078
        %v4906 = vsel %vm2618, %v4858, %v4080
        %v4907 = vsel %vm2618, %v4859, %v4082
        %v4908 = vsel %vm2618, %v4860, %v4084
        %v4909 = vsel %vm2618, %v4861, %v4086
        %v4910 = vsel %vm2618, %v4862, %v4088
        %v4911 = vsel %vm2618, %v4863, %v4090
        %v4912 = vsel %vm2618, %v4864, %v4092
        %v4913 = vsel %vm2618, %v4865, %v4094
        %v4914 = vsel %vm2618, %v4866, %v4096
        %v4915 = vsel %vm2618, %v4867, %v4098
        %v4916 = vsel %vm2618, %v4868, %v4100
        %v4917 = vsel %vm2618, %v4869, %v4102
        %v4918 = vsel %vm2618, %v4870, %v4104
        %v4919 = vsel %vm2618, %v4871, %v4106
        %v4920 = vsel %vm2618, %v4872, %v4108
        %v4921 = vsel %vm2618, %v4873, %v4110
        %v4922 = vsel %vm2618, %v4874, %v4112
        %v4923 = vsel %vm2618, %v4875, %v4114
        %v4924 = vsel %vm2618, %v4876, %v4116
        %v4925 = vsel %vm2618, %v4877, %v4118
        %v4926 = vsel %vm2618, %v4878, %v4120
        %v4927 = vsel %vm2651, %v4879, %v4175
        %v4928 = vsel %vm2651, %v4880, %v4177
        %v4929 = vsel %vm2651, %v4881, %v4179
        %v4930 = vsel %vm2651, %v4882, %v4181
        %v4931 = vsel %vm2651, %v4883, %v4183
        %v4932 = vsel %vm2651, %v4884, %v4185
        %v4933 = vsel %vm2651, %v4885, %v4187
        %v4934 = vsel %vm2651, %v4886, %v4189
        %v4935 = vsel %vm2651, %v4887, %v4191
        %v4936 = vsel %vm2651, %v4888, %v4193
        %v4937 = vsel %vm2651, %v4889, %v4195
        %v4938 = vsel %vm2651, %v4890, %v4197
        %v4939 = vsel %vm2651, %v4891, %v4199
        %v4940 = vsel %vm2651, %v4892, %v4201
        %v4941 = vsel %vm2651, %v4893, %v4203
        %v4942 = vsel %vm2651, %v4894, %v4205
        %v4943 = vsel %vm2651, %v4895, %v4207
        %v4944 = vsel %vm2651, %v4896, %v4209
        %v4945 = vsel %vm2651, %v4897, %v4211
        %v4946 = vsel %vm2651, %v4898, %v4213
        %v4947 = vsel %vm2651, %v4899, %v4215
        %v4948 = vsel %vm2651, %v4900, %v4217
        %v4949 = vsel %vm2651, %v4901, %v4219
        %v4950 = vsel %vm2651, %v4902, %v4221
        %v4951 = vsel %vm2651, %v4903, %v4223
        %v4952 = vsel %vm2651, %v4904, %v4225
        %v4953 = vsel %vm2651, %v4905, %v4227
        %v4954 = vsel %vm2651, %v4906, %v4229
        %v4955 = vsel %vm2651, %v4907, %v4231
        %v4956 = vsel %vm2651, %v4908, %v4233
        %v4957 = vsel %vm2651, %v4909, %v4235
        %v4958 = vsel %vm2651, %v4910, %v4237
        %v4959 = vsel %vm2651, %v4911, %v4239
        %v4960 = vsel %vm2651, %v4912, %v4241
        %v4961 = vsel %vm2651, %v4913, %v4243
        %v4962 = vsel %vm2651, %v4914, %v4245
        %v4963 = vsel %vm2651, %v4915, %v4247
        %v4964 = vsel %vm2651, %v4916, %v4249
        %v4965 = vsel %vm2651, %v4917, %v4251
        %v4966 = vsel %vm2651, %v4918, %v4253
        %v4967 = vsel %vm2651, %v4919, %v4255
        %v4968 = vsel %vm2651, %v4920, %v4257
        %v4969 = vsel %vm2651, %v4921, %v4259
        %v4970 = vsel %vm2651, %v4922, %v4261
        %v4971 = vsel %vm2651, %v4923, %v4263
        %v4972 = vsel %vm2651, %v4924, %v4265
        %v4973 = vsel %vm2651, %v4925, %v4267
        %v4974 = vsel %vm2651, %v4926, %v4269
        %v4975 = vrot.slane %v446, 1
        %v4976 = vsel %vm510, %v3575, %v4975
        %4977 = vrot.lane.b32.xlu0 %v1850, 16
        %v4978 = vpop.permute.xlu0 %4977
        %4979 = vrot.lane.b32.xlu0 %v3011, 16
        %v4980 = vpop.permute.xlu0 %4979
        %4981 = vrot.lane.b32.xlu0 %v3520, 16
        %v4982 = vpop.permute.xlu0 %4981
        %4983 = vrot.lane.b32.xlu0 %v3519, 16
        %v4984 = vpop.permute.xlu0 %4983
        %4985 = vrot.lane.b32.xlu0 %v3576, 16
        %v4986 = vpop.permute.xlu0 %4985
        %4987 = vrot.lane.b32.xlu0 %v4976, 16
        %v4988 = vpop.permute.xlu0 %4987
        %4989 = vrot.lane.b32.xlu0 %v4975, 16
        %v4990 = vpop.permute.xlu0 %4989
        %4998 = vrot.lane.b32.xlu0 %v706, 32
        %v4999 = vpop.permute.xlu0 %4998
        %5000 = vrot.lane.b32.xlu0 %v711, 32
        %v5001 = vpop.permute.xlu0 %5000
        %5002 = vrot.lane.b32.xlu0 %v716, 32
        %v5003 = vpop.permute.xlu0 %5002
        %5004 = vrot.lane.b32.xlu0 %v721, 32
        %v5005 = vpop.permute.xlu0 %5004
        %5006 = vrot.lane.b32.xlu0 %v726, 32
        %v5007 = vpop.permute.xlu0 %5006
        %5008 = vrot.lane.b32.xlu0 %v731, 32
        %v5009 = vpop.permute.xlu0 %5008
        %5010 = vrot.lane.b32.xlu0 %v736, 32
        %v5011 = vpop.permute.xlu0 %5010
        %5012 = vrot.lane.b32.xlu0 %v741, 32
        %v5013 = vpop.permute.xlu0 %5012
        %5014 = vrot.lane.b32.xlu0 %v746, 32
        %v5015 = vpop.permute.xlu0 %5014
        %5016 = vrot.lane.b32.xlu0 %v751, 32
        %v5017 = vpop.permute.xlu0 %5016
        %5018 = vrot.lane.b32.xlu0 %v756, 32
        %v5019 = vpop.permute.xlu0 %5018
        %5020 = vrot.lane.b32.xlu0 %v761, 32
        %v5021 = vpop.permute.xlu0 %5020
        %5022 = vrot.lane.b32.xlu0 %v766, 32
        %v5023 = vpop.permute.xlu0 %5022
        %5024 = vrot.lane.b32.xlu0 %v1951, 32
        %v5025 = vpop.permute.xlu0 %5024
        %5026 = vrot.lane.b32.xlu0 %v1953, 32
        %v5027 = vpop.permute.xlu0 %5026
        %5028 = vrot.lane.b32.xlu0 %v1952, 32
        %v5029 = vpop.permute.xlu0 %5028
        %5030 = vrot.lane.b32.xlu0 %v3114, 32
        %v5031 = vpop.permute.xlu0 %5030
        %5032 = vrot.lane.b32.xlu0 %v3116, 32
        %v5033 = vpop.permute.xlu0 %5032
        %5034 = vrot.lane.b32.xlu0 %v3115, 32
        %v5035 = vpop.permute.xlu0 %5034
        %5036 = vrot.lane.b32.xlu0 %v3724, 32
        %v5037 = vpop.permute.xlu0 %5036
        %5038 = vrot.lane.b32.xlu0 %v3726, 32
        %v5039 = vpop.permute.xlu0 %5038
        %5040 = vrot.lane.b32.xlu0 %v3725, 32
        %v5041 = vpop.permute.xlu0 %5040
        %5064 = vrot.lane.b32.xlu0 %v881, 48
        %v5065 = vpop.permute.xlu0 %5064
        %5066 = vrot.lane.b32.xlu0 %v883, 48
        %v5067 = vpop.permute.xlu0 %5066
        %5068 = vrot.lane.b32.xlu0 %v886, 48
        %v5069 = vpop.permute.xlu0 %5068
        %5070 = vrot.lane.b32.xlu0 %v888, 48
        %v5071 = vpop.permute.xlu0 %5070
        %5072 = vrot.lane.b32.xlu0 %v891, 48
        %v5073 = vpop.permute.xlu0 %5072
        %5074 = vrot.lane.b32.xlu0 %v893, 48
        %v5075 = vpop.permute.xlu0 %5074
        %5076 = vrot.lane.b32.xlu0 %v896, 48
        %v5077 = vpop.permute.xlu0 %5076
        %5078 = vrot.lane.b32.xlu0 %v898, 48
        %v5079 = vpop.permute.xlu0 %5078
        %5080 = vrot.lane.b32.xlu0 %v901, 48
        %v5081 = vpop.permute.xlu0 %5080
        %5082 = vrot.lane.b32.xlu0 %v903, 48
        %v5083 = vpop.permute.xlu0 %5082
        %5084 = vrot.lane.b32.xlu0 %v906, 48
        %v5085 = vpop.permute.xlu0 %5084
        %5086 = vrot.lane.b32.xlu0 %v908, 48
        %v5087 = vpop.permute.xlu0 %5086
        %5088 = vrot.lane.b32.xlu0 %v911, 48
        %v5089 = vpop.permute.xlu0 %5088
        %5090 = vrot.lane.b32.xlu0 %v913, 48
        %v5091 = vpop.permute.xlu0 %5090
        %5092 = vrot.lane.b32.xlu0 %v916, 48
        %v5093 = vpop.permute.xlu0 %5092
        %5094 = vrot.lane.b32.xlu0 %v918, 48
        %v5095 = vpop.permute.xlu0 %5094
        %5096 = vrot.lane.b32.xlu0 %v921, 48
        %v5097 = vpop.permute.xlu0 %5096
        %5098 = vrot.lane.b32.xlu0 %v923, 48
        %v5099 = vpop.permute.xlu0 %5098
        %5100 = vrot.lane.b32.xlu0 %v926, 48
        %v5101 = vpop.permute.xlu0 %5100
        %5102 = vrot.lane.b32.xlu0 %v928, 48
        %v5103 = vpop.permute.xlu0 %5102
        %5104 = vrot.lane.b32.xlu0 %v931, 48
        %v5105 = vpop.permute.xlu0 %5104
        %5106 = vrot.lane.b32.xlu0 %v933, 48
        %v5107 = vpop.permute.xlu0 %5106
        %5108 = vrot.lane.b32.xlu0 %v936, 48
        %v5109 = vpop.permute.xlu0 %5108
        %5110 = vrot.lane.b32.xlu0 %v938, 48
        %v5111 = vpop.permute.xlu0 %5110
        %5112 = vrot.lane.b32.xlu0 %v941, 48
        %v5113 = vpop.permute.xlu0 %5112
        %5114 = vrot.lane.b32.xlu0 %v943, 48
        %v5115 = vpop.permute.xlu0 %5114
        %5116 = vrot.lane.b32.xlu0 %v2051, 48
        %v5117 = vpop.permute.xlu0 %5116
        %5118 = vrot.lane.b32.xlu0 %v2054, 48
        %v5119 = vpop.permute.xlu0 %5118
        %5120 = vrot.lane.b32.xlu0 %v2053, 48
        %v5121 = vpop.permute.xlu0 %5120
        %5122 = vrot.lane.b32.xlu0 %v3172, 48
        %v5123 = vpop.permute.xlu0 %5122
        %5124 = vrot.lane.b32.xlu0 %v3175, 48
        %v5125 = vpop.permute.xlu0 %5124
        %5126 = vrot.lane.b32.xlu0 %v3174, 48
        %v5127 = vpop.permute.xlu0 %5126
        %5128 = vrot.lane.b32.xlu0 %v3872, 48
        %v5129 = vpop.permute.xlu0 %5128
        %5130 = vrot.lane.b32.xlu0 %v3875, 48
        %v5131 = vpop.permute.xlu0 %5130
        %5132 = vrot.lane.b32.xlu0 %v3874, 48
        %v5133 = vpop.permute.xlu0 %5132
        %v5171 = vrot.slane %v447, 3
        %v5172 = vrot.slane %v448, 3
        %v5173 = vsel %vm864, %v5171, %v5172
        %5174 = vrot.lane.b32.xlu0 %v886, 64
        %v5175 = vpop.permute.xlu0 %5174
        %5176 = vrot.lane.b32.xlu0 %v891, 64
        %v5177 = vpop.permute.xlu0 %5176
        %5178 = vrot.lane.b32.xlu0 %v896, 64
        %v5179 = vpop.permute.xlu0 %5178
        %5180 = vrot.lane.b32.xlu0 %v901, 64
        %v5181 = vpop.permute.xlu0 %5180
        %5182 = vrot.lane.b32.xlu0 %v906, 64
        %v5183 = vpop.permute.xlu0 %5182
        %5184 = vrot.lane.b32.xlu0 %v911, 64
        %v5185 = vpop.permute.xlu0 %5184
        %5186 = vrot.lane.b32.xlu0 %v916, 64
        %v5187 = vpop.permute.xlu0 %5186
        %5188 = vrot.lane.b32.xlu0 %v921, 64
        %v5189 = vpop.permute.xlu0 %5188
        %5190 = vrot.lane.b32.xlu0 %v926, 64
        %v5191 = vpop.permute.xlu0 %5190
        %5192 = vrot.lane.b32.xlu0 %v931, 64
        %v5193 = vpop.permute.xlu0 %5192
        %5194 = vrot.lane.b32.xlu0 %v936, 64
        %v5195 = vpop.permute.xlu0 %5194
        %5196 = vrot.lane.b32.xlu0 %v941, 64
        %v5197 = vpop.permute.xlu0 %5196
        %5198 = vrot.lane.b32.xlu0 %v2051, 64
        %v5199 = vpop.permute.xlu0 %5198
        %5200 = vrot.lane.b32.xlu0 %v3172, 64
        %v5201 = vpop.permute.xlu0 %5200
        %5202 = vrot.lane.b32.xlu0 %v3871, 64
        %v5203 = vpop.permute.xlu0 %5202
        %5204 = vrot.lane.b32.xlu0 %v3873, 64
        %v5205 = vpop.permute.xlu0 %5204
        %5206 = vrot.lane.b32.xlu0 %v3872, 64
        %v5207 = vpop.permute.xlu0 %5206
        %5208 = vrot.lane.b32.xlu0 %v5171, 64
        %v5209 = vpop.permute.xlu0 %5208
        %5210 = vrot.lane.b32.xlu0 %v5173, 64
        %v5211 = vpop.permute.xlu0 %5210
        %5212 = vrot.lane.b32.xlu0 %v5172, 64
        %v5213 = vpop.permute.xlu0 %5212
        %v5235 = vrot.slane %v447, 4
        %v5236 = vrot.slane %v448, 4
        %v5237 = vsel %vm1041, %v5235, %v5236
        %v5238 = vrot.slane %v449, 4
        %v5239 = vsel %vm1041, %v5236, %v5238
        %5240 = vrot.lane.b32.xlu0 %v4020, 80
        %v5241 = vpop.permute.xlu0 %5240
        %5242 = vrot.lane.b32.xlu0 %v4022, 80
        %v5243 = vpop.permute.xlu0 %5242
        %5244 = vrot.lane.b32.xlu0 %v4024, 80
        %v5245 = vpop.permute.xlu0 %5244
        %5246 = vrot.lane.b32.xlu0 %v5235, 80
        %v5247 = vpop.permute.xlu0 %5246
        %5248 = vrot.lane.b32.xlu0 %v5237, 80
        %v5249 = vpop.permute.xlu0 %5248
        %5250 = vrot.lane.b32.xlu0 %v5239, 80
        %v5251 = vpop.permute.xlu0 %5250
        %v5258 = vrot.slane %v447, 5
        %v5259 = vrot.slane %v448, 5
        %v5260 = vsel %vm1218, %v5258, %v5259
        %v5261 = vrot.slane %v449, 5
        %v5262 = vsel %vm1218, %v5259, %v5261
        %5263 = vrot.lane.b32.xlu0 %v4169, 96
        %v5264 = vpop.permute.xlu0 %5263
        %5265 = vrot.lane.b32.xlu0 %v4171, 96
        %v5266 = vpop.permute.xlu0 %5265
        %5267 = vrot.lane.b32.xlu0 %v4173, 96
        %v5268 = vpop.permute.xlu0 %5267
        %5269 = vrot.lane.b32.xlu0 %v5258, 96
        %v5270 = vpop.permute.xlu0 %5269
        %5271 = vrot.lane.b32.xlu0 %v5260, 96
        %v5272 = vpop.permute.xlu0 %5271
        %5273 = vrot.lane.b32.xlu0 %v5262, 96
        %v5274 = vpop.permute.xlu0 %5273
        %v5281 = vrot.slane %v444, 6
        %v5282 = vrot.slane %v445, 6
        %v5283 = vsel %vm1395, %v5281, %v5282
        %v5284 = vrot.slane %v446, 6
        %v5285 = vsel %vm1395, %v5282, %v5284
        %v5286 = vrot.slane %v447, 6
        %v5287 = vrot.slane %v448, 6
        %v5288 = vsel %vm1395, %v5286, %v5287
        %v5289 = vrot.slane %v449, 6
        %v5290 = vsel %vm1395, %v5287, %v5289
        %5291 = vrot.lane.b32.xlu0 %v5281, 112
        %v5292 = vpop.permute.xlu0 %5291
        %5293 = vrot.lane.b32.xlu0 %v5283, 112
        %v5294 = vpop.permute.xlu0 %5293
        %5295 = vrot.lane.b32.xlu0 %v5285, 112
        %v5296 = vpop.permute.xlu0 %5295
        %5297 = vrot.lane.b32.xlu0 %v5286, 112
        %v5298 = vpop.permute.xlu0 %5297
        %5299 = vrot.lane.b32.xlu0 %v5288, 112
        %v5300 = vpop.permute.xlu0 %5299
        %5301 = vrot.lane.b32.xlu0 %v5290, 112
        %v5302 = vpop.permute.xlu0 %5301
        %v5309 = vrot.slane %v444, 7
        %v5310 = vrot.slane %v445, 7
        %v5311 = vsel %vm1572, %v5309, %v5310
        %v5312 = vrot.slane %v446, 7
        %v5313 = vsel %vm1572, %v5310, %v5312
        %v5314 = vrot.slane %v447, 7
        %v5315 = vrot.slane %v448, 7
        %v5316 = vsel %vm1572, %v5314, %v5315
        %v5317 = vrot.slane %v449, 7
        %v5318 = vsel %vm1572, %v5315, %v5317
        %5325 = vrot.lane.b32.xlu0 %v444, 16
        %v5326 = vpop.permute.xlu0 %5325
        %5327 = vrot.lane.b32.xlu0 %v445, 16
        %v5328 = vpop.permute.xlu0 %5327
        %5329 = vrot.lane.b32.xlu0 %v446, 16
        %v5330 = vpop.permute.xlu0 %5329
        %5331 = vrot.lane.b32.xlu0 %v447, 16
        %v5332 = vpop.permute.xlu0 %5331
        %5333 = vrot.lane.b32.xlu0 %v448, 16
        %v5334 = vpop.permute.xlu0 %5333
        %5335 = vrot.lane.b32.xlu0 %v449, 16
        %v5336 = vpop.permute.xlu0 %5335
        %v5343 = vrot.slane %v447, 1
        %v5344 = vrot.slane %v448, 1
        %v5345 = vsel %vm510, %v5343, %v5344
        %v5346 = vrot.slane %v449, 1
        %v5347 = vsel %vm510, %v5344, %v5346
        %5348 = vrot.lane.b32.xlu0 %v3576, 32
        %v5349 = vpop.permute.xlu0 %5348
        %5350 = vrot.lane.b32.xlu0 %v4976, 32
        %v5351 = vpop.permute.xlu0 %5350
        %5352 = vrot.lane.b32.xlu0 %v4975, 32
        %v5353 = vpop.permute.xlu0 %5352
        %5354 = vrot.lane.b32.xlu0 %v5345, 32
        %v5355 = vpop.permute.xlu0 %5354
        %5356 = vrot.lane.b32.xlu0 %v5347, 32
        %v5357 = vpop.permute.xlu0 %5356
        %5358 = vrot.lane.b32.xlu0 %v5346, 32
        %v5359 = vpop.permute.xlu0 %5358
        %v5366 = vrot.slane %v447, 2
        %v5367 = vrot.slane %v448, 2
        %v5368 = vsel %vm687, %v5366, %v5367
        %v5369 = vrot.slane %v449, 2
        %v5370 = vsel %vm687, %v5367, %v5369
        %5371 = vrot.lane.b32.xlu0 %v711, 48
        %v5372 = vpop.permute.xlu0 %5371
        %5373 = vrot.lane.b32.xlu0 %v716, 48
        %v5374 = vpop.permute.xlu0 %5373
        %5375 = vrot.lane.b32.xlu0 %v721, 48
        %v5376 = vpop.permute.xlu0 %5375
        %5377 = vrot.lane.b32.xlu0 %v726, 48
        %v5378 = vpop.permute.xlu0 %5377
        %5379 = vrot.lane.b32.xlu0 %v731, 48
        %v5380 = vpop.permute.xlu0 %5379
        %5381 = vrot.lane.b32.xlu0 %v736, 48
        %v5382 = vpop.permute.xlu0 %5381
        %5383 = vrot.lane.b32.xlu0 %v741, 48
        %v5384 = vpop.permute.xlu0 %5383
        %5385 = vrot.lane.b32.xlu0 %v746, 48
        %v5386 = vpop.permute.xlu0 %5385
        %5387 = vrot.lane.b32.xlu0 %v751, 48
        %v5388 = vpop.permute.xlu0 %5387
        %5389 = vrot.lane.b32.xlu0 %v756, 48
        %v5390 = vpop.permute.xlu0 %5389
        %5391 = vrot.lane.b32.xlu0 %v761, 48
        %v5392 = vpop.permute.xlu0 %5391
        %5393 = vrot.lane.b32.xlu0 %v766, 48
        %v5394 = vpop.permute.xlu0 %5393
        %5395 = vrot.lane.b32.xlu0 %v1952, 48
        %v5396 = vpop.permute.xlu0 %5395
        %5397 = vrot.lane.b32.xlu0 %v3115, 48
        %v5398 = vpop.permute.xlu0 %5397
        %5399 = vrot.lane.b32.xlu0 %v3724, 48
        %v5400 = vpop.permute.xlu0 %5399
        %5401 = vrot.lane.b32.xlu0 %v3726, 48
        %v5402 = vpop.permute.xlu0 %5401
        %5403 = vrot.lane.b32.xlu0 %v3725, 48
        %v5404 = vpop.permute.xlu0 %5403
        %5405 = vrot.lane.b32.xlu0 %v5368, 48
        %v5406 = vpop.permute.xlu0 %5405
        %5407 = vrot.lane.b32.xlu0 %v5370, 48
        %v5408 = vpop.permute.xlu0 %5407
        %5409 = vrot.lane.b32.xlu0 %v5369, 48
        %v5410 = vpop.permute.xlu0 %5409
        %v5431 = vrot.slane %v449, 3
        %v5432 = vsel %vm864, %v5172, %v5431
        %5433 = vrot.lane.b32.xlu0 %v888, 64
        %v5434 = vpop.permute.xlu0 %5433
        %5435 = vrot.lane.b32.xlu0 %v893, 64
        %v5436 = vpop.permute.xlu0 %5435
        %5437 = vrot.lane.b32.xlu0 %v898, 64
        %v5438 = vpop.permute.xlu0 %5437
        %5439 = vrot.lane.b32.xlu0 %v903, 64
        %v5440 = vpop.permute.xlu0 %5439
        %5441 = vrot.lane.b32.xlu0 %v908, 64
        %v5442 = vpop.permute.xlu0 %5441
        %5443 = vrot.lane.b32.xlu0 %v913, 64
        %v5444 = vpop.permute.xlu0 %5443
        %5445 = vrot.lane.b32.xlu0 %v918, 64
        %v5446 = vpop.permute.xlu0 %5445
        %5447 = vrot.lane.b32.xlu0 %v923, 64
        %v5448 = vpop.permute.xlu0 %5447
        %5449 = vrot.lane.b32.xlu0 %v928, 64
        %v5450 = vpop.permute.xlu0 %5449
        %5451 = vrot.lane.b32.xlu0 %v933, 64
        %v5452 = vpop.permute.xlu0 %5451
        %5453 = vrot.lane.b32.xlu0 %v938, 64
        %v5454 = vpop.permute.xlu0 %5453
        %5455 = vrot.lane.b32.xlu0 %v943, 64
        %v5456 = vpop.permute.xlu0 %5455
        %5457 = vrot.lane.b32.xlu0 %v2053, 64
        %v5458 = vpop.permute.xlu0 %5457
        %5459 = vrot.lane.b32.xlu0 %v3174, 64
        %v5460 = vpop.permute.xlu0 %5459
        %5461 = vrot.lane.b32.xlu0 %v3875, 64
        %v5462 = vpop.permute.xlu0 %5461
        %5463 = vrot.lane.b32.xlu0 %v3874, 64
        %v5464 = vpop.permute.xlu0 %5463
        %5465 = vrot.lane.b32.xlu0 %v5432, 64
        %v5466 = vpop.permute.xlu0 %5465
        %5467 = vrot.lane.b32.xlu0 %v5431, 64
        %v5468 = vpop.permute.xlu0 %5467
        %v5489 = vrot.slane %v450, 3
        %v5490 = vrot.slane %v451, 3
        %v5491 = vsel %vm864, %v5489, %v5490
        %5492 = vrot.lane.b32.xlu0 %v891, 80
        %v5493 = vpop.permute.xlu0 %5492
        %5494 = vrot.lane.b32.xlu0 %v896, 80
        %v5495 = vpop.permute.xlu0 %5494
        %5496 = vrot.lane.b32.xlu0 %v901, 80
        %v5497 = vpop.permute.xlu0 %5496
        %5498 = vrot.lane.b32.xlu0 %v906, 80
        %v5499 = vpop.permute.xlu0 %5498
        %5500 = vrot.lane.b32.xlu0 %v911, 80
        %v5501 = vpop.permute.xlu0 %5500
        %5502 = vrot.lane.b32.xlu0 %v916, 80
        %v5503 = vpop.permute.xlu0 %5502
        %5504 = vrot.lane.b32.xlu0 %v921, 80
        %v5505 = vpop.permute.xlu0 %5504
        %5506 = vrot.lane.b32.xlu0 %v926, 80
        %v5507 = vpop.permute.xlu0 %5506
        %5508 = vrot.lane.b32.xlu0 %v931, 80
        %v5509 = vpop.permute.xlu0 %5508
        %5510 = vrot.lane.b32.xlu0 %v936, 80
        %v5511 = vpop.permute.xlu0 %5510
        %5512 = vrot.lane.b32.xlu0 %v941, 80
        %v5513 = vpop.permute.xlu0 %5512
        %5514 = vrot.lane.b32.xlu0 %v2051, 80
        %v5515 = vpop.permute.xlu0 %5514
        %5516 = vrot.lane.b32.xlu0 %v3172, 80
        %v5517 = vpop.permute.xlu0 %5516
        %5518 = vrot.lane.b32.xlu0 %v3872, 80
        %v5519 = vpop.permute.xlu0 %5518
        %5520 = vrot.lane.b32.xlu0 %v5171, 80
        %v5521 = vpop.permute.xlu0 %5520
        %5522 = vrot.lane.b32.xlu0 %v5173, 80
        %v5523 = vpop.permute.xlu0 %5522
        %5524 = vrot.lane.b32.xlu0 %v5172, 80
        %v5525 = vpop.permute.xlu0 %5524
        %5526 = vrot.lane.b32.xlu0 %v5489, 80
        %v5527 = vpop.permute.xlu0 %5526
        %5528 = vrot.lane.b32.xlu0 %v5491, 80
        %v5529 = vpop.permute.xlu0 %5528
        %5530 = vrot.lane.b32.xlu0 %v5490, 80
        %v5531 = vpop.permute.xlu0 %5530
        %v5553 = vrot.slane %v450, 4
        %v5554 = vrot.slane %v451, 4
        %v5555 = vsel %vm1041, %v5553, %v5554
        %v5556 = vrot.slane %v452, 4
        %v5557 = vsel %vm1041, %v5554, %v5556
        %5558 = vrot.lane.b32.xlu0 %v5235, 96
        %v5559 = vpop.permute.xlu0 %5558
        %5560 = vrot.lane.b32.xlu0 %v5237, 96
        %v5561 = vpop.permute.xlu0 %5560
        %5562 = vrot.lane.b32.xlu0 %v5239, 96
        %v5563 = vpop.permute.xlu0 %5562
        %5564 = vrot.lane.b32.xlu0 %v5553, 96
        %v5565 = vpop.permute.xlu0 %5564
        %5566 = vrot.lane.b32.xlu0 %v5555, 96
        %v5567 = vpop.permute.xlu0 %5566
        %5568 = vrot.lane.b32.xlu0 %v5557, 96
        %v5569 = vpop.permute.xlu0 %5568
        %v5576 = vrot.slane %v450, 5
        %v5577 = vrot.slane %v451, 5
        %v5578 = vsel %vm1218, %v5576, %v5577
        %v5579 = vrot.slane %v452, 5
        %v5580 = vsel %vm1218, %v5577, %v5579
        %5581 = vrot.lane.b32.xlu0 %v5258, 112
        %v5582 = vpop.permute.xlu0 %5581
        %5583 = vrot.lane.b32.xlu0 %v5260, 112
        %v5584 = vpop.permute.xlu0 %5583
        %5585 = vrot.lane.b32.xlu0 %v5262, 112
        %v5586 = vpop.permute.xlu0 %5585
        %5587 = vrot.lane.b32.xlu0 %v5576, 112
        %v5588 = vpop.permute.xlu0 %5587
        %5589 = vrot.lane.b32.xlu0 %v5578, 112
        %v5590 = vpop.permute.xlu0 %5589
        %5591 = vrot.lane.b32.xlu0 %v5580, 112
        %v5592 = vpop.permute.xlu0 %5591
        %v5599 = vsel %vm252, %v438, %v4978
        %v5600 = vsel %vm252, %v441, %v4980
        %v5601 = vsel %vm252, %v442, %v4982
        %v5602 = vsel %vm252, %v443, %v4984
        %v5603 = vsel %vm252, %v444, %v4986
        %v5604 = vsel %vm252, %v445, %v4988
        %v5605 = vsel %vm252, %v446, %v4990
        %v5606 = vsel %vm2486, %v4323, %v4999
        %v5607 = vsel %vm2486, %v4325, %v5001
        %v5608 = vsel %vm2486, %v4327, %v5003
        %v5609 = vsel %vm2486, %v4329, %v5005
        %v5610 = vsel %vm2486, %v4331, %v5007
        %v5611 = vsel %vm2486, %v4333, %v5009
        %v5612 = vsel %vm2486, %v4335, %v5011
        %v5613 = vsel %vm2486, %v4337, %v5013
        %v5614 = vsel %vm2486, %v4339, %v5015
        %v5615 = vsel %vm2486, %v4341, %v5017
        %v5616 = vsel %vm2486, %v4343, %v5019
        %v5617 = vsel %vm2486, %v4345, %v5021
        %v5618 = vsel %vm2486, %v4347, %v5023
        %v5619 = vsel %vm2486, %v5599, %v5025
        %v5620 = vsel %vm2486, %v4349, %v5027
        %v5621 = vsel %vm2486, %v4350, %v5029
        %v5622 = vsel %vm2486, %v5600, %v5031
        %v5623 = vsel %vm2486, %v5601, %v5033
        %v5624 = vsel %vm2486, %v5602, %v5035
        %v5625 = vsel %vm2486, %v5603, %v5037
        %v5626 = vsel %vm2486, %v5604, %v5039
        %v5627 = vsel %vm2486, %v5605, %v5041
        %v5628 = vsel %vm2519, %v2493, %v5065
        %v5629 = vsel %vm2519, %v5606, %v5067
        %v5630 = vsel %vm2519, %v2495, %v5069
        %v5631 = vsel %vm2519, %v5607, %v5071
        %v5632 = vsel %vm2519, %v2497, %v5073
        %v5633 = vsel %vm2519, %v5608, %v5075
        %v5634 = vsel %vm2519, %v2499, %v5077
        %v5635 = vsel %vm2519, %v5609, %v5079
        %v5636 = vsel %vm2519, %v2501, %v5081
        %v5637 = vsel %vm2519, %v5610, %v5083
        %v5638 = vsel %vm2519, %v2503, %v5085
        %v5639 = vsel %vm2519, %v5611, %v5087
        %v5640 = vsel %vm2519, %v2505, %v5089
        %v5641 = vsel %vm2519, %v5612, %v5091
        %v5642 = vsel %vm2519, %v2507, %v5093
        %v5643 = vsel %vm2519, %v5613, %v5095
        %v5644 = vsel %vm2519, %v2509, %v5097
        %v5645 = vsel %vm2519, %v5614, %v5099
        %v5646 = vsel %vm2519, %v2511, %v5101
        %v5647 = vsel %vm2519, %v5615, %v5103
        %v5648 = vsel %vm2519, %v2513, %v5105
        %v5649 = vsel %vm2519, %v5616, %v5107
        %v5650 = vsel %vm2519, %v2515, %v5109
        %v5651 = vsel %vm2519, %v5617, %v5111
        %v5652 = vsel %vm2519, %v2517, %v5113
        %v5653 = vsel %vm2519, %v5618, %v5115
        %v5654 = vsel %vm2519, %v5619, %v5117
        %v5655 = vsel %vm2519, %v5620, %v5119
        %v5656 = vsel %vm2519, %v5621, %v5121
        %v5657 = vsel %vm2519, %v5622, %v5123
        %v5658 = vsel %vm2519, %v5623, %v5125
        %v5659 = vsel %vm2519, %v5624, %v5127
        %v5660 = vsel %vm2519, %v5625, %v5129
        %v5661 = vsel %vm2519, %v5626, %v5131
        %v5662 = vsel %vm2519, %v5627, %v5133
        %v5663 = vsel %vm2552, %v5628, %v3181
        %v5664 = vsel %vm2552, %v2527, %v2068
        %v5665 = vsel %vm2552, %v5629, %v5175
        %v5666 = vsel %vm2552, %v5630, %v3183
        %v5667 = vsel %vm2552, %v2529, %v2072
        %v5668 = vsel %vm2552, %v5631, %v5177
        %v5669 = vsel %vm2552, %v5632, %v3185
        %v5670 = vsel %vm2552, %v2531, %v2076
        %v5671 = vsel %vm2552, %v5633, %v5179
        %v5672 = vsel %vm2552, %v5634, %v3187
        %v5673 = vsel %vm2552, %v2533, %v2080
        %v5674 = vsel %vm2552, %v5635, %v5181
        %v5675 = vsel %vm2552, %v5636, %v3189
        %v5676 = vsel %vm2552, %v2535, %v2084
        %v5677 = vsel %vm2552, %v5637, %v5183
        %v5678 = vsel %vm2552, %v5638, %v3191
        %v5679 = vsel %vm2552, %v2537, %v2088
        %v5680 = vsel %vm2552, %v5639, %v5185
        %v5681 = vsel %vm2552, %v5640, %v3193
        %v5682 = vsel %vm2552, %v2539, %v2092
        %v5683 = vsel %vm2552, %v5641, %v5187
        %v5684 = vsel %vm2552, %v5642, %v3195
        %v5685 = vsel %vm2552, %v2541, %v2096
        %v5686 = vsel %vm2552, %v5643, %v5189
        %v5687 = vsel %vm2552, %v5644, %v3197
        %v5688 = vsel %vm2552, %v2543, %v2100
        %v5689 = vsel %vm2552, %v5645, %v5191
        %v5690 = vsel %vm2552, %v5646, %v3199
        %v5691 = vsel %vm2552, %v2545, %v2104
        %v5692 = vsel %vm2552, %v5647, %v5193
        %v5693 = vsel %vm2552, %v5648, %v3201
        %v5694 = vsel %vm2552, %v2547, %v2108
        %v5695 = vsel %vm2552, %v5649, %v5195
        %v5696 = vsel %vm2552, %v5650, %v3203
        %v5697 = vsel %vm2552, %v2549, %v2112
        %v5698 = vsel %vm2552, %v5651, %v5197
        %v5699 = vsel %vm2552, %v5652, %v3205
        %v5700 = vsel %vm2552, %v2551, %v2116
        %v5701 = vsel %vm2552, %v5653, %v5199
        %v5702 = vsel %vm2552, %v5654, %v3207
        %v5703 = vsel %vm2552, %v5655, %v3209
        %v5704 = vsel %vm2552, %v5656, %v5201
        %v5705 = vsel %vm2552, %v5657, %v5203
        %v5706 = vsel %vm2552, %v5658, %v5205
        %v5707 = vsel %vm2552, %v5659, %v5207
        %v5708 = vsel %vm2552, %v5660, %v5209
        %v5709 = vsel %vm2552, %v5661, %v5211
        %v5710 = vsel %vm2552, %v5662, %v5213
        %v5711 = vsel %vm2585, %v5663, %v3240
        %v5712 = vsel %vm2585, %v5664, %v2169
        %v5713 = vsel %vm2585, %v5665, %v2171
        %v5714 = vsel %vm2585, %v5666, %v3242
        %v5715 = vsel %vm2585, %v5667, %v2173
        %v5716 = vsel %vm2585, %v5668, %v2175
        %v5717 = vsel %vm2585, %v5669, %v3244
        %v5718 = vsel %vm2585, %v5670, %v2177
        %v5719 = vsel %vm2585, %v5671, %v2179
        %v5720 = vsel %vm2585, %v5672, %v3246
        %v5721 = vsel %vm2585, %v5673, %v2181
        %v5722 = vsel %vm2585, %v5674, %v2183
        %v5723 = vsel %vm2585, %v5675, %v3248
        %v5724 = vsel %vm2585, %v5676, %v2185
        %v5725 = vsel %vm2585, %v5677, %v2187
        %v5726 = vsel %vm2585, %v5678, %v3250
        %v5727 = vsel %vm2585, %v5679, %v2189
        %v5728 = vsel %vm2585, %v5680, %v2191
        %v5729 = vsel %vm2585, %v5681, %v3252
        %v5730 = vsel %vm2585, %v5682, %v2193
        %v5731 = vsel %vm2585, %v5683, %v2195
        %v5732 = vsel %vm2585, %v5684, %v3254
        %v5733 = vsel %vm2585, %v5685, %v2197
        %v5734 = vsel %vm2585, %v5686, %v2199
        %v5735 = vsel %vm2585, %v5687, %v3256
        %v5736 = vsel %vm2585, %v5688, %v2201
        %v5737 = vsel %vm2585, %v5689, %v2203
        %v5738 = vsel %vm2585, %v5690, %v3258
        %v5739 = vsel %vm2585, %v5691, %v2205
        %v5740 = vsel %vm2585, %v5692, %v2207
        %v5741 = vsel %vm2585, %v5693, %v3260
        %v5742 = vsel %vm2585, %v5694, %v2209
        %v5743 = vsel %vm2585, %v5695, %v2211
        %v5744 = vsel %vm2585, %v5696, %v3262
        %v5745 = vsel %vm2585, %v5697, %v2213
        %v5746 = vsel %vm2585, %v5698, %v2215
        %v5747 = vsel %vm2585, %v5699, %v3264
        %v5748 = vsel %vm2585, %v5700, %v2217
        %v5749 = vsel %vm2585, %v5701, %v2219
        %v5750 = vsel %vm2585, %v5702, %v3266
        %v5751 = vsel %vm2585, %v5703, %v3268
        %v5752 = vsel %vm2585, %v5704, %v3270
        %v5753 = vsel %vm2585, %v5705, %v5241
        %v5754 = vsel %vm2585, %v5706, %v5243
        %v5755 = vsel %vm2585, %v5707, %v5245
        %v5756 = vsel %vm2585, %v5708, %v5247
        %v5757 = vsel %vm2585, %v5709, %v5249
        %v5758 = vsel %vm2585, %v5710, %v5251
        %v5759 = vsel %vm2618, %v5711, %v3299
        %v5760 = vsel %vm2618, %v5712, %v2270
        %v5761 = vsel %vm2618, %v5713, %v2272
        %v5762 = vsel %vm2618, %v5714, %v3301
        %v5763 = vsel %vm2618, %v5715, %v2274
        %v5764 = vsel %vm2618, %v5716, %v2276
        %v5765 = vsel %vm2618, %v5717, %v3303
        %v5766 = vsel %vm2618, %v5718, %v2278
        %v5767 = vsel %vm2618, %v5719, %v2280
        %v5768 = vsel %vm2618, %v5720, %v3305
        %v5769 = vsel %vm2618, %v5721, %v2282
        %v5770 = vsel %vm2618, %v5722, %v2284
        %v5771 = vsel %vm2618, %v5723, %v3307
        %v5772 = vsel %vm2618, %v5724, %v2286
        %v5773 = vsel %vm2618, %v5725, %v2288
        %v5774 = vsel %vm2618, %v5726, %v3309
        %v5775 = vsel %vm2618, %v5727, %v2290
        %v5776 = vsel %vm2618, %v5728, %v2292
        %v5777 = vsel %vm2618, %v5729, %v3311
        %v5778 = vsel %vm2618, %v5730, %v2294
        %v5779 = vsel %vm2618, %v5731, %v2296
        %v5780 = vsel %vm2618, %v5732, %v3313
        %v5781 = vsel %vm2618, %v5733, %v2298
        %v5782 = vsel %vm2618, %v5734, %v2300
        %v5783 = vsel %vm2618, %v5735, %v3315
        %v5784 = vsel %vm2618, %v5736, %v2302
        %v5785 = vsel %vm2618, %v5737, %v2304
        %v5786 = vsel %vm2618, %v5738, %v3317
        %v5787 = vsel %vm2618, %v5739, %v2306
        %v5788 = vsel %vm2618, %v5740, %v2308
        %v5789 = vsel %vm2618, %v5741, %v3319
        %v5790 = vsel %vm2618, %v5742, %v2310
        %v5791 = vsel %vm2618, %v5743, %v2312
        %v5792 = vsel %vm2618, %v5744, %v3321
        %v5793 = vsel %vm2618, %v5745, %v2314
        %v5794 = vsel %vm2618, %v5746, %v2316
        %v5795 = vsel %vm2618, %v5747, %v3323
        %v5796 = vsel %vm2618, %v5748, %v2318
        %v5797 = vsel %vm2618, %v5749, %v2320
        %v5798 = vsel %vm2618, %v5750, %v3325
        %v5799 = vsel %vm2618, %v5751, %v3327
        %v5800 = vsel %vm2618, %v5752, %v3329
        %v5801 = vsel %vm2618, %v5753, %v5264
        %v5802 = vsel %vm2618, %v5754, %v5266
        %v5803 = vsel %vm2618, %v5755, %v5268
        %v5804 = vsel %vm2618, %v5756, %v5270
        %v5805 = vsel %vm2618, %v5757, %v5272
        %v5806 = vsel %vm2618, %v5758, %v5274
        %v5807 = vsel %vm2651, %v5759, %v3358
        %v5808 = vsel %vm2651, %v5760, %v2371
        %v5809 = vsel %vm2651, %v5761, %v2373
        %v5810 = vsel %vm2651, %v5762, %v3360
        %v5811 = vsel %vm2651, %v5763, %v2375
        %v5812 = vsel %vm2651, %v5764, %v2377
        %v5813 = vsel %vm2651, %v5765, %v3362
        %v5814 = vsel %vm2651, %v5766, %v2379
        %v5815 = vsel %vm2651, %v5767, %v2381
        %v5816 = vsel %vm2651, %v5768, %v3364
        %v5817 = vsel %vm2651, %v5769, %v2383
        %v5818 = vsel %vm2651, %v5770, %v2385
        %v5819 = vsel %vm2651, %v5771, %v3366
        %v5820 = vsel %vm2651, %v5772, %v2387
        %v5821 = vsel %vm2651, %v5773, %v2389
        %v5822 = vsel %vm2651, %v5774, %v3368
        %v5823 = vsel %vm2651, %v5775, %v2391
        %v5824 = vsel %vm2651, %v5776, %v2393
        %v5825 = vsel %vm2651, %v5777, %v3370
        %v5826 = vsel %vm2651, %v5778, %v2395
        %v5827 = vsel %vm2651, %v5779, %v2397
        %v5828 = vsel %vm2651, %v5780, %v3372
        %v5829 = vsel %vm2651, %v5781, %v2399
        %v5830 = vsel %vm2651, %v5782, %v2401
        %v5831 = vsel %vm2651, %v5783, %v3374
        %v5832 = vsel %vm2651, %v5784, %v2403
        %v5833 = vsel %vm2651, %v5785, %v2405
        %v5834 = vsel %vm2651, %v5786, %v3376
        %v5835 = vsel %vm2651, %v5787, %v2407
        %v5836 = vsel %vm2651, %v5788, %v2409
        %v5837 = vsel %vm2651, %v5789, %v3378
        %v5838 = vsel %vm2651, %v5790, %v2411
        %v5839 = vsel %vm2651, %v5791, %v2413
        %v5840 = vsel %vm2651, %v5792, %v3380
        %v5841 = vsel %vm2651, %v5793, %v2415
        %v5842 = vsel %vm2651, %v5794, %v2417
        %v5843 = vsel %vm2651, %v5795, %v3382
        %v5844 = vsel %vm2651, %v5796, %v2419
        %v5845 = vsel %vm2651, %v5797, %v2421
        %v5846 = vsel %vm2651, %v5798, %v3384
        %v5847 = vsel %vm2651, %v5799, %v3386
        %v5848 = vsel %vm2651, %v5800, %v3388
        %v5849 = vsel %vm2651, %v5801, %v5292
        %v5850 = vsel %vm2651, %v5802, %v5294
        %v5851 = vsel %vm2651, %v5803, %v5296
        %v5852 = vsel %vm2651, %v5804, %v5298
        %v5853 = vsel %vm2651, %v5805, %v5300
        %v5854 = vsel %vm2651, %v5806, %v5302
        %v5855 = vsel %vm252, %v5309, %v5326
        %v5856 = vsel %vm252, %v5311, %v5328
        %v5857 = vsel %vm252, %v5313, %v5330
        %v5858 = vsel %vm252, %v5314, %v5332
        %v5859 = vsel %vm252, %v5316, %v5334
        %v5860 = vsel %vm252, %v5318, %v5336
        %v5861 = vsel %vm2486, %v4645, %v1866
        %v5862 = vsel %vm2486, %v4648, %v1870
        %v5863 = vsel %vm2486, %v4651, %v1874
        %v5864 = vsel %vm2486, %v4654, %v1878
        %v5865 = vsel %vm2486, %v4657, %v1882
        %v5866 = vsel %vm2486, %v4660, %v1886
        %v5867 = vsel %vm2486, %v4663, %v1890
        %v5868 = vsel %vm2486, %v4666, %v1894
        %v5869 = vsel %vm2486, %v4669, %v1898
        %v5870 = vsel %vm2486, %v4672, %v1902
        %v5871 = vsel %vm2486, %v4675, %v1906
        %v5872 = vsel %vm2486, %v4678, %v1910
        %v5873 = vsel %vm2486, %v4681, %v1914
        %v5874 = vsel %vm2486, %v4684, %v3075
        %v5875 = vsel %vm2486, %v5855, %v5349
        %v5876 = vsel %vm2486, %v5856, %v5351
        %v5877 = vsel %vm2486, %v5857, %v5353
        %v5878 = vsel %vm2486, %v5858, %v5355
        %v5879 = vsel %vm2486, %v5859, %v5357
        %v5880 = vsel %vm2486, %v5860, %v5359
        %v5881 = vsel %vm2519, %v5861, %v1967
        %v5882 = vsel %vm2519, %v4694, %v1969
        %v5883 = vsel %vm2519, %v4695, %v5372
        %v5884 = vsel %vm2519, %v5862, %v1971
        %v5885 = vsel %vm2519, %v4697, %v1973
        %v5886 = vsel %vm2519, %v4698, %v5374
        %v5887 = vsel %vm2519, %v5863, %v1975
        %v5888 = vsel %vm2519, %v4700, %v1977
        %v5889 = vsel %vm2519, %v4701, %v5376
        %v5890 = vsel %vm2519, %v5864, %v1979
        %v5891 = vsel %vm2519, %v4703, %v1981
        %v5892 = vsel %vm2519, %v4704, %v5378
        %v5893 = vsel %vm2519, %v5865, %v1983
        %v5894 = vsel %vm2519, %v4706, %v1985
        %v5895 = vsel %vm2519, %v4707, %v5380
        %v5896 = vsel %vm2519, %v5866, %v1987
        %v5897 = vsel %vm2519, %v4709, %v1989
        %v5898 = vsel %vm2519, %v4710, %v5382
        %v5899 = vsel %vm2519, %v5867, %v1991
        %v5900 = vsel %vm2519, %v4712, %v1993
        %v5901 = vsel %vm2519, %v4713, %v5384
        %v5902 = vsel %vm2519, %v5868, %v1995
        %v5903 = vsel %vm2519, %v4715, %v1997
        %v5904 = vsel %vm2519, %v4716, %v5386
        %v5905 = vsel %vm2519, %v5869, %v1999
        %v5906 = vsel %vm2519, %v4718, %v2001
        %v5907 = vsel %vm2519, %v4719, %v5388
        %v5908 = vsel %vm2519, %v5870, %v2003
        %v5909 = vsel %vm2519, %v4721, %v2005
        %v5910 = vsel %vm2519, %v4722, %v5390
        %v5911 = vsel %vm2519, %v5871, %v2007
        %v5912 = vsel %vm2519, %v4724, %v2009
        %v5913 = vsel %vm2519, %v4725, %v5392
        %v5914 = vsel %vm2519, %v5872, %v2011
        %v5915 = vsel %vm2519, %v4727, %v2013
        %v5916 = vsel %vm2519, %v4728, %v5394
        %v5917 = vsel %vm2519, %v5873, %v2015
        %v5918 = vsel %vm2519, %v4730, %v2017
        %v5919 = vsel %vm2519, %v4731, %v5396
        %v5920 = vsel %vm2519, %v5874, %v3150
        %v5921 = vsel %vm2519, %v4733, %v3152
        %v5922 = vsel %vm2519, %v4734, %v5398
        %v5923 = vsel %vm2519, %v5875, %v5400
        %v5924 = vsel %vm2519, %v5876, %v5402
        %v5925 = vsel %vm2519, %v5877, %v5404
        %v5926 = vsel %vm2519, %v5878, %v5406
        %v5927 = vsel %vm2519, %v5879, %v5408
        %v5928 = vsel %vm2519, %v5880, %v5410
        %v5929 = vsel %vm2552, %v5881, %v5175
        %v5930 = vsel %vm2552, %v5882, %v2070
        %v5931 = vsel %vm2552, %v5883, %v5434
        %v5932 = vsel %vm2552, %v5884, %v5177
        %v5933 = vsel %vm2552, %v5885, %v2074
        %v5934 = vsel %vm2552, %v5886, %v5436
        %v5935 = vsel %vm2552, %v5887, %v5179
        %v5936 = vsel %vm2552, %v5888, %v2078
        %v5937 = vsel %vm2552, %v5889, %v5438
        %v5938 = vsel %vm2552, %v5890, %v5181
        %v5939 = vsel %vm2552, %v5891, %v2082
        %v5940 = vsel %vm2552, %v5892, %v5440
        %v5941 = vsel %vm2552, %v5893, %v5183
        %v5942 = vsel %vm2552, %v5894, %v2086
        %v5943 = vsel %vm2552, %v5895, %v5442
        %v5944 = vsel %vm2552, %v5896, %v5185
        %v5945 = vsel %vm2552, %v5897, %v2090
        %v5946 = vsel %vm2552, %v5898, %v5444
        %v5947 = vsel %vm2552, %v5899, %v5187
        %v5948 = vsel %vm2552, %v5900, %v2094
        %v5949 = vsel %vm2552, %v5901, %v5446
        %v5950 = vsel %vm2552, %v5902, %v5189
        %v5951 = vsel %vm2552, %v5903, %v2098
        %v5952 = vsel %vm2552, %v5904, %v5448
        %v5953 = vsel %vm2552, %v5905, %v5191
        %v5954 = vsel %vm2552, %v5906, %v2102
        %v5955 = vsel %vm2552, %v5907, %v5450
        %v5956 = vsel %vm2552, %v5908, %v5193
        %v5957 = vsel %vm2552, %v5909, %v2106
        %v5958 = vsel %vm2552, %v5910, %v5452
        %v5959 = vsel %vm2552, %v5911, %v5195
        %v5960 = vsel %vm2552, %v5912, %v2110
        %v5961 = vsel %vm2552, %v5913, %v5454
        %v5962 = vsel %vm2552, %v5914, %v5197
        %v5963 = vsel %vm2552, %v5915, %v2114
        %v5964 = vsel %vm2552, %v5916, %v5456
        %v5965 = vsel %vm2552, %v5917, %v5199
        %v5966 = vsel %vm2552, %v5918, %v2118
        %v5967 = vsel %vm2552, %v5919, %v5458
        %v5968 = vsel %vm2552, %v5920, %v5201
        %v5969 = vsel %vm2552, %v5921, %v3211
        %v5970 = vsel %vm2552, %v5922, %v5460
        %v5971 = vsel %vm2552, %v5923, %v5207
        %v5972 = vsel %vm2552, %v5924, %v5462
        %v5973 = vsel %vm2552, %v5925, %v5464
        %v5974 = vsel %vm2552, %v5926, %v5213
        %v5975 = vsel %vm2552, %v5927, %v5466
        %v5976 = vsel %vm2552, %v5928, %v5468
        %v5977 = vsel %vm2585, %v5929, %v3889
        %v5978 = vsel %vm2585, %v5930, %v3891
        %v5979 = vsel %vm2585, %v5931, %v5493
        %v5980 = vsel %vm2585, %v5932, %v3895
        %v5981 = vsel %vm2585, %v5933, %v3897
        %v5982 = vsel %vm2585, %v5934, %v5495
        %v5983 = vsel %vm2585, %v5935, %v3901
        %v5984 = vsel %vm2585, %v5936, %v3903
        %v5985 = vsel %vm2585, %v5937, %v5497
        %v5986 = vsel %vm2585, %v5938, %v3907
        %v5987 = vsel %vm2585, %v5939, %v3909
        %v5988 = vsel %vm2585, %v5940, %v5499
        %v5989 = vsel %vm2585, %v5941, %v3913
        %v5990 = vsel %vm2585, %v5942, %v3915
        %v5991 = vsel %vm2585, %v5943, %v5501
        %v5992 = vsel %vm2585, %v5944, %v3919
        %v5993 = vsel %vm2585, %v5945, %v3921
        %v5994 = vsel %vm2585, %v5946, %v5503
        %v5995 = vsel %vm2585, %v5947, %v3925
        %v5996 = vsel %vm2585, %v5948, %v3927
        %v5997 = vsel %vm2585, %v5949, %v5505
        %v5998 = vsel %vm2585, %v5950, %v3931
        %v5999 = vsel %vm2585, %v5951, %v3933
        %v6000 = vsel %vm2585, %v5952, %v5507
        %v6001 = vsel %vm2585, %v5953, %v3937
        %v6002 = vsel %vm2585, %v5954, %v3939
        %v6003 = vsel %vm2585, %v5955, %v5509
        %v6004 = vsel %vm2585, %v5956, %v3943
        %v6005 = vsel %vm2585, %v5957, %v3945
        %v6006 = vsel %vm2585, %v5958, %v5511
        %v6007 = vsel %vm2585, %v5959, %v3949
        %v6008 = vsel %vm2585, %v5960, %v3951
        %v6009 = vsel %vm2585, %v5961, %v5513
        %v6010 = vsel %vm2585, %v5962, %v3955
        %v6011 = vsel %vm2585, %v5963, %v3957
        %v6012 = vsel %vm2585, %v5964, %v5515
        %v6013 = vsel %vm2585, %v5965, %v3961
        %v6014 = vsel %vm2585, %v5966, %v3963
        %v6015 = vsel %vm2585, %v5967, %v5517
        %v6016 = vsel %vm2585, %v5968, %v3967
        %v6017 = vsel %vm2585, %v5969, %v3969
        %v6018 = vsel %vm2585, %v5970, %v5519
        %v6019 = vsel %vm2585, %v5971, %v5521
        %v6020 = vsel %vm2585, %v5972, %v5523
        %v6021 = vsel %vm2585, %v5973, %v5525
        %v6022 = vsel %vm2585, %v5974, %v5527
        %v6023 = vsel %vm2585, %v5975, %v5529
        %v6024 = vsel %vm2585, %v5976, %v5531
        %v6025 = vsel %vm2618, %v5977, %v4038
        %v6026 = vsel %vm2618, %v5978, %v4040
        %v6027 = vsel %vm2618, %v5979, %v4042
        %v6028 = vsel %vm2618, %v5980, %v4044
        %v6029 = vsel %vm2618, %v5981, %v4046
        %v6030 = vsel %vm2618, %v5982, %v4048
        %v6031 = vsel %vm2618, %v5983, %v4050
        %v6032 = vsel %vm2618, %v5984, %v4052
        %v6033 = vsel %vm2618, %v5985, %v4054
        %v6034 = vsel %vm2618, %v5986, %v4056
        %v6035 = vsel %vm2618, %v5987, %v4058
        %v6036 = vsel %vm2618, %v5988, %v4060
        %v6037 = vsel %vm2618, %v5989, %v4062
        %v6038 = vsel %vm2618, %v5990, %v4064
        %v6039 = vsel %vm2618, %v5991, %v4066
        %v6040 = vsel %vm2618, %v5992, %v4068
        %v6041 = vsel %vm2618, %v5993, %v4070
        %v6042 = vsel %vm2618, %v5994, %v4072
        %v6043 = vsel %vm2618, %v5995, %v4074
        %v6044 = vsel %vm2618, %v5996, %v4076
        %v6045 = vsel %vm2618, %v5997, %v4078
        %v6046 = vsel %vm2618, %v5998, %v4080
        %v6047 = vsel %vm2618, %v5999, %v4082
        %v6048 = vsel %vm2618, %v6000, %v4084
        %v6049 = vsel %vm2618, %v6001, %v4086
        %v6050 = vsel %vm2618, %v6002, %v4088
        %v6051 = vsel %vm2618, %v6003, %v4090
        %v6052 = vsel %vm2618, %v6004, %v4092
        %v6053 = vsel %vm2618, %v6005, %v4094
        %v6054 = vsel %vm2618, %v6006, %v4096
        %v6055 = vsel %vm2618, %v6007, %v4098
        %v6056 = vsel %vm2618, %v6008, %v4100
        %v6057 = vsel %vm2618, %v6009, %v4102
        %v6058 = vsel %vm2618, %v6010, %v4104
        %v6059 = vsel %vm2618, %v6011, %v4106
        %v6060 = vsel %vm2618, %v6012, %v4108
        %v6061 = vsel %vm2618, %v6013, %v4110
        %v6062 = vsel %vm2618, %v6014, %v4112
        %v6063 = vsel %vm2618, %v6015, %v4114
        %v6064 = vsel %vm2618, %v6016, %v4116
        %v6065 = vsel %vm2618, %v6017, %v4118
        %v6066 = vsel %vm2618, %v6018, %v4120
        %v6067 = vsel %vm2618, %v6019, %v5559
        %v6068 = vsel %vm2618, %v6020, %v5561
        %v6069 = vsel %vm2618, %v6021, %v5563
        %v6070 = vsel %vm2618, %v6022, %v5565
        %v6071 = vsel %vm2618, %v6023, %v5567
        %v6072 = vsel %vm2618, %v6024, %v5569
        %v6073 = vsel %vm2651, %v6025, %v4187
        %v6074 = vsel %vm2651, %v6026, %v4189
        %v6075 = vsel %vm2651, %v6027, %v4191
        %v6076 = vsel %vm2651, %v6028, %v4193
        %v6077 = vsel %vm2651, %v6029, %v4195
        %v6078 = vsel %vm2651, %v6030, %v4197
        %v6079 = vsel %vm2651, %v6031, %v4199
        %v6080 = vsel %vm2651, %v6032, %v4201
        %v6081 = vsel %vm2651, %v6033, %v4203
        %v6082 = vsel %vm2651, %v6034, %v4205
        %v6083 = vsel %vm2651, %v6035, %v4207
        %v6084 = vsel %vm2651, %v6036, %v4209
        %v6085 = vsel %vm2651, %v6037, %v4211
        %v6086 = vsel %vm2651, %v6038, %v4213
        %v6087 = vsel %vm2651, %v6039, %v4215
        %v6088 = vsel %vm2651, %v6040, %v4217
        %v6089 = vsel %vm2651, %v6041, %v4219
        %v6090 = vsel %vm2651, %v6042, %v4221
        %v6091 = vsel %vm2651, %v6043, %v4223
        %v6092 = vsel %vm2651, %v6044, %v4225
        %v6093 = vsel %vm2651, %v6045, %v4227
        %v6094 = vsel %vm2651, %v6046, %v4229
        %v6095 = vsel %vm2651, %v6047, %v4231
        %v6096 = vsel %vm2651, %v6048, %v4233
        %v6097 = vsel %vm2651, %v6049, %v4235
        %v6098 = vsel %vm2651, %v6050, %v4237
        %v6099 = vsel %vm2651, %v6051, %v4239
        %v6100 = vsel %vm2651, %v6052, %v4241
        %v6101 = vsel %vm2651, %v6053, %v4243
        %v6102 = vsel %vm2651, %v6054, %v4245
        %v6103 = vsel %vm2651, %v6055, %v4247
        %v6104 = vsel %vm2651, %v6056, %v4249
        %v6105 = vsel %vm2651, %v6057, %v4251
        %v6106 = vsel %vm2651, %v6058, %v4253
        %v6107 = vsel %vm2651, %v6059, %v4255
        %v6108 = vsel %vm2651, %v6060, %v4257
        %v6109 = vsel %vm2651, %v6061, %v4259
        %v6110 = vsel %vm2651, %v6062, %v4261
        %v6111 = vsel %vm2651, %v6063, %v4263
        %v6112 = vsel %vm2651, %v6064, %v4265
        %v6113 = vsel %vm2651, %v6065, %v4267
        %v6114 = vsel %vm2651, %v6066, %v4269
        %v6115 = vsel %vm2651, %v6067, %v5582
        %v6116 = vsel %vm2651, %v6068, %v5584
        %v6117 = vsel %vm2651, %v6069, %v5586
        %v6118 = vsel %vm2651, %v6070, %v5588
        %v6119 = vsel %vm2651, %v6071, %v5590
        %v6120 = vsel %vm2651, %v6072, %v5592
        %v6121 = vrot.slane %v450, 1
        %v6122 = vrot.slane %v451, 1
        %v6123 = vsel %vm510, %v6121, %v6122
        %v6124 = vrot.slane %v452, 1
        %v6125 = vsel %vm510, %v6122, %v6124
        %6126 = vrot.lane.b32.xlu0 %v5345, 16
        %v6127 = vpop.permute.xlu0 %6126
        %6128 = vrot.lane.b32.xlu0 %v5347, 16
        %v6129 = vpop.permute.xlu0 %6128
        %6130 = vrot.lane.b32.xlu0 %v5346, 16
        %v6131 = vpop.permute.xlu0 %6130
        %6132 = vrot.lane.b32.xlu0 %v6123, 16
        %v6133 = vpop.permute.xlu0 %6132
        %6134 = vrot.lane.b32.xlu0 %v6125, 16
        %v6135 = vpop.permute.xlu0 %6134
        %6136 = vrot.lane.b32.xlu0 %v6124, 16
        %v6137 = vpop.permute.xlu0 %6136
        %v6144 = vrot.slane %v450, 2
        %v6145 = vrot.slane %v451, 2
        %v6146 = vsel %vm687, %v6144, %v6145
        %v6147 = vrot.slane %v452, 2
        %v6148 = vsel %vm687, %v6145, %v6147
        %6149 = vrot.lane.b32.xlu0 %v5368, 32
        %v6150 = vpop.permute.xlu0 %6149
        %6151 = vrot.lane.b32.xlu0 %v5370, 32
        %v6152 = vpop.permute.xlu0 %6151
        %6153 = vrot.lane.b32.xlu0 %v5369, 32
        %v6154 = vpop.permute.xlu0 %6153
        %6155 = vrot.lane.b32.xlu0 %v6146, 32
        %v6156 = vpop.permute.xlu0 %6155
        %6157 = vrot.lane.b32.xlu0 %v6148, 32
        %v6158 = vpop.permute.xlu0 %6157
        %6159 = vrot.lane.b32.xlu0 %v6147, 32
        %v6160 = vpop.permute.xlu0 %6159
        %v6167 = vrot.slane %v452, 3
        %v6168 = vsel %vm864, %v5490, %v6167
        %6169 = vrot.lane.b32.xlu0 %v2052, 48
        %v6170 = vpop.permute.xlu0 %6169
        %6171 = vrot.lane.b32.xlu0 %v3173, 48
        %v6172 = vpop.permute.xlu0 %6171
        %6173 = vrot.lane.b32.xlu0 %v3873, 48
        %v6174 = vpop.permute.xlu0 %6173
        %6175 = vrot.lane.b32.xlu0 %v5173, 48
        %v6176 = vpop.permute.xlu0 %6175
        %6177 = vrot.lane.b32.xlu0 %v5432, 48
        %v6178 = vpop.permute.xlu0 %6177
        %6179 = vrot.lane.b32.xlu0 %v5431, 48
        %v6180 = vpop.permute.xlu0 %6179
        %6181 = vrot.lane.b32.xlu0 %v5491, 48
        %v6182 = vpop.permute.xlu0 %6181
        %6183 = vrot.lane.b32.xlu0 %v6168, 48
        %v6184 = vpop.permute.xlu0 %6183
        %6185 = vrot.lane.b32.xlu0 %v6167, 48
        %v6186 = vpop.permute.xlu0 %6185
        %6196 = vrot.lane.b32.xlu0 %v1070, 64
        %v6197 = vpop.permute.xlu0 %6196
        %6198 = vrot.lane.b32.xlu0 %v1075, 64
        %v6199 = vpop.permute.xlu0 %6198
        %6200 = vrot.lane.b32.xlu0 %v1080, 64
        %v6201 = vpop.permute.xlu0 %6200
        %6202 = vrot.lane.b32.xlu0 %v1085, 64
        %v6203 = vpop.permute.xlu0 %6202
        %6204 = vrot.lane.b32.xlu0 %v1090, 64
        %v6205 = vpop.permute.xlu0 %6204
        %6206 = vrot.lane.b32.xlu0 %v1095, 64
        %v6207 = vpop.permute.xlu0 %6206
        %6208 = vrot.lane.b32.xlu0 %v1100, 64
        %v6209 = vpop.permute.xlu0 %6208
        %6210 = vrot.lane.b32.xlu0 %v1105, 64
        %v6211 = vpop.permute.xlu0 %6210
        %6212 = vrot.lane.b32.xlu0 %v1110, 64
        %v6213 = vpop.permute.xlu0 %6212
        %6214 = vrot.lane.b32.xlu0 %v1115, 64
        %v6215 = vpop.permute.xlu0 %6214
        %6216 = vrot.lane.b32.xlu0 %v1120, 64
        %v6217 = vpop.permute.xlu0 %6216
        %6218 = vrot.lane.b32.xlu0 %v2153, 64
        %v6219 = vpop.permute.xlu0 %6218
        %6220 = vrot.lane.b32.xlu0 %v2155, 64
        %v6221 = vpop.permute.xlu0 %6220
        %6222 = vrot.lane.b32.xlu0 %v2154, 64
        %v6223 = vpop.permute.xlu0 %6222
        %6224 = vrot.lane.b32.xlu0 %v3232, 64
        %v6225 = vpop.permute.xlu0 %6224
        %6226 = vrot.lane.b32.xlu0 %v3234, 64
        %v6227 = vpop.permute.xlu0 %6226
        %6228 = vrot.lane.b32.xlu0 %v3233, 64
        %v6229 = vpop.permute.xlu0 %6228
        %6230 = vrot.lane.b32.xlu0 %v4022, 64
        %v6231 = vpop.permute.xlu0 %6230
        %6232 = vrot.lane.b32.xlu0 %v4024, 64
        %v6233 = vpop.permute.xlu0 %6232
        %6234 = vrot.lane.b32.xlu0 %v4023, 64
        %v6235 = vpop.permute.xlu0 %6234
        %6236 = vrot.lane.b32.xlu0 %v5237, 64
        %v6237 = vpop.permute.xlu0 %6236
        %6238 = vrot.lane.b32.xlu0 %v5239, 64
        %v6239 = vpop.permute.xlu0 %6238
        %6240 = vrot.lane.b32.xlu0 %v5238, 64
        %v6241 = vpop.permute.xlu0 %6240
        %6242 = vrot.lane.b32.xlu0 %v5555, 64
        %v6243 = vpop.permute.xlu0 %6242
        %6244 = vrot.lane.b32.xlu0 %v5557, 64
        %v6245 = vpop.permute.xlu0 %6244
        %6246 = vrot.lane.b32.xlu0 %v5556, 64
        %v6247 = vpop.permute.xlu0 %6246
        %6274 = vrot.lane.b32.xlu0 %v1245, 80
        %v6275 = vpop.permute.xlu0 %6274
        %6276 = vrot.lane.b32.xlu0 %v1247, 80
        %v6277 = vpop.permute.xlu0 %6276
        %6278 = vrot.lane.b32.xlu0 %v1250, 80
        %v6279 = vpop.permute.xlu0 %6278
        %6280 = vrot.lane.b32.xlu0 %v1252, 80
        %v6281 = vpop.permute.xlu0 %6280
        %6282 = vrot.lane.b32.xlu0 %v1255, 80
        %v6283 = vpop.permute.xlu0 %6282
        %6284 = vrot.lane.b32.xlu0 %v1257, 80
        %v6285 = vpop.permute.xlu0 %6284
        %6286 = vrot.lane.b32.xlu0 %v1260, 80
        %v6287 = vpop.permute.xlu0 %6286
        %6288 = vrot.lane.b32.xlu0 %v1262, 80
        %v6289 = vpop.permute.xlu0 %6288
        %6290 = vrot.lane.b32.xlu0 %v1265, 80
        %v6291 = vpop.permute.xlu0 %6290
        %6292 = vrot.lane.b32.xlu0 %v1267, 80
        %v6293 = vpop.permute.xlu0 %6292
        %6294 = vrot.lane.b32.xlu0 %v1270, 80
        %v6295 = vpop.permute.xlu0 %6294
        %6296 = vrot.lane.b32.xlu0 %v1272, 80
        %v6297 = vpop.permute.xlu0 %6296
        %6298 = vrot.lane.b32.xlu0 %v1275, 80
        %v6299 = vpop.permute.xlu0 %6298
        %6300 = vrot.lane.b32.xlu0 %v1277, 80
        %v6301 = vpop.permute.xlu0 %6300
        %6302 = vrot.lane.b32.xlu0 %v1280, 80
        %v6303 = vpop.permute.xlu0 %6302
        %6304 = vrot.lane.b32.xlu0 %v1282, 80
        %v6305 = vpop.permute.xlu0 %6304
        %6306 = vrot.lane.b32.xlu0 %v1285, 80
        %v6307 = vpop.permute.xlu0 %6306
        %6308 = vrot.lane.b32.xlu0 %v1287, 80
        %v6309 = vpop.permute.xlu0 %6308
        %6310 = vrot.lane.b32.xlu0 %v1290, 80
        %v6311 = vpop.permute.xlu0 %6310
        %6312 = vrot.lane.b32.xlu0 %v1292, 80
        %v6313 = vpop.permute.xlu0 %6312
        %6314 = vrot.lane.b32.xlu0 %v1295, 80
        %v6315 = vpop.permute.xlu0 %6314
        %6316 = vrot.lane.b32.xlu0 %v1297, 80
        %v6317 = vpop.permute.xlu0 %6316
        %6318 = vrot.lane.b32.xlu0 %v2253, 80
        %v6319 = vpop.permute.xlu0 %6318
        %6320 = vrot.lane.b32.xlu0 %v2256, 80
        %v6321 = vpop.permute.xlu0 %6320
        %6322 = vrot.lane.b32.xlu0 %v2255, 80
        %v6323 = vpop.permute.xlu0 %6322
        %6324 = vrot.lane.b32.xlu0 %v3290, 80
        %v6325 = vpop.permute.xlu0 %6324
        %6326 = vrot.lane.b32.xlu0 %v3293, 80
        %v6327 = vpop.permute.xlu0 %6326
        %6328 = vrot.lane.b32.xlu0 %v3292, 80
        %v6329 = vpop.permute.xlu0 %6328
        %6330 = vrot.lane.b32.xlu0 %v4170, 80
        %v6331 = vpop.permute.xlu0 %6330
        %6332 = vrot.lane.b32.xlu0 %v4173, 80
        %v6333 = vpop.permute.xlu0 %6332
        %6334 = vrot.lane.b32.xlu0 %v4172, 80
        %v6335 = vpop.permute.xlu0 %6334
        %6336 = vrot.lane.b32.xlu0 %v5259, 80
        %v6337 = vpop.permute.xlu0 %6336
        %6338 = vrot.lane.b32.xlu0 %v5262, 80
        %v6339 = vpop.permute.xlu0 %6338
        %6340 = vrot.lane.b32.xlu0 %v5261, 80
        %v6341 = vpop.permute.xlu0 %6340
        %6342 = vrot.lane.b32.xlu0 %v5577, 80
        %v6343 = vpop.permute.xlu0 %6342
        %6344 = vrot.lane.b32.xlu0 %v5580, 80
        %v6345 = vpop.permute.xlu0 %6344
        %6346 = vrot.lane.b32.xlu0 %v5579, 80
        %v6347 = vpop.permute.xlu0 %6346
        %v6387 = vrot.slane %v453, 5
        %v6388 = vrot.slane %v454, 5
        %v6389 = vsel %vm1218, %v6387, %v6388
        %6390 = vrot.lane.b32.xlu0 %v1250, 96
        %v6391 = vpop.permute.xlu0 %6390
        %6392 = vrot.lane.b32.xlu0 %v1255, 96
        %v6393 = vpop.permute.xlu0 %6392
        %6394 = vrot.lane.b32.xlu0 %v1260, 96
        %v6395 = vpop.permute.xlu0 %6394
        %6396 = vrot.lane.b32.xlu0 %v1265, 96
        %v6397 = vpop.permute.xlu0 %6396
        %6398 = vrot.lane.b32.xlu0 %v1270, 96
        %v6399 = vpop.permute.xlu0 %6398
        %6400 = vrot.lane.b32.xlu0 %v1275, 96
        %v6401 = vpop.permute.xlu0 %6400
        %6402 = vrot.lane.b32.xlu0 %v1280, 96
        %v6403 = vpop.permute.xlu0 %6402
        %6404 = vrot.lane.b32.xlu0 %v1285, 96
        %v6405 = vpop.permute.xlu0 %6404
        %6406 = vrot.lane.b32.xlu0 %v1290, 96
        %v6407 = vpop.permute.xlu0 %6406
        %6408 = vrot.lane.b32.xlu0 %v1295, 96
        %v6409 = vpop.permute.xlu0 %6408
        %6410 = vrot.lane.b32.xlu0 %v2253, 96
        %v6411 = vpop.permute.xlu0 %6410
        %6412 = vrot.lane.b32.xlu0 %v3290, 96
        %v6413 = vpop.permute.xlu0 %6412
        %6414 = vrot.lane.b32.xlu0 %v4170, 96
        %v6415 = vpop.permute.xlu0 %6414
        %6416 = vrot.lane.b32.xlu0 %v5259, 96
        %v6417 = vpop.permute.xlu0 %6416
        %6418 = vrot.lane.b32.xlu0 %v5576, 96
        %v6419 = vpop.permute.xlu0 %6418
        %6420 = vrot.lane.b32.xlu0 %v5578, 96
        %v6421 = vpop.permute.xlu0 %6420
        %6422 = vrot.lane.b32.xlu0 %v5577, 96
        %v6423 = vpop.permute.xlu0 %6422
        %6424 = vrot.lane.b32.xlu0 %v6387, 96
        %v6425 = vpop.permute.xlu0 %6424
        %6426 = vrot.lane.b32.xlu0 %v6389, 96
        %v6427 = vpop.permute.xlu0 %6426
        %6428 = vrot.lane.b32.xlu0 %v6388, 96
        %v6429 = vpop.permute.xlu0 %6428
        %v6451 = vrot.slane %v450, 6
        %v6452 = vrot.slane %v451, 6
        %v6453 = vsel %vm1395, %v6451, %v6452
        %v6454 = vrot.slane %v452, 6
        %v6455 = vsel %vm1395, %v6452, %v6454
        %v6456 = vrot.slane %v453, 6
        %v6457 = vrot.slane %v454, 6
        %v6458 = vsel %vm1395, %v6456, %v6457
        %v6459 = vrot.slane %v455, 6
        %v6460 = vsel %vm1395, %v6457, %v6459
        %6461 = vrot.lane.b32.xlu0 %v6451, 112
        %v6462 = vpop.permute.xlu0 %6461
        %6463 = vrot.lane.b32.xlu0 %v6453, 112
        %v6464 = vpop.permute.xlu0 %6463
        %6465 = vrot.lane.b32.xlu0 %v6455, 112
        %v6466 = vpop.permute.xlu0 %6465
        %6467 = vrot.lane.b32.xlu0 %v6456, 112
        %v6468 = vpop.permute.xlu0 %6467
        %6469 = vrot.lane.b32.xlu0 %v6458, 112
        %v6470 = vpop.permute.xlu0 %6469
        %6471 = vrot.lane.b32.xlu0 %v6460, 112
        %v6472 = vpop.permute.xlu0 %6471
        %v6479 = vrot.slane %v450, 7
        %v6480 = vrot.slane %v451, 7
        %v6481 = vsel %vm1572, %v6479, %v6480
        %v6482 = vrot.slane %v452, 7
        %v6483 = vsel %vm1572, %v6480, %v6482
        %v6484 = vrot.slane %v453, 7
        %v6485 = vrot.slane %v454, 7
        %v6486 = vsel %vm1572, %v6484, %v6485
        %v6487 = vrot.slane %v455, 7
        %v6488 = vsel %vm1572, %v6485, %v6487
        %6495 = vrot.lane.b32.xlu0 %v450, 16
        %v6496 = vpop.permute.xlu0 %6495
        %6497 = vrot.lane.b32.xlu0 %v451, 16
        %v6498 = vpop.permute.xlu0 %6497
        %6499 = vrot.lane.b32.xlu0 %v452, 16
        %v6500 = vpop.permute.xlu0 %6499
        %6501 = vrot.lane.b32.xlu0 %v453, 16
        %v6502 = vpop.permute.xlu0 %6501
        %6503 = vrot.lane.b32.xlu0 %v454, 16
        %v6504 = vpop.permute.xlu0 %6503
        %6505 = vrot.lane.b32.xlu0 %v455, 16
        %v6506 = vpop.permute.xlu0 %6505
        %v6513 = vrot.slane %v453, 1
        %v6514 = vrot.slane %v454, 1
        %v6515 = vsel %vm510, %v6513, %v6514
        %v6516 = vrot.slane %v455, 1
        %v6517 = vsel %vm510, %v6514, %v6516
        %6518 = vrot.lane.b32.xlu0 %v6123, 32
        %v6519 = vpop.permute.xlu0 %6518
        %6520 = vrot.lane.b32.xlu0 %v6125, 32
        %v6521 = vpop.permute.xlu0 %6520
        %6522 = vrot.lane.b32.xlu0 %v6124, 32
        %v6523 = vpop.permute.xlu0 %6522
        %6524 = vrot.lane.b32.xlu0 %v6515, 32
        %v6525 = vpop.permute.xlu0 %6524
        %6526 = vrot.lane.b32.xlu0 %v6517, 32
        %v6527 = vpop.permute.xlu0 %6526
        %6528 = vrot.lane.b32.xlu0 %v6516, 32
        %v6529 = vpop.permute.xlu0 %6528
        %v6536 = vrot.slane %v453, 2
        %v6537 = vrot.slane %v454, 2
        %v6538 = vsel %vm687, %v6536, %v6537
        %v6539 = vrot.slane %v455, 2
        %v6540 = vsel %vm687, %v6537, %v6539
        %6541 = vrot.lane.b32.xlu0 %v6146, 48
        %v6542 = vpop.permute.xlu0 %6541
        %6543 = vrot.lane.b32.xlu0 %v6148, 48
        %v6544 = vpop.permute.xlu0 %6543
        %6545 = vrot.lane.b32.xlu0 %v6147, 48
        %v6546 = vpop.permute.xlu0 %6545
        %6547 = vrot.lane.b32.xlu0 %v6538, 48
        %v6548 = vpop.permute.xlu0 %6547
        %6549 = vrot.lane.b32.xlu0 %v6540, 48
        %v6550 = vpop.permute.xlu0 %6549
        %6551 = vrot.lane.b32.xlu0 %v6539, 48
        %v6552 = vpop.permute.xlu0 %6551
        %v6559 = vrot.slane %v453, 3
        %v6560 = vrot.slane %v454, 3
        %v6561 = vsel %vm864, %v6559, %v6560
        %v6562 = vrot.slane %v455, 3
        %v6563 = vsel %vm864, %v6560, %v6562
        %6564 = vrot.lane.b32.xlu0 %v5491, 64
        %v6565 = vpop.permute.xlu0 %6564
        %6566 = vrot.lane.b32.xlu0 %v6168, 64
        %v6567 = vpop.permute.xlu0 %6566
        %6568 = vrot.lane.b32.xlu0 %v6167, 64
        %v6569 = vpop.permute.xlu0 %6568
        %6570 = vrot.lane.b32.xlu0 %v6561, 64
        %v6571 = vpop.permute.xlu0 %6570
        %6572 = vrot.lane.b32.xlu0 %v6563, 64
        %v6573 = vpop.permute.xlu0 %6572
        %6574 = vrot.lane.b32.xlu0 %v6562, 64
        %v6575 = vpop.permute.xlu0 %6574
        %v6582 = vrot.slane %v453, 4
        %v6583 = vrot.slane %v454, 4
        %v6584 = vsel %vm1041, %v6582, %v6583
        %v6585 = vrot.slane %v455, 4
        %v6586 = vsel %vm1041, %v6583, %v6585
        %6587 = vrot.lane.b32.xlu0 %v1075, 80
        %v6588 = vpop.permute.xlu0 %6587
        %6589 = vrot.lane.b32.xlu0 %v1080, 80
        %v6590 = vpop.permute.xlu0 %6589
        %6591 = vrot.lane.b32.xlu0 %v1085, 80
        %v6592 = vpop.permute.xlu0 %6591
        %6593 = vrot.lane.b32.xlu0 %v1090, 80
        %v6594 = vpop.permute.xlu0 %6593
        %6595 = vrot.lane.b32.xlu0 %v1095, 80
        %v6596 = vpop.permute.xlu0 %6595
        %6597 = vrot.lane.b32.xlu0 %v1100, 80
        %v6598 = vpop.permute.xlu0 %6597
        %6599 = vrot.lane.b32.xlu0 %v1105, 80
        %v6600 = vpop.permute.xlu0 %6599
        %6601 = vrot.lane.b32.xlu0 %v1110, 80
        %v6602 = vpop.permute.xlu0 %6601
        %6603 = vrot.lane.b32.xlu0 %v1115, 80
        %v6604 = vpop.permute.xlu0 %6603
        %6605 = vrot.lane.b32.xlu0 %v1120, 80
        %v6606 = vpop.permute.xlu0 %6605
        %6607 = vrot.lane.b32.xlu0 %v2154, 80
        %v6608 = vpop.permute.xlu0 %6607
        %6609 = vrot.lane.b32.xlu0 %v3233, 80
        %v6610 = vpop.permute.xlu0 %6609
        %6611 = vrot.lane.b32.xlu0 %v4023, 80
        %v6612 = vpop.permute.xlu0 %6611
        %6613 = vrot.lane.b32.xlu0 %v5238, 80
        %v6614 = vpop.permute.xlu0 %6613
        %6615 = vrot.lane.b32.xlu0 %v5555, 80
        %v6616 = vpop.permute.xlu0 %6615
        %6617 = vrot.lane.b32.xlu0 %v5557, 80
        %v6618 = vpop.permute.xlu0 %6617
        %6619 = vrot.lane.b32.xlu0 %v5556, 80
        %v6620 = vpop.permute.xlu0 %6619
        %6621 = vrot.lane.b32.xlu0 %v6584, 80
        %v6622 = vpop.permute.xlu0 %6621
        %6623 = vrot.lane.b32.xlu0 %v6586, 80
        %v6624 = vpop.permute.xlu0 %6623
        %6625 = vrot.lane.b32.xlu0 %v6585, 80
        %v6626 = vpop.permute.xlu0 %6625
        %v6647 = vrot.slane %v455, 5
        %v6648 = vsel %vm1218, %v6388, %v6647
        %6649 = vrot.lane.b32.xlu0 %v1252, 96
        %v6650 = vpop.permute.xlu0 %6649
        %6651 = vrot.lane.b32.xlu0 %v1257, 96
        %v6652 = vpop.permute.xlu0 %6651
        %6653 = vrot.lane.b32.xlu0 %v1262, 96
        %v6654 = vpop.permute.xlu0 %6653
        %6655 = vrot.lane.b32.xlu0 %v1267, 96
        %v6656 = vpop.permute.xlu0 %6655
        %6657 = vrot.lane.b32.xlu0 %v1272, 96
        %v6658 = vpop.permute.xlu0 %6657
        %6659 = vrot.lane.b32.xlu0 %v1277, 96
        %v6660 = vpop.permute.xlu0 %6659
        %6661 = vrot.lane.b32.xlu0 %v1282, 96
        %v6662 = vpop.permute.xlu0 %6661
        %6663 = vrot.lane.b32.xlu0 %v1287, 96
        %v6664 = vpop.permute.xlu0 %6663
        %6665 = vrot.lane.b32.xlu0 %v1292, 96
        %v6666 = vpop.permute.xlu0 %6665
        %6667 = vrot.lane.b32.xlu0 %v1297, 96
        %v6668 = vpop.permute.xlu0 %6667
        %6669 = vrot.lane.b32.xlu0 %v2255, 96
        %v6670 = vpop.permute.xlu0 %6669
        %6671 = vrot.lane.b32.xlu0 %v3292, 96
        %v6672 = vpop.permute.xlu0 %6671
        %6673 = vrot.lane.b32.xlu0 %v4172, 96
        %v6674 = vpop.permute.xlu0 %6673
        %6675 = vrot.lane.b32.xlu0 %v5261, 96
        %v6676 = vpop.permute.xlu0 %6675
        %6677 = vrot.lane.b32.xlu0 %v5580, 96
        %v6678 = vpop.permute.xlu0 %6677
        %6679 = vrot.lane.b32.xlu0 %v5579, 96
        %v6680 = vpop.permute.xlu0 %6679
        %6681 = vrot.lane.b32.xlu0 %v6648, 96
        %v6682 = vpop.permute.xlu0 %6681
        %6683 = vrot.lane.b32.xlu0 %v6647, 96
        %v6684 = vpop.permute.xlu0 %6683
        %v6705 = vrot.slane %v456, 5
        %v6706 = vrot.slane %v457, 5
        %v6707 = vsel %vm1218, %v6705, %v6706
        %6708 = vrot.lane.b32.xlu0 %v1255, 112
        %v6709 = vpop.permute.xlu0 %6708
        %6710 = vrot.lane.b32.xlu0 %v1260, 112
        %v6711 = vpop.permute.xlu0 %6710
        %6712 = vrot.lane.b32.xlu0 %v1265, 112
        %v6713 = vpop.permute.xlu0 %6712
        %6714 = vrot.lane.b32.xlu0 %v1270, 112
        %v6715 = vpop.permute.xlu0 %6714
        %6716 = vrot.lane.b32.xlu0 %v1275, 112
        %v6717 = vpop.permute.xlu0 %6716
        %6718 = vrot.lane.b32.xlu0 %v1280, 112
        %v6719 = vpop.permute.xlu0 %6718
        %6720 = vrot.lane.b32.xlu0 %v1285, 112
        %v6721 = vpop.permute.xlu0 %6720
        %6722 = vrot.lane.b32.xlu0 %v1290, 112
        %v6723 = vpop.permute.xlu0 %6722
        %6724 = vrot.lane.b32.xlu0 %v1295, 112
        %v6725 = vpop.permute.xlu0 %6724
        %6726 = vrot.lane.b32.xlu0 %v2253, 112
        %v6727 = vpop.permute.xlu0 %6726
        %6728 = vrot.lane.b32.xlu0 %v3290, 112
        %v6729 = vpop.permute.xlu0 %6728
        %6730 = vrot.lane.b32.xlu0 %v4170, 112
        %v6731 = vpop.permute.xlu0 %6730
        %6732 = vrot.lane.b32.xlu0 %v5259, 112
        %v6733 = vpop.permute.xlu0 %6732
        %6734 = vrot.lane.b32.xlu0 %v5577, 112
        %v6735 = vpop.permute.xlu0 %6734
        %6736 = vrot.lane.b32.xlu0 %v6387, 112
        %v6737 = vpop.permute.xlu0 %6736
        %6738 = vrot.lane.b32.xlu0 %v6389, 112
        %v6739 = vpop.permute.xlu0 %6738
        %6740 = vrot.lane.b32.xlu0 %v6388, 112
        %v6741 = vpop.permute.xlu0 %6740
        %6742 = vrot.lane.b32.xlu0 %v6705, 112
        %v6743 = vpop.permute.xlu0 %6742
        %6744 = vrot.lane.b32.xlu0 %v6707, 112
        %v6745 = vpop.permute.xlu0 %6744
        %6746 = vrot.lane.b32.xlu0 %v6706, 112
        %v6747 = vpop.permute.xlu0 %6746
        %v6768 = vsel %vm252, %v447, %v6127
        %v6769 = vsel %vm252, %v448, %v6129
        %v6770 = vsel %vm252, %v449, %v6131
        %v6771 = vsel %vm252, %v450, %v6133
        %v6772 = vsel %vm252, %v451, %v6135
        %v6773 = vsel %vm252, %v452, %v6137
        %v6774 = vsel %vm2486, %v6768, %v6150
        %v6775 = vsel %vm2486, %v6769, %v6152
        %v6776 = vsel %vm2486, %v6770, %v6154
        %v6777 = vsel %vm2486, %v6771, %v6156
        %v6778 = vsel %vm2486, %v6772, %v6158
        %v6779 = vsel %vm2486, %v6773, %v6160
        %v6780 = vsel %vm2519, %v5619, %v6170
        %v6781 = vsel %vm2519, %v5622, %v6172
        %v6782 = vsel %vm2519, %v5625, %v6174
        %v6783 = vsel %vm2519, %v6774, %v6176
        %v6784 = vsel %vm2519, %v6775, %v6178
        %v6785 = vsel %vm2519, %v6776, %v6180
        %v6786 = vsel %vm2519, %v6777, %v6182
        %v6787 = vsel %vm2519, %v6778, %v6184
        %v6788 = vsel %vm2519, %v6779, %v6186
        %v6789 = vsel %vm2552, %v5633, %v6197
        %v6790 = vsel %vm2552, %v5635, %v6199
        %v6791 = vsel %vm2552, %v5637, %v6201
        %v6792 = vsel %vm2552, %v5639, %v6203
        %v6793 = vsel %vm2552, %v5641, %v6205
        %v6794 = vsel %vm2552, %v5643, %v6207
        %v6795 = vsel %vm2552, %v5645, %v6209
        %v6796 = vsel %vm2552, %v5647, %v6211
        %v6797 = vsel %vm2552, %v5649, %v6213
        %v6798 = vsel %vm2552, %v5651, %v6215
        %v6799 = vsel %vm2552, %v5653, %v6217
        %v6800 = vsel %vm2552, %v6780, %v6219
        %v6801 = vsel %vm2552, %v5655, %v6221
        %v6802 = vsel %vm2552, %v5656, %v6223
        %v6803 = vsel %vm2552, %v6781, %v6225
        %v6804 = vsel %vm2552, %v5658, %v6227
        %v6805 = vsel %vm2552, %v5659, %v6229
        %v6806 = vsel %vm2552, %v6782, %v6231
        %v6807 = vsel %vm2552, %v5661, %v6233
        %v6808 = vsel %vm2552, %v5662, %v6235
        %v6809 = vsel %vm2552, %v6783, %v6237
        %v6810 = vsel %vm2552, %v6784, %v6239
        %v6811 = vsel %vm2552, %v6785, %v6241
        %v6812 = vsel %vm2552, %v6786, %v6243
        %v6813 = vsel %vm2552, %v6787, %v6245
        %v6814 = vsel %vm2552, %v6788, %v6247
        %v6815 = vsel %vm2585, %v2563, %v6275
        %v6816 = vsel %vm2585, %v6789, %v6277
        %v6817 = vsel %vm2585, %v2565, %v6279
        %v6818 = vsel %vm2585, %v6790, %v6281
        %v6819 = vsel %vm2585, %v2567, %v6283
        %v6820 = vsel %vm2585, %v6791, %v6285
        %v6821 = vsel %vm2585, %v2569, %v6287
        %v6822 = vsel %vm2585, %v6792, %v6289
        %v6823 = vsel %vm2585, %v2571, %v6291
        %v6824 = vsel %vm2585, %v6793, %v6293
        %v6825 = vsel %vm2585, %v2573, %v6295
        %v6826 = vsel %vm2585, %v6794, %v6297
        %v6827 = vsel %vm2585, %v2575, %v6299
        %v6828 = vsel %vm2585, %v6795, %v6301
        %v6829 = vsel %vm2585, %v2577, %v6303
        %v6830 = vsel %vm2585, %v6796, %v6305
        %v6831 = vsel %vm2585, %v2579, %v6307
        %v6832 = vsel %vm2585, %v6797, %v6309
        %v6833 = vsel %vm2585, %v2581, %v6311
        %v6834 = vsel %vm2585, %v6798, %v6313
        %v6835 = vsel %vm2585, %v2583, %v6315
        %v6836 = vsel %vm2585, %v6799, %v6317
        %v6837 = vsel %vm2585, %v6800, %v6319
        %v6838 = vsel %vm2585, %v6801, %v6321
        %v6839 = vsel %vm2585, %v6802, %v6323
        %v6840 = vsel %vm2585, %v6803, %v6325
        %v6841 = vsel %vm2585, %v6804, %v6327
        %v6842 = vsel %vm2585, %v6805, %v6329
        %v6843 = vsel %vm2585, %v6806, %v6331
        %v6844 = vsel %vm2585, %v6807, %v6333
        %v6845 = vsel %vm2585, %v6808, %v6335
        %v6846 = vsel %vm2585, %v6809, %v6337
        %v6847 = vsel %vm2585, %v6810, %v6339
        %v6848 = vsel %vm2585, %v6811, %v6341
        %v6849 = vsel %vm2585, %v6812, %v6343
        %v6850 = vsel %vm2585, %v6813, %v6345
        %v6851 = vsel %vm2585, %v6814, %v6347
        %v6852 = vsel %vm2618, %v6815, %v3303
        %v6853 = vsel %vm2618, %v2597, %v2278
        %v6854 = vsel %vm2618, %v6816, %v6391
        %v6855 = vsel %vm2618, %v6817, %v3305
        %v6856 = vsel %vm2618, %v2599, %v2282
        %v6857 = vsel %vm2618, %v6818, %v6393
        %v6858 = vsel %vm2618, %v6819, %v3307
        %v6859 = vsel %vm2618, %v2601, %v2286
        %v6860 = vsel %vm2618, %v6820, %v6395
        %v6861 = vsel %vm2618, %v6821, %v3309
        %v6862 = vsel %vm2618, %v2603, %v2290
        %v6863 = vsel %vm2618, %v6822, %v6397
        %v6864 = vsel %vm2618, %v6823, %v3311
        %v6865 = vsel %vm2618, %v2605, %v2294
        %v6866 = vsel %vm2618, %v6824, %v6399
        %v6867 = vsel %vm2618, %v6825, %v3313
        %v6868 = vsel %vm2618, %v2607, %v2298
        %v6869 = vsel %vm2618, %v6826, %v6401
        %v6870 = vsel %vm2618, %v6827, %v3315
        %v6871 = vsel %vm2618, %v2609, %v2302
        %v6872 = vsel %vm2618, %v6828, %v6403
        %v6873 = vsel %vm2618, %v6829, %v3317
        %v6874 = vsel %vm2618, %v2611, %v2306
        %v6875 = vsel %vm2618, %v6830, %v6405
        %v6876 = vsel %vm2618, %v6831, %v3319
        %v6877 = vsel %vm2618, %v2613, %v2310
        %v6878 = vsel %vm2618, %v6832, %v6407
        %v6879 = vsel %vm2618, %v6833, %v3321
        %v6880 = vsel %vm2618, %v2615, %v2314
        %v6881 = vsel %vm2618, %v6834, %v6409
        %v6882 = vsel %vm2618, %v6835, %v3323
        %v6883 = vsel %vm2618, %v2617, %v2318
        %v6884 = vsel %vm2618, %v6836, %v6411
        %v6885 = vsel %vm2618, %v6837, %v3325
        %v6886 = vsel %vm2618, %v6838, %v3327
        %v6887 = vsel %vm2618, %v6839, %v6413
        %v6888 = vsel %vm2618, %v6840, %v5264
        %v6889 = vsel %vm2618, %v6841, %v5266
        %v6890 = vsel %vm2618, %v6842, %v6415
        %v6891 = vsel %vm2618, %v6843, %v5270
        %v6892 = vsel %vm2618, %v6844, %v5272
        %v6893 = vsel %vm2618, %v6845, %v6417
        %v6894 = vsel %vm2618, %v6846, %v6419
        %v6895 = vsel %vm2618, %v6847, %v6421
        %v6896 = vsel %vm2618, %v6848, %v6423
        %v6897 = vsel %vm2618, %v6849, %v6425
        %v6898 = vsel %vm2618, %v6850, %v6427
        %v6899 = vsel %vm2618, %v6851, %v6429
        %v6900 = vsel %vm2651, %v6852, %v3362
        %v6901 = vsel %vm2651, %v6853, %v2379
        %v6902 = vsel %vm2651, %v6854, %v2381
        %v6903 = vsel %vm2651, %v6855, %v3364
        %v6904 = vsel %vm2651, %v6856, %v2383
        %v6905 = vsel %vm2651, %v6857, %v2385
        %v6906 = vsel %vm2651, %v6858, %v3366
        %v6907 = vsel %vm2651, %v6859, %v2387
        %v6908 = vsel %vm2651, %v6860, %v2389
        %v6909 = vsel %vm2651, %v6861, %v3368
        %v6910 = vsel %vm2651, %v6862, %v2391
        %v6911 = vsel %vm2651, %v6863, %v2393
        %v6912 = vsel %vm2651, %v6864, %v3370
        %v6913 = vsel %vm2651, %v6865, %v2395
        %v6914 = vsel %vm2651, %v6866, %v2397
        %v6915 = vsel %vm2651, %v6867, %v3372
        %v6916 = vsel %vm2651, %v6868, %v2399
        %v6917 = vsel %vm2651, %v6869, %v2401
        %v6918 = vsel %vm2651, %v6870, %v3374
        %v6919 = vsel %vm2651, %v6871, %v2403
        %v6920 = vsel %vm2651, %v6872, %v2405
        %v6921 = vsel %vm2651, %v6873, %v3376
        %v6922 = vsel %vm2651, %v6874, %v2407
        %v6923 = vsel %vm2651, %v6875, %v2409
        %v6924 = vsel %vm2651, %v6876, %v3378
        %v6925 = vsel %vm2651, %v6877, %v2411
        %v6926 = vsel %vm2651, %v6878, %v2413
        %v6927 = vsel %vm2651, %v6879, %v3380
        %v6928 = vsel %vm2651, %v6880, %v2415
        %v6929 = vsel %vm2651, %v6881, %v2417
        %v6930 = vsel %vm2651, %v6882, %v3382
        %v6931 = vsel %vm2651, %v6883, %v2419
        %v6932 = vsel %vm2651, %v6884, %v2421
        %v6933 = vsel %vm2651, %v6885, %v3384
        %v6934 = vsel %vm2651, %v6886, %v3386
        %v6935 = vsel %vm2651, %v6887, %v3388
        %v6936 = vsel %vm2651, %v6888, %v5292
        %v6937 = vsel %vm2651, %v6889, %v5294
        %v6938 = vsel %vm2651, %v6890, %v5296
        %v6939 = vsel %vm2651, %v6891, %v5298
        %v6940 = vsel %vm2651, %v6892, %v5300
        %v6941 = vsel %vm2651, %v6893, %v5302
        %v6942 = vsel %vm2651, %v6894, %v6462
        %v6943 = vsel %vm2651, %v6895, %v6464
        %v6944 = vsel %vm2651, %v6896, %v6466
        %v6945 = vsel %vm2651, %v6897, %v6468
        %v6946 = vsel %vm2651, %v6898, %v6470
        %v6947 = vsel %vm2651, %v6899, %v6472
        %v6948 = vsel %vm252, %v6479, %v6496
        %v6949 = vsel %vm252, %v6481, %v6498
        %v6950 = vsel %vm252, %v6483, %v6500
        %v6951 = vsel %vm252, %v6484, %v6502
        %v6952 = vsel %vm252, %v6486, %v6504
        %v6953 = vsel %vm252, %v6488, %v6506
        %v6954 = vsel %vm2486, %v6948, %v6519
        %v6955 = vsel %vm2486, %v6949, %v6521
        %v6956 = vsel %vm2486, %v6950, %v6523
        %v6957 = vsel %vm2486, %v6951, %v6525
        %v6958 = vsel %vm2486, %v6952, %v6527
        %v6959 = vsel %vm2486, %v6953, %v6529
        %v6960 = vsel %vm2519, %v6954, %v6542
        %v6961 = vsel %vm2519, %v6955, %v6544
        %v6962 = vsel %vm2519, %v6956, %v6546
        %v6963 = vsel %vm2519, %v6957, %v6548
        %v6964 = vsel %vm2519, %v6958, %v6550
        %v6965 = vsel %vm2519, %v6959, %v6552
        %v6966 = vsel %vm2552, %v5887, %v2076
        %v6967 = vsel %vm2552, %v5890, %v2080
        %v6968 = vsel %vm2552, %v5893, %v2084
        %v6969 = vsel %vm2552, %v5896, %v2088
        %v6970 = vsel %vm2552, %v5899, %v2092
        %v6971 = vsel %vm2552, %v5902, %v2096
        %v6972 = vsel %vm2552, %v5905, %v2100
        %v6973 = vsel %vm2552, %v5908, %v2104
        %v6974 = vsel %vm2552, %v5911, %v2108
        %v6975 = vsel %vm2552, %v5914, %v2112
        %v6976 = vsel %vm2552, %v5917, %v2116
        %v6977 = vsel %vm2552, %v5920, %v3209
        %v6978 = vsel %vm2552, %v5923, %v5205
        %v6979 = vsel %vm2552, %v5926, %v5211
        %v6980 = vsel %vm2552, %v6960, %v6565
        %v6981 = vsel %vm2552, %v6961, %v6567
        %v6982 = vsel %vm2552, %v6962, %v6569
        %v6983 = vsel %vm2552, %v6963, %v6571
        %v6984 = vsel %vm2552, %v6964, %v6573
        %v6985 = vsel %vm2552, %v6965, %v6575
        %v6986 = vsel %vm2585, %v6966, %v2177
        %v6987 = vsel %vm2585, %v5936, %v2179
        %v6988 = vsel %vm2585, %v5937, %v6588
        %v6989 = vsel %vm2585, %v6967, %v2181
        %v6990 = vsel %vm2585, %v5939, %v2183
        %v6991 = vsel %vm2585, %v5940, %v6590
        %v6992 = vsel %vm2585, %v6968, %v2185
        %v6993 = vsel %vm2585, %v5942, %v2187
        %v6994 = vsel %vm2585, %v5943, %v6592
        %v6995 = vsel %vm2585, %v6969, %v2189
        %v6996 = vsel %vm2585, %v5945, %v2191
        %v6997 = vsel %vm2585, %v5946, %v6594
        %v6998 = vsel %vm2585, %v6970, %v2193
        %v6999 = vsel %vm2585, %v5948, %v2195
        %v7000 = vsel %vm2585, %v5949, %v6596
        %v7001 = vsel %vm2585, %v6971, %v2197
        %v7002 = vsel %vm2585, %v5951, %v2199
        %v7003 = vsel %vm2585, %v5952, %v6598
        %v7004 = vsel %vm2585, %v6972, %v2201
        %v7005 = vsel %vm2585, %v5954, %v2203
        %v7006 = vsel %vm2585, %v5955, %v6600
        %v7007 = vsel %vm2585, %v6973, %v2205
        %v7008 = vsel %vm2585, %v5957, %v2207
        %v7009 = vsel %vm2585, %v5958, %v6602
        %v7010 = vsel %vm2585, %v6974, %v2209
        %v7011 = vsel %vm2585, %v5960, %v2211
        %v7012 = vsel %vm2585, %v5961, %v6604
        %v7013 = vsel %vm2585, %v6975, %v2213
        %v7014 = vsel %vm2585, %v5963, %v2215
        %v7015 = vsel %vm2585, %v5964, %v6606
        %v7016 = vsel %vm2585, %v6976, %v2217
        %v7017 = vsel %vm2585, %v5966, %v2219
        %v7018 = vsel %vm2585, %v5967, %v6608
        %v7019 = vsel %vm2585, %v6977, %v3268
        %v7020 = vsel %vm2585, %v5969, %v3270
        %v7021 = vsel %vm2585, %v5970, %v6610
        %v7022 = vsel %vm2585, %v6978, %v5243
        %v7023 = vsel %vm2585, %v5972, %v5245
        %v7024 = vsel %vm2585, %v5973, %v6612
        %v7025 = vsel %vm2585, %v6979, %v5249
        %v7026 = vsel %vm2585, %v5975, %v5251
        %v7027 = vsel %vm2585, %v5976, %v6614
        %v7028 = vsel %vm2585, %v6980, %v6616
        %v7029 = vsel %vm2585, %v6981, %v6618
        %v7030 = vsel %vm2585, %v6982, %v6620
        %v7031 = vsel %vm2585, %v6983, %v6622
        %v7032 = vsel %vm2585, %v6984, %v6624
        %v7033 = vsel %vm2585, %v6985, %v6626
        %v7034 = vsel %vm2618, %v6986, %v6391
        %v7035 = vsel %vm2618, %v6987, %v2280
        %v7036 = vsel %vm2618, %v6988, %v6650
        %v7037 = vsel %vm2618, %v6989, %v6393
        %v7038 = vsel %vm2618, %v6990, %v2284
        %v7039 = vsel %vm2618, %v6991, %v6652
        %v7040 = vsel %vm2618, %v6992, %v6395
        %v7041 = vsel %vm2618, %v6993, %v2288
        %v7042 = vsel %vm2618, %v6994, %v6654
        %v7043 = vsel %vm2618, %v6995, %v6397
        %v7044 = vsel %vm2618, %v6996, %v2292
        %v7045 = vsel %vm2618, %v6997, %v6656
        %v7046 = vsel %vm2618, %v6998, %v6399
        %v7047 = vsel %vm2618, %v6999, %v2296
        %v7048 = vsel %vm2618, %v7000, %v6658
        %v7049 = vsel %vm2618, %v7001, %v6401
        %v7050 = vsel %vm2618, %v7002, %v2300
        %v7051 = vsel %vm2618, %v7003, %v6660
        %v7052 = vsel %vm2618, %v7004, %v6403
        %v7053 = vsel %vm2618, %v7005, %v2304
        %v7054 = vsel %vm2618, %v7006, %v6662
        %v7055 = vsel %vm2618, %v7007, %v6405
        %v7056 = vsel %vm2618, %v7008, %v2308
        %v7057 = vsel %vm2618, %v7009, %v6664
        %v7058 = vsel %vm2618, %v7010, %v6407
        %v7059 = vsel %vm2618, %v7011, %v2312
        %v7060 = vsel %vm2618, %v7012, %v6666
        %v7061 = vsel %vm2618, %v7013, %v6409
        %v7062 = vsel %vm2618, %v7014, %v2316
        %v7063 = vsel %vm2618, %v7015, %v6668
        %v7064 = vsel %vm2618, %v7016, %v6411
        %v7065 = vsel %vm2618, %v7017, %v2320
        %v7066 = vsel %vm2618, %v7018, %v6670
        %v7067 = vsel %vm2618, %v7019, %v6413
        %v7068 = vsel %vm2618, %v7020, %v3329
        %v7069 = vsel %vm2618, %v7021, %v6672
        %v7070 = vsel %vm2618, %v7022, %v6415
        %v7071 = vsel %vm2618, %v7023, %v5268
        %v7072 = vsel %vm2618, %v7024, %v6674
        %v7073 = vsel %vm2618, %v7025, %v6417
        %v7074 = vsel %vm2618, %v7026, %v5274
        %v7075 = vsel %vm2618, %v7027, %v6676
        %v7076 = vsel %vm2618, %v7028, %v6423
        %v7077 = vsel %vm2618, %v7029, %v6678
        %v7078 = vsel %vm2618, %v7030, %v6680
        %v7079 = vsel %vm2618, %v7031, %v6429
        %v7080 = vsel %vm2618, %v7032, %v6682
        %v7081 = vsel %vm2618, %v7033, %v6684
        %v7082 = vsel %vm2651, %v7034, %v4199
        %v7083 = vsel %vm2651, %v7035, %v4201
        %v7084 = vsel %vm2651, %v7036, %v6709
        %v7085 = vsel %vm2651, %v7037, %v4205
        %v7086 = vsel %vm2651, %v7038, %v4207
        %v7087 = vsel %vm2651, %v7039, %v6711
        %v7088 = vsel %vm2651, %v7040, %v4211
        %v7089 = vsel %vm2651, %v7041, %v4213
        %v7090 = vsel %vm2651, %v7042, %v6713
        %v7091 = vsel %vm2651, %v7043, %v4217
        %v7092 = vsel %vm2651, %v7044, %v4219
        %v7093 = vsel %vm2651, %v7045, %v6715
        %v7094 = vsel %vm2651, %v7046, %v4223
        %v7095 = vsel %vm2651, %v7047, %v4225
        %v7096 = vsel %vm2651, %v7048, %v6717
        %v7097 = vsel %vm2651, %v7049, %v4229
        %v7098 = vsel %vm2651, %v7050, %v4231
        %v7099 = vsel %vm2651, %v7051, %v6719
        %v7100 = vsel %vm2651, %v7052, %v4235
        %v7101 = vsel %vm2651, %v7053, %v4237
        %v7102 = vsel %vm2651, %v7054, %v6721
        %v7103 = vsel %vm2651, %v7055, %v4241
        %v7104 = vsel %vm2651, %v7056, %v4243
        %v7105 = vsel %vm2651, %v7057, %v6723
        %v7106 = vsel %vm2651, %v7058, %v4247
        %v7107 = vsel %vm2651, %v7059, %v4249
        %v7108 = vsel %vm2651, %v7060, %v6725
        %v7109 = vsel %vm2651, %v7061, %v4253
        %v7110 = vsel %vm2651, %v7062, %v4255
        %v7111 = vsel %vm2651, %v7063, %v6727
        %v7112 = vsel %vm2651, %v7064, %v4259
        %v7113 = vsel %vm2651, %v7065, %v4261
        %v7114 = vsel %vm2651, %v7066, %v6729
        %v7115 = vsel %vm2651, %v7067, %v4265
        %v7116 = vsel %vm2651, %v7068, %v4267
        %v7117 = vsel %vm2651, %v7069, %v6731
        %v7118 = vsel %vm2651, %v7070, %v5582
        %v7119 = vsel %vm2651, %v7071, %v5584
        %v7120 = vsel %vm2651, %v7072, %v6733
        %v7121 = vsel %vm2651, %v7073, %v5588
        %v7122 = vsel %vm2651, %v7074, %v5590
        %v7123 = vsel %vm2651, %v7075, %v6735
        %v7124 = vsel %vm2651, %v7076, %v6737
        %v7125 = vsel %vm2651, %v7077, %v6739
        %v7126 = vsel %vm2651, %v7078, %v6741
        %v7127 = vsel %vm2651, %v7079, %v6743
        %v7128 = vsel %vm2651, %v7080, %v6745
        %v7129 = vsel %vm2651, %v7081, %v6747
        %v7131 = vrot.slane %v456, 1
        %v7132 = vrot.slane %v457, 1
        %v7133 = vsel %vm510, %v7131, %v7132
        %v7134 = vrot.slane %v458, 1
        %v7135 = vsel %vm510, %v7132, %v7134
        %7136 = vrot.lane.b32.xlu0 %v6515, 16
        %v7137 = vpop.permute.xlu0 %7136
        %7138 = vrot.lane.b32.xlu0 %v6517, 16
        %v7139 = vpop.permute.xlu0 %7138
        %7140 = vrot.lane.b32.xlu0 %v6516, 16
        %v7141 = vpop.permute.xlu0 %7140
        %7142 = vrot.lane.b32.xlu0 %v7133, 16
        %v7143 = vpop.permute.xlu0 %7142
        %7144 = vrot.lane.b32.xlu0 %v7135, 16
        %v7145 = vpop.permute.xlu0 %7144
        %7146 = vrot.lane.b32.xlu0 %v7134, 16
        %v7147 = vpop.permute.xlu0 %7146
        %v7154 = vrot.slane %v456, 2
        %v7155 = vrot.slane %v457, 2
        %v7156 = vsel %vm687, %v7154, %v7155
        %v7157 = vrot.slane %v458, 2
        %v7158 = vsel %vm687, %v7155, %v7157
        %7159 = vrot.lane.b32.xlu0 %v6538, 32
        %v7160 = vpop.permute.xlu0 %7159
        %7161 = vrot.lane.b32.xlu0 %v6540, 32
        %v7162 = vpop.permute.xlu0 %7161
        %7163 = vrot.lane.b32.xlu0 %v6539, 32
        %v7164 = vpop.permute.xlu0 %7163
        %7165 = vrot.lane.b32.xlu0 %v7156, 32
        %v7166 = vpop.permute.xlu0 %7165
        %7167 = vrot.lane.b32.xlu0 %v7158, 32
        %v7168 = vpop.permute.xlu0 %7167
        %7169 = vrot.lane.b32.xlu0 %v7157, 32
        %v7170 = vpop.permute.xlu0 %7169
        %v7177 = vrot.slane %v456, 3
        %v7178 = vrot.slane %v457, 3
        %v7179 = vsel %vm864, %v7177, %v7178
        %v7180 = vrot.slane %v458, 3
        %v7181 = vsel %vm864, %v7178, %v7180
        %7182 = vrot.lane.b32.xlu0 %v6561, 48
        %v7183 = vpop.permute.xlu0 %7182
        %7184 = vrot.lane.b32.xlu0 %v6563, 48
        %v7185 = vpop.permute.xlu0 %7184
        %7186 = vrot.lane.b32.xlu0 %v6562, 48
        %v7187 = vpop.permute.xlu0 %7186
        %7188 = vrot.lane.b32.xlu0 %v7179, 48
        %v7189 = vpop.permute.xlu0 %7188
        %7190 = vrot.lane.b32.xlu0 %v7181, 48
        %v7191 = vpop.permute.xlu0 %7190
        %7192 = vrot.lane.b32.xlu0 %v7180, 48
        %v7193 = vpop.permute.xlu0 %7192
        %v7200 = vrot.slane %v456, 4
        %v7201 = vrot.slane %v457, 4
        %v7202 = vsel %vm1041, %v7200, %v7201
        %v7203 = vrot.slane %v458, 4
        %v7204 = vsel %vm1041, %v7201, %v7203
        %7205 = vrot.lane.b32.xlu0 %v6584, 64
        %v7206 = vpop.permute.xlu0 %7205
        %7207 = vrot.lane.b32.xlu0 %v6586, 64
        %v7208 = vpop.permute.xlu0 %7207
        %7209 = vrot.lane.b32.xlu0 %v6585, 64
        %v7210 = vpop.permute.xlu0 %7209
        %7211 = vrot.lane.b32.xlu0 %v7202, 64
        %v7212 = vpop.permute.xlu0 %7211
        %7213 = vrot.lane.b32.xlu0 %v7204, 64
        %v7214 = vpop.permute.xlu0 %7213
        %7215 = vrot.lane.b32.xlu0 %v7203, 64
        %v7216 = vpop.permute.xlu0 %7215
        %v7223 = vrot.slane %v458, 5
        %v7224 = vsel %vm1218, %v6706, %v7223
        %7225 = vrot.lane.b32.xlu0 %v2254, 80
        %v7226 = vpop.permute.xlu0 %7225
        %7227 = vrot.lane.b32.xlu0 %v3291, 80
        %v7228 = vpop.permute.xlu0 %7227
        %7229 = vrot.lane.b32.xlu0 %v4171, 80
        %v7230 = vpop.permute.xlu0 %7229
        %7231 = vrot.lane.b32.xlu0 %v5260, 80
        %v7232 = vpop.permute.xlu0 %7231
        %7233 = vrot.lane.b32.xlu0 %v5578, 80
        %v7234 = vpop.permute.xlu0 %7233
        %7235 = vrot.lane.b32.xlu0 %v6389, 80
        %v7236 = vpop.permute.xlu0 %7235
        %7237 = vrot.lane.b32.xlu0 %v6648, 80
        %v7238 = vpop.permute.xlu0 %7237
        %7239 = vrot.lane.b32.xlu0 %v6647, 80
        %v7240 = vpop.permute.xlu0 %7239
        %7241 = vrot.lane.b32.xlu0 %v6707, 80
        %v7242 = vpop.permute.xlu0 %7241
        %7243 = vrot.lane.b32.xlu0 %v7224, 80
        %v7244 = vpop.permute.xlu0 %7243
        %7245 = vrot.lane.b32.xlu0 %v7223, 80
        %v7246 = vpop.permute.xlu0 %7245
        %v7258 = vrot.slane %v456, 6
        %v7259 = vrot.slane %v457, 6
        %v7260 = vsel %vm1395, %v7258, %v7259
        %v7261 = vrot.slane %v458, 6
        %v7262 = vsel %vm1395, %v7259, %v7261
        %7263 = vrot.lane.b32.xlu0 %v1434, 96
        %v7264 = vpop.permute.xlu0 %7263
        %7265 = vrot.lane.b32.xlu0 %v1439, 96
        %v7266 = vpop.permute.xlu0 %7265
        %7267 = vrot.lane.b32.xlu0 %v1444, 96
        %v7268 = vpop.permute.xlu0 %7267
        %7269 = vrot.lane.b32.xlu0 %v1449, 96
        %v7270 = vpop.permute.xlu0 %7269
        %7271 = vrot.lane.b32.xlu0 %v1454, 96
        %v7272 = vpop.permute.xlu0 %7271
        %7273 = vrot.lane.b32.xlu0 %v1459, 96
        %v7274 = vpop.permute.xlu0 %7273
        %7275 = vrot.lane.b32.xlu0 %v1464, 96
        %v7276 = vpop.permute.xlu0 %7275
        %7277 = vrot.lane.b32.xlu0 %v1469, 96
        %v7278 = vpop.permute.xlu0 %7277
        %7279 = vrot.lane.b32.xlu0 %v1474, 96
        %v7280 = vpop.permute.xlu0 %7279
        %7281 = vrot.lane.b32.xlu0 %v2355, 96
        %v7282 = vpop.permute.xlu0 %7281
        %7283 = vrot.lane.b32.xlu0 %v2357, 96
        %v7284 = vpop.permute.xlu0 %7283
        %7285 = vrot.lane.b32.xlu0 %v2356, 96
        %v7286 = vpop.permute.xlu0 %7285
        %7287 = vrot.lane.b32.xlu0 %v3350, 96
        %v7288 = vpop.permute.xlu0 %7287
        %7289 = vrot.lane.b32.xlu0 %v3352, 96
        %v7290 = vpop.permute.xlu0 %7289
        %7291 = vrot.lane.b32.xlu0 %v3351, 96
        %v7292 = vpop.permute.xlu0 %7291
        %7293 = vrot.lane.b32.xlu0 %v5283, 96
        %v7294 = vpop.permute.xlu0 %7293
        %7295 = vrot.lane.b32.xlu0 %v5285, 96
        %v7296 = vpop.permute.xlu0 %7295
        %7297 = vrot.lane.b32.xlu0 %v5284, 96
        %v7298 = vpop.permute.xlu0 %7297
        %7299 = vrot.lane.b32.xlu0 %v5288, 96
        %v7300 = vpop.permute.xlu0 %7299
        %7301 = vrot.lane.b32.xlu0 %v5290, 96
        %v7302 = vpop.permute.xlu0 %7301
        %7303 = vrot.lane.b32.xlu0 %v5289, 96
        %v7304 = vpop.permute.xlu0 %7303
        %7305 = vrot.lane.b32.xlu0 %v6453, 96
        %v7306 = vpop.permute.xlu0 %7305
        %7307 = vrot.lane.b32.xlu0 %v6455, 96
        %v7308 = vpop.permute.xlu0 %7307
        %7309 = vrot.lane.b32.xlu0 %v6454, 96
        %v7310 = vpop.permute.xlu0 %7309
        %7311 = vrot.lane.b32.xlu0 %v6458, 96
        %v7312 = vpop.permute.xlu0 %7311
        %7313 = vrot.lane.b32.xlu0 %v6460, 96
        %v7314 = vpop.permute.xlu0 %7313
        %7315 = vrot.lane.b32.xlu0 %v6459, 96
        %v7316 = vpop.permute.xlu0 %7315
        %7317 = vrot.lane.b32.xlu0 %v7260, 96
        %v7318 = vpop.permute.xlu0 %7317
        %7319 = vrot.lane.b32.xlu0 %v7262, 96
        %v7320 = vpop.permute.xlu0 %7319
        %7321 = vrot.lane.b32.xlu0 %v7261, 96
        %v7322 = vpop.permute.xlu0 %7321
        %v7353 = vrot.slane %v457, 7
        %v7354 = vrot.slane %v458, 7
        %v7355 = vsel %vm1572, %v7353, %v7354
        %7356 = vrot.lane.b32.xlu0 %v1609, 112
        %v7357 = vpop.permute.xlu0 %7356
        %7358 = vrot.lane.b32.xlu0 %v1611, 112
        %v7359 = vpop.permute.xlu0 %7358
        %7360 = vrot.lane.b32.xlu0 %v1614, 112
        %v7361 = vpop.permute.xlu0 %7360
        %7362 = vrot.lane.b32.xlu0 %v1616, 112
        %v7363 = vpop.permute.xlu0 %7362
        %7364 = vrot.lane.b32.xlu0 %v1619, 112
        %v7365 = vpop.permute.xlu0 %7364
        %7366 = vrot.lane.b32.xlu0 %v1621, 112
        %v7367 = vpop.permute.xlu0 %7366
        %7368 = vrot.lane.b32.xlu0 %v1624, 112
        %v7369 = vpop.permute.xlu0 %7368
        %7370 = vrot.lane.b32.xlu0 %v1626, 112
        %v7371 = vpop.permute.xlu0 %7370
        %7372 = vrot.lane.b32.xlu0 %v1629, 112
        %v7373 = vpop.permute.xlu0 %7372
        %7374 = vrot.lane.b32.xlu0 %v1631, 112
        %v7375 = vpop.permute.xlu0 %7374
        %7376 = vrot.lane.b32.xlu0 %v1634, 112
        %v7377 = vpop.permute.xlu0 %7376
        %7378 = vrot.lane.b32.xlu0 %v1636, 112
        %v7379 = vpop.permute.xlu0 %7378
        %7380 = vrot.lane.b32.xlu0 %v1639, 112
        %v7381 = vpop.permute.xlu0 %7380
        %7382 = vrot.lane.b32.xlu0 %v1641, 112
        %v7383 = vpop.permute.xlu0 %7382
        %7384 = vrot.lane.b32.xlu0 %v1644, 112
        %v7385 = vpop.permute.xlu0 %7384
        %7386 = vrot.lane.b32.xlu0 %v1646, 112
        %v7387 = vpop.permute.xlu0 %7386
        %7388 = vrot.lane.b32.xlu0 %v1649, 112
        %v7389 = vpop.permute.xlu0 %7388
        %7390 = vrot.lane.b32.xlu0 %v1651, 112
        %v7391 = vpop.permute.xlu0 %7390
        %7392 = vrot.lane.b32.xlu0 %v3408, 112
        %v7393 = vpop.permute.xlu0 %7392
        %7394 = vrot.lane.b32.xlu0 %v3411, 112
        %v7395 = vpop.permute.xlu0 %7394
        %7396 = vrot.lane.b32.xlu0 %v3410, 112
        %v7397 = vpop.permute.xlu0 %7396
        %7398 = vrot.lane.b32.xlu0 %v3413, 112
        %v7399 = vpop.permute.xlu0 %7398
        %7400 = vrot.lane.b32.xlu0 %v3416, 112
        %v7401 = vpop.permute.xlu0 %7400
        %7402 = vrot.lane.b32.xlu0 %v3415, 112
        %v7403 = vpop.permute.xlu0 %7402
        %7404 = vrot.lane.b32.xlu0 %v5310, 112
        %v7405 = vpop.permute.xlu0 %7404
        %7406 = vrot.lane.b32.xlu0 %v5313, 112
        %v7407 = vpop.permute.xlu0 %7406
        %7408 = vrot.lane.b32.xlu0 %v5312, 112
        %v7409 = vpop.permute.xlu0 %7408
        %7410 = vrot.lane.b32.xlu0 %v5315, 112
        %v7411 = vpop.permute.xlu0 %7410
        %7412 = vrot.lane.b32.xlu0 %v5318, 112
        %v7413 = vpop.permute.xlu0 %7412
        %7414 = vrot.lane.b32.xlu0 %v5317, 112
        %v7415 = vpop.permute.xlu0 %7414
        %7416 = vrot.lane.b32.xlu0 %v6480, 112
        %v7417 = vpop.permute.xlu0 %7416
        %7418 = vrot.lane.b32.xlu0 %v6483, 112
        %v7419 = vpop.permute.xlu0 %7418
        %7420 = vrot.lane.b32.xlu0 %v6482, 112
        %v7421 = vpop.permute.xlu0 %7420
        %7422 = vrot.lane.b32.xlu0 %v6485, 112
        %v7423 = vpop.permute.xlu0 %7422
        %7424 = vrot.lane.b32.xlu0 %v6488, 112
        %v7425 = vpop.permute.xlu0 %7424
        %7426 = vrot.lane.b32.xlu0 %v6487, 112
        %v7427 = vpop.permute.xlu0 %7426
        %7428 = vrot.lane.b32.xlu0 %v7353, 112
        %v7429 = vpop.permute.xlu0 %7428
        %7430 = vrot.lane.b32.xlu0 %v7355, 112
        %v7431 = vpop.permute.xlu0 %7430
        %7432 = vrot.lane.b32.xlu0 %v7354, 112
        %v7433 = vpop.permute.xlu0 %7432
        %v7475 = vrot.slane %v456, 7
        %v7476 = vsel %vm1572, %v7475, %v7353
        %v7477 = vrot.slane %v459, 7
        %v7478 = vrot.slane %v460, 7
        %v7479 = vsel %vm1572, %v7477, %v7478
        %7501 = vrot.lane.b32.xlu0 %v456, 16
        %v7502 = vpop.permute.xlu0 %7501
        %7503 = vrot.lane.b32.xlu0 %v457, 16
        %v7504 = vpop.permute.xlu0 %7503
        %7505 = vrot.lane.b32.xlu0 %v458, 16
        %v7506 = vpop.permute.xlu0 %7505
        %7507 = vrot.lane.b32.xlu0 %v459, 16
        %v7508 = vpop.permute.xlu0 %7507
        %7509 = vrot.lane.b32.xlu0 %v460, 16
        %v7510 = vpop.permute.xlu0 %7509
        %7511 = vrot.lane.b32.xlu0 %v461, 16
        %v7512 = vpop.permute.xlu0 %7511
        %v7519 = vrot.slane %v459, 1
        %v7520 = vrot.slane %v460, 1
        %v7521 = vsel %vm510, %v7519, %v7520
        %v7522 = vrot.slane %v461, 1
        %v7523 = vsel %vm510, %v7520, %v7522
        %7524 = vrot.lane.b32.xlu0 %v7133, 32
        %v7525 = vpop.permute.xlu0 %7524
        %7526 = vrot.lane.b32.xlu0 %v7135, 32
        %v7527 = vpop.permute.xlu0 %7526
        %7528 = vrot.lane.b32.xlu0 %v7134, 32
        %v7529 = vpop.permute.xlu0 %7528
        %7530 = vrot.lane.b32.xlu0 %v7521, 32
        %v7531 = vpop.permute.xlu0 %7530
        %7532 = vrot.lane.b32.xlu0 %v7523, 32
        %v7533 = vpop.permute.xlu0 %7532
        %7534 = vrot.lane.b32.xlu0 %v7522, 32
        %v7535 = vpop.permute.xlu0 %7534
        %v7542 = vrot.slane %v459, 2
        %v7543 = vrot.slane %v460, 2
        %v7544 = vsel %vm687, %v7542, %v7543
        %v7545 = vrot.slane %v461, 2
        %v7546 = vsel %vm687, %v7543, %v7545
        %7547 = vrot.lane.b32.xlu0 %v7156, 48
        %v7548 = vpop.permute.xlu0 %7547
        %7549 = vrot.lane.b32.xlu0 %v7158, 48
        %v7550 = vpop.permute.xlu0 %7549
        %7551 = vrot.lane.b32.xlu0 %v7157, 48
        %v7552 = vpop.permute.xlu0 %7551
        %7553 = vrot.lane.b32.xlu0 %v7544, 48
        %v7554 = vpop.permute.xlu0 %7553
        %7555 = vrot.lane.b32.xlu0 %v7546, 48
        %v7556 = vpop.permute.xlu0 %7555
        %7557 = vrot.lane.b32.xlu0 %v7545, 48
        %v7558 = vpop.permute.xlu0 %7557
        %v7565 = vrot.slane %v459, 3
        %v7566 = vrot.slane %v460, 3
        %v7567 = vsel %vm864, %v7565, %v7566
        %v7568 = vrot.slane %v461, 3
        %v7569 = vsel %vm864, %v7566, %v7568
        %7570 = vrot.lane.b32.xlu0 %v7179, 64
        %v7571 = vpop.permute.xlu0 %7570
        %7572 = vrot.lane.b32.xlu0 %v7181, 64
        %v7573 = vpop.permute.xlu0 %7572
        %7574 = vrot.lane.b32.xlu0 %v7180, 64
        %v7575 = vpop.permute.xlu0 %7574
        %7576 = vrot.lane.b32.xlu0 %v7567, 64
        %v7577 = vpop.permute.xlu0 %7576
        %7578 = vrot.lane.b32.xlu0 %v7569, 64
        %v7579 = vpop.permute.xlu0 %7578
        %7580 = vrot.lane.b32.xlu0 %v7568, 64
        %v7581 = vpop.permute.xlu0 %7580
        %v7588 = vrot.slane %v459, 4
        %v7589 = vrot.slane %v460, 4
        %v7590 = vsel %vm1041, %v7588, %v7589
        %v7591 = vrot.slane %v461, 4
        %v7592 = vsel %vm1041, %v7589, %v7591
        %7593 = vrot.lane.b32.xlu0 %v7202, 80
        %v7594 = vpop.permute.xlu0 %7593
        %7595 = vrot.lane.b32.xlu0 %v7204, 80
        %v7596 = vpop.permute.xlu0 %7595
        %7597 = vrot.lane.b32.xlu0 %v7203, 80
        %v7598 = vpop.permute.xlu0 %7597
        %7599 = vrot.lane.b32.xlu0 %v7590, 80
        %v7600 = vpop.permute.xlu0 %7599
        %7601 = vrot.lane.b32.xlu0 %v7592, 80
        %v7602 = vpop.permute.xlu0 %7601
        %7603 = vrot.lane.b32.xlu0 %v7591, 80
        %v7604 = vpop.permute.xlu0 %7603
        %v7611 = vrot.slane %v459, 5
        %v7612 = vrot.slane %v460, 5
        %v7613 = vsel %vm1218, %v7611, %v7612
        %v7614 = vrot.slane %v461, 5
        %v7615 = vsel %vm1218, %v7612, %v7614
        %7616 = vrot.lane.b32.xlu0 %v6707, 96
        %v7617 = vpop.permute.xlu0 %7616
        %7618 = vrot.lane.b32.xlu0 %v7224, 96
        %v7619 = vpop.permute.xlu0 %7618
        %7620 = vrot.lane.b32.xlu0 %v7223, 96
        %v7621 = vpop.permute.xlu0 %7620
        %7622 = vrot.lane.b32.xlu0 %v7613, 96
        %v7623 = vpop.permute.xlu0 %7622
        %7624 = vrot.lane.b32.xlu0 %v7615, 96
        %v7625 = vpop.permute.xlu0 %7624
        %7626 = vrot.lane.b32.xlu0 %v7614, 96
        %v7627 = vpop.permute.xlu0 %7626
        %v7634 = vrot.slane %v459, 6
        %v7635 = vrot.slane %v460, 6
        %v7636 = vsel %vm1395, %v7634, %v7635
        %v7637 = vrot.slane %v461, 6
        %v7638 = vsel %vm1395, %v7635, %v7637
        %7639 = vrot.lane.b32.xlu0 %v1439, 112
        %v7640 = vpop.permute.xlu0 %7639
        %7641 = vrot.lane.b32.xlu0 %v1444, 112
        %v7642 = vpop.permute.xlu0 %7641
        %7643 = vrot.lane.b32.xlu0 %v1449, 112
        %v7644 = vpop.permute.xlu0 %7643
        %7645 = vrot.lane.b32.xlu0 %v1454, 112
        %v7646 = vpop.permute.xlu0 %7645
        %7647 = vrot.lane.b32.xlu0 %v1459, 112
        %v7648 = vpop.permute.xlu0 %7647
        %7649 = vrot.lane.b32.xlu0 %v1464, 112
        %v7650 = vpop.permute.xlu0 %7649
        %7651 = vrot.lane.b32.xlu0 %v1469, 112
        %v7652 = vpop.permute.xlu0 %7651
        %7653 = vrot.lane.b32.xlu0 %v1474, 112
        %v7654 = vpop.permute.xlu0 %7653
        %7655 = vrot.lane.b32.xlu0 %v2356, 112
        %v7656 = vpop.permute.xlu0 %7655
        %7657 = vrot.lane.b32.xlu0 %v3351, 112
        %v7658 = vpop.permute.xlu0 %7657
        %7659 = vrot.lane.b32.xlu0 %v5284, 112
        %v7660 = vpop.permute.xlu0 %7659
        %7661 = vrot.lane.b32.xlu0 %v5289, 112
        %v7662 = vpop.permute.xlu0 %7661
        %7663 = vrot.lane.b32.xlu0 %v6454, 112
        %v7664 = vpop.permute.xlu0 %7663
        %7665 = vrot.lane.b32.xlu0 %v6459, 112
        %v7666 = vpop.permute.xlu0 %7665
        %7667 = vrot.lane.b32.xlu0 %v7260, 112
        %v7668 = vpop.permute.xlu0 %7667
        %7669 = vrot.lane.b32.xlu0 %v7262, 112
        %v7670 = vpop.permute.xlu0 %7669
        %7671 = vrot.lane.b32.xlu0 %v7261, 112
        %v7672 = vpop.permute.xlu0 %7671
        %7673 = vrot.lane.b32.xlu0 %v7636, 112
        %v7674 = vpop.permute.xlu0 %7673
        %7675 = vrot.lane.b32.xlu0 %v7638, 112
        %v7676 = vpop.permute.xlu0 %7675
        %7677 = vrot.lane.b32.xlu0 %v7637, 112
        %v7678 = vpop.permute.xlu0 %7677
        %v7699 = vsel %vm252, %v453, %v7137
        %v7700 = vsel %vm252, %v454, %v7139
        %v7701 = vsel %vm252, %v455, %v7141
        %v7702 = vsel %vm252, %v456, %v7143
        %v7703 = vsel %vm252, %v457, %v7145
        %v7704 = vsel %vm252, %v458, %v7147
        %v7705 = vsel %vm2486, %v7699, %v7160
        %v7706 = vsel %vm2486, %v7700, %v7162
        %v7707 = vsel %vm2486, %v7701, %v7164
        %v7708 = vsel %vm2486, %v7702, %v7166
        %v7709 = vsel %vm2486, %v7703, %v7168
        %v7710 = vsel %vm2486, %v7704, %v7170
        %v7711 = vsel %vm2519, %v7705, %v7183
        %v7712 = vsel %vm2519, %v7706, %v7185
        %v7713 = vsel %vm2519, %v7707, %v7187
        %v7714 = vsel %vm2519, %v7708, %v7189
        %v7715 = vsel %vm2519, %v7709, %v7191
        %v7716 = vsel %vm2519, %v7710, %v7193
        %v7717 = vsel %vm2552, %v7711, %v7206
        %v7718 = vsel %vm2552, %v7712, %v7208
        %v7719 = vsel %vm2552, %v7713, %v7210
        %v7720 = vsel %vm2552, %v7714, %v7212
        %v7721 = vsel %vm2552, %v7715, %v7214
        %v7722 = vsel %vm2552, %v7716, %v7216
        %v7723 = vsel %vm2585, %v6800, %v7226
        %v7724 = vsel %vm2585, %v6803, %v7228
        %v7725 = vsel %vm2585, %v6806, %v7230
        %v7726 = vsel %vm2585, %v6809, %v7232
        %v7727 = vsel %vm2585, %v6812, %v7234
        %v7728 = vsel %vm2585, %v7717, %v7236
        %v7729 = vsel %vm2585, %v7718, %v7238
        %v7730 = vsel %vm2585, %v7719, %v7240
        %v7731 = vsel %vm2585, %v7720, %v7242
        %v7732 = vsel %vm2585, %v7721, %v7244
        %v7733 = vsel %vm2585, %v7722, %v7246
        %v7734 = vsel %vm2618, %v6820, %v7264
        %v7735 = vsel %vm2618, %v6822, %v7266
        %v7736 = vsel %vm2618, %v6824, %v7268
        %v7737 = vsel %vm2618, %v6826, %v7270
        %v7738 = vsel %vm2618, %v6828, %v7272
        %v7739 = vsel %vm2618, %v6830, %v7274
        %v7740 = vsel %vm2618, %v6832, %v7276
        %v7741 = vsel %vm2618, %v6834, %v7278
        %v7742 = vsel %vm2618, %v6836, %v7280
        %v7743 = vsel %vm2618, %v7723, %v7282
        %v7744 = vsel %vm2618, %v6838, %v7284
        %v7745 = vsel %vm2618, %v6839, %v7286
        %v7746 = vsel %vm2618, %v7724, %v7288
        %v7747 = vsel %vm2618, %v6841, %v7290
        %v7748 = vsel %vm2618, %v6842, %v7292
        %v7749 = vsel %vm2618, %v7725, %v7294
        %v7750 = vsel %vm2618, %v6844, %v7296
        %v7751 = vsel %vm2618, %v6845, %v7298
        %v7752 = vsel %vm2618, %v7726, %v7300
        %v7753 = vsel %vm2618, %v6847, %v7302
        %v7754 = vsel %vm2618, %v6848, %v7304
        %v7755 = vsel %vm2618, %v7727, %v7306
        %v7756 = vsel %vm2618, %v6850, %v7308
        %v7757 = vsel %vm2618, %v6851, %v7310
        %v7758 = vsel %vm2618, %v7728, %v7312
        %v7759 = vsel %vm2618, %v7729, %v7314
        %v7760 = vsel %vm2618, %v7730, %v7316
        %v7761 = vsel %vm2618, %v7731, %v7318
        %v7762 = vsel %vm2618, %v7732, %v7320
        %v7763 = vsel %vm2618, %v7733, %v7322
        %v7764 = vsel %vm2651, %v2633, %v7357
        %v7765 = vsel %vm2651, %v7734, %v7359
        %v7766 = vsel %vm2651, %v2635, %v7361
        %v7767 = vsel %vm2651, %v7735, %v7363
        %v7768 = vsel %vm2651, %v2637, %v7365
        %v7769 = vsel %vm2651, %v7736, %v7367
        %v7770 = vsel %vm2651, %v2639, %v7369
        %v7771 = vsel %vm2651, %v7737, %v7371
        %v7772 = vsel %vm2651, %v2641, %v7373
        %v7773 = vsel %vm2651, %v7738, %v7375
        %v7774 = vsel %vm2651, %v2643, %v7377
        %v7775 = vsel %vm2651, %v7739, %v7379
        %v7776 = vsel %vm2651, %v2645, %v7381
        %v7777 = vsel %vm2651, %v7740, %v7383
        %v7778 = vsel %vm2651, %v2647, %v7385
        %v7779 = vsel %vm2651, %v7741, %v7387
        %v7780 = vsel %vm2651, %v2649, %v7389
        %v7781 = vsel %vm2651, %v7742, %v7391
        %v7782 = vsel %vm2651, %v7743, %v7393
        %v7783 = vsel %vm2651, %v7744, %v7395
        %v7784 = vsel %vm2651, %v7745, %v7397
        %v7785 = vsel %vm2651, %v7746, %v7399
        %v7786 = vsel %vm2651, %v7747, %v7401
        %v7787 = vsel %vm2651, %v7748, %v7403
        %v7788 = vsel %vm2651, %v7749, %v7405
        %v7789 = vsel %vm2651, %v7750, %v7407
        %v7790 = vsel %vm2651, %v7751, %v7409
        %v7791 = vsel %vm2651, %v7752, %v7411
        %v7792 = vsel %vm2651, %v7753, %v7413
        %v7793 = vsel %vm2651, %v7754, %v7415
        %v7794 = vsel %vm2651, %v7755, %v7417
        %v7795 = vsel %vm2651, %v7756, %v7419
        %v7796 = vsel %vm2651, %v7757, %v7421
        %v7797 = vsel %vm2651, %v7758, %v7423
        %v7798 = vsel %vm2651, %v7759, %v7425
        %v7799 = vsel %vm2651, %v7760, %v7427
        %v7800 = vsel %vm2651, %v7761, %v7429
        %v7801 = vsel %vm2651, %v7762, %v7431
        %v7802 = vsel %vm2651, %v7763, %v7433
        %v7803 = vsel %vm252, %v1614, %v3478
        %v7804 = vsel %vm252, %v1619, %v3480
        %v7805 = vsel %vm252, %v1624, %v3482
        %v7806 = vsel %vm252, %v1629, %v3484
        %v7807 = vsel %vm252, %v1634, %v3486
        %v7808 = vsel %vm252, %v1639, %v3488
        %v7809 = vsel %vm252, %v1644, %v3490
        %v7810 = vsel %vm252, %v1649, %v3492
        %v7811 = vsel %vm252, %v3408, %v3494
        %v7812 = vsel %vm252, %v3413, %v3500
        %v7813 = vsel %vm252, %v5310, %v5330
        %v7814 = vsel %vm252, %v5315, %v5336
        %v7815 = vsel %vm252, %v6480, %v6500
        %v7816 = vsel %vm252, %v6485, %v6506
        %v7817 = vsel %vm252, %v7475, %v7502
        %v7818 = vsel %vm252, %v7476, %v7504
        %v7819 = vsel %vm252, %v7353, %v7506
        %v7820 = vsel %vm252, %v7477, %v7508
        %v7821 = vsel %vm252, %v7479, %v7510
        %v7822 = vsel %vm252, %v7478, %v7512
        %v7823 = vsel %vm2486, %v7803, %v3534
        %v7824 = vsel %vm2486, %v7804, %v3536
        %v7825 = vsel %vm2486, %v7805, %v3538
        %v7826 = vsel %vm2486, %v7806, %v3540
        %v7827 = vsel %vm2486, %v7807, %v3542
        %v7828 = vsel %vm2486, %v7808, %v3544
        %v7829 = vsel %vm2486, %v7809, %v3546
        %v7830 = vsel %vm2486, %v7810, %v3548
        %v7831 = vsel %vm2486, %v7811, %v3550
        %v7832 = vsel %vm2486, %v7812, %v3554
        %v7833 = vsel %vm2486, %v7813, %v5353
        %v7834 = vsel %vm2486, %v7814, %v5359
        %v7835 = vsel %vm2486, %v7815, %v6523
        %v7836 = vsel %vm2486, %v7816, %v6529
        %v7837 = vsel %vm2486, %v7817, %v7525
        %v7838 = vsel %vm2486, %v7818, %v7527
        %v7839 = vsel %vm2486, %v7819, %v7529
        %v7840 = vsel %vm2486, %v7820, %v7531
        %v7841 = vsel %vm2486, %v7821, %v7533
        %v7842 = vsel %vm2486, %v7822, %v7535
        %v7843 = vsel %vm2519, %v7823, %v5380
        %v7844 = vsel %vm2519, %v7824, %v5382
        %v7845 = vsel %vm2519, %v7825, %v5384
        %v7846 = vsel %vm2519, %v7826, %v5386
        %v7847 = vsel %vm2519, %v7827, %v5388
        %v7848 = vsel %vm2519, %v7828, %v5390
        %v7849 = vsel %vm2519, %v7829, %v5392
        %v7850 = vsel %vm2519, %v7830, %v5394
        %v7851 = vsel %vm2519, %v7831, %v5396
        %v7852 = vsel %vm2519, %v7832, %v5398
        %v7853 = vsel %vm2519, %v7833, %v5404
        %v7854 = vsel %vm2519, %v7834, %v5410
        %v7855 = vsel %vm2519, %v7835, %v6546
        %v7856 = vsel %vm2519, %v7836, %v6552
        %v7857 = vsel %vm2519, %v7837, %v7548
        %v7858 = vsel %vm2519, %v7838, %v7550
        %v7859 = vsel %vm2519, %v7839, %v7552
        %v7860 = vsel %vm2519, %v7840, %v7554
        %v7861 = vsel %vm2519, %v7841, %v7556
        %v7862 = vsel %vm2519, %v7842, %v7558
        %v7863 = vsel %vm2552, %v7843, %v5442
        %v7864 = vsel %vm2552, %v7844, %v5444
        %v7865 = vsel %vm2552, %v7845, %v5446
        %v7866 = vsel %vm2552, %v7846, %v5448
        %v7867 = vsel %vm2552, %v7847, %v5450
        %v7868 = vsel %vm2552, %v7848, %v5452
        %v7869 = vsel %vm2552, %v7849, %v5454
        %v7870 = vsel %vm2552, %v7850, %v5456
        %v7871 = vsel %vm2552, %v7851, %v5458
        %v7872 = vsel %vm2552, %v7852, %v5460
        %v7873 = vsel %vm2552, %v7853, %v5464
        %v7874 = vsel %vm2552, %v7854, %v5468
        %v7875 = vsel %vm2552, %v7855, %v6569
        %v7876 = vsel %vm2552, %v7856, %v6575
        %v7877 = vsel %vm2552, %v7857, %v7571
        %v7878 = vsel %vm2552, %v7858, %v7573
        %v7879 = vsel %vm2552, %v7859, %v7575
        %v7880 = vsel %vm2552, %v7860, %v7577
        %v7881 = vsel %vm2552, %v7861, %v7579
        %v7882 = vsel %vm2552, %v7862, %v7581
        %v7883 = vsel %vm2585, %v7863, %v6592
        %v7884 = vsel %vm2585, %v7864, %v6594
        %v7885 = vsel %vm2585, %v7865, %v6596
        %v7886 = vsel %vm2585, %v7866, %v6598
        %v7887 = vsel %vm2585, %v7867, %v6600
        %v7888 = vsel %vm2585, %v7868, %v6602
        %v7889 = vsel %vm2585, %v7869, %v6604
        %v7890 = vsel %vm2585, %v7870, %v6606
        %v7891 = vsel %vm2585, %v7871, %v6608
        %v7892 = vsel %vm2585, %v7872, %v6610
        %v7893 = vsel %vm2585, %v7873, %v6612
        %v7894 = vsel %vm2585, %v7874, %v6614
        %v7895 = vsel %vm2585, %v7875, %v6620
        %v7896 = vsel %vm2585, %v7876, %v6626
        %v7897 = vsel %vm2585, %v7877, %v7594
        %v7898 = vsel %vm2585, %v7878, %v7596
        %v7899 = vsel %vm2585, %v7879, %v7598
        %v7900 = vsel %vm2585, %v7880, %v7600
        %v7901 = vsel %vm2585, %v7881, %v7602
        %v7902 = vsel %vm2585, %v7882, %v7604
        %v7903 = vsel %vm2618, %v6992, %v2286
        %v7904 = vsel %vm2618, %v7883, %v6654
        %v7905 = vsel %vm2618, %v6995, %v2290
        %v7906 = vsel %vm2618, %v7884, %v6656
        %v7907 = vsel %vm2618, %v6998, %v2294
        %v7908 = vsel %vm2618, %v7885, %v6658
        %v7909 = vsel %vm2618, %v7001, %v2298
        %v7910 = vsel %vm2618, %v7886, %v6660
        %v7911 = vsel %vm2618, %v7004, %v2302
        %v7912 = vsel %vm2618, %v7887, %v6662
        %v7913 = vsel %vm2618, %v7007, %v2306
        %v7914 = vsel %vm2618, %v7888, %v6664
        %v7915 = vsel %vm2618, %v7010, %v2310
        %v7916 = vsel %vm2618, %v7889, %v6666
        %v7917 = vsel %vm2618, %v7013, %v2314
        %v7918 = vsel %vm2618, %v7890, %v6668
        %v7919 = vsel %vm2618, %v7016, %v2318
        %v7920 = vsel %vm2618, %v7891, %v6670
        %v7921 = vsel %vm2618, %v7019, %v3327
        %v7922 = vsel %vm2618, %v7892, %v6672
        %v7923 = vsel %vm2618, %v7022, %v5266
        %v7924 = vsel %vm2618, %v7893, %v6674
        %v7925 = vsel %vm2618, %v7025, %v5272
        %v7926 = vsel %vm2618, %v7894, %v6676
        %v7927 = vsel %vm2618, %v7028, %v6421
        %v7928 = vsel %vm2618, %v7895, %v6680
        %v7929 = vsel %vm2618, %v7031, %v6427
        %v7930 = vsel %vm2618, %v7896, %v6684
        %v7931 = vsel %vm2618, %v7897, %v7617
        %v7932 = vsel %vm2618, %v7898, %v7619
        %v7933 = vsel %vm2618, %v7899, %v7621
        %v7934 = vsel %vm2618, %v7900, %v7623
        %v7935 = vsel %vm2618, %v7901, %v7625
        %v7936 = vsel %vm2618, %v7902, %v7627
        %v7937 = vsel %vm2651, %v7903, %v2387
        %v7938 = vsel %vm2651, %v7041, %v2389
        %v7939 = vsel %vm2651, %v7904, %v7640
        %v7940 = vsel %vm2651, %v7905, %v2391
        %v7941 = vsel %vm2651, %v7044, %v2393
        %v7942 = vsel %vm2651, %v7906, %v7642
        %v7943 = vsel %vm2651, %v7907, %v2395
        %v7944 = vsel %vm2651, %v7047, %v2397
        %v7945 = vsel %vm2651, %v7908, %v7644
        %v7946 = vsel %vm2651, %v7909, %v2399
        %v7947 = vsel %vm2651, %v7050, %v2401
        %v7948 = vsel %vm2651, %v7910, %v7646
        %v7949 = vsel %vm2651, %v7911, %v2403
        %v7950 = vsel %vm2651, %v7053, %v2405
        %v7951 = vsel %vm2651, %v7912, %v7648
        %v7952 = vsel %vm2651, %v7913, %v2407
        %v7953 = vsel %vm2651, %v7056, %v2409
        %v7954 = vsel %vm2651, %v7914, %v7650
        %v7955 = vsel %vm2651, %v7915, %v2411
        %v7956 = vsel %vm2651, %v7059, %v2413
        %v7957 = vsel %vm2651, %v7916, %v7652
        %v7958 = vsel %vm2651, %v7917, %v2415
        %v7959 = vsel %vm2651, %v7062, %v2417
        %v7960 = vsel %vm2651, %v7918, %v7654
        %v7961 = vsel %vm2651, %v7919, %v2419
        %v7962 = vsel %vm2651, %v7065, %v2421
        %v7963 = vsel %vm2651, %v7920, %v7656
        %v7964 = vsel %vm2651, %v7921, %v3386
        %v7965 = vsel %vm2651, %v7068, %v3388
        %v7966 = vsel %vm2651, %v7922, %v7658
        %v7967 = vsel %vm2651, %v7923, %v5294
        %v7968 = vsel %vm2651, %v7071, %v5296
        %v7969 = vsel %vm2651, %v7924, %v7660
        %v7970 = vsel %vm2651, %v7925, %v5300
        %v7971 = vsel %vm2651, %v7074, %v5302
        %v7972 = vsel %vm2651, %v7926, %v7662
        %v7973 = vsel %vm2651, %v7927, %v6464
        %v7974 = vsel %vm2651, %v7077, %v6466
        %v7975 = vsel %vm2651, %v7928, %v7664
        %v7976 = vsel %vm2651, %v7929, %v6470
        %v7977 = vsel %vm2651, %v7080, %v6472
        %v7978 = vsel %vm2651, %v7930, %v7666
        %v7979 = vsel %vm2651, %v7931, %v7668
        %v7980 = vsel %vm2651, %v7932, %v7670
        %v7981 = vsel %vm2651, %v7933, %v7672
        %v7982 = vsel %vm2651, %v7934, %v7674
        %v7983 = vsel %vm2651, %v7935, %v7676
        %v7984 = vsel %vm2651, %v7936, %v7678
        %v8081 = vrot.slane %v4591, 7
        %v8082 = vrot.slane %v4592, 7
        %v8083 = vsel %vm1572, %v8081, %v8082
        %v8084 = vrot.slane %v4927, 7
        %v8085 = vrot.slane %v4928, 7
        %v8086 = vsel %vm1572, %v8084, %v8085
        %v8087 = vrot.slane %v4593, 7
        %v8088 = vsel %vm1572, %v8082, %v8087
        %v8089 = vrot.slane %v4929, 7
        %v8090 = vsel %vm1572, %v8085, %v8089
        %v8091 = vrot.slane %v4594, 7
        %v8092 = vrot.slane %v4595, 7
        %v8093 = vsel %vm1572, %v8091, %v8092
        %v8094 = vrot.slane %v4930, 7
        %v8095 = vrot.slane %v4931, 7
        %v8096 = vsel %vm1572, %v8094, %v8095
        %v8097 = vrot.slane %v4596, 7
        %v8098 = vsel %vm1572, %v8092, %v8097
        %v8099 = vrot.slane %v4932, 7
        %v8100 = vsel %vm1572, %v8095, %v8099
        %v8101 = vrot.slane %v4597, 7
        %v8102 = vrot.slane %v4598, 7
        %v8103 = vsel %vm1572, %v8101, %v8102
        %v8104 = vrot.slane %v4933, 7
        %v8105 = vrot.slane %v4934, 7
        %v8106 = vsel %vm1572, %v8104, %v8105
        %v8107 = vrot.slane %v4599, 7
        %v8108 = vsel %vm1572, %v8102, %v8107
        %v8109 = vrot.slane %v4935, 7
        %v8110 = vsel %vm1572, %v8105, %v8109
        %v8111 = vrot.slane %v4600, 7
        %v8112 = vrot.slane %v4601, 7
        %v8113 = vsel %vm1572, %v8111, %v8112
        %v8114 = vrot.slane %v4936, 7
        %v8115 = vrot.slane %v4937, 7
        %v8116 = vsel %vm1572, %v8114, %v8115
        %v8117 = vrot.slane %v4602, 7
        %v8118 = vsel %vm1572, %v8112, %v8117
        %v8119 = vrot.slane %v4938, 7
        %v8120 = vsel %vm1572, %v8115, %v8119
        %v8121 = vrot.slane %v4603, 7
        %v8122 = vrot.slane %v4604, 7
        %v8123 = vsel %vm1572, %v8121, %v8122
        %v8124 = vrot.slane %v4939, 7
        %v8125 = vrot.slane %v4940, 7
        %v8126 = vsel %vm1572, %v8124, %v8125
        %v8127 = vrot.slane %v4605, 7
        %v8128 = vsel %vm1572, %v8122, %v8127
        %v8129 = vrot.slane %v4941, 7
        %v8130 = vsel %vm1572, %v8125, %v8129
        %v8131 = vrot.slane %v4606, 7
        %v8132 = vrot.slane %v4607, 7
        %v8133 = vsel %vm1572, %v8131, %v8132
        %v8134 = vrot.slane %v4942, 7
        %v8135 = vrot.slane %v4943, 7
        %v8136 = vsel %vm1572, %v8134, %v8135
        %v8137 = vrot.slane %v4608, 7
        %v8138 = vsel %vm1572, %v8132, %v8137
        %v8139 = vrot.slane %v4944, 7
        %v8140 = vsel %vm1572, %v8135, %v8139
        %v8141 = vrot.slane %v4609, 7
        %v8142 = vrot.slane %v4610, 7
        %v8143 = vsel %vm1572, %v8141, %v8142
        %v8144 = vrot.slane %v4945, 7
        %v8145 = vrot.slane %v4946, 7
        %v8146 = vsel %vm1572, %v8144, %v8145
        %v8147 = vrot.slane %v4611, 7
        %v8148 = vsel %vm1572, %v8142, %v8147
        %v8149 = vrot.slane %v4947, 7
        %v8150 = vsel %vm1572, %v8145, %v8149
        %v8151 = vrot.slane %v4612, 7
        %v8152 = vrot.slane %v4613, 7
        %v8153 = vsel %vm1572, %v8151, %v8152
        %v8154 = vrot.slane %v4948, 7
        %v8155 = vrot.slane %v4949, 7
        %v8156 = vsel %vm1572, %v8154, %v8155
        %v8157 = vrot.slane %v4614, 7
        %v8158 = vsel %vm1572, %v8152, %v8157
        %v8159 = vrot.slane %v4950, 7
        %v8160 = vsel %vm1572, %v8155, %v8159
        %v8161 = vrot.slane %v4615, 7
        %v8162 = vrot.slane %v4616, 7
        %v8163 = vsel %vm1572, %v8161, %v8162
        %v8164 = vrot.slane %v4951, 7
        %v8165 = vrot.slane %v4952, 7
        %v8166 = vsel %vm1572, %v8164, %v8165
        %v8167 = vrot.slane %v4617, 7
        %v8168 = vsel %vm1572, %v8162, %v8167
        %v8169 = vrot.slane %v4953, 7
        %v8170 = vsel %vm1572, %v8165, %v8169
        %v8171 = vrot.slane %v4618, 7
        %v8172 = vrot.slane %v4619, 7
        %v8173 = vsel %vm1572, %v8171, %v8172
        %v8174 = vrot.slane %v4954, 7
        %v8175 = vrot.slane %v4955, 7
        %v8176 = vsel %vm1572, %v8174, %v8175
        %v8177 = vrot.slane %v4620, 7
        %v8178 = vsel %vm1572, %v8172, %v8177
        %v8179 = vrot.slane %v4956, 7
        %v8180 = vsel %vm1572, %v8175, %v8179
        %v8181 = vrot.slane %v4621, 7
        %v8182 = vrot.slane %v4622, 7
        %v8183 = vsel %vm1572, %v8181, %v8182
        %v8184 = vrot.slane %v4957, 7
        %v8185 = vrot.slane %v4958, 7
        %v8186 = vsel %vm1572, %v8184, %v8185
        %v8187 = vrot.slane %v4623, 7
        %v8188 = vsel %vm1572, %v8182, %v8187
        %v8189 = vrot.slane %v4959, 7
        %v8190 = vsel %vm1572, %v8185, %v8189
        %v8191 = vrot.slane %v4624, 7
        %v8192 = vrot.slane %v4625, 7
        %v8193 = vsel %vm1572, %v8191, %v8192
        %v8194 = vrot.slane %v4960, 7
        %v8195 = vrot.slane %v4961, 7
        %v8196 = vsel %vm1572, %v8194, %v8195
        %v8197 = vrot.slane %v4626, 7
        %v8198 = vsel %vm1572, %v8192, %v8197
        %v8199 = vrot.slane %v4962, 7
        %v8200 = vsel %vm1572, %v8195, %v8199
        %v8201 = vrot.slane %v4627, 7
        %v8202 = vrot.slane %v4628, 7
        %v8203 = vsel %vm1572, %v8201, %v8202
        %v8204 = vrot.slane %v4963, 7
        %v8205 = vrot.slane %v4964, 7
        %v8206 = vsel %vm1572, %v8204, %v8205
        %v8207 = vrot.slane %v4629, 7
        %v8208 = vsel %vm1572, %v8202, %v8207
        %v8209 = vrot.slane %v4965, 7
        %v8210 = vsel %vm1572, %v8205, %v8209
        %v8211 = vrot.slane %v4630, 7
        %v8212 = vrot.slane %v4631, 7
        %v8213 = vsel %vm1572, %v8211, %v8212
        %v8214 = vrot.slane %v4966, 7
        %v8215 = vrot.slane %v4967, 7
        %v8216 = vsel %vm1572, %v8214, %v8215
        %v8217 = vrot.slane %v4632, 7
        %v8218 = vsel %vm1572, %v8212, %v8217
        %v8219 = vrot.slane %v4968, 7
        %v8220 = vsel %vm1572, %v8215, %v8219
        %v8221 = vrot.slane %v4633, 7
        %v8222 = vrot.slane %v4634, 7
        %v8223 = vsel %vm1572, %v8221, %v8222
        %v8224 = vrot.slane %v4969, 7
        %v8225 = vrot.slane %v4970, 7
        %v8226 = vsel %vm1572, %v8224, %v8225
        %v8227 = vrot.slane %v4635, 7
        %v8228 = vsel %vm1572, %v8222, %v8227
        %v8229 = vrot.slane %v4971, 7
        %v8230 = vsel %vm1572, %v8225, %v8229
        %v8231 = vrot.slane %v4636, 7
        %v8232 = vrot.slane %v4637, 7
        %v8233 = vsel %vm1572, %v8231, %v8232
        %v8234 = vrot.slane %v4972, 7
        %v8235 = vrot.slane %v4973, 7
        %v8236 = vsel %vm1572, %v8234, %v8235
        %v8237 = vrot.slane %v4638, 7
        %v8238 = vsel %vm1572, %v8232, %v8237
        %v8239 = vrot.slane %v4974, 7
        %v8240 = vsel %vm1572, %v8235, %v8239
        %v8401 = vrot.slane %v5807, 5
        %v8402 = vrot.slane %v5808, 5
        %v8403 = vsel %vm1218, %v8401, %v8402
        %v8404 = vrot.slane %v6073, 5
        %v8405 = vrot.slane %v6074, 5
        %v8406 = vsel %vm1218, %v8404, %v8405
        %v8407 = vrot.slane %v5809, 5
        %v8408 = vsel %vm1218, %v8402, %v8407
        %v8409 = vrot.slane %v6075, 5
        %v8410 = vsel %vm1218, %v8405, %v8409
        %v8411 = vrot.slane %v5810, 5
        %v8412 = vrot.slane %v5811, 5
        %v8413 = vsel %vm1218, %v8411, %v8412
        %v8414 = vrot.slane %v6076, 5
        %v8415 = vrot.slane %v6077, 5
        %v8416 = vsel %vm1218, %v8414, %v8415
        %v8417 = vrot.slane %v5812, 5
        %v8418 = vsel %vm1218, %v8412, %v8417
        %v8419 = vrot.slane %v6078, 5
        %v8420 = vsel %vm1218, %v8415, %v8419
        %v8421 = vrot.slane %v5813, 5
        %v8422 = vrot.slane %v5814, 5
        %v8423 = vsel %vm1218, %v8421, %v8422
        %v8424 = vrot.slane %v6079, 5
        %v8425 = vrot.slane %v6080, 5
        %v8426 = vsel %vm1218, %v8424, %v8425
        %v8427 = vrot.slane %v5815, 5
        %v8428 = vsel %vm1218, %v8422, %v8427
        %v8429 = vrot.slane %v6081, 5
        %v8430 = vsel %vm1218, %v8425, %v8429
        %v8431 = vrot.slane %v5816, 5
        %v8432 = vrot.slane %v5817, 5
        %v8433 = vsel %vm1218, %v8431, %v8432
        %v8434 = vrot.slane %v6082, 5
        %v8435 = vrot.slane %v6083, 5
        %v8436 = vsel %vm1218, %v8434, %v8435
        %v8437 = vrot.slane %v5818, 5
        %v8438 = vsel %vm1218, %v8432, %v8437
        %v8439 = vrot.slane %v6084, 5
        %v8440 = vsel %vm1218, %v8435, %v8439
        %v8441 = vrot.slane %v5819, 5
        %v8442 = vrot.slane %v5820, 5
        %v8443 = vsel %vm1218, %v8441, %v8442
        %v8444 = vrot.slane %v6085, 5
        %v8445 = vrot.slane %v6086, 5
        %v8446 = vsel %vm1218, %v8444, %v8445
        %v8447 = vrot.slane %v5821, 5
        %v8448 = vsel %vm1218, %v8442, %v8447
        %v8449 = vrot.slane %v6087, 5
        %v8450 = vsel %vm1218, %v8445, %v8449
        %v8451 = vrot.slane %v5822, 5
        %v8452 = vrot.slane %v5823, 5
        %v8453 = vsel %vm1218, %v8451, %v8452
        %v8454 = vrot.slane %v6088, 5
        %v8455 = vrot.slane %v6089, 5
        %v8456 = vsel %vm1218, %v8454, %v8455
        %v8457 = vrot.slane %v5824, 5
        %v8458 = vsel %vm1218, %v8452, %v8457
        %v8459 = vrot.slane %v6090, 5
        %v8460 = vsel %vm1218, %v8455, %v8459
        %v8461 = vrot.slane %v5825, 5
        %v8462 = vrot.slane %v5826, 5
        %v8463 = vsel %vm1218, %v8461, %v8462
        %v8464 = vrot.slane %v6091, 5
        %v8465 = vrot.slane %v6092, 5
        %v8466 = vsel %vm1218, %v8464, %v8465
        %v8467 = vrot.slane %v5827, 5
        %v8468 = vsel %vm1218, %v8462, %v8467
        %v8469 = vrot.slane %v6093, 5
        %v8470 = vsel %vm1218, %v8465, %v8469
        %v8471 = vrot.slane %v5828, 5
        %v8472 = vrot.slane %v5829, 5
        %v8473 = vsel %vm1218, %v8471, %v8472
        %v8474 = vrot.slane %v6094, 5
        %v8475 = vrot.slane %v6095, 5
        %v8476 = vsel %vm1218, %v8474, %v8475
        %v8477 = vrot.slane %v5830, 5
        %v8478 = vsel %vm1218, %v8472, %v8477
        %v8479 = vrot.slane %v6096, 5
        %v8480 = vsel %vm1218, %v8475, %v8479
        %v8481 = vrot.slane %v5831, 5
        %v8482 = vrot.slane %v5832, 5
        %v8483 = vsel %vm1218, %v8481, %v8482
        %v8484 = vrot.slane %v6097, 5
        %v8485 = vrot.slane %v6098, 5
        %v8486 = vsel %vm1218, %v8484, %v8485
        %v8487 = vrot.slane %v5833, 5
        %v8488 = vsel %vm1218, %v8482, %v8487
        %v8489 = vrot.slane %v6099, 5
        %v8490 = vsel %vm1218, %v8485, %v8489
        %v8491 = vrot.slane %v5834, 5
        %v8492 = vrot.slane %v5835, 5
        %v8493 = vsel %vm1218, %v8491, %v8492
        %v8494 = vrot.slane %v6100, 5
        %v8495 = vrot.slane %v6101, 5
        %v8496 = vsel %vm1218, %v8494, %v8495
        %v8497 = vrot.slane %v5836, 5
        %v8498 = vsel %vm1218, %v8492, %v8497
        %v8499 = vrot.slane %v6102, 5
        %v8500 = vsel %vm1218, %v8495, %v8499
        %v8501 = vrot.slane %v5837, 5
        %v8502 = vrot.slane %v5838, 5
        %v8503 = vsel %vm1218, %v8501, %v8502
        %v8504 = vrot.slane %v6103, 5
        %v8505 = vrot.slane %v6104, 5
        %v8506 = vsel %vm1218, %v8504, %v8505
        %v8507 = vrot.slane %v5839, 5
        %v8508 = vsel %vm1218, %v8502, %v8507
        %v8509 = vrot.slane %v6105, 5
        %v8510 = vsel %vm1218, %v8505, %v8509
        %v8511 = vrot.slane %v5840, 5
        %v8512 = vrot.slane %v5841, 5
        %v8513 = vsel %vm1218, %v8511, %v8512
        %v8514 = vrot.slane %v6106, 5
        %v8515 = vrot.slane %v6107, 5
        %v8516 = vsel %vm1218, %v8514, %v8515
        %v8517 = vrot.slane %v5842, 5
        %v8518 = vsel %vm1218, %v8512, %v8517
        %v8519 = vrot.slane %v6108, 5
        %v8520 = vsel %vm1218, %v8515, %v8519
        %v8521 = vrot.slane %v5843, 5
        %v8522 = vrot.slane %v5844, 5
        %v8523 = vsel %vm1218, %v8521, %v8522
        %v8524 = vrot.slane %v6109, 5
        %v8525 = vrot.slane %v6110, 5
        %v8526 = vsel %vm1218, %v8524, %v8525
        %v8527 = vrot.slane %v5845, 5
        %v8528 = vsel %vm1218, %v8522, %v8527
        %v8529 = vrot.slane %v6111, 5
        %v8530 = vsel %vm1218, %v8525, %v8529
        %v8531 = vrot.slane %v5846, 5
        %v8532 = vrot.slane %v5847, 5
        %v8533 = vsel %vm1218, %v8531, %v8532
        %v8534 = vrot.slane %v6112, 5
        %v8535 = vrot.slane %v6113, 5
        %v8536 = vsel %vm1218, %v8534, %v8535
        %v8537 = vrot.slane %v5848, 5
        %v8538 = vsel %vm1218, %v8532, %v8537
        %v8539 = vrot.slane %v6114, 5
        %v8540 = vsel %vm1218, %v8535, %v8539
        %v8541 = vrot.slane %v5849, 5
        %v8542 = vrot.slane %v5850, 5
        %v8543 = vsel %vm1218, %v8541, %v8542
        %v8544 = vrot.slane %v6115, 5
        %v8545 = vrot.slane %v6116, 5
        %v8546 = vsel %vm1218, %v8544, %v8545
        %v8547 = vrot.slane %v5851, 5
        %v8548 = vsel %vm1218, %v8542, %v8547
        %v8549 = vrot.slane %v6117, 5
        %v8550 = vsel %vm1218, %v8545, %v8549
        %v8551 = vrot.slane %v5852, 5
        %v8552 = vrot.slane %v5853, 5
        %v8553 = vsel %vm1218, %v8551, %v8552
        %v8554 = vrot.slane %v6118, 5
        %v8555 = vrot.slane %v6119, 5
        %v8556 = vsel %vm1218, %v8554, %v8555
        %v8557 = vrot.slane %v5854, 5
        %v8558 = vsel %vm1218, %v8552, %v8557
        %v8559 = vrot.slane %v6120, 5
        %v8560 = vsel %vm1218, %v8555, %v8559
        %v8721 = vrot.slane %v6900, 3
        %v8722 = vrot.slane %v6901, 3
        %v8723 = vsel %vm864, %v8721, %v8722
        %v8724 = vrot.slane %v7082, 3
        %v8725 = vrot.slane %v7083, 3
        %v8726 = vsel %vm864, %v8724, %v8725
        %v8727 = vrot.slane %v6902, 3
        %v8728 = vsel %vm864, %v8722, %v8727
        %v8729 = vrot.slane %v7084, 3
        %v8730 = vsel %vm864, %v8725, %v8729
        %v8731 = vrot.slane %v6903, 3
        %v8732 = vrot.slane %v6904, 3
        %v8733 = vsel %vm864, %v8731, %v8732
        %v8734 = vrot.slane %v7085, 3
        %v8735 = vrot.slane %v7086, 3
        %v8736 = vsel %vm864, %v8734, %v8735
        %v8737 = vrot.slane %v6905, 3
        %v8738 = vsel %vm864, %v8732, %v8737
        %v8739 = vrot.slane %v7087, 3
        %v8740 = vsel %vm864, %v8735, %v8739
        %v8741 = vrot.slane %v6906, 3
        %v8742 = vrot.slane %v6907, 3
        %v8743 = vsel %vm864, %v8741, %v8742
        %v8744 = vrot.slane %v7088, 3
        %v8745 = vrot.slane %v7089, 3
        %v8746 = vsel %vm864, %v8744, %v8745
        %v8747 = vrot.slane %v6908, 3
        %v8748 = vsel %vm864, %v8742, %v8747
        %v8749 = vrot.slane %v7090, 3
        %v8750 = vsel %vm864, %v8745, %v8749
        %v8751 = vrot.slane %v6909, 3
        %v8752 = vrot.slane %v6910, 3
        %v8753 = vsel %vm864, %v8751, %v8752
        %v8754 = vrot.slane %v7091, 3
        %v8755 = vrot.slane %v7092, 3
        %v8756 = vsel %vm864, %v8754, %v8755
        %v8757 = vrot.slane %v6911, 3
        %v8758 = vsel %vm864, %v8752, %v8757
        %v8759 = vrot.slane %v7093, 3
        %v8760 = vsel %vm864, %v8755, %v8759
        %v8761 = vrot.slane %v6912, 3
        %v8762 = vrot.slane %v6913, 3
        %v8763 = vsel %vm864, %v8761, %v8762
        %v8764 = vrot.slane %v7094, 3
        %v8765 = vrot.slane %v7095, 3
        %v8766 = vsel %vm864, %v8764, %v8765
        %v8767 = vrot.slane %v6914, 3
        %v8768 = vsel %vm864, %v8762, %v8767
        %v8769 = vrot.slane %v7096, 3
        %v8770 = vsel %vm864, %v8765, %v8769
        %v8771 = vrot.slane %v6915, 3
        %v8772 = vrot.slane %v6916, 3
        %v8773 = vsel %vm864, %v8771, %v8772
        %v8774 = vrot.slane %v7097, 3
        %v8775 = vrot.slane %v7098, 3
        %v8776 = vsel %vm864, %v8774, %v8775
        %v8777 = vrot.slane %v6917, 3
        %v8778 = vsel %vm864, %v8772, %v8777
        %v8779 = vrot.slane %v7099, 3
        %v8780 = vsel %vm864, %v8775, %v8779
        %v8781 = vrot.slane %v6918, 3
        %v8782 = vrot.slane %v6919, 3
        %v8783 = vsel %vm864, %v8781, %v8782
        %v8784 = vrot.slane %v7100, 3
        %v8785 = vrot.slane %v7101, 3
        %v8786 = vsel %vm864, %v8784, %v8785
        %v8787 = vrot.slane %v6920, 3
        %v8788 = vsel %vm864, %v8782, %v8787
        %v8789 = vrot.slane %v7102, 3
        %v8790 = vsel %vm864, %v8785, %v8789
        %v8791 = vrot.slane %v6921, 3
        %v8792 = vrot.slane %v6922, 3
        %v8793 = vsel %vm864, %v8791, %v8792
        %v8794 = vrot.slane %v7103, 3
        %v8795 = vrot.slane %v7104, 3
        %v8796 = vsel %vm864, %v8794, %v8795
        %v8797 = vrot.slane %v6923, 3
        %v8798 = vsel %vm864, %v8792, %v8797
        %v8799 = vrot.slane %v7105, 3
        %v8800 = vsel %vm864, %v8795, %v8799
        %v8801 = vrot.slane %v6924, 3
        %v8802 = vrot.slane %v6925, 3
        %v8803 = vsel %vm864, %v8801, %v8802
        %v8804 = vrot.slane %v7106, 3
        %v8805 = vrot.slane %v7107, 3
        %v8806 = vsel %vm864, %v8804, %v8805
        %v8807 = vrot.slane %v6926, 3
        %v8808 = vsel %vm864, %v8802, %v8807
        %v8809 = vrot.slane %v7108, 3
        %v8810 = vsel %vm864, %v8805, %v8809
        %v8811 = vrot.slane %v6927, 3
        %v8812 = vrot.slane %v6928, 3
        %v8813 = vsel %vm864, %v8811, %v8812
        %v8814 = vrot.slane %v7109, 3
        %v8815 = vrot.slane %v7110, 3
        %v8816 = vsel %vm864, %v8814, %v8815
        %v8817 = vrot.slane %v6929, 3
        %v8818 = vsel %vm864, %v8812, %v8817
        %v8819 = vrot.slane %v7111, 3
        %v8820 = vsel %vm864, %v8815, %v8819
        %v8821 = vrot.slane %v6930, 3
        %v8822 = vrot.slane %v6931, 3
        %v8823 = vsel %vm864, %v8821, %v8822
        %v8824 = vrot.slane %v7112, 3
        %v8825 = vrot.slane %v7113, 3
        %v8826 = vsel %vm864, %v8824, %v8825
        %v8827 = vrot.slane %v6932, 3
        %v8828 = vsel %vm864, %v8822, %v8827
        %v8829 = vrot.slane %v7114, 3
        %v8830 = vsel %vm864, %v8825, %v8829
        %v8831 = vrot.slane %v6933, 3
        %v8832 = vrot.slane %v6934, 3
        %v8833 = vsel %vm864, %v8831, %v8832
        %v8834 = vrot.slane %v7115, 3
        %v8835 = vrot.slane %v7116, 3
        %v8836 = vsel %vm864, %v8834, %v8835
        %v8837 = vrot.slane %v6935, 3
        %v8838 = vsel %vm864, %v8832, %v8837
        %v8839 = vrot.slane %v7117, 3
        %v8840 = vsel %vm864, %v8835, %v8839
        %v8841 = vrot.slane %v6936, 3
        %v8842 = vrot.slane %v6937, 3
        %v8843 = vsel %vm864, %v8841, %v8842
        %v8844 = vrot.slane %v7118, 3
        %v8845 = vrot.slane %v7119, 3
        %v8846 = vsel %vm864, %v8844, %v8845
        %v8847 = vrot.slane %v6938, 3
        %v8848 = vsel %vm864, %v8842, %v8847
        %v8849 = vrot.slane %v7120, 3
        %v8850 = vsel %vm864, %v8845, %v8849
        %v8851 = vrot.slane %v6939, 3
        %v8852 = vrot.slane %v6940, 3
        %v8853 = vsel %vm864, %v8851, %v8852
        %v8854 = vrot.slane %v7121, 3
        %v8855 = vrot.slane %v7122, 3
        %v8856 = vsel %vm864, %v8854, %v8855
        %v8857 = vrot.slane %v6941, 3
        %v8858 = vsel %vm864, %v8852, %v8857
        %v8859 = vrot.slane %v7123, 3
        %v8860 = vsel %vm864, %v8855, %v8859
        %v8861 = vrot.slane %v6942, 3
        %v8862 = vrot.slane %v6943, 3
        %v8863 = vsel %vm864, %v8861, %v8862
        %v8864 = vrot.slane %v7124, 3
        %v8865 = vrot.slane %v7125, 3
        %v8866 = vsel %vm864, %v8864, %v8865
        %v8867 = vrot.slane %v6944, 3
        %v8868 = vsel %vm864, %v8862, %v8867
        %v8869 = vrot.slane %v7126, 3
        %v8870 = vsel %vm864, %v8865, %v8869
        %v8871 = vrot.slane %v6945, 3
        %v8872 = vrot.slane %v6946, 3
        %v8873 = vsel %vm864, %v8871, %v8872
        %v8874 = vrot.slane %v7127, 3
        %v8875 = vrot.slane %v7128, 3
        %v8876 = vsel %vm864, %v8874, %v8875
        %v8877 = vrot.slane %v6947, 3
        %v8878 = vsel %vm864, %v8872, %v8877
        %v8879 = vrot.slane %v7129, 3
        %v8880 = vsel %vm864, %v8875, %v8879
        %v9041 = vrot.slane %v7764, 1
        %v9042 = vrot.slane %v2667, 1
        %v9043 = vsel %vm510, %v9041, %v9042
        %v9044 = vrot.slane %v7937, 1
        %v9045 = vrot.slane %v7938, 1
        %v9046 = vsel %vm510, %v9044, %v9045
        %v9047 = vrot.slane %v7765, 1
        %v9048 = vsel %vm510, %v9042, %v9047
        %v9049 = vrot.slane %v7939, 1
        %v9050 = vsel %vm510, %v9045, %v9049
        %v9051 = vrot.slane %v7766, 1
        %v9052 = vrot.slane %v2669, 1
        %v9053 = vsel %vm510, %v9051, %v9052
        %v9054 = vrot.slane %v7940, 1
        %v9055 = vrot.slane %v7941, 1
        %v9056 = vsel %vm510, %v9054, %v9055
        %v9057 = vrot.slane %v7767, 1
        %v9058 = vsel %vm510, %v9052, %v9057
        %v9059 = vrot.slane %v7942, 1
        %v9060 = vsel %vm510, %v9055, %v9059
        %v9061 = vrot.slane %v7768, 1
        %v9062 = vrot.slane %v2671, 1
        %v9063 = vsel %vm510, %v9061, %v9062
        %v9064 = vrot.slane %v7943, 1
        %v9065 = vrot.slane %v7944, 1
        %v9066 = vsel %vm510, %v9064, %v9065
        %v9067 = vrot.slane %v7769, 1
        %v9068 = vsel %vm510, %v9062, %v9067
        %v9069 = vrot.slane %v7945, 1
        %v9070 = vsel %vm510, %v9065, %v9069
        %v9071 = vrot.slane %v7770, 1
        %v9072 = vrot.slane %v2673, 1
        %v9073 = vsel %vm510, %v9071, %v9072
        %v9074 = vrot.slane %v7946, 1
        %v9075 = vrot.slane %v7947, 1
        %v9076 = vsel %vm510, %v9074, %v9075
        %v9077 = vrot.slane %v7771, 1
        %v9078 = vsel %vm510, %v9072, %v9077
        %v9079 = vrot.slane %v7948, 1
        %v9080 = vsel %vm510, %v9075, %v9079
        %v9081 = vrot.slane %v7772, 1
        %v9082 = vrot.slane %v2675, 1
        %v9083 = vsel %vm510, %v9081, %v9082
        %v9084 = vrot.slane %v7949, 1
        %v9085 = vrot.slane %v7950, 1
        %v9086 = vsel %vm510, %v9084, %v9085
        %v9087 = vrot.slane %v7773, 1
        %v9088 = vsel %vm510, %v9082, %v9087
        %v9089 = vrot.slane %v7951, 1
        %v9090 = vsel %vm510, %v9085, %v9089
        %v9091 = vrot.slane %v7774, 1
        %v9092 = vrot.slane %v2677, 1
        %v9093 = vsel %vm510, %v9091, %v9092
        %v9094 = vrot.slane %v7952, 1
        %v9095 = vrot.slane %v7953, 1
        %v9096 = vsel %vm510, %v9094, %v9095
        %v9097 = vrot.slane %v7775, 1
        %v9098 = vsel %vm510, %v9092, %v9097
        %v9099 = vrot.slane %v7954, 1
        %v9100 = vsel %vm510, %v9095, %v9099
        %v9101 = vrot.slane %v7776, 1
        %v9102 = vrot.slane %v2679, 1
        %v9103 = vsel %vm510, %v9101, %v9102
        %v9104 = vrot.slane %v7955, 1
        %v9105 = vrot.slane %v7956, 1
        %v9106 = vsel %vm510, %v9104, %v9105
        %v9107 = vrot.slane %v7777, 1
        %v9108 = vsel %vm510, %v9102, %v9107
        %v9109 = vrot.slane %v7957, 1
        %v9110 = vsel %vm510, %v9105, %v9109
        %v9111 = vrot.slane %v7778, 1
        %v9112 = vrot.slane %v2681, 1
        %v9113 = vsel %vm510, %v9111, %v9112
        %v9114 = vrot.slane %v7958, 1
        %v9115 = vrot.slane %v7959, 1
        %v9116 = vsel %vm510, %v9114, %v9115
        %v9117 = vrot.slane %v7779, 1
        %v9118 = vsel %vm510, %v9112, %v9117
        %v9119 = vrot.slane %v7960, 1
        %v9120 = vsel %vm510, %v9115, %v9119
        %v9121 = vrot.slane %v7780, 1
        %v9122 = vrot.slane %v2683, 1
        %v9123 = vsel %vm510, %v9121, %v9122
        %v9124 = vrot.slane %v7961, 1
        %v9125 = vrot.slane %v7962, 1
        %v9126 = vsel %vm510, %v9124, %v9125
        %v9127 = vrot.slane %v7781, 1
        %v9128 = vsel %vm510, %v9122, %v9127
        %v9129 = vrot.slane %v7963, 1
        %v9130 = vsel %vm510, %v9125, %v9129
        %v9131 = vrot.slane %v7782, 1
        %v9132 = vrot.slane %v7783, 1
        %v9133 = vsel %vm510, %v9131, %v9132
        %v9134 = vrot.slane %v7964, 1
        %v9135 = vrot.slane %v7965, 1
        %v9136 = vsel %vm510, %v9134, %v9135
        %v9137 = vrot.slane %v7784, 1
        %v9138 = vsel %vm510, %v9132, %v9137
        %v9139 = vrot.slane %v7966, 1
        %v9140 = vsel %vm510, %v9135, %v9139
        %v9141 = vrot.slane %v7785, 1
        %v9142 = vrot.slane %v7786, 1
        %v9143 = vsel %vm510, %v9141, %v9142
        %v9144 = vrot.slane %v7967, 1
        %v9145 = vrot.slane %v7968, 1
        %v9146 = vsel %vm510, %v9144, %v9145
        %v9147 = vrot.slane %v7787, 1
        %v9148 = vsel %vm510, %v9142, %v9147
        %v9149 = vrot.slane %v7969, 1
        %v9150 = vsel %vm510, %v9145, %v9149
        %v9151 = vrot.slane %v7788, 1
        %v9152 = vrot.slane %v7789, 1
        %v9153 = vsel %vm510, %v9151, %v9152
        %v9154 = vrot.slane %v7970, 1
        %v9155 = vrot.slane %v7971, 1
        %v9156 = vsel %vm510, %v9154, %v9155
        %v9157 = vrot.slane %v7790, 1
        %v9158 = vsel %vm510, %v9152, %v9157
        %v9159 = vrot.slane %v7972, 1
        %v9160 = vsel %vm510, %v9155, %v9159
        %v9161 = vrot.slane %v7791, 1
        %v9162 = vrot.slane %v7792, 1
        %v9163 = vsel %vm510, %v9161, %v9162
        %v9164 = vrot.slane %v7973, 1
        %v9165 = vrot.slane %v7974, 1
        %v9166 = vsel %vm510, %v9164, %v9165
        %v9167 = vrot.slane %v7793, 1
        %v9168 = vsel %vm510, %v9162, %v9167
        %v9169 = vrot.slane %v7975, 1
        %v9170 = vsel %vm510, %v9165, %v9169
        %v9171 = vrot.slane %v7794, 1
        %v9172 = vrot.slane %v7795, 1
        %v9173 = vsel %vm510, %v9171, %v9172
        %v9174 = vrot.slane %v7976, 1
        %v9175 = vrot.slane %v7977, 1
        %v9176 = vsel %vm510, %v9174, %v9175
        %v9177 = vrot.slane %v7796, 1
        %v9178 = vsel %vm510, %v9172, %v9177
        %v9179 = vrot.slane %v7978, 1
        %v9180 = vsel %vm510, %v9175, %v9179
        %v9181 = vrot.slane %v7797, 1
        %v9182 = vrot.slane %v7798, 1
        %v9183 = vsel %vm510, %v9181, %v9182
        %v9184 = vrot.slane %v7979, 1
        %v9185 = vrot.slane %v7980, 1
        %v9186 = vsel %vm510, %v9184, %v9185
        %v9187 = vrot.slane %v7799, 1
        %v9188 = vsel %vm510, %v9182, %v9187
        %v9189 = vrot.slane %v7981, 1
        %v9190 = vsel %vm510, %v9185, %v9189
        %v9191 = vrot.slane %v7800, 1
        %v9192 = vrot.slane %v7801, 1
        %v9193 = vsel %vm510, %v9191, %v9192
        %v9194 = vrot.slane %v7982, 1
        %v9195 = vrot.slane %v7983, 1
        %v9196 = vsel %vm510, %v9194, %v9195
        %v9197 = vrot.slane %v7802, 1
        %v9198 = vsel %vm510, %v9192, %v9197
        %v9199 = vrot.slane %v7984, 1
        %v9200 = vsel %vm510, %v9195, %v9199
        %v9265 = vld [vmem:[%s1] sm:$0xff]
        %v9266 = vld [vmem:[%s1 + $0x8] sm:$0xff]
        %v9267 = vld [vmem:[%s1 + $0x10] sm:$0xff]
        %v9268 = vld [vmem:[%s1 + $0x18] sm:$0xff]
        %v9269 = vld [vmem:[%s1 + $0x20] sm:$0xff]
        %v9270 = vld [vmem:[%s1 + $0x28] sm:$0xff]
        %v9271 = vld [vmem:[%s1 + $0x30] sm:$0xff]
        %v9272 = vld [vmem:[%s1 + $0x38] sm:$0xff]
        %v9273 = vld [vmem:[%s1 + $0x40] sm:$0xff]
        %v9274 = vld [vmem:[%s1 + $0x48] sm:$0xff]
        %v9275 = vld [vmem:[%s1 + $0x50] sm:$0xff]
        %v9276 = vld [vmem:[%s1 + $0x58] sm:$0xff]
        %v9277 = vld [vmem:[%s1 + $0x60] sm:$0xff]
        %v9278 = vld [vmem:[%s1 + $0x68] sm:$0xff]
        %v9279 = vld [vmem:[%s1 + $0x70] sm:$0xff]
        %v9280 = vld [vmem:[%s1 + $0x78] sm:$0xff]
        %v9281 = vld [vmem:[%s1 + $0x80] sm:$0xff]
        %v9282 = vld [vmem:[%s1 + $0x88] sm:$0xff]
        %v9283 = vld [vmem:[%s1 + $0x90] sm:$0xff]
        %v9284 = vld [vmem:[%s1 + $0x98] sm:$0xff]
        %v9285 = vld [vmem:[%s1 + $0xa0] sm:$0xff]
        %v9286 = vld [vmem:[%s1 + $0xa8] sm:$0xff]
        %v9287 = vld [vmem:[%s1 + $0xb0] sm:$0xff]
        %v9288 = vld [vmem:[%s1 + $0xb8] sm:$0xff]
        %v9289 = vld [vmem:[%s1 + $0xc0] sm:$0xff]
        %v9290 = vld [vmem:[%s1 + $0xc8] sm:$0xff]
        %v9291 = vld [vmem:[%s1 + $0xd0] sm:$0xff]
        %v9292 = vld [vmem:[%s1 + $0xd8] sm:$0xff]
        %v9293 = vld [vmem:[%s1 + $0xe0] sm:$0xff]
        %v9294 = vld [vmem:[%s1 + $0xe8] sm:$0xff]
        %v9295 = vld [vmem:[%s1 + $0xf0] sm:$0xff]
        %v9296 = vld [vmem:[%s1 + $0xf8] sm:$0xff]
        %v9297 = vld [vmem:[%s1 + $0x100] sm:$0xff]
        %v9298 = vld [vmem:[%s1 + $0x108] sm:$0xff]
        %v9299 = vld [vmem:[%s1 + $0x110] sm:$0xff]
        %v9300 = vld [vmem:[%s1 + $0x118] sm:$0xff]
        %v9301 = vld [vmem:[%s1 + $0x120] sm:$0xff]
        %v9302 = vld [vmem:[%s1 + $0x128] sm:$0xff]
        %v9303 = vld [vmem:[%s1 + $0x130] sm:$0xff]
        %v9304 = vld [vmem:[%s1 + $0x138] sm:$0xff]
        %v9305 = vld [vmem:[%s1 + $0x140] sm:$0xff]
        %v9306 = vld [vmem:[%s1 + $0x148] sm:$0xff]
        %v9307 = vld [vmem:[%s1 + $0x150] sm:$0xff]
        %v9308 = vld [vmem:[%s1 + $0x158] sm:$0xff]
        %v9309 = vld [vmem:[%s1 + $0x160] sm:$0xff]
        %v9310 = vld [vmem:[%s1 + $0x168] sm:$0xff]
        %v9311 = vld [vmem:[%s1 + $0x170] sm:$0xff]
        %v9312 = vld [vmem:[%s1 + $0x178] sm:$0xff]
        %v9313 = vld [vmem:[%s1 + $0x180] sm:$0xff]
        %v9314 = vld [vmem:[%s1 + $0x188] sm:$0xff]
        %v9315 = vld [vmem:[%s1 + $0x190] sm:$0xff]
        %v9316 = vld [vmem:[%s1 + $0x198] sm:$0xff]
        %v9317 = vld [vmem:[%s1 + $0x1a0] sm:$0xff]
        %v9318 = vld [vmem:[%s1 + $0x1a8] sm:$0xff]
        %v9319 = vld [vmem:[%s1 + $0x1b0] sm:$0xff]
        %v9320 = vld [vmem:[%s1 + $0x1b8] sm:$0xff]
        %v9321 = vld [vmem:[%s1 + $0x1c0] sm:$0xff]
        %v9322 = vld [vmem:[%s1 + $0x1c8] sm:$0xff]
        %v9323 = vld [vmem:[%s1 + $0x1d0] sm:$0xff]
        %v9324 = vld [vmem:[%s1 + $0x1d8] sm:$0xff]
        %v9325 = vld [vmem:[%s1 + $0x1e0] sm:$0xff]
        %v9326 = vld [vmem:[%s1 + $0x1e8] sm:$0xff]
        %v9327 = vld [vmem:[%s1 + $0x1f0] sm:$0xff]
        %v9328 = vld [vmem:[%s1 + $0x1f8] sm:$0xff]
        %v9329 = vld [vmem:[%s1 + $0x200] sm:$0xff]
        %v9330 = vld [vmem:[%s1 + $0x208] sm:$0xff]
        %v9331 = vld [vmem:[%s1 + $0x210] sm:$0xff]
        %v9332 = vld [vmem:[%s1 + $0x218] sm:$0xff]
        %v9333 = vld [vmem:[%s1 + $0x220] sm:$0xff]
        %v9334 = vld [vmem:[%s1 + $0x228] sm:$0xff]
        %v9335 = vld [vmem:[%s1 + $0x230] sm:$0xff]
        %v9336 = vld [vmem:[%s1 + $0x238] sm:$0xff]
        %v9337 = vld [vmem:[%s1 + $0x240] sm:$0xff]
        %v9338 = vld [vmem:[%s1 + $0x248] sm:$0xff]
        %v9339 = vld [vmem:[%s1 + $0x250] sm:$0xff]
        %v9340 = vld [vmem:[%s1 + $0x258] sm:$0xff]
        %v9341 = vld [vmem:[%s1 + $0x260] sm:$0xff]
        %v9342 = vld [vmem:[%s1 + $0x268] sm:$0xff]
        %v9343 = vld [vmem:[%s1 + $0x270] sm:$0xff]
        %v9344 = vld [vmem:[%s1 + $0x278] sm:$0xff]
        %v9345 = vld [vmem:[%s1 + $0x280] sm:$0xff]
        %v9346 = vld [vmem:[%s1 + $0x288] sm:$0xff]
        %v9347 = vld [vmem:[%s1 + $0x290] sm:$0xff]
        %v9348 = vld [vmem:[%s1 + $0x298] sm:$0xff]
        %v9349 = vld [vmem:[%s1 + $0x2a0] sm:$0xff]
        %v9350 = vld [vmem:[%s1 + $0x2a8] sm:$0xff]
        %v9351 = vld [vmem:[%s1 + $0x2b0] sm:$0xff]
        %v9352 = vld [vmem:[%s1 + $0x2b8] sm:$0xff]
        %v9353 = vld [vmem:[%s1 + $0x2c0] sm:$0xff]
        %v9354 = vld [vmem:[%s1 + $0x2c8] sm:$0xff]
        %v9355 = vld [vmem:[%s1 + $0x2d0] sm:$0xff]
        %v9356 = vld [vmem:[%s1 + $0x2d8] sm:$0xff]
        %v9357 = vld [vmem:[%s1 + $0x2e0] sm:$0xff]
        %v9358 = vld [vmem:[%s1 + $0x2e8] sm:$0xff]
        %v9359 = vld [vmem:[%s1 + $0x2f0] sm:$0xff]
        %v9360 = vld [vmem:[%s1 + $0x2f8] sm:$0xff]
        %v9361 = vld [vmem:[%s1 + $0x300] sm:$0xff]
        %v9362 = vld [vmem:[%s1 + $0x308] sm:$0xff]
        %v9363 = vld [vmem:[%s1 + $0x310] sm:$0xff]
        %v9364 = vld [vmem:[%s1 + $0x318] sm:$0xff]
        %v9365 = vld [vmem:[%s1 + $0x320] sm:$0xff]
        %v9366 = vld [vmem:[%s1 + $0x328] sm:$0xff]
        %v9367 = vld [vmem:[%s1 + $0x330] sm:$0xff]
        %v9368 = vld [vmem:[%s1 + $0x338] sm:$0xff]
        %v9369 = vld [vmem:[%s1 + $0x340] sm:$0xff]
        %v9370 = vld [vmem:[%s1 + $0x348] sm:$0xff]
        %v9371 = vld [vmem:[%s1 + $0x350] sm:$0xff]
        %v9372 = vld [vmem:[%s1 + $0x358] sm:$0xff]
        %v9373 = vld [vmem:[%s1 + $0x360] sm:$0xff]
        %v9374 = vld [vmem:[%s1 + $0x368] sm:$0xff]
        %v9375 = vld [vmem:[%s1 + $0x370] sm:$0xff]
        %v9376 = vld [vmem:[%s1 + $0x378] sm:$0xff]
        %v9377 = vld [vmem:[%s1 + $0x380] sm:$0xff]
        %v9378 = vld [vmem:[%s1 + $0x388] sm:$0xff]
        %v9379 = vld [vmem:[%s1 + $0x390] sm:$0xff]
        %v9380 = vld [vmem:[%s1 + $0x398] sm:$0xff]
        %v9381 = vld [vmem:[%s1 + $0x3a0] sm:$0xff]
        %v9382 = vld [vmem:[%s1 + $0x3a8] sm:$0xff]
        %v9383 = vld [vmem:[%s1 + $0x3b0] sm:$0xff]
        %v9384 = vld [vmem:[%s1 + $0x3b8] sm:$0xff]
        %v9385 = vld [vmem:[%s1 + $0x3c0] sm:$0xff]
        %v9386 = vld [vmem:[%s1 + $0x3c8] sm:$0xff]
        %v9387 = vld [vmem:[%s1 + $0x3d0] sm:$0xff]
        %v9388 = vld [vmem:[%s1 + $0x3d8] sm:$0xff]
        %v9389 = vld [vmem:[%s1 + $0x3e0] sm:$0xff]
        %v9390 = vld [vmem:[%s1 + $0x3e8] sm:$0xff]
        %v9391 = vld [vmem:[%s1 + $0x3f0] sm:$0xff]
        %v9392 = vld [vmem:[%s1 + $0x3f8] sm:$0xff]
        %v9393 = vld [vmem:[%s1 + $0x400] sm:$0xff]
        %v9394 = vld [vmem:[%s1 + $0x408] sm:$0xff]
        %v9395 = vld [vmem:[%s1 + $0x410] sm:$0xff]
        %v9396 = vld [vmem:[%s1 + $0x418] sm:$0xff]
        %v9397 = vld [vmem:[%s1 + $0x420] sm:$0xff]
        %v9398 = vld [vmem:[%s1 + $0x428] sm:$0xff]
        %v9399 = vld [vmem:[%s1 + $0x430] sm:$0xff]
        %v9400 = vld [vmem:[%s1 + $0x438] sm:$0xff]
        %v9401 = vld [vmem:[%s1 + $0x440] sm:$0xff]
        %v9402 = vld [vmem:[%s1 + $0x448] sm:$0xff]
        %v9403 = vld [vmem:[%s1 + $0x450] sm:$0xff]
        %v9404 = vld [vmem:[%s1 + $0x458] sm:$0xff]
        %v9405 = vld [vmem:[%s1 + $0x460] sm:$0xff]
        %v9406 = vld [vmem:[%s1 + $0x468] sm:$0xff]
        %v9407 = vld [vmem:[%s1 + $0x470] sm:$0xff]
        %v9408 = vld [vmem:[%s1 + $0x478] sm:$0xff]
        %v9409 = vld [vmem:[%s1 + $0x480] sm:$0xff]
        %v9410 = vld [vmem:[%s1 + $0x488] sm:$0xff]
        %v9411 = vld [vmem:[%s1 + $0x490] sm:$0xff]
        %v9412 = vld [vmem:[%s1 + $0x498] sm:$0xff]
        %v9413 = vld [vmem:[%s1 + $0x4a0] sm:$0xff]
        %v9414 = vld [vmem:[%s1 + $0x4a8] sm:$0xff]
        %v9415 = vld [vmem:[%s1 + $0x4b0] sm:$0xff]
        %v9416 = vld [vmem:[%s1 + $0x4b8] sm:$0xff]
        %v9417 = vld [vmem:[%s1 + $0x4c0] sm:$0xff]
        %v9418 = vld [vmem:[%s1 + $0x4c8] sm:$0xff]
        %v9419 = vld [vmem:[%s1 + $0x4d0] sm:$0xff]
        %v9420 = vld [vmem:[%s1 + $0x4d8] sm:$0xff]
        %v9421 = vld [vmem:[%s1 + $0x4e0] sm:$0xff]
        %v9422 = vld [vmem:[%s1 + $0x4e8] sm:$0xff]
        %v9423 = vld [vmem:[%s1 + $0x4f0] sm:$0xff]
        %v9424 = vld [vmem:[%s1 + $0x4f8] sm:$0xff]
        %v9425 = vld [vmem:[%s1 + $0x500] sm:$0xff]
        %v9426 = vld [vmem:[%s1 + $0x508] sm:$0xff]
        %v9427 = vsel %vm252, %v415, 0
        %v9429 = vsel %vm252, %v416, 0
        %v9431 = vsel %vm252, %v418, 0
        %v9433 = vsel %vm252, %v419, 0
        %v9435 = vsel %vm252, %v421, 0
        %v9437 = vsel %vm252, %v422, 0
        %v9439 = vsel %vm252, %v424, 0
        %v9441 = vsel %vm252, %v425, 0
        %v9443 = vsel %vm252, %v427, 0
        %v9445 = vsel %vm252, %v428, 0
        %v9447 = vsel %vm252, %v430, 0
        %v9449 = vsel %vm252, %v431, 0
        %v9451 = vsel %vm252, %v433, 0
        %v9453 = vsel %vm252, %v434, 0
        %v9455 = vsel %vm252, %v436, 0
        %v9457 = vsel %vm252, %v437, 0
        %v9459 = vsel %vm252, %v439, 0
        %v9461 = vsel %vm252, %v440, 0
        %v9463 = vsel %vm252, %v442, 0
        %v9465 = vsel %vm252, %v443, 0
        %v9467 = vsel %vm252, %v445, 0
        %v9469 = vsel %vm252, %v446, 0
        %v9471 = vsel %vm252, %v448, 0
        %v9473 = vsel %vm252, %v449, 0
        %v9475 = vsel %vm252, %v451, 0
        %v9477 = vsel %vm252, %v452, 0
        %v9479 = vsel %vm252, %v454, 0
        %v9481 = vsel %vm252, %v455, 0
        %v9483 = vsel %vm252, %v457, 0
        %v9485 = vsel %vm252, %v458, 0
        %v9487 = vsel %vm252, %v460, 0
        %v9489 = vsel %vm252, %v461, 0
        %9491 = vmatprep.subr.mxu0 0.0
        %9492 = vmatpush1.msra.mxu0 %v9265
        %9493 = vmatprep.subr.mxu0 0.0
        %9494 = vmatpush1.msra.mxu0 %v9266
        %9495 = vmatprep.subr.mxu0 0.0
        %9496 = vmatpush1.msra.mxu0 %v9267
        %9497 = vmatprep.subr.mxu0 0.0
        %9498 = vmatpush1.msra.mxu0 %v9268
        %9499 = vmatprep.subr.mxu0 0.0
        %9500 = vmatpush1.msra.mxu0 %v9269
        %9501 = vmatprep.subr.mxu0 0.0
        %9502 = vmatpush1.msra.mxu0 %v9270
        %9503 = vmatprep.subr.mxu0 0.0
        %9504 = vmatpush1.msra.mxu0 %v9271
        %9505 = vmatprep.subr.mxu0 0.0
        %9506 = vmatpush1.msra.mxu0 %v9272
        %9507 = vmatprep.subr.mxu0 0.0
        %9508 = vmatpush1.msra.mxu0 %v9273
        %9509 = vmatprep.subr.mxu0 0.0
        %9510 = vmatpush1.msra.mxu0 %v9274
        %9511 = vmatprep.subr.mxu0 0.0
        %9512 = vmatpush1.msra.mxu0 %v9275
        %9513 = vmatprep.subr.mxu0 0.0
        %9514 = vmatpush1.msra.mxu0 %v9276
        %9515 = vmatprep.subr.mxu0 0.0
        %9516 = vmatpush1.msra.mxu0 %v9277
        %9517 = vmatprep.subr.mxu0 0.0
        %9518 = vmatpush1.msra.mxu0 %v9278
        %9519 = vmatprep.subr.mxu0 0.0
        %9520 = vmatpush1.msra.mxu0 %v9279
        %9521 = vmatprep.subr.mxu0 0.0
        %9522 = vmatpush1.msra.mxu0 %v9280
        %9523 = vmatprep.subr.mxu0 0.0
        %9524 = vmatpush1.msra.mxu0 %v9281
        %9525 = vmatprep.subr.mxu0 0.0
        %9526 = vmatpush1.msra.mxu0 %v9282
        %9527 = vmatprep.subr.mxu0 0.0
        %9528 = vmatpush1.msra.mxu0 %v9283
        %9529 = vmatprep.subr.mxu0 0.0
        %9530 = vmatpush1.msra.mxu0 %v9284
        %9531 = vmatprep.subr.mxu0 0.0
        %9532 = vmatpush1.msra.mxu0 %v9285
        %9533 = vmatprep.subr.mxu0 0.0
        %9534 = vmatpush1.msra.mxu0 %v9286
        %9535 = vmatprep.subr.mxu0 0.0
        %9536 = vmatpush1.msra.mxu0 %v9287
        %9537 = vmatprep.subr.mxu0 0.0
        %9538 = vmatpush1.msra.mxu0 %v9288
        %9539 = vmatprep.subr.mxu0 0.0
        %9540 = vmatpush1.msra.mxu0 %v9289
        %9541 = vmatprep.subr.mxu0 0.0
        %9542 = vmatpush1.msra.mxu0 %v9290
        %9543 = vmatprep.subr.mxu0 0.0
        %9544 = vmatpush1.msra.mxu0 %v9291
        %9545 = vmatprep.subr.mxu0 0.0
        %9546 = vmatpush1.msra.mxu0 %v9292
        %9547 = vmatprep.subr.mxu0 0.0
        %9548 = vmatpush1.msra.mxu0 %v9293
        %9549 = vmatprep.subr.mxu0 0.0
        %9550 = vmatpush1.msra.mxu0 %v9294
        %9551 = vmatprep.subr.mxu0 0.0
        %9552 = vmatpush1.msra.mxu0 %v9295
        %9553 = vmatprep.subr.mxu0 0.0
        %9554 = vmatpush1.msra.mxu0 %v9296
        %9555 = vmatprep.mubr.f32.mxu0 %v2876
        %9556 = vmatmul.mubr.f32.gmra.mrb[0].mxu0 %v2652
        %v9557 = vpop.f32.mrb[0].mxu0
        %v9558 = vadd.f32 0.0, %v9557
        %v9559 = vpop.f32.mrb[0].mxu0
        %9560 = vmatprep.mubr.f32.mxu0 %v2877
        %9561 = vmatmul.mubr.f32.gmra.mrb[0].mxu0 %v2653
        %v9562 = vpop.f32.mrb[0].mxu0
        %v9563 = vadd.f32 0.0, %v9562
        %v9564 = vpop.f32.mrb[0].mxu0
        %9565 = vmatprep.mubr.f32.mxu0 %v2878
        %9566 = vmatmul.mubr.f32.gmra.mrb[0].mxu0 %v2654
        %v9567 = vpop.f32.mrb[0].mxu0
        %v9568 = vadd.f32 0.0, %v9567
        %v9569 = vpop.f32.mrb[0].mxu0
        %9570 = vmatprep.mubr.f32.mxu0 %v2879
        %9571 = vmatmul.mubr.f32.gmra.mrb[0].mxu0 %v2655
        %v9572 = vpop.f32.mrb[0].mxu0
        %v9573 = vadd.f32 0.0, %v9572
        %v9574 = vpop.f32.mrb[0].mxu0
        %9575 = vmatprep.mubr.f32.mxu0 %v2880
        %9576 = vmatmul.mubr.f32.gmra.mrb[0].mxu0 %v2656
        %v9577 = vpop.f32.mrb[0].mxu0
        %v9578 = vadd.f32 0.0, %v9577
        %v9579 = vpop.f32.mrb[0].mxu0
        %9580 = vmatprep.mubr.f32.mxu0 %v2881
        %9581 = vmatmul.mubr.f32.gmra.mrb[0].mxu0 %v2657
        %v9582 = vpop.f32.mrb[0].mxu0
        %v9583 = vadd.f32 0.0, %v9582
        %v9584 = vpop.f32.mrb[0].mxu0
        %9585 = vmatprep.mubr.f32.mxu0 %v2882
        %9586 = vmatmul.mubr.f32.gmra.mrb[0].mxu0 %v2658
        %v9587 = vpop.f32.mrb[0].mxu0
        %v9588 = vadd.f32 0.0, %v9587
        %v9589 = vpop.f32.mrb[0].mxu0
        %9590 = vmatprep.mubr.f32.mxu0 %v2883
        %9591 = vmatmul.mubr.f32.gmra.mrb[0].mxu0 %v2659
        %v9592 = vpop.f32.mrb[0].mxu0
        %v9593 = vadd.f32 0.0, %v9592
        %v9594 = vpop.f32.mrb[0].mxu0
        %9595 = vmatprep.mubr.f32.mxu0 %v2884
        %9596 = vmatmul.mubr.f32.gmra.mrb[0].mxu0 %v2660
        %v9597 = vpop.f32.mrb[0].mxu0
        %v9598 = vadd.f32 0.0, %v9597
        %v9599 = vpop.f32.mrb[0].mxu0
        %9600 = vmatprep.mubr.f32.mxu0 %v2885
        %9601 = vmatmul.mubr.f32.gmra.mrb[0].mxu0 %v2661
        %v9602 = vpop.f32.mrb[0].mxu0
        %v9603 = vadd.f32 0.0, %v9602
        %v9604 = vpop.f32.mrb[0].mxu0
        %9605 = vmatprep.mubr.f32.mxu0 %v2886
        %9606 = vmatmul.mubr.f32.gmra.mrb[0].mxu0 %v2662
        %v9607 = vpop.f32.mrb[0].mxu0
        %v9608 = vadd.f32 0.0, %v9607
        %v9609 = vpop.f32.mrb[0].mxu0
        %9610 = vmatprep.mubr.f32.mxu0 %v2887
        %9611 = vmatmul.mubr.f32.gmra.mrb[0].mxu0 %v2663
        %v9612 = vpop.f32.mrb[0].mxu0
        %v9613 = vadd.f32 0.0, %v9612
        %v9614 = vpop.f32.mrb[0].mxu0
        %9615 = vmatprep.mubr.f32.mxu0 %v2888
        %9616 = vmatmul.mubr.f32.gmra.mrb[0].mxu0 %v2664
        %v9617 = vpop.f32.mrb[0].mxu0
        %v9618 = vadd.f32 0.0, %v9617
        %v9619 = vpop.f32.mrb[0].mxu0
        %9620 = vmatprep.mubr.f32.mxu0 %v2889
        %9621 = vmatmul.mubr.f32.gmra.mrb[0].mxu0 %v2665
        %v9622 = vpop.f32.mrb[0].mxu0
        %v9623 = vadd.f32 0.0, %v9622
        %v9624 = vpop.f32.mrb[0].mxu0
        %9625 = vmatprep.mubr.f32.mxu0 %v2890
        %9626 = vmatmul.mubr.f32.gmra.mrb[0].mxu0 %v2666
        %v9627 = vpop.f32.mrb[0].mxu0
        %v9628 = vadd.f32 0.0, %v9627
        %v9629 = vpop.f32.mrb[0].mxu0
        %9630 = vmatprep.mubr.f32.mxu0 %v2891
        %9631 = vmatmul.mubr.f32.gmra.mrb[0].mxu0 %v2667
        %v9632 = vpop.f32.mrb[0].mxu0
        %v9633 = vadd.f32 0.0, %v9632
        %v9634 = vpop.f32.mrb[0].mxu0
        %9635 = vmatprep.mubr.f32.mxu0 %v2892
        %9636 = vmatmul.mubr.f32.gmra.mrb[0].mxu0 %v2668
        %v9637 = vpop.f32.mrb[0].mxu0
        %v9638 = vadd.f32 0.0, %v9637
        %v9639 = vpop.f32.mrb[0].mxu0
        %9640 = vmatprep.mubr.f32.mxu0 %v2893
        %9641 = vmatmul.mubr.f32.gmra.mrb[0].mxu0 %v2669
        %v9642 = vpop.f32.mrb[0].mxu0
        %v9643 = vadd.f32 0.0, %v9642
        %v9644 = vpop.f32.mrb[0].mxu0
        %9645 = vmatprep.mubr.f32.mxu0 %v2894
        %9646 = vmatmul.mubr.f32.gmra.mrb[0].mxu0 %v2670
        %v9647 = vpop.f32.mrb[0].mxu0
        %v9648 = vadd.f32 0.0, %v9647
        %v9649 = vpop.f32.mrb[0].mxu0
        %9650 = vmatprep.mubr.f32.mxu0 %v2895
        %9651 = vmatmul.mubr.f32.gmra.mrb[0].mxu0 %v2671
        %v9652 = vpop.f32.mrb[0].mxu0
        %v9653 = vadd.f32 0.0, %v9652
        %v9654 = vpop.f32.mrb[0].mxu0
        %9655 = vmatprep.mubr.f32.mxu0 %v2896
        %9656 = vmatmul.mubr.f32.gmra.mrb[0].mxu0 %v2672
        %v9657 = vpop.f32.mrb[0].mxu0
        %v9658 = vadd.f32 0.0, %v9657
        %v9659 = vpop.f32.mrb[0].mxu0
        %9660 = vmatprep.mubr.f32.mxu0 %v2897
        %9661 = vmatmul.mubr.f32.gmra.mrb[0].mxu0 %v2673
        %v9662 = vpop.f32.mrb[0].mxu0
        %v9663 = vadd.f32 0.0, %v9662
        %v9664 = vpop.f32.mrb[0].mxu0
        %9665 = vmatprep.mubr.f32.mxu0 %v2898
        %9666 = vmatmul.mubr.f32.gmra.mrb[0].mxu0 %v2674
        %v9667 = vpop.f32.mrb[0].mxu0
        %v9668 = vadd.f32 0.0, %v9667
        %v9669 = vpop.f32.mrb[0].mxu0
        %9670 = vmatprep.mubr.f32.mxu0 %v2899
        %9671 = vmatmul.mubr.f32.gmra.mrb[0].mxu0 %v2675
        %v9672 = vpop.f32.mrb[0].mxu0
        %v9673 = vadd.f32 0.0, %v9672
        %v9674 = vpop.f32.mrb[0].mxu0
        %9675 = vmatprep.mubr.f32.mxu0 %v2900
        %9676 = vmatmul.mubr.f32.gmra.mrb[0].mxu0 %v2676
        %v9677 = vpop.f32.mrb[0].mxu0
        %v9678 = vadd.f32 0.0, %v9677
        %v9679 = vpop.f32.mrb[0].mxu0
        %9680 = vmatprep.mubr.f32.mxu0 %v2901
        %9681 = vmatmul.mubr.f32.gmra.mrb[0].mxu0 %v2677
        %v9682 = vpop.f32.mrb[0].mxu0
        %v9683 = vadd.f32 0.0, %v9682
        %v9684 = vpop.f32.mrb[0].mxu0
        %9685 = vmatprep.mubr.f32.mxu0 %v2902
        %9686 = vmatmul.mubr.f32.gmra.mrb[0].mxu0 %v2678
        %v9687 = vpop.f32.mrb[0].mxu0
        %v9688 = vadd.f32 0.0, %v9687
        %v9689 = vpop.f32.mrb[0].mxu0
        %9690 = vmatprep.mubr.f32.mxu0 %v2903
        %9691 = vmatmul.mubr.f32.gmra.mrb[0].mxu0 %v2679
        %v9692 = vpop.f32.mrb[0].mxu0
        %v9693 = vadd.f32 0.0, %v9692
        %v9694 = vpop.f32.mrb[0].mxu0
        %9695 = vmatprep.mubr.f32.mxu0 %v2904
        %9696 = vmatmul.mubr.f32.gmra.mrb[0].mxu0 %v2680
        %v9697 = vpop.f32.mrb[0].mxu0
        %v9698 = vadd.f32 0.0, %v9697
        %v9699 = vpop.f32.mrb[0].mxu0
        %9700 = vmatprep.mubr.f32.mxu0 %v2905
        %9701 = vmatmul.mubr.f32.gmra.mrb[0].mxu0 %v2681
        %v9702 = vpop.f32.mrb[0].mxu0
        %v9703 = vadd.f32 0.0, %v9702
        %v9704 = vpop.f32.mrb[0].mxu0
        %9705 = vmatprep.mubr.f32.mxu0 %v2906
        %9706 = vmatmul.mubr.f32.gmra.mrb[0].mxu0 %v2682
        %v9707 = vpop.f32.mrb[0].mxu0
        %v9708 = vadd.f32 0.0, %v9707
        %v9709 = vpop.f32.mrb[0].mxu0
        %9710 = vmatprep.mubr.f32.mxu0 %v2907
        %9711 = vmatmul.mubr.f32.gmra.mrb[0].mxu0 %v2683
        %v9712 = vpop.f32.mrb[0].mxu0
        %v9713 = vadd.f32 0.0, %v9712
        %v9714 = vpop.f32.mrb[0].mxu0
        %9715 = vdwg.mxu0
        %9716 = vmatprep.subr.mxu0 0.0
        %9717 = vmatpush1.msra.mxu0 %v9297
        %9718 = vmatprep.subr.mxu0 0.0
        %9719 = vmatpush1.msra.mxu0 %v9298
        %9720 = vmatprep.subr.mxu0 0.0
        %9721 = vmatpush1.msra.mxu0 %v9299
        %9722 = vmatprep.subr.mxu0 0.0
        %9723 = vmatpush1.msra.mxu0 %v9300
        %9724 = vmatprep.subr.mxu0 0.0
        %9725 = vmatpush1.msra.mxu0 %v9301
        %9726 = vmatprep.subr.mxu0 0.0
        %9727 = vmatpush1.msra.mxu0 %v9302
        %9728 = vmatprep.subr.mxu0 0.0
        %9729 = vmatpush1.msra.mxu0 %v9303
        %9730 = vmatprep.subr.mxu0 0.0
        %9731 = vmatpush1.msra.mxu0 %v9304
        %9732 = vmatprep.subr.mxu0 0.0
        %9733 = vmatpush1.msra.mxu0 %v9305
        %9734 = vmatprep.subr.mxu0 0.0
        %9735 = vmatpush1.msra.mxu0 %v9306
        %9736 = vmatprep.subr.mxu0 0.0
        %9737 = vmatpush1.msra.mxu0 %v9307
        %9738 = vmatprep.subr.mxu0 0.0
        %9739 = vmatpush1.msra.mxu0 %v9308
        %9740 = vmatprep.subr.mxu0 0.0
        %9741 = vmatpush1.msra.mxu0 %v9309
        %9742 = vmatprep.subr.mxu0 0.0
        %9743 = vmatpush1.msra.mxu0 %v9310
        %9744 = vmatprep.subr.mxu0 0.0
        %9745 = vmatpush1.msra.mxu0 %v9311
        %9746 = vmatprep.subr.mxu0 0.0
        %9747 = vmatpush1.msra.mxu0 %v9312
        %9748 = vmatprep.subr.mxu0 0.0
        %9749 = vmatpush1.msra.mxu0 %v9313
        %9750 = vmatprep.subr.mxu0 0.0
        %9751 = vmatpush1.msra.mxu0 %v9314
        %9752 = vmatprep.subr.mxu0 0.0
        %9753 = vmatpush1.msra.mxu0 %v9315
        %9754 = vmatprep.subr.mxu0 0.0
        %9755 = vmatpush1.msra.mxu0 %v9316
        %9756 = vmatprep.subr.mxu0 0.0
        %9757 = vmatpush1.msra.mxu0 %v9317
        %9758 = vmatprep.subr.mxu0 0.0
        %9759 = vmatpush1.msra.mxu0 %v9318
        %9760 = vmatprep.subr.mxu0 0.0
        %9761 = vmatpush1.msra.mxu0 %v9319
        %9762 = vmatprep.subr.mxu0 0.0
        %9763 = vmatpush1.msra.mxu0 %v9320
        %9764 = vmatprep.subr.mxu0 0.0
        %9765 = vmatpush1.msra.mxu0 %v9321
        %9766 = vmatprep.subr.mxu0 0.0
        %9767 = vmatpush1.msra.mxu0 %v9322
        %9768 = vmatprep.subr.mxu0 0.0
        %9769 = vmatpush1.msra.mxu0 %v9323
        %9770 = vmatprep.subr.mxu0 0.0
        %9771 = vmatpush1.msra.mxu0 %v9324
        %9772 = vmatprep.subr.mxu0 0.0
        %9773 = vmatpush1.msra.mxu0 %v9325
        %9774 = vmatprep.subr.mxu0 0.0
        %9775 = vmatpush1.msra.mxu0 %v9326
        %9776 = vmatprep.subr.mxu0 0.0
        %9777 = vmatpush1.msra.mxu0 %v9327
        %9778 = vmatprep.subr.mxu0 0.0
        %9779 = vmatpush1.msra.mxu0 %v9328
        %9780 = vmatprep.mubr.f32.mxu0 %v8086
        %9781 = vmatmul.mubr.f32.gmra.mrb[0].mxu0 %v8083
        %v9782 = vpop.f32.mrb[0].mxu0
        %v9783 = vadd.f32 %v9558, %v9782
        %v9784 = vpop.f32.mrb[0].mxu0
        %9785 = vmatprep.mubr.f32.mxu0 %v8090
        %9786 = vmatmul.mubr.f32.gmra.mrb[0].mxu0 %v8088
        %v9787 = vpop.f32.mrb[0].mxu0
        %v9788 = vadd.f32 %v9563, %v9787
        %v9789 = vpop.f32.mrb[0].mxu0
        %9790 = vmatprep.mubr.f32.mxu0 %v8096
        %9791 = vmatmul.mubr.f32.gmra.mrb[0].mxu0 %v8093
        %v9792 = vpop.f32.mrb[0].mxu0
        %v9793 = vadd.f32 %v9568, %v9792
        %v9794 = vpop.f32.mrb[0].mxu0
        %9795 = vmatprep.mubr.f32.mxu0 %v8100
        %9796 = vmatmul.mubr.f32.gmra.mrb[0].mxu0 %v8098
        %v9797 = vpop.f32.mrb[0].mxu0
        %v9798 = vadd.f32 %v9573, %v9797
        %v9799 = vpop.f32.mrb[0].mxu0
        %9800 = vmatprep.mubr.f32.mxu0 %v8106
        %9801 = vmatmul.mubr.f32.gmra.mrb[0].mxu0 %v8103
        %v9802 = vpop.f32.mrb[0].mxu0
        %v9803 = vadd.f32 %v9578, %v9802
        %v9804 = vpop.f32.mrb[0].mxu0
        %9805 = vmatprep.mubr.f32.mxu0 %v8110
        %9806 = vmatmul.mubr.f32.gmra.mrb[0].mxu0 %v8108
        %v9807 = vpop.f32.mrb[0].mxu0
        %v9808 = vadd.f32 %v9583, %v9807
        %v9809 = vpop.f32.mrb[0].mxu0
        %9810 = vmatprep.mubr.f32.mxu0 %v8116
        %9811 = vmatmul.mubr.f32.gmra.mrb[0].mxu0 %v8113
        %v9812 = vpop.f32.mrb[0].mxu0
        %v9813 = vadd.f32 %v9588, %v9812
        %v9814 = vpop.f32.mrb[0].mxu0
        %9815 = vmatprep.mubr.f32.mxu0 %v8120
        %9816 = vmatmul.mubr.f32.gmra.mrb[0].mxu0 %v8118
        %v9817 = vpop.f32.mrb[0].mxu0
        %v9818 = vadd.f32 %v9593, %v9817
        %v9819 = vpop.f32.mrb[0].mxu0
        %9820 = vmatprep.mubr.f32.mxu0 %v8126
        %9821 = vmatmul.mubr.f32.gmra.mrb[0].mxu0 %v8123
        %v9822 = vpop.f32.mrb[0].mxu0
        %v9823 = vadd.f32 %v9598, %v9822
        %v9824 = vpop.f32.mrb[0].mxu0
        %9825 = vmatprep.mubr.f32.mxu0 %v8130
        %9826 = vmatmul.mubr.f32.gmra.mrb[0].mxu0 %v8128
        %v9827 = vpop.f32.mrb[0].mxu0
        %v9828 = vadd.f32 %v9603, %v9827
        %v9829 = vpop.f32.mrb[0].mxu0
        %9830 = vmatprep.mubr.f32.mxu0 %v8136
        %9831 = vmatmul.mubr.f32.gmra.mrb[0].mxu0 %v8133
        %v9832 = vpop.f32.mrb[0].mxu0
        %v9833 = vadd.f32 %v9608, %v9832
        %v9834 = vpop.f32.mrb[0].mxu0
        %9835 = vmatprep.mubr.f32.mxu0 %v8140
        %9836 = vmatmul.mubr.f32.gmra.mrb[0].mxu0 %v8138
        %v9837 = vpop.f32.mrb[0].mxu0
        %v9838 = vadd.f32 %v9613, %v9837
        %v9839 = vpop.f32.mrb[0].mxu0
        %9840 = vmatprep.mubr.f32.mxu0 %v8146
        %9841 = vmatmul.mubr.f32.gmra.mrb[0].mxu0 %v8143
        %v9842 = vpop.f32.mrb[0].mxu0
        %v9843 = vadd.f32 %v9618, %v9842
        %v9844 = vpop.f32.mrb[0].mxu0
        %9845 = vmatprep.mubr.f32.mxu0 %v8150
        %9846 = vmatmul.mubr.f32.gmra.mrb[0].mxu0 %v8148
        %v9847 = vpop.f32.mrb[0].mxu0
        %v9848 = vadd.f32 %v9623, %v9847
        %v9849 = vpop.f32.mrb[0].mxu0
        %9850 = vmatprep.mubr.f32.mxu0 %v8156
        %9851 = vmatmul.mubr.f32.gmra.mrb[0].mxu0 %v8153
        %v9852 = vpop.f32.mrb[0].mxu0
        %v9853 = vadd.f32 %v9628, %v9852
        %v9854 = vpop.f32.mrb[0].mxu0
        %9855 = vmatprep.mubr.f32.mxu0 %v8160
        %9856 = vmatmul.mubr.f32.gmra.mrb[0].mxu0 %v8158
        %v9857 = vpop.f32.mrb[0].mxu0
        %v9858 = vadd.f32 %v9633, %v9857
        %v9859 = vpop.f32.mrb[0].mxu0
        %9860 = vmatprep.mubr.f32.mxu0 %v8166
        %9861 = vmatmul.mubr.f32.gmra.mrb[0].mxu0 %v8163
        %v9862 = vpop.f32.mrb[0].mxu0
        %v9863 = vadd.f32 %v9638, %v9862
        %v9864 = vpop.f32.mrb[0].mxu0
        %9865 = vmatprep.mubr.f32.mxu0 %v8170
        %9866 = vmatmul.mubr.f32.gmra.mrb[0].mxu0 %v8168
        %v9867 = vpop.f32.mrb[0].mxu0
        %v9868 = vadd.f32 %v9643, %v9867
        %v9869 = vpop.f32.mrb[0].mxu0
        %9870 = vmatprep.mubr.f32.mxu0 %v8176
        %9871 = vmatmul.mubr.f32.gmra.mrb[0].mxu0 %v8173
        %v9872 = vpop.f32.mrb[0].mxu0
        %v9873 = vadd.f32 %v9648, %v9872
        %v9874 = vpop.f32.mrb[0].mxu0
        %9875 = vmatprep.mubr.f32.mxu0 %v8180
        %9876 = vmatmul.mubr.f32.gmra.mrb[0].mxu0 %v8178
        %v9877 = vpop.f32.mrb[0].mxu0
        %v9878 = vadd.f32 %v9653, %v9877
        %v9879 = vpop.f32.mrb[0].mxu0
        %9880 = vmatprep.mubr.f32.mxu0 %v8186
        %9881 = vmatmul.mubr.f32.gmra.mrb[0].mxu0 %v8183
        %v9882 = vpop.f32.mrb[0].mxu0
        %v9883 = vadd.f32 %v9658, %v9882
        %v9884 = vpop.f32.mrb[0].mxu0
        %9885 = vmatprep.mubr.f32.mxu0 %v8190
        %9886 = vmatmul.mubr.f32.gmra.mrb[0].mxu0 %v8188
        %v9887 = vpop.f32.mrb[0].mxu0
        %v9888 = vadd.f32 %v9663, %v9887
        %v9889 = vpop.f32.mrb[0].mxu0
        %9890 = vmatprep.mubr.f32.mxu0 %v8196
        %9891 = vmatmul.mubr.f32.gmra.mrb[0].mxu0 %v8193
        %v9892 = vpop.f32.mrb[0].mxu0
        %v9893 = vadd.f32 %v9668, %v9892
        %v9894 = vpop.f32.mrb[0].mxu0
        %9895 = vmatprep.mubr.f32.mxu0 %v8200
        %9896 = vmatmul.mubr.f32.gmra.mrb[0].mxu0 %v8198
        %v9897 = vpop.f32.mrb[0].mxu0
        %v9898 = vadd.f32 %v9673, %v9897
        %v9899 = vpop.f32.mrb[0].mxu0
        %9900 = vmatprep.mubr.f32.mxu0 %v8206
        %9901 = vmatmul.mubr.f32.gmra.mrb[0].mxu0 %v8203
        %v9902 = vpop.f32.mrb[0].mxu0
        %v9903 = vadd.f32 %v9678, %v9902
        %v9904 = vpop.f32.mrb[0].mxu0
        %9905 = vmatprep.mubr.f32.mxu0 %v8210
        %9906 = vmatmul.mubr.f32.gmra.mrb[0].mxu0 %v8208
        %v9907 = vpop.f32.mrb[0].mxu0
        %v9908 = vadd.f32 %v9683, %v9907
        %v9909 = vpop.f32.mrb[0].mxu0
        %9910 = vmatprep.mubr.f32.mxu0 %v8216
        %9911 = vmatmul.mubr.f32.gmra.mrb[0].mxu0 %v8213
        %v9912 = vpop.f32.mrb[0].mxu0
        %v9913 = vadd.f32 %v9688, %v9912
        %v9914 = vpop.f32.mrb[0].mxu0
        %9915 = vmatprep.mubr.f32.mxu0 %v8220
        %9916 = vmatmul.mubr.f32.gmra.mrb[0].mxu0 %v8218
        %v9917 = vpop.f32.mrb[0].mxu0
        %v9918 = vadd.f32 %v9693, %v9917
        %v9919 = vpop.f32.mrb[0].mxu0
        %9920 = vmatprep.mubr.f32.mxu0 %v8226
        %9921 = vmatmul.mubr.f32.gmra.mrb[0].mxu0 %v8223
        %v9922 = vpop.f32.mrb[0].mxu0
        %v9923 = vadd.f32 %v9698, %v9922
        %v9924 = vpop.f32.mrb[0].mxu0
        %9925 = vmatprep.mubr.f32.mxu0 %v8230
        %9926 = vmatmul.mubr.f32.gmra.mrb[0].mxu0 %v8228
        %v9927 = vpop.f32.mrb[0].mxu0
        %v9928 = vadd.f32 %v9703, %v9927
        %v9929 = vpop.f32.mrb[0].mxu0
        %9930 = vmatprep.mubr.f32.mxu0 %v8236
        %9931 = vmatmul.mubr.f32.gmra.mrb[0].mxu0 %v8233
        %v9932 = vpop.f32.mrb[0].mxu0
        %v9933 = vadd.f32 %v9708, %v9932
        %v9934 = vpop.f32.mrb[0].mxu0
        %9935 = vmatprep.mubr.f32.mxu0 %v8240
        %9936 = vmatmul.mubr.f32.gmra.mrb[0].mxu0 %v8238
        %v9937 = vpop.f32.mrb[0].mxu0
        %v9938 = vadd.f32 %v9713, %v9937
        %v9939 = vpop.f32.mrb[0].mxu0
        %9940 = vdwg.mxu0
        %9941 = vmatprep.subr.mxu0 0.0
        %9942 = vmatpush1.msra.mxu0 %v9329
        %9943 = vmatprep.subr.mxu0 0.0
        %9944 = vmatpush1.msra.mxu0 %v9330
        %9945 = vmatprep.subr.mxu0 0.0
        %9946 = vmatpush1.msra.mxu0 %v9331
        %9947 = vmatprep.subr.mxu0 0.0
        %9948 = vmatpush1.msra.mxu0 %v9332
        %9949 = vmatprep.subr.mxu0 0.0
        %9950 = vmatpush1.msra.mxu0 %v9333
        %9951 = vmatprep.subr.mxu0 0.0
        %9952 = vmatpush1.msra.mxu0 %v9334
        %9953 = vmatprep.subr.mxu0 0.0
        %9954 = vmatpush1.msra.mxu0 %v9335
        %9955 = vmatprep.subr.mxu0 0.0
        %9956 = vmatpush1.msra.mxu0 %v9336
        %9957 = vmatprep.subr.mxu0 0.0
        %9958 = vmatpush1.msra.mxu0 %v9337
        %9959 = vmatprep.subr.mxu0 0.0
        %9960 = vmatpush1.msra.mxu0 %v9338
        %9961 = vmatprep.subr.mxu0 0.0
        %9962 = vmatpush1.msra.mxu0 %v9339
        %9963 = vmatprep.subr.mxu0 0.0
        %9964 = vmatpush1.msra.mxu0 %v9340
        %9965 = vmatprep.subr.mxu0 0.0
        %9966 = vmatpush1.msra.mxu0 %v9341
        %9967 = vmatprep.subr.mxu0 0.0
        %9968 = vmatpush1.msra.mxu0 %v9342
        %9969 = vmatprep.subr.mxu0 0.0
        %9970 = vmatpush1.msra.mxu0 %v9343
        %9971 = vmatprep.subr.mxu0 0.0
        %9972 = vmatpush1.msra.mxu0 %v9344
        %9973 = vmatprep.subr.mxu0 0.0
        %9974 = vmatpush1.msra.mxu0 %v9345
        %9975 = vmatprep.subr.mxu0 0.0
        %9976 = vmatpush1.msra.mxu0 %v9346
        %9977 = vmatprep.subr.mxu0 0.0
        %9978 = vmatpush1.msra.mxu0 %v9347
        %9979 = vmatprep.subr.mxu0 0.0
        %9980 = vmatpush1.msra.mxu0 %v9348
        %9981 = vmatprep.subr.mxu0 0.0
        %9982 = vmatpush1.msra.mxu0 %v9349
        %9983 = vmatprep.subr.mxu0 0.0
        %9984 = vmatpush1.msra.mxu0 %v9350
        %9985 = vmatprep.subr.mxu0 0.0
        %9986 = vmatpush1.msra.mxu0 %v9351
        %9987 = vmatprep.subr.mxu0 0.0
        %9988 = vmatpush1.msra.mxu0 %v9352
        %9989 = vmatprep.subr.mxu0 0.0
        %9990 = vmatpush1.msra.mxu0 %v9353
        %9991 = vmatprep.subr.mxu0 0.0
        %9992 = vmatpush1.msra.mxu0 %v9354
        %9993 = vmatprep.subr.mxu0 0.0
        %9994 = vmatpush1.msra.mxu0 %v9355
        %9995 = vmatprep.subr.mxu0 0.0
        %9996 = vmatpush1.msra.mxu0 %v9356
        %9997 = vmatprep.subr.mxu0 0.0
        %9998 = vmatpush1.msra.mxu0 %v9357
        %9999 = vmatprep.subr.mxu0 0.0
        %10000 = vmatpush1.msra.mxu0 %v9358
        %10001 = vmatprep.subr.mxu0 0.0
        %10002 = vmatpush1.msra.mxu0 %v9359
        %10003 = vmatprep.subr.mxu0 0.0
        %10004 = vmatpush1.msra.mxu0 %v9360
        %10005 = vmatprep.mubr.f32.mxu0 %v8406
        %10006 = vmatmul.mubr.f32.gmra.mrb[0].mxu0 %v8403
        %v10007 = vpop.f32.mrb[0].mxu0
        %v10008 = vadd.f32 %v9783, %v10007
        %v10009 = vpop.f32.mrb[0].mxu0
        %10010 = vmatprep.mubr.f32.mxu0 %v8410
        %10011 = vmatmul.mubr.f32.gmra.mrb[0].mxu0 %v8408
        %v10012 = vpop.f32.mrb[0].mxu0
        %v10013 = vadd.f32 %v9788, %v10012
        %v10014 = vpop.f32.mrb[0].mxu0
        %10015 = vmatprep.mubr.f32.mxu0 %v8416
        %10016 = vmatmul.mubr.f32.gmra.mrb[0].mxu0 %v8413
        %v10017 = vpop.f32.mrb[0].mxu0
        %v10018 = vadd.f32 %v9793, %v10017
        %v10019 = vpop.f32.mrb[0].mxu0
        %10020 = vmatprep.mubr.f32.mxu0 %v8420
        %10021 = vmatmul.mubr.f32.gmra.mrb[0].mxu0 %v8418
        %v10022 = vpop.f32.mrb[0].mxu0
        %v10023 = vadd.f32 %v9798, %v10022
        %v10024 = vpop.f32.mrb[0].mxu0
        %10025 = vmatprep.mubr.f32.mxu0 %v8426
        %10026 = vmatmul.mubr.f32.gmra.mrb[0].mxu0 %v8423
        %v10027 = vpop.f32.mrb[0].mxu0
        %v10028 = vadd.f32 %v9803, %v10027
        %v10029 = vpop.f32.mrb[0].mxu0
        %10030 = vmatprep.mubr.f32.mxu0 %v8430
        %10031 = vmatmul.mubr.f32.gmra.mrb[0].mxu0 %v8428
        %v10032 = vpop.f32.mrb[0].mxu0
        %v10033 = vadd.f32 %v9808, %v10032
        %v10034 = vpop.f32.mrb[0].mxu0
        %10035 = vmatprep.mubr.f32.mxu0 %v8436
        %10036 = vmatmul.mubr.f32.gmra.mrb[0].mxu0 %v8433
        %v10037 = vpop.f32.mrb[0].mxu0
        %v10038 = vadd.f32 %v9813, %v10037
        %v10039 = vpop.f32.mrb[0].mxu0
        %10040 = vmatprep.mubr.f32.mxu0 %v8440
        %10041 = vmatmul.mubr.f32.gmra.mrb[0].mxu0 %v8438
        %v10042 = vpop.f32.mrb[0].mxu0
        %v10043 = vadd.f32 %v9818, %v10042
        %v10044 = vpop.f32.mrb[0].mxu0
        %10045 = vmatprep.mubr.f32.mxu0 %v8446
        %10046 = vmatmul.mubr.f32.gmra.mrb[0].mxu0 %v8443
        %v10047 = vpop.f32.mrb[0].mxu0
        %v10048 = vadd.f32 %v9823, %v10047
        %v10049 = vpop.f32.mrb[0].mxu0
        %10050 = vmatprep.mubr.f32.mxu0 %v8450
        %10051 = vmatmul.mubr.f32.gmra.mrb[0].mxu0 %v8448
        %v10052 = vpop.f32.mrb[0].mxu0
        %v10053 = vadd.f32 %v9828, %v10052
        %v10054 = vpop.f32.mrb[0].mxu0
        %10055 = vmatprep.mubr.f32.mxu0 %v8456
        %10056 = vmatmul.mubr.f32.gmra.mrb[0].mxu0 %v8453
        %v10057 = vpop.f32.mrb[0].mxu0
        %v10058 = vadd.f32 %v9833, %v10057
        %v10059 = vpop.f32.mrb[0].mxu0
        %10060 = vmatprep.mubr.f32.mxu0 %v8460
        %10061 = vmatmul.mubr.f32.gmra.mrb[0].mxu0 %v8458
        %v10062 = vpop.f32.mrb[0].mxu0
        %v10063 = vadd.f32 %v9838, %v10062
        %v10064 = vpop.f32.mrb[0].mxu0
        %10065 = vmatprep.mubr.f32.mxu0 %v8466
        %10066 = vmatmul.mubr.f32.gmra.mrb[0].mxu0 %v8463
        %v10067 = vpop.f32.mrb[0].mxu0
        %v10068 = vadd.f32 %v9843, %v10067
        %v10069 = vpop.f32.mrb[0].mxu0
        %10070 = vmatprep.mubr.f32.mxu0 %v8470
        %10071 = vmatmul.mubr.f32.gmra.mrb[0].mxu0 %v8468
        %v10072 = vpop.f32.mrb[0].mxu0
        %v10073 = vadd.f32 %v9848, %v10072
        %v10074 = vpop.f32.mrb[0].mxu0
        %10075 = vmatprep.mubr.f32.mxu0 %v8476
        %10076 = vmatmul.mubr.f32.gmra.mrb[0].mxu0 %v8473
        %v10077 = vpop.f32.mrb[0].mxu0
        %v10078 = vadd.f32 %v9853, %v10077
        %v10079 = vpop.f32.mrb[0].mxu0
        %10080 = vmatprep.mubr.f32.mxu0 %v8480
        %10081 = vmatmul.mubr.f32.gmra.mrb[0].mxu0 %v8478
        %v10082 = vpop.f32.mrb[0].mxu0
        %v10083 = vadd.f32 %v9858, %v10082
        %v10084 = vpop.f32.mrb[0].mxu0
        %10085 = vmatprep.mubr.f32.mxu0 %v8486
        %10086 = vmatmul.mubr.f32.gmra.mrb[0].mxu0 %v8483
        %v10087 = vpop.f32.mrb[0].mxu0
        %v10088 = vadd.f32 %v9863, %v10087
        %v10089 = vpop.f32.mrb[0].mxu0
        %10090 = vmatprep.mubr.f32.mxu0 %v8490
        %10091 = vmatmul.mubr.f32.gmra.mrb[0].mxu0 %v8488
        %v10092 = vpop.f32.mrb[0].mxu0
        %v10093 = vadd.f32 %v9868, %v10092
        %v10094 = vpop.f32.mrb[0].mxu0
        %10095 = vmatprep.mubr.f32.mxu0 %v8496
        %10096 = vmatmul.mubr.f32.gmra.mrb[0].mxu0 %v8493
        %v10097 = vpop.f32.mrb[0].mxu0
        %v10098 = vadd.f32 %v9873, %v10097
        %v10099 = vpop.f32.mrb[0].mxu0
        %10100 = vmatprep.mubr.f32.mxu0 %v8500
        %10101 = vmatmul.mubr.f32.gmra.mrb[0].mxu0 %v8498
        %v10102 = vpop.f32.mrb[0].mxu0
        %v10103 = vadd.f32 %v9878, %v10102
        %v10104 = vpop.f32.mrb[0].mxu0
        %10105 = vmatprep.mubr.f32.mxu0 %v8506
        %10106 = vmatmul.mubr.f32.gmra.mrb[0].mxu0 %v8503
        %v10107 = vpop.f32.mrb[0].mxu0
        %v10108 = vadd.f32 %v9883, %v10107
        %v10109 = vpop.f32.mrb[0].mxu0
        %10110 = vmatprep.mubr.f32.mxu0 %v8510
        %10111 = vmatmul.mubr.f32.gmra.mrb[0].mxu0 %v8508
        %v10112 = vpop.f32.mrb[0].mxu0
        %v10113 = vadd.f32 %v9888, %v10112
        %v10114 = vpop.f32.mrb[0].mxu0
        %10115 = vmatprep.mubr.f32.mxu0 %v8516
        %10116 = vmatmul.mubr.f32.gmra.mrb[0].mxu0 %v8513
        %v10117 = vpop.f32.mrb[0].mxu0
        %v10118 = vadd.f32 %v9893, %v10117
        %v10119 = vpop.f32.mrb[0].mxu0
        %10120 = vmatprep.mubr.f32.mxu0 %v8520
        %10121 = vmatmul.mubr.f32.gmra.mrb[0].mxu0 %v8518
        %v10122 = vpop.f32.mrb[0].mxu0
        %v10123 = vadd.f32 %v9898, %v10122
        %v10124 = vpop.f32.mrb[0].mxu0
        %10125 = vmatprep.mubr.f32.mxu0 %v8526
        %10126 = vmatmul.mubr.f32.gmra.mrb[0].mxu0 %v8523
        %v10127 = vpop.f32.mrb[0].mxu0
        %v10128 = vadd.f32 %v9903, %v10127
        %v10129 = vpop.f32.mrb[0].mxu0
        %10130 = vmatprep.mubr.f32.mxu0 %v8530
        %10131 = vmatmul.mubr.f32.gmra.mrb[0].mxu0 %v8528
        %v10132 = vpop.f32.mrb[0].mxu0
        %v10133 = vadd.f32 %v9908, %v10132
        %v10134 = vpop.f32.mrb[0].mxu0
        %10135 = vmatprep.mubr.f32.mxu0 %v8536
        %10136 = vmatmul.mubr.f32.gmra.mrb[0].mxu0 %v8533
        %v10137 = vpop.f32.mrb[0].mxu0
        %v10138 = vadd.f32 %v9913, %v10137
        %v10139 = vpop.f32.mrb[0].mxu0
        %10140 = vmatprep.mubr.f32.mxu0 %v8540
        %10141 = vmatmul.mubr.f32.gmra.mrb[0].mxu0 %v8538
        %v10142 = vpop.f32.mrb[0].mxu0
        %v10143 = vadd.f32 %v9918, %v10142
        %v10144 = vpop.f32.mrb[0].mxu0
        %10145 = vmatprep.mubr.f32.mxu0 %v8546
        %10146 = vmatmul.mubr.f32.gmra.mrb[0].mxu0 %v8543
        %v10147 = vpop.f32.mrb[0].mxu0
        %v10148 = vadd.f32 %v9923, %v10147
        %v10149 = vpop.f32.mrb[0].mxu0
        %10150 = vmatprep.mubr.f32.mxu0 %v8550
        %10151 = vmatmul.mubr.f32.gmra.mrb[0].mxu0 %v8548
        %v10152 = vpop.f32.mrb[0].mxu0
        %v10153 = vadd.f32 %v9928, %v10152
        %v10154 = vpop.f32.mrb[0].mxu0
        %10155 = vmatprep.mubr.f32.mxu0 %v8556
        %10156 = vmatmul.mubr.f32.gmra.mrb[0].mxu0 %v8553
        %v10157 = vpop.f32.mrb[0].mxu0
        %v10158 = vadd.f32 %v9933, %v10157
        %v10159 = vpop.f32.mrb[0].mxu0
        %10160 = vmatprep.mubr.f32.mxu0 %v8560
        %10161 = vmatmul.mubr.f32.gmra.mrb[0].mxu0 %v8558
        %v10162 = vpop.f32.mrb[0].mxu0
        %v10163 = vadd.f32 %v9938, %v10162
        %v10164 = vpop.f32.mrb[0].mxu0
        %10165 = vdwg.mxu0
        %10166 = vmatprep.subr.mxu0 0.0
        %10167 = vmatpush1.msra.mxu0 %v9361
        %10168 = vmatprep.subr.mxu0 0.0
        %10169 = vmatpush1.msra.mxu0 %v9362
        %10170 = vmatprep.subr.mxu0 0.0
        %10171 = vmatpush1.msra.mxu0 %v9363
        %10172 = vmatprep.subr.mxu0 0.0
        %10173 = vmatpush1.msra.mxu0 %v9364
        %10174 = vmatprep.subr.mxu0 0.0
        %10175 = vmatpush1.msra.mxu0 %v9365
        %10176 = vmatprep.subr.mxu0 0.0
        %10177 = vmatpush1.msra.mxu0 %v9366
        %10178 = vmatprep.subr.mxu0 0.0
        %10179 = vmatpush1.msra.mxu0 %v9367
        %10180 = vmatprep.subr.mxu0 0.0
        %10181 = vmatpush1.msra.mxu0 %v9368
        %10182 = vmatprep.subr.mxu0 0.0
        %10183 = vmatpush1.msra.mxu0 %v9369
        %10184 = vmatprep.subr.mxu0 0.0
        %10185 = vmatpush1.msra.mxu0 %v9370
        %10186 = vmatprep.subr.mxu0 0.0
        %10187 = vmatpush1.msra.mxu0 %v9371
        %10188 = vmatprep.subr.mxu0 0.0
        %10189 = vmatpush1.msra.mxu0 %v9372
        %10190 = vmatprep.subr.mxu0 0.0
        %10191 = vmatpush1.msra.mxu0 %v9373
        %10192 = vmatprep.subr.mxu0 0.0
        %10193 = vmatpush1.msra.mxu0 %v9374
        %10194 = vmatprep.subr.mxu0 0.0
        %10195 = vmatpush1.msra.mxu0 %v9375
        %10196 = vmatprep.subr.mxu0 0.0
        %10197 = vmatpush1.msra.mxu0 %v9376
        %10198 = vmatprep.subr.mxu0 0.0
        %10199 = vmatpush1.msra.mxu0 %v9377
        %10200 = vmatprep.subr.mxu0 0.0
        %10201 = vmatpush1.msra.mxu0 %v9378
        %10202 = vmatprep.subr.mxu0 0.0
        %10203 = vmatpush1.msra.mxu0 %v9379
        %10204 = vmatprep.subr.mxu0 0.0
        %10205 = vmatpush1.msra.mxu0 %v9380
        %10206 = vmatprep.subr.mxu0 0.0
        %10207 = vmatpush1.msra.mxu0 %v9381
        %10208 = vmatprep.subr.mxu0 0.0
        %10209 = vmatpush1.msra.mxu0 %v9382
        %10210 = vmatprep.subr.mxu0 0.0
        %10211 = vmatpush1.msra.mxu0 %v9383
        %10212 = vmatprep.subr.mxu0 0.0
        %10213 = vmatpush1.msra.mxu0 %v9384
        %10214 = vmatprep.subr.mxu0 0.0
        %10215 = vmatpush1.msra.mxu0 %v9385
        %10216 = vmatprep.subr.mxu0 0.0
        %10217 = vmatpush1.msra.mxu0 %v9386
        %10218 = vmatprep.subr.mxu0 0.0
        %10219 = vmatpush1.msra.mxu0 %v9387
        %10220 = vmatprep.subr.mxu0 0.0
        %10221 = vmatpush1.msra.mxu0 %v9388
        %10222 = vmatprep.subr.mxu0 0.0
        %10223 = vmatpush1.msra.mxu0 %v9389
        %10224 = vmatprep.subr.mxu0 0.0
        %10225 = vmatpush1.msra.mxu0 %v9390
        %10226 = vmatprep.subr.mxu0 0.0
        %10227 = vmatpush1.msra.mxu0 %v9391
        %10228 = vmatprep.subr.mxu0 0.0
        %10229 = vmatpush1.msra.mxu0 %v9392
        %10230 = vmatprep.mubr.f32.mxu0 %v8726
        %10231 = vmatmul.mubr.f32.gmra.mrb[0].mxu0 %v8723
        %v10232 = vpop.f32.mrb[0].mxu0
        %v10233 = vadd.f32 %v10008, %v10232
        %v10234 = vpop.f32.mrb[0].mxu0
        %10235 = vmatprep.mubr.f32.mxu0 %v8730
        %10236 = vmatmul.mubr.f32.gmra.mrb[0].mxu0 %v8728
        %v10237 = vpop.f32.mrb[0].mxu0
        %v10238 = vadd.f32 %v10013, %v10237
        %v10239 = vpop.f32.mrb[0].mxu0
        %10240 = vmatprep.mubr.f32.mxu0 %v8736
        %10241 = vmatmul.mubr.f32.gmra.mrb[0].mxu0 %v8733
        %v10242 = vpop.f32.mrb[0].mxu0
        %v10243 = vadd.f32 %v10018, %v10242
        %v10244 = vpop.f32.mrb[0].mxu0
        %10245 = vmatprep.mubr.f32.mxu0 %v8740
        %10246 = vmatmul.mubr.f32.gmra.mrb[0].mxu0 %v8738
        %v10247 = vpop.f32.mrb[0].mxu0
        %v10248 = vadd.f32 %v10023, %v10247
        %v10249 = vpop.f32.mrb[0].mxu0
        %10250 = vmatprep.mubr.f32.mxu0 %v8746
        %10251 = vmatmul.mubr.f32.gmra.mrb[0].mxu0 %v8743
        %v10252 = vpop.f32.mrb[0].mxu0
        %v10253 = vadd.f32 %v10028, %v10252
        %v10254 = vpop.f32.mrb[0].mxu0
        %10255 = vmatprep.mubr.f32.mxu0 %v8750
        %10256 = vmatmul.mubr.f32.gmra.mrb[0].mxu0 %v8748
        %v10257 = vpop.f32.mrb[0].mxu0
        %v10258 = vadd.f32 %v10033, %v10257
        %v10259 = vpop.f32.mrb[0].mxu0
        %10260 = vmatprep.mubr.f32.mxu0 %v8756
        %10261 = vmatmul.mubr.f32.gmra.mrb[0].mxu0 %v8753
        %v10262 = vpop.f32.mrb[0].mxu0
        %v10263 = vadd.f32 %v10038, %v10262
        %v10264 = vpop.f32.mrb[0].mxu0
        %10265 = vmatprep.mubr.f32.mxu0 %v8760
        %10266 = vmatmul.mubr.f32.gmra.mrb[0].mxu0 %v8758
        %v10267 = vpop.f32.mrb[0].mxu0
        %v10268 = vadd.f32 %v10043, %v10267
        %v10269 = vpop.f32.mrb[0].mxu0
        %10270 = vmatprep.mubr.f32.mxu0 %v8766
        %10271 = vmatmul.mubr.f32.gmra.mrb[0].mxu0 %v8763
        %v10272 = vpop.f32.mrb[0].mxu0
        %v10273 = vadd.f32 %v10048, %v10272
        %v10274 = vpop.f32.mrb[0].mxu0
        %10275 = vmatprep.mubr.f32.mxu0 %v8770
        %10276 = vmatmul.mubr.f32.gmra.mrb[0].mxu0 %v8768
        %v10277 = vpop.f32.mrb[0].mxu0
        %v10278 = vadd.f32 %v10053, %v10277
        %v10279 = vpop.f32.mrb[0].mxu0
        %10280 = vmatprep.mubr.f32.mxu0 %v8776
        %10281 = vmatmul.mubr.f32.gmra.mrb[0].mxu0 %v8773
        %v10282 = vpop.f32.mrb[0].mxu0
        %v10283 = vadd.f32 %v10058, %v10282
        %v10284 = vpop.f32.mrb[0].mxu0
        %10285 = vmatprep.mubr.f32.mxu0 %v8780
        %10286 = vmatmul.mubr.f32.gmra.mrb[0].mxu0 %v8778
        %v10287 = vpop.f32.mrb[0].mxu0
        %v10288 = vadd.f32 %v10063, %v10287
        %v10289 = vpop.f32.mrb[0].mxu0
        %10290 = vmatprep.mubr.f32.mxu0 %v8786
        %10291 = vmatmul.mubr.f32.gmra.mrb[0].mxu0 %v8783
        %v10292 = vpop.f32.mrb[0].mxu0
        %v10293 = vadd.f32 %v10068, %v10292
        %v10294 = vpop.f32.mrb[0].mxu0
        %10295 = vmatprep.mubr.f32.mxu0 %v8790
        %10296 = vmatmul.mubr.f32.gmra.mrb[0].mxu0 %v8788
        %v10297 = vpop.f32.mrb[0].mxu0
        %v10298 = vadd.f32 %v10073, %v10297
        %v10299 = vpop.f32.mrb[0].mxu0
        %10300 = vmatprep.mubr.f32.mxu0 %v8796
        %10301 = vmatmul.mubr.f32.gmra.mrb[0].mxu0 %v8793
        %v10302 = vpop.f32.mrb[0].mxu0
        %v10303 = vadd.f32 %v10078, %v10302
        %v10304 = vpop.f32.mrb[0].mxu0
        %10305 = vmatprep.mubr.f32.mxu0 %v8800
        %10306 = vmatmul.mubr.f32.gmra.mrb[0].mxu0 %v8798
        %v10307 = vpop.f32.mrb[0].mxu0
        %v10308 = vadd.f32 %v10083, %v10307
        %v10309 = vpop.f32.mrb[0].mxu0
        %10310 = vmatprep.mubr.f32.mxu0 %v8806
        %10311 = vmatmul.mubr.f32.gmra.mrb[0].mxu0 %v8803
        %v10312 = vpop.f32.mrb[0].mxu0
        %v10313 = vadd.f32 %v10088, %v10312
        %v10314 = vpop.f32.mrb[0].mxu0
        %10315 = vmatprep.mubr.f32.mxu0 %v8810
        %10316 = vmatmul.mubr.f32.gmra.mrb[0].mxu0 %v8808
        %v10317 = vpop.f32.mrb[0].mxu0
        %v10318 = vadd.f32 %v10093, %v10317
        %v10319 = vpop.f32.mrb[0].mxu0
        %10320 = vmatprep.mubr.f32.mxu0 %v8816
        %10321 = vmatmul.mubr.f32.gmra.mrb[0].mxu0 %v8813
        %v10322 = vpop.f32.mrb[0].mxu0
        %v10323 = vadd.f32 %v10098, %v10322
        %v10324 = vpop.f32.mrb[0].mxu0
        %10325 = vmatprep.mubr.f32.mxu0 %v8820
        %10326 = vmatmul.mubr.f32.gmra.mrb[0].mxu0 %v8818
        %v10327 = vpop.f32.mrb[0].mxu0
        %v10328 = vadd.f32 %v10103, %v10327
        %v10329 = vpop.f32.mrb[0].mxu0
        %10330 = vmatprep.mubr.f32.mxu0 %v8826
        %10331 = vmatmul.mubr.f32.gmra.mrb[0].mxu0 %v8823
        %v10332 = vpop.f32.mrb[0].mxu0
        %v10333 = vadd.f32 %v10108, %v10332
        %v10334 = vpop.f32.mrb[0].mxu0
        %10335 = vmatprep.mubr.f32.mxu0 %v8830
        %10336 = vmatmul.mubr.f32.gmra.mrb[0].mxu0 %v8828
        %v10337 = vpop.f32.mrb[0].mxu0
        %v10338 = vadd.f32 %v10113, %v10337
        %v10339 = vpop.f32.mrb[0].mxu0
        %10340 = vmatprep.mubr.f32.mxu0 %v8836
        %10341 = vmatmul.mubr.f32.gmra.mrb[0].mxu0 %v8833
        %v10342 = vpop.f32.mrb[0].mxu0
        %v10343 = vadd.f32 %v10118, %v10342
        %v10344 = vpop.f32.mrb[0].mxu0
        %10345 = vmatprep.mubr.f32.mxu0 %v8840
        %10346 = vmatmul.mubr.f32.gmra.mrb[0].mxu0 %v8838
        %v10347 = vpop.f32.mrb[0].mxu0
        %v10348 = vadd.f32 %v10123, %v10347
        %v10349 = vpop.f32.mrb[0].mxu0
        %10350 = vmatprep.mubr.f32.mxu0 %v8846
        %10351 = vmatmul.mubr.f32.gmra.mrb[0].mxu0 %v8843
        %v10352 = vpop.f32.mrb[0].mxu0
        %v10353 = vadd.f32 %v10128, %v10352
        %v10354 = vpop.f32.mrb[0].mxu0
        %10355 = vmatprep.mubr.f32.mxu0 %v8850
        %10356 = vmatmul.mubr.f32.gmra.mrb[0].mxu0 %v8848
        %v10357 = vpop.f32.mrb[0].mxu0
        %v10358 = vadd.f32 %v10133, %v10357
        %v10359 = vpop.f32.mrb[0].mxu0
        %10360 = vmatprep.mubr.f32.mxu0 %v8856
        %10361 = vmatmul.mubr.f32.gmra.mrb[0].mxu0 %v8853
        %v10362 = vpop.f32.mrb[0].mxu0
        %v10363 = vadd.f32 %v10138, %v10362
        %v10364 = vpop.f32.mrb[0].mxu0
        %10365 = vmatprep.mubr.f32.mxu0 %v8860
        %10366 = vmatmul.mubr.f32.gmra.mrb[0].mxu0 %v8858
        %v10367 = vpop.f32.mrb[0].mxu0
        %v10368 = vadd.f32 %v10143, %v10367
        %v10369 = vpop.f32.mrb[0].mxu0
        %10370 = vmatprep.mubr.f32.mxu0 %v8866
        %10371 = vmatmul.mubr.f32.gmra.mrb[0].mxu0 %v8863
        %v10372 = vpop.f32.mrb[0].mxu0
        %v10373 = vadd.f32 %v10148, %v10372
        %v10374 = vpop.f32.mrb[0].mxu0
        %10375 = vmatprep.mubr.f32.mxu0 %v8870
        %10376 = vmatmul.mubr.f32.gmra.mrb[0].mxu0 %v8868
        %v10377 = vpop.f32.mrb[0].mxu0
        %v10378 = vadd.f32 %v10153, %v10377
        %v10379 = vpop.f32.mrb[0].mxu0
        %10380 = vmatprep.mubr.f32.mxu0 %v8876
        %10381 = vmatmul.mubr.f32.gmra.mrb[0].mxu0 %v8873
        %v10382 = vpop.f32.mrb[0].mxu0
        %v10383 = vadd.f32 %v10158, %v10382
        %v10384 = vpop.f32.mrb[0].mxu0
        %10385 = vmatprep.mubr.f32.mxu0 %v8880
        %10386 = vmatmul.mubr.f32.gmra.mrb[0].mxu0 %v8878
        %v10387 = vpop.f32.mrb[0].mxu0
        %v10388 = vadd.f32 %v10163, %v10387
        %v10389 = vpop.f32.mrb[0].mxu0
        %10390 = vdwg.mxu0
        %10391 = vmatprep.subr.mxu0 0.0
        %10392 = vmatpush1.msra.mxu0 %v9393
        %10393 = vmatprep.subr.mxu0 0.0
        %10394 = vmatpush1.msra.mxu0 %v9394
        %10395 = vmatprep.subr.mxu0 0.0
        %10396 = vmatpush1.msra.mxu0 %v9395
        %10397 = vmatprep.subr.mxu0 0.0
        %10398 = vmatpush1.msra.mxu0 %v9396
        %10399 = vmatprep.subr.mxu0 0.0
        %10400 = vmatpush1.msra.mxu0 %v9397
        %10401 = vmatprep.subr.mxu0 0.0
        %10402 = vmatpush1.msra.mxu0 %v9398
        %10403 = vmatprep.subr.mxu0 0.0
        %10404 = vmatpush1.msra.mxu0 %v9399
        %10405 = vmatprep.subr.mxu0 0.0
        %10406 = vmatpush1.msra.mxu0 %v9400
        %10407 = vmatprep.subr.mxu0 0.0
        %10408 = vmatpush1.msra.mxu0 %v9401
        %10409 = vmatprep.subr.mxu0 0.0
        %10410 = vmatpush1.msra.mxu0 %v9402
        %10411 = vmatprep.subr.mxu0 0.0
        %10412 = vmatpush1.msra.mxu0 %v9403
        %10413 = vmatprep.subr.mxu0 0.0
        %10414 = vmatpush1.msra.mxu0 %v9404
        %10415 = vmatprep.subr.mxu0 0.0
        %10416 = vmatpush1.msra.mxu0 %v9405
        %10417 = vmatprep.subr.mxu0 0.0
        %10418 = vmatpush1.msra.mxu0 %v9406
        %10419 = vmatprep.subr.mxu0 0.0
        %10420 = vmatpush1.msra.mxu0 %v9407
        %10421 = vmatprep.subr.mxu0 0.0
        %10422 = vmatpush1.msra.mxu0 %v9408
        %10423 = vmatprep.subr.mxu0 0.0
        %10424 = vmatpush1.msra.mxu0 %v9409
        %10425 = vmatprep.subr.mxu0 0.0
        %10426 = vmatpush1.msra.mxu0 %v9410
        %10427 = vmatprep.subr.mxu0 0.0
        %10428 = vmatpush1.msra.mxu0 %v9411
        %10429 = vmatprep.subr.mxu0 0.0
        %10430 = vmatpush1.msra.mxu0 %v9412
        %10431 = vmatprep.subr.mxu0 0.0
        %10432 = vmatpush1.msra.mxu0 %v9413
        %10433 = vmatprep.subr.mxu0 0.0
        %10434 = vmatpush1.msra.mxu0 %v9414
        %10435 = vmatprep.subr.mxu0 0.0
        %10436 = vmatpush1.msra.mxu0 %v9415
        %10437 = vmatprep.subr.mxu0 0.0
        %10438 = vmatpush1.msra.mxu0 %v9416
        %10439 = vmatprep.subr.mxu0 0.0
        %10440 = vmatpush1.msra.mxu0 %v9417
        %10441 = vmatprep.subr.mxu0 0.0
        %10442 = vmatpush1.msra.mxu0 %v9418
        %10443 = vmatprep.subr.mxu0 0.0
        %10444 = vmatpush1.msra.mxu0 %v9419
        %10445 = vmatprep.subr.mxu0 0.0
        %10446 = vmatpush1.msra.mxu0 %v9420
        %10447 = vmatprep.subr.mxu0 0.0
        %10448 = vmatpush1.msra.mxu0 %v9421
        %10449 = vmatprep.subr.mxu0 0.0
        %10450 = vmatpush1.msra.mxu0 %v9422
        %10451 = vmatprep.subr.mxu0 0.0
        %10452 = vmatpush1.msra.mxu0 %v9423
        %10453 = vmatprep.subr.mxu0 0.0
        %10454 = vmatpush1.msra.mxu0 %v9424
        %10455 = vmatprep.mubr.f32.mxu0 %v9046
        %10456 = vmatmul.mubr.f32.gmra.mrb[0].mxu0 %v9043
        %v10457 = vpop.f32.mrb[0].mxu0
        %v10458 = vadd.f32 %v10233, %v10457
        %v10459 = vpop.f32.mrb[0].mxu0
        %10460 = vmatprep.mubr.f32.mxu0 %v9050
        %10461 = vmatmul.mubr.f32.gmra.mrb[0].mxu0 %v9048
        %v10462 = vpop.f32.mrb[0].mxu0
        %v10463 = vadd.f32 %v10238, %v10462
        %v10464 = vpop.f32.mrb[0].mxu0
        %10465 = vmatprep.mubr.f32.mxu0 %v9056
        %10466 = vmatmul.mubr.f32.gmra.mrb[0].mxu0 %v9053
        %v10467 = vpop.f32.mrb[0].mxu0
        %v10468 = vadd.f32 %v10243, %v10467
        %v10469 = vpop.f32.mrb[0].mxu0
        %10470 = vmatprep.mubr.f32.mxu0 %v9060
        %10471 = vmatmul.mubr.f32.gmra.mrb[0].mxu0 %v9058
        %v10472 = vpop.f32.mrb[0].mxu0
        %v10473 = vadd.f32 %v10248, %v10472
        %v10474 = vpop.f32.mrb[0].mxu0
        %10475 = vmatprep.mubr.f32.mxu0 %v9066
        %10476 = vmatmul.mubr.f32.gmra.mrb[0].mxu0 %v9063
        %v10477 = vpop.f32.mrb[0].mxu0
        %v10478 = vadd.f32 %v10253, %v10477
        %v10479 = vpop.f32.mrb[0].mxu0
        %10480 = vmatprep.mubr.f32.mxu0 %v9070
        %10481 = vmatmul.mubr.f32.gmra.mrb[0].mxu0 %v9068
        %v10482 = vpop.f32.mrb[0].mxu0
        %v10483 = vadd.f32 %v10258, %v10482
        %v10484 = vpop.f32.mrb[0].mxu0
        %10485 = vmatprep.mubr.f32.mxu0 %v9076
        %10486 = vmatmul.mubr.f32.gmra.mrb[0].mxu0 %v9073
        %v10487 = vpop.f32.mrb[0].mxu0
        %v10488 = vadd.f32 %v10263, %v10487
        %v10489 = vpop.f32.mrb[0].mxu0
        %10490 = vmatprep.mubr.f32.mxu0 %v9080
        %10491 = vmatmul.mubr.f32.gmra.mrb[0].mxu0 %v9078
        %v10492 = vpop.f32.mrb[0].mxu0
        %v10493 = vadd.f32 %v10268, %v10492
        %v10494 = vpop.f32.mrb[0].mxu0
        %10495 = vmatprep.mubr.f32.mxu0 %v9086
        %10496 = vmatmul.mubr.f32.gmra.mrb[0].mxu0 %v9083
        %v10497 = vpop.f32.mrb[0].mxu0
        %v10498 = vadd.f32 %v10273, %v10497
        %v10499 = vpop.f32.mrb[0].mxu0
        %10500 = vmatprep.mubr.f32.mxu0 %v9090
        %10501 = vmatmul.mubr.f32.gmra.mrb[0].mxu0 %v9088
        %v10502 = vpop.f32.mrb[0].mxu0
        %v10503 = vadd.f32 %v10278, %v10502
        %v10504 = vpop.f32.mrb[0].mxu0
        %10505 = vmatprep.mubr.f32.mxu0 %v9096
        %10506 = vmatmul.mubr.f32.gmra.mrb[0].mxu0 %v9093
        %v10507 = vpop.f32.mrb[0].mxu0
        %v10508 = vadd.f32 %v10283, %v10507
        %v10509 = vpop.f32.mrb[0].mxu0
        %10510 = vmatprep.mubr.f32.mxu0 %v9100
        %10511 = vmatmul.mubr.f32.gmra.mrb[0].mxu0 %v9098
        %v10512 = vpop.f32.mrb[0].mxu0
        %v10513 = vadd.f32 %v10288, %v10512
        %v10514 = vpop.f32.mrb[0].mxu0
        %10515 = vmatprep.mubr.f32.mxu0 %v9106
        %10516 = vmatmul.mubr.f32.gmra.mrb[0].mxu0 %v9103
        %v10517 = vpop.f32.mrb[0].mxu0
        %v10518 = vadd.f32 %v10293, %v10517
        %v10519 = vpop.f32.mrb[0].mxu0
        %10520 = vmatprep.mubr.f32.mxu0 %v9110
        %10521 = vmatmul.mubr.f32.gmra.mrb[0].mxu0 %v9108
        %v10522 = vpop.f32.mrb[0].mxu0
        %v10523 = vadd.f32 %v10298, %v10522
        %v10524 = vpop.f32.mrb[0].mxu0
        %10525 = vmatprep.mubr.f32.mxu0 %v9116
        %10526 = vmatmul.mubr.f32.gmra.mrb[0].mxu0 %v9113
        %v10527 = vpop.f32.mrb[0].mxu0
        %v10528 = vadd.f32 %v10303, %v10527
        %v10529 = vpop.f32.mrb[0].mxu0
        %10530 = vmatprep.mubr.f32.mxu0 %v9120
        %10531 = vmatmul.mubr.f32.gmra.mrb[0].mxu0 %v9118
        %v10532 = vpop.f32.mrb[0].mxu0
        %v10533 = vadd.f32 %v10308, %v10532
        %v10534 = vpop.f32.mrb[0].mxu0
        %10535 = vmatprep.mubr.f32.mxu0 %v9126
        %10536 = vmatmul.mubr.f32.gmra.mrb[0].mxu0 %v9123
        %v10537 = vpop.f32.mrb[0].mxu0
        %v10538 = vadd.f32 %v10313, %v10537
        %v10539 = vpop.f32.mrb[0].mxu0
        %10540 = vmatprep.mubr.f32.mxu0 %v9130
        %10541 = vmatmul.mubr.f32.gmra.mrb[0].mxu0 %v9128
        %v10542 = vpop.f32.mrb[0].mxu0
        %v10543 = vadd.f32 %v10318, %v10542
        %v10544 = vpop.f32.mrb[0].mxu0
        %10545 = vmatprep.mubr.f32.mxu0 %v9136
        %10546 = vmatmul.mubr.f32.gmra.mrb[0].mxu0 %v9133
        %v10547 = vpop.f32.mrb[0].mxu0
        %v10548 = vadd.f32 %v10323, %v10547
        %v10549 = vpop.f32.mrb[0].mxu0
        %10550 = vmatprep.mubr.f32.mxu0 %v9140
        %10551 = vmatmul.mubr.f32.gmra.mrb[0].mxu0 %v9138
        %v10552 = vpop.f32.mrb[0].mxu0
        %v10553 = vadd.f32 %v10328, %v10552
        %v10554 = vpop.f32.mrb[0].mxu0
        %10555 = vmatprep.mubr.f32.mxu0 %v9146
        %10556 = vmatmul.mubr.f32.gmra.mrb[0].mxu0 %v9143
        %v10557 = vpop.f32.mrb[0].mxu0
        %v10558 = vadd.f32 %v10333, %v10557
        %v10559 = vpop.f32.mrb[0].mxu0
        %10560 = vmatprep.mubr.f32.mxu0 %v9150
        %10561 = vmatmul.mubr.f32.gmra.mrb[0].mxu0 %v9148
        %v10562 = vpop.f32.mrb[0].mxu0
        %v10563 = vadd.f32 %v10338, %v10562
        %v10564 = vpop.f32.mrb[0].mxu0
        %10565 = vmatprep.mubr.f32.mxu0 %v9156
        %10566 = vmatmul.mubr.f32.gmra.mrb[0].mxu0 %v9153
        %v10567 = vpop.f32.mrb[0].mxu0
        %v10568 = vadd.f32 %v10343, %v10567
        %v10569 = vpop.f32.mrb[0].mxu0
        %10570 = vmatprep.mubr.f32.mxu0 %v9160
        %10571 = vmatmul.mubr.f32.gmra.mrb[0].mxu0 %v9158
        %v10572 = vpop.f32.mrb[0].mxu0
        %v10573 = vadd.f32 %v10348, %v10572
        %v10574 = vpop.f32.mrb[0].mxu0
        %10575 = vmatprep.mubr.f32.mxu0 %v9166
        %10576 = vmatmul.mubr.f32.gmra.mrb[0].mxu0 %v9163
        %v10577 = vpop.f32.mrb[0].mxu0
        %v10578 = vadd.f32 %v10353, %v10577
        %v10579 = vpop.f32.mrb[0].mxu0
        %10580 = vmatprep.mubr.f32.mxu0 %v9170
        %10581 = vmatmul.mubr.f32.gmra.mrb[0].mxu0 %v9168
        %v10582 = vpop.f32.mrb[0].mxu0
        %v10583 = vadd.f32 %v10358, %v10582
        %v10584 = vpop.f32.mrb[0].mxu0
        %10585 = vmatprep.mubr.f32.mxu0 %v9176
        %10586 = vmatmul.mubr.f32.gmra.mrb[0].mxu0 %v9173
        %v10587 = vpop.f32.mrb[0].mxu0
        %v10588 = vadd.f32 %v10363, %v10587
        %v10589 = vpop.f32.mrb[0].mxu0
        %10590 = vmatprep.mubr.f32.mxu0 %v9180
        %10591 = vmatmul.mubr.f32.gmra.mrb[0].mxu0 %v9178
        %v10592 = vpop.f32.mrb[0].mxu0
        %v10593 = vadd.f32 %v10368, %v10592
        %v10594 = vpop.f32.mrb[0].mxu0
        %10595 = vmatprep.mubr.f32.mxu0 %v9186
        %10596 = vmatmul.mubr.f32.gmra.mrb[0].mxu0 %v9183
        %v10597 = vpop.f32.mrb[0].mxu0
        %v10598 = vadd.f32 %v10373, %v10597
        %v10599 = vpop.f32.mrb[0].mxu0
        %10600 = vmatprep.mubr.f32.mxu0 %v9190
        %10601 = vmatmul.mubr.f32.gmra.mrb[0].mxu0 %v9188
        %v10602 = vpop.f32.mrb[0].mxu0
        %v10603 = vadd.f32 %v10378, %v10602
        %v10604 = vpop.f32.mrb[0].mxu0
        %10605 = vmatprep.mubr.f32.mxu0 %v9196
        %10606 = vmatmul.mubr.f32.gmra.mrb[0].mxu0 %v9193
        %v10607 = vpop.f32.mrb[0].mxu0
        %v10608 = vadd.f32 %v10383, %v10607
        %v10609 = vpop.f32.mrb[0].mxu0
        %10610 = vmatprep.mubr.f32.mxu0 %v9200
        %10611 = vmatmul.mubr.f32.gmra.mrb[0].mxu0 %v9198
        %v10612 = vpop.f32.mrb[0].mxu0
        %v10613 = vadd.f32 %v10388, %v10612
        %v10614 = vpop.f32.mrb[0].mxu0
        %10615 = vdwg.mxu0
        %10616 = vmatprep.subr.mxu0 0.0
        %10617 = vmatpush1.msra.mxu0 %v9425
        %10618 = vmatprep.subr.mxu0 0.0
        %10619 = vmatpush1.msra.mxu0 %v9426
        %10620 = vmatprep.subr.mxu0 0.0
        %10621 = vmatpush1.msra.mxu0 0.0
        %10622 = vmatprep.subr.mxu0 0.0
        %10623 = vmatpush1.msra.mxu0 0.0
        %10624 = vmatprep.subr.mxu0 0.0
        %10625 = vmatpush1.msra.mxu0 0.0
        %10626 = vmatprep.subr.mxu0 0.0
        %10627 = vmatpush1.msra.mxu0 0.0
        %10628 = vmatprep.subr.mxu0 0.0
        %10629 = vmatpush1.msra.mxu0 0.0
        %10630 = vmatprep.subr.mxu0 0.0
        %10631 = vmatpush1.msra.mxu0 0.0
        %10632 = vmatprep.subr.mxu0 0.0
        %10633 = vmatpush1.msra.mxu0 0.0
        %10634 = vmatprep.subr.mxu0 0.0
        %10635 = vmatpush1.msra.mxu0 0.0
        %10636 = vmatprep.subr.mxu0 0.0
        %10637 = vmatpush1.msra.mxu0 0.0
        %10638 = vmatprep.subr.mxu0 0.0
        %10639 = vmatpush1.msra.mxu0 0.0
        %10640 = vmatprep.subr.mxu0 0.0
        %10641 = vmatpush1.msra.mxu0 0.0
        %10642 = vmatprep.subr.mxu0 0.0
        %10643 = vmatpush1.msra.mxu0 0.0
        %10644 = vmatprep.subr.mxu0 0.0
        %10645 = vmatpush1.msra.mxu0 0.0
        %10646 = vmatprep.subr.mxu0 0.0
        %10647 = vmatpush1.msra.mxu0 0.0
        %10648 = vmatprep.subr.mxu0 0.0
        %10649 = vmatpush1.msra.mxu0 0.0
        %10650 = vmatprep.subr.mxu0 0.0
        %10651 = vmatpush1.msra.mxu0 0.0
        %10652 = vmatprep.subr.mxu0 0.0
        %10653 = vmatpush1.msra.mxu0 0.0
        %10654 = vmatprep.subr.mxu0 0.0
        %10655 = vmatpush1.msra.mxu0 0.0
        %10656 = vmatprep.subr.mxu0 0.0
        %10657 = vmatpush1.msra.mxu0 0.0
        %10658 = vmatprep.subr.mxu0 0.0
        %10659 = vmatpush1.msra.mxu0 0.0
        %10660 = vmatprep.subr.mxu0 0.0
        %10661 = vmatpush1.msra.mxu0 0.0
        %10662 = vmatprep.subr.mxu0 0.0
        %10663 = vmatpush1.msra.mxu0 0.0
        %10664 = vmatprep.subr.mxu0 0.0
        %10665 = vmatpush1.msra.mxu0 0.0
        %10666 = vmatprep.subr.mxu0 0.0
        %10667 = vmatpush1.msra.mxu0 0.0
        %10668 = vmatprep.subr.mxu0 0.0
        %10669 = vmatpush1.msra.mxu0 0.0
        %10670 = vmatprep.subr.mxu0 0.0
        %10671 = vmatpush1.msra.mxu0 0.0
        %10672 = vmatprep.subr.mxu0 0.0
        %10673 = vmatpush1.msra.mxu0 0.0
        %10674 = vmatprep.subr.mxu0 0.0
        %10675 = vmatpush1.msra.mxu0 0.0
        %10676 = vmatprep.subr.mxu0 0.0
        %10677 = vmatpush1.msra.mxu0 0.0
        %10678 = vmatprep.subr.mxu0 0.0
        %10679 = vmatpush1.msra.mxu0 0.0
        %10680 = vmatprep.mubr.f32.mxu0 0.0
        %10681 = vmatmul.mubr.f32.gmra.mrb[0].mxu0 %v9427
        %v10682 = vpop.f32.mrb[0].mxu0
        %v10683 = vadd.f32 %v10458, %v10682
        %v10684 = vpop.f32.mrb[0].mxu0
        %10685 = vmatprep.mubr.f32.mxu0 0.0
        %10686 = vmatmul.mubr.f32.gmra.mrb[0].mxu0 %v9429
        %v10687 = vpop.f32.mrb[0].mxu0
        %v10688 = vadd.f32 %v10463, %v10687
        %v10689 = vpop.f32.mrb[0].mxu0
        %10690 = vmatprep.mubr.f32.mxu0 0.0
        %10691 = vmatmul.mubr.f32.gmra.mrb[0].mxu0 %v9431
        %v10692 = vpop.f32.mrb[0].mxu0
        %v10693 = vadd.f32 %v10468, %v10692
        %v10694 = vpop.f32.mrb[0].mxu0
        %10695 = vmatprep.mubr.f32.mxu0 0.0
        %10696 = vmatmul.mubr.f32.gmra.mrb[0].mxu0 %v9433
        %v10697 = vpop.f32.mrb[0].mxu0
        %v10698 = vadd.f32 %v10473, %v10697
        %v10699 = vpop.f32.mrb[0].mxu0
        %10700 = vmatprep.mubr.f32.mxu0 0.0
        %10701 = vmatmul.mubr.f32.gmra.mrb[0].mxu0 %v9435
        %v10702 = vpop.f32.mrb[0].mxu0
        %v10703 = vadd.f32 %v10478, %v10702
        %v10704 = vpop.f32.mrb[0].mxu0
        %10705 = vmatprep.mubr.f32.mxu0 0.0
        %10706 = vmatmul.mubr.f32.gmra.mrb[0].mxu0 %v9437
        %v10707 = vpop.f32.mrb[0].mxu0
        %v10708 = vadd.f32 %v10483, %v10707
        %v10709 = vpop.f32.mrb[0].mxu0
        %10710 = vmatprep.mubr.f32.mxu0 0.0
        %10711 = vmatmul.mubr.f32.gmra.mrb[0].mxu0 %v9439
        %v10712 = vpop.f32.mrb[0].mxu0
        %v10713 = vadd.f32 %v10488, %v10712
        %v10714 = vpop.f32.mrb[0].mxu0
        %10715 = vmatprep.mubr.f32.mxu0 0.0
        %10716 = vmatmul.mubr.f32.gmra.mrb[0].mxu0 %v9441
        %v10717 = vpop.f32.mrb[0].mxu0
        %v10718 = vadd.f32 %v10493, %v10717
        %v10719 = vpop.f32.mrb[0].mxu0
        %10720 = vmatprep.mubr.f32.mxu0 0.0
        %10721 = vmatmul.mubr.f32.gmra.mrb[0].mxu0 %v9443
        %v10722 = vpop.f32.mrb[0].mxu0
        %v10723 = vadd.f32 %v10498, %v10722
        %v10724 = vpop.f32.mrb[0].mxu0
        %10725 = vmatprep.mubr.f32.mxu0 0.0
        %10726 = vmatmul.mubr.f32.gmra.mrb[0].mxu0 %v9445
        %v10727 = vpop.f32.mrb[0].mxu0
        %v10728 = vadd.f32 %v10503, %v10727
        %v10729 = vpop.f32.mrb[0].mxu0
        %10730 = vmatprep.mubr.f32.mxu0 0.0
        %10731 = vmatmul.mubr.f32.gmra.mrb[0].mxu0 %v9447
        %v10732 = vpop.f32.mrb[0].mxu0
        %v10733 = vadd.f32 %v10508, %v10732
        %v10734 = vpop.f32.mrb[0].mxu0
        %10735 = vmatprep.mubr.f32.mxu0 0.0
        %10736 = vmatmul.mubr.f32.gmra.mrb[0].mxu0 %v9449
        %v10737 = vpop.f32.mrb[0].mxu0
        %v10738 = vadd.f32 %v10513, %v10737
        %v10739 = vpop.f32.mrb[0].mxu0
        %10740 = vmatprep.mubr.f32.mxu0 0.0
        %10741 = vmatmul.mubr.f32.gmra.mrb[0].mxu0 %v9451
        %v10742 = vpop.f32.mrb[0].mxu0
        %v10743 = vadd.f32 %v10518, %v10742
        %v10744 = vpop.f32.mrb[0].mxu0
        %10745 = vmatprep.mubr.f32.mxu0 0.0
        %10746 = vmatmul.mubr.f32.gmra.mrb[0].mxu0 %v9453
        %v10747 = vpop.f32.mrb[0].mxu0
        %v10748 = vadd.f32 %v10523, %v10747
        %v10749 = vpop.f32.mrb[0].mxu0
        %10750 = vmatprep.mubr.f32.mxu0 0.0
        %10751 = vmatmul.mubr.f32.gmra.mrb[0].mxu0 %v9455
        %v10752 = vpop.f32.mrb[0].mxu0
        %v10753 = vadd.f32 %v10528, %v10752
        %v10754 = vpop.f32.mrb[0].mxu0
        %10755 = vmatprep.mubr.f32.mxu0 0.0
        %10756 = vmatmul.mubr.f32.gmra.mrb[0].mxu0 %v9457
        %v10757 = vpop.f32.mrb[0].mxu0
        %v10758 = vadd.f32 %v10533, %v10757
        %v10759 = vpop.f32.mrb[0].mxu0
        %10760 = vmatprep.mubr.f32.mxu0 0.0
        %10761 = vmatmul.mubr.f32.gmra.mrb[0].mxu0 %v9459
        %v10762 = vpop.f32.mrb[0].mxu0
        %v10763 = vadd.f32 %v10538, %v10762
        %v10764 = vpop.f32.mrb[0].mxu0
        %10765 = vmatprep.mubr.f32.mxu0 0.0
        %10766 = vmatmul.mubr.f32.gmra.mrb[0].mxu0 %v9461
        %v10767 = vpop.f32.mrb[0].mxu0
        %v10768 = vadd.f32 %v10543, %v10767
        %v10769 = vpop.f32.mrb[0].mxu0
        %10770 = vmatprep.mubr.f32.mxu0 0.0
        %10771 = vmatmul.mubr.f32.gmra.mrb[0].mxu0 %v9463
        %v10772 = vpop.f32.mrb[0].mxu0
        %v10773 = vadd.f32 %v10548, %v10772
        %v10774 = vpop.f32.mrb[0].mxu0
        %10775 = vmatprep.mubr.f32.mxu0 0.0
        %10776 = vmatmul.mubr.f32.gmra.mrb[0].mxu0 %v9465
        %v10777 = vpop.f32.mrb[0].mxu0
        %v10778 = vadd.f32 %v10553, %v10777
        %v10779 = vpop.f32.mrb[0].mxu0
        %10780 = vmatprep.mubr.f32.mxu0 0.0
        %10781 = vmatmul.mubr.f32.gmra.mrb[0].mxu0 %v9467
        %v10782 = vpop.f32.mrb[0].mxu0
        %v10783 = vadd.f32 %v10558, %v10782
        %v10784 = vpop.f32.mrb[0].mxu0
        %10785 = vmatprep.mubr.f32.mxu0 0.0
        %10786 = vmatmul.mubr.f32.gmra.mrb[0].mxu0 %v9469
        %v10787 = vpop.f32.mrb[0].mxu0
        %v10788 = vadd.f32 %v10563, %v10787
        %v10789 = vpop.f32.mrb[0].mxu0
        %10790 = vmatprep.mubr.f32.mxu0 0.0
        %10791 = vmatmul.mubr.f32.gmra.mrb[0].mxu0 %v9471
        %v10792 = vpop.f32.mrb[0].mxu0
        %v10793 = vadd.f32 %v10568, %v10792
        %v10794 = vpop.f32.mrb[0].mxu0
        %10795 = vmatprep.mubr.f32.mxu0 0.0
        %10796 = vmatmul.mubr.f32.gmra.mrb[0].mxu0 %v9473
        %v10797 = vpop.f32.mrb[0].mxu0
        %v10798 = vadd.f32 %v10573, %v10797
        %v10799 = vpop.f32.mrb[0].mxu0
        %10800 = vmatprep.mubr.f32.mxu0 0.0
        %10801 = vmatmul.mubr.f32.gmra.mrb[0].mxu0 %v9475
        %v10802 = vpop.f32.mrb[0].mxu0
        %v10803 = vadd.f32 %v10578, %v10802
        %v10804 = vpop.f32.mrb[0].mxu0
        %10805 = vmatprep.mubr.f32.mxu0 0.0
        %10806 = vmatmul.mubr.f32.gmra.mrb[0].mxu0 %v9477
        %v10807 = vpop.f32.mrb[0].mxu0
        %v10808 = vadd.f32 %v10583, %v10807
        %v10809 = vpop.f32.mrb[0].mxu0
        %10810 = vmatprep.mubr.f32.mxu0 0.0
        %10811 = vmatmul.mubr.f32.gmra.mrb[0].mxu0 %v9479
        %v10812 = vpop.f32.mrb[0].mxu0
        %v10813 = vadd.f32 %v10588, %v10812
        %v10814 = vpop.f32.mrb[0].mxu0
        %10815 = vmatprep.mubr.f32.mxu0 0.0
        %10816 = vmatmul.mubr.f32.gmra.mrb[0].mxu0 %v9481
        %v10817 = vpop.f32.mrb[0].mxu0
        %v10818 = vadd.f32 %v10593, %v10817
        %v10819 = vpop.f32.mrb[0].mxu0
        %10820 = vmatprep.mubr.f32.mxu0 0.0
        %10821 = vmatmul.mubr.f32.gmra.mrb[0].mxu0 %v9483
        %v10822 = vpop.f32.mrb[0].mxu0
        %v10823 = vadd.f32 %v10598, %v10822
        %v10824 = vpop.f32.mrb[0].mxu0
        %10825 = vmatprep.mubr.f32.mxu0 0.0
        %10826 = vmatmul.mubr.f32.gmra.mrb[0].mxu0 %v9485
        %v10827 = vpop.f32.mrb[0].mxu0
        %v10828 = vadd.f32 %v10603, %v10827
        %v10829 = vpop.f32.mrb[0].mxu0
        %10830 = vmatprep.mubr.f32.mxu0 0.0
        %10831 = vmatmul.mubr.f32.gmra.mrb[0].mxu0 %v9487
        %v10832 = vpop.f32.mrb[0].mxu0
        %v10833 = vadd.f32 %v10608, %v10832
        %v10834 = vpop.f32.mrb[0].mxu0
        %10835 = vmatprep.mubr.f32.mxu0 0.0
        %10836 = vmatmul.mubr.f32.gmra.mrb[0].mxu0 %v9489
        %v10837 = vpop.f32.mrb[0].mxu0
        %v10838 = vadd.f32 %v10613, %v10837
        %v10839 = vpop.f32.mrb[0].mxu0
        %10840 = vdwg.mxu0
        %v10841 = vld [vmem:[%s2] sm:$0xff]
        %v10842 = vld [vmem:[%s2 + $0x8] sm:$0xff]
        %v10843 = vld [vmem:[#allocation3] sm:$0x1]
        %v10844 = vld [vmem:[%s4] sm:$0x1]
        %v10845 = vld [vmem:[%s5] sm:$0x1]
        %v10846 = vsel %vm2552, %v10683, 0.0
        %v10847 = vsel %vm2552, %v10688, 0.0
        %v10848 = vadd.f32 %v10846, %v10847
        %v10849 = vsel %vm2552, %v10693, 0.0
        %v10850 = vadd.f32 %v10848, %v10849
        %v10851 = vsel %vm2552, %v10698, 0.0
        %v10852 = vadd.f32 %v10850, %v10851
        %v10853 = vsel %vm2552, %v10703, 0.0
        %v10854 = vadd.f32 %v10852, %v10853
        %v10855 = vsel %vm2552, %v10708, 0.0
        %v10856 = vadd.f32 %v10854, %v10855
        %v10857 = vsel %vm2552, %v10713, 0.0
        %v10858 = vadd.f32 %v10856, %v10857
        %v10859 = vsel %vm2552, %v10718, 0.0
        %v10860 = vadd.f32 %v10858, %v10859
        %v10861 = vsel %vm2552, %v10723, 0.0
        %v10862 = vadd.f32 %v10860, %v10861
        %v10863 = vsel %vm2552, %v10728, 0.0
        %v10864 = vadd.f32 %v10862, %v10863
        %v10865 = vsel %vm2552, %v10733, 0.0
        %v10866 = vadd.f32 %v10864, %v10865
        %v10867 = vsel %vm2552, %v10738, 0.0
        %v10868 = vadd.f32 %v10866, %v10867
        %v10869 = vsel %vm2552, %v10743, 0.0
        %v10870 = vadd.f32 %v10868, %v10869
        %v10871 = vsel %vm2552, %v10748, 0.0
        %v10872 = vadd.f32 %v10870, %v10871
        %v10873 = vsel %vm2552, %v10753, 0.0
        %v10874 = vadd.f32 %v10872, %v10873
        %v10875 = vsel %vm2552, %v10758, 0.0
        %v10876 = vadd.f32 %v10874, %v10875
        %v10877 = vsel %vm2552, %v10763, 0.0
        %v10878 = vadd.f32 %v10876, %v10877
        %v10879 = vsel %vm2552, %v10768, 0.0
        %v10880 = vadd.f32 %v10878, %v10879
        %v10881 = vsel %vm2552, %v10773, 0.0
        %v10882 = vadd.f32 %v10880, %v10881
        %v10883 = vsel %vm2552, %v10778, 0.0
        %v10884 = vadd.f32 %v10882, %v10883
        %v10885 = vsel %vm2552, %v10783, 0.0
        %v10886 = vadd.f32 %v10884, %v10885
        %v10887 = vsel %vm2552, %v10788, 0.0
        %v10888 = vadd.f32 %v10886, %v10887
        %v10889 = vsel %vm2552, %v10793, 0.0
        %v10890 = vadd.f32 %v10888, %v10889
        %v10891 = vsel %vm2552, %v10798, 0.0
        %v10892 = vadd.f32 %v10890, %v10891
        %v10893 = vsel %vm2552, %v10803, 0.0
        %v10894 = vadd.f32 %v10892, %v10893
        %v10895 = vsel %vm2552, %v10808, 0.0
        %v10896 = vadd.f32 %v10894, %v10895
        %v10897 = vsel %vm2552, %v10813, 0.0
        %v10898 = vadd.f32 %v10896, %v10897
        %v10899 = vsel %vm2552, %v10818, 0.0
        %v10900 = vadd.f32 %v10898, %v10899
        %v10901 = vsel %vm2552, %v10823, 0.0
        %v10902 = vadd.f32 %v10900, %v10901
        %v10903 = vsel %vm2552, %v10828, 0.0
        %v10904 = vadd.f32 %v10902, %v10903
        %v10905 = vsel %vm2552, %v10833, 0.0
        %v10906 = vadd.f32 %v10904, %v10905
        %v10907 = vsel %vm2552, %v10838, 0.0
        %v10908 = vadd.f32 %v10906, %v10907
        %v10909 = vrot.slane %v10908, 4
        %v10910 = vadd.f32 %v10908, %v10909
        %v10911 = vrot.slane %v10910, 2
        %v10912 = vadd.f32 %v10910, %v10911
        %v10913 = vrot.slane %v10912, 1
        %v10914 = vadd.f32 %v10912, %v10913
        %v10915 = vrcp.pop 256.0
        %v10916 = vmul.f32 %v10914, %v10915
        %10918 = vbcast.lane.b32.xlu0 %v10916, 256
        %v10919 = vpop.permute.xlu0 %10918
        %s10921 = sor.u32 256, 8
        %10922 = vbcast.lane.b32.xlu0 %v10916, %s10921
        %v10923 = vpop.permute.xlu0 %10922
        %v10924 = vmul.f32 %v10919, %v10841
        %v10925 = vmul.f32 %v10923, %v10842
        %vm10926 = vcmask 7168
        %v10927 = vsel %vm10926, %v10924, 0.0
        %v10928 = vsel %vm10926, %v10925, 0.0
        %v10929 = vadd.f32 %v10927, %v10928
        %v10930 = vrot.slane %v10929, 4
        %v10931 = vadd.f32 %v10929, %v10930
        %v10932 = vrot.slane %v10931, 2
        %v10933 = vadd.f32 %v10931, %v10932
        %v10934 = vrot.slane %v10933, 1
        %v10935 = vadd.f32 %v10933, %v10934
        %v10936 = vadd.f32 %v10935, %v10843
        %v10937 = vmax.f32 %v10936, 0.0
        %10939 = vset.pattern.permute.xlu0 0
        %10940 = vperm.xlu0 %10939, %v10937
        %v10941 = vpop.permute.xlu0 %10940
        %v10943 = vmul.f32 %v10941, %v10844
        %v10944 = vadd.f32 %v10943, 0.0
        %v10945 = vadd.f32 %v10944, %v10845
        %v10946 = vxor.u32 %v10945, 2147483648
        %v10947 = vmul.f32 %v10946, 1.442695
        %v10948 = vpow.pop %v10947
        %v10949 = vadd.f32 %v10948, 1.0
        %v10950 = vrcp.pop %v10949
        %v10951 = vmul.f32 1.0, %v10950
        %s10953 = sor.u32 256, 16
        %10954 = vbcast.lane.b32.xlu0 %v10916, %s10953
        %v10955 = vpop.permute.xlu0 %10954
        %s10957 = sor.u32 256, 24
        %10958 = vbcast.lane.b32.xlu0 %v10916, %s10957
        %v10959 = vpop.permute.xlu0 %10958
        %v10960 = vmul.f32 %v10955, %v10841
        %v10961 = vmul.f32 %v10959, %v10842
        %v10962 = vsel %vm10926, %v10960, 0.0
        %v10963 = vsel %vm10926, %v10961, 0.0
        %v10964 = vadd.f32 %v10962, %v10963
        %v10965 = vrot.slane %v10964, 4
        %v10966 = vadd.f32 %v10964, %v10965
        %v10967 = vrot.slane %v10966, 2
        %v10968 = vadd.f32 %v10966, %v10967
        %v10969 = vrot.slane %v10968, 1
        %v10970 = vadd.f32 %v10968, %v10969
        %v10971 = vadd.f32 %v10970, %v10843
        %v10972 = vmax.f32 %v10971, 0.0
        %10974 = vset.pattern.permute.xlu0 0
        %10975 = vperm.xlu0 %10974, %v10972
        %v10976 = vpop.permute.xlu0 %10975
        %v10978 = vmul.f32 %v10976, %v10844
        %v10979 = vadd.f32 %v10978, 0.0
        %v10980 = vadd.f32 %v10979, %v10845
        %v10981 = vxor.u32 %v10980, 2147483648
        %v10982 = vmul.f32 %v10981, 1.442695
        %v10983 = vpow.pop %v10982
        %v10984 = vadd.f32 %v10983, 1.0
        %v10985 = vrcp.pop %v10984
        %v10986 = vmul.f32 1.0, %v10985
        %s10988 = sor.u32 256, 32
        %10989 = vbcast.lane.b32.xlu0 %v10916, %s10988
        %v10990 = vpop.permute.xlu0 %10989
        %s10992 = sor.u32 256, 40
        %10993 = vbcast.lane.b32.xlu0 %v10916, %s10992
        %v10994 = vpop.permute.xlu0 %10993
        %v10995 = vmul.f32 %v10990, %v10841
        %v10996 = vmul.f32 %v10994, %v10842
        %v10997 = vsel %vm10926, %v10995, 0.0
        %v10998 = vsel %vm10926, %v10996, 0.0
        %v10999 = vadd.f32 %v10997, %v10998
        %v11000 = vrot.slane %v10999, 4
        %v11001 = vadd.f32 %v10999, %v11000
        %v11002 = vrot.slane %v11001, 2
        %v11003 = vadd.f32 %v11001, %v11002
        %v11004 = vrot.slane %v11003, 1
        %v11005 = vadd.f32 %v11003, %v11004
        %v11006 = vadd.f32 %v11005, %v10843
        %v11007 = vmax.f32 %v11006, 0.0
        %11009 = vset.pattern.permute.xlu0 0
        %11010 = vperm.xlu0 %11009, %v11007
        %v11011 = vpop.permute.xlu0 %11010
        %v11013 = vmul.f32 %v11011, %v10844
        %v11014 = vadd.f32 %v11013, 0.0
        %v11015 = vadd.f32 %v11014, %v10845
        %v11016 = vxor.u32 %v11015, 2147483648
        %v11017 = vmul.f32 %v11016, 1.442695
        %v11018 = vpow.pop %v11017
        %v11019 = vadd.f32 %v11018, 1.0
        %v11020 = vrcp.pop %v11019
        %v11021 = vmul.f32 1.0, %v11020
        %s11023 = sor.u32 256, 48
        %11024 = vbcast.lane.b32.xlu0 %v10916, %s11023
        %v11025 = vpop.permute.xlu0 %11024
        %s11027 = sor.u32 256, 56
        %11028 = vbcast.lane.b32.xlu0 %v10916, %s11027
        %v11029 = vpop.permute.xlu0 %11028
        %v11030 = vmul.f32 %v11025, %v10841
        %v11031 = vmul.f32 %v11029, %v10842
        %v11032 = vsel %vm10926, %v11030, 0.0
        %v11033 = vsel %vm10926, %v11031, 0.0
        %v11034 = vadd.f32 %v11032, %v11033
        %v11035 = vrot.slane %v11034, 4
        %v11036 = vadd.f32 %v11034, %v11035
        %v11037 = vrot.slane %v11036, 2
        %v11038 = vadd.f32 %v11036, %v11037
        %v11039 = vrot.slane %v11038, 1
        %v11040 = vadd.f32 %v11038, %v11039
        %v11041 = vadd.f32 %v11040, %v10843
        %v11042 = vmax.f32 %v11041, 0.0
        %11044 = vset.pattern.permute.xlu0 0
        %11045 = vperm.xlu0 %11044, %v11042
        %v11046 = vpop.permute.xlu0 %11045
        %v11048 = vmul.f32 %v11046, %v10844
        %v11049 = vadd.f32 %v11048, 0.0
        %v11050 = vadd.f32 %v11049, %v10845
        %v11051 = vxor.u32 %v11050, 2147483648
        %v11052 = vmul.f32 %v11051, 1.442695
        %v11053 = vpow.pop %v11052
        %v11054 = vadd.f32 %v11053, 1.0
        %v11055 = vrcp.pop %v11054
        %v11056 = vmul.f32 1.0, %v11055
        %v11057 = vmax.f32 %v10951, %v10986
        %v11058 = vmax.f32 %v11021, %v11056
        %v11059 = vmax.f32 %v11057, %v11058
        %v11060 = vsub.f32 %v10951, %v11059
        %v11061 = vmul.f32 %v11060, 1.442695
        %v11062 = vpow.pop %v11061
        %v11063 = vsub.f32 %v10986, %v11059
        %v11064 = vmul.f32 %v11063, 1.442695
        %v11065 = vpow.pop %v11064
        %v11066 = vsub.f32 %v11021, %v11059
        %v11067 = vmul.f32 %v11066, 1.442695
        %v11068 = vpow.pop %v11067
        %v11069 = vsub.f32 %v11056, %v11059
        %v11070 = vmul.f32 %v11069, 1.442695
        %v11071 = vpow.pop %v11070
        %v11072 = vadd.f32 %v11062, %v11065
        %v11073 = vadd.f32 %v11072, %v11068
        %v11074 = vadd.f32 %v11073, %v11071
        %v11075 = vrcp.pop %v11074
        %v11076 = vmul.f32 %v11062, %v11075
        %v11077 = vmul.f32 %v11065, %v11075
        %v11078 = vmul.f32 %v11068, %v11075
        %v11079 = vmul.f32 %v11071, %v11075
        %11081 = vrot.lane.b32.xlu0 %v11077, 16
        %v11082 = vpop.permute.xlu0 %11081
        %11085 = vrot.lane.b32.xlu0 %v11078, 32
        %v11086 = vpop.permute.xlu0 %11085
        %11089 = vrot.lane.b32.xlu0 %v11079, 48
        %v11090 = vpop.permute.xlu0 %11089
        %v11092 = vsel %vm252, %v11076, %v11082
        %v11093 = vsel %vm2486, %v11092, %v11086
        %v11094 = vsel %vm2519, %v11093, %v11090
        %v11095 = vlaneseq
        %v11096 = vshrl.u32 %v11095, 7
        %v11097 = vsub.s32 0, %v11096
        %v11098 = vrot.slane %v11094, %v11097
        %v11099 = vmul.f32 %v10683, %v11098
        %v11100 = vmul.f32 %v10688, %v11098
        %v11101 = vmul.f32 %v10693, %v11098
        %v11102 = vmul.f32 %v10698, %v11098
        %v11103 = vmul.f32 %v10703, %v11098
        %v11104 = vmul.f32 %v10708, %v11098
        %v11105 = vmul.f32 %v10713, %v11098
        %v11106 = vmul.f32 %v10718, %v11098
        %v11107 = vmul.f32 %v10723, %v11098
        %v11108 = vmul.f32 %v10728, %v11098
        %v11109 = vmul.f32 %v10733, %v11098
        %v11110 = vmul.f32 %v10738, %v11098
        %v11111 = vmul.f32 %v10743, %v11098
        %v11112 = vmul.f32 %v10748, %v11098
        %v11113 = vmul.f32 %v10753, %v11098
        %v11114 = vmul.f32 %v10758, %v11098
        %v11115 = vmul.f32 %v10763, %v11098
        %v11116 = vmul.f32 %v10768, %v11098
        %v11117 = vmul.f32 %v10773, %v11098
        %v11118 = vmul.f32 %v10778, %v11098
        %v11119 = vmul.f32 %v10783, %v11098
        %v11120 = vmul.f32 %v10788, %v11098
        %v11121 = vmul.f32 %v10793, %v11098
        %v11122 = vmul.f32 %v10798, %v11098
        %v11123 = vmul.f32 %v10803, %v11098
        %v11124 = vmul.f32 %v10808, %v11098
        %v11125 = vmul.f32 %v10813, %v11098
        %v11126 = vmul.f32 %v10818, %v11098
        %v11127 = vmul.f32 %v10823, %v11098
        %v11128 = vmul.f32 %v10828, %v11098
        %v11129 = vmul.f32 %v10833, %v11098
        %v11130 = vmul.f32 %v10838, %v11098
        %11131 = vst.msk [vmem:[%s246] sm:$0xff] %vm2552, %v11099
        %11132 = vst.msk [vmem:[%s246 + $0x8] sm:$0xff] %vm2552, %v11100
        %11133 = vst.msk [vmem:[%s246 + $0x10] sm:$0xff] %vm2552, %v11101
        %11134 = vst.msk [vmem:[%s246 + $0x18] sm:$0xff] %vm2552, %v11102
        %11135 = vst.msk [vmem:[%s246 + $0x20] sm:$0xff] %vm2552, %v11103
        %11136 = vst.msk [vmem:[%s246 + $0x28] sm:$0xff] %vm2552, %v11104
        %11137 = vst.msk [vmem:[%s246 + $0x30] sm:$0xff] %vm2552, %v11105
        %11138 = vst.msk [vmem:[%s246 + $0x38] sm:$0xff] %vm2552, %v11106
        %11139 = vst.msk [vmem:[%s246 + $0x40] sm:$0xff] %vm2552, %v11107
        %11140 = vst.msk [vmem:[%s246 + $0x48] sm:$0xff] %vm2552, %v11108
        %11141 = vst.msk [vmem:[%s246 + $0x50] sm:$0xff] %vm2552, %v11109
        %11142 = vst.msk [vmem:[%s246 + $0x58] sm:$0xff] %vm2552, %v11110
        %11143 = vst.msk [vmem:[%s246 + $0x60] sm:$0xff] %vm2552, %v11111
        %11144 = vst.msk [vmem:[%s246 + $0x68] sm:$0xff] %vm2552, %v11112
        %11145 = vst.msk [vmem:[%s246 + $0x70] sm:$0xff] %vm2552, %v11113
        %11146 = vst.msk [vmem:[%s246 + $0x78] sm:$0xff] %vm2552, %v11114
        %11147 = vst.msk [vmem:[%s246 + $0x80] sm:$0xff] %vm2552, %v11115
        %11148 = vst.msk [vmem:[%s246 + $0x88] sm:$0xff] %vm2552, %v11116
        %11149 = vst.msk [vmem:[%s246 + $0x90] sm:$0xff] %vm2552, %v11117
        %11150 = vst.msk [vmem:[%s246 + $0x98] sm:$0xff] %vm2552, %v11118
        %11151 = vst.msk [vmem:[%s246 + $0xa0] sm:$0xff] %vm2552, %v11119
        %11152 = vst.msk [vmem:[%s246 + $0xa8] sm:$0xff] %vm2552, %v11120
        %11153 = vst.msk [vmem:[%s246 + $0xb0] sm:$0xff] %vm2552, %v11121
        %11154 = vst.msk [vmem:[%s246 + $0xb8] sm:$0xff] %vm2552, %v11122
        %11155 = vst.msk [vmem:[%s246 + $0xc0] sm:$0xff] %vm2552, %v11123
        %11156 = vst.msk [vmem:[%s246 + $0xc8] sm:$0xff] %vm2552, %v11124
        %11157 = vst.msk [vmem:[%s246 + $0xd0] sm:$0xff] %vm2552, %v11125
        %11158 = vst.msk [vmem:[%s246 + $0xd8] sm:$0xff] %vm2552, %v11126
        %11159 = vst.msk [vmem:[%s246 + $0xe0] sm:$0xff] %vm2552, %v11127
        %11160 = vst.msk [vmem:[%s246 + $0xe8] sm:$0xff] %vm2552, %v11128
        %11161 = vst.msk [vmem:[%s246 + $0xf0] sm:$0xff] %vm2552, %v11129
        %11162 = vst.msk [vmem:[%s246 + $0xf8] sm:$0xff] %vm2552, %v11130
        %s11163 = sand.u32 %s161, 1
        %s11164 = scalar_lea.sflag [#allocation5], %s11163
        %s11165 = sand.u32 %s161, 1
        %s11166 = smul.addr %s11165, 256
        %s11167 = scalar_lea.vmem [#allocation4], %s11166
        // Predicated region
        $region45: #{psa_forward_pallas.1} parent=43 // pred_check
          %p11168 = pneg %p171
        $region46: #{psa_forward_pallas.1} parent=43 // pred_check_branch
          %11170 = sbr.rel (%p11168) target = $region48
        $region47: #{psa_forward_pallas.1} parent=43 // pred_region
          %s11172 = ssub.s32 4096, 4096
          %11173 = vsyncadd %s11164, %s11172
          %s11174 = smul.addr %s22, 32
          %s11175 = smul.addr %s11174, 128
          %s11176 = scalar_lea.hbm %s6, %s11175
          %s11177 = sshll.u32 %s11167, 4
          %s11178 = int_to_ptr.vmem [resolvable:$true] %s11177
          %11183 = dma.vmem_to_hbm [thread:$0]  %s11178, 4096, %s11176, %s11164, 128, 128, 8
        $region48: #{psa_forward_pallas.1} parent=43 // pred_fallthru
          _
      $region44: #{psa_forward_pallas.1} parent=5 // pred_fallthru
        _
      %p11184 = scmp.le.s32.totalorder 2, %s17
      // Predicated region
      $region49: #{psa_forward_pallas.1} parent=5 // pred_check
        %p11185 = pneg %p11184
      $region50: #{psa_forward_pallas.1} parent=5 // pred_check_branch
        %11187 = sbr.rel (%p11185) target = $region52
      $region51: #{psa_forward_pallas.1} parent=5 // pred_region
        %s11188 = ssub.s32 %s17, 2
        // Predicated region
        $region53: #{psa_forward_pallas.1} parent=51 // pred_check
          %p11189 = pneg %p177
        $region54: #{psa_forward_pallas.1} parent=51 // pred_check_branch
          %11191 = sbr.rel (%p11189) target = $region56
        $region55: #{psa_forward_pallas.1} parent=51 // pred_region
          %s11192 = sand.u32 %s162, 1
          %s11193 = scalar_lea.sflag [#allocation5], %s11192
          %s11194 = sand.u32 %s162, 1
          %s11195 = smul.addr %s11194, 256
          %s11196 = scalar_lea.vmem [#allocation4], %s11195
          %11197 = dma.done %s11193, 4096
        $region56: #{psa_forward_pallas.1} parent=51 // pred_fallthru
          _
      $region52: #{psa_forward_pallas.1} parent=5 // pred_fallthru
        _
    $region6: #{psa_forward_pallas.1} parent=1 // loop_footer
      %s21 = sadd.s32 1, %s17
    $region7: #{psa_forward_pallas.1} parent=1 // loop_footer_branch
      %16 = sbr.rel target = $region3
    $region8: #{psa_forward_pallas.1} parent=1 // loop_exit
      _
    %11198 = vsyncpa [#allocation5], 1
    %s11199 = scalar_lea.sflag [#allocation5], 1
    %11200 = vsyncpa %s11199, 1

</llo_original>
